<compile_context>
chip_gen: v7x
topology: tpu7x:2x2x1
jax: 0.10.0
libtpu: 0.0.40
codegen_flags: <defaults>
</compile_context>

<pallas_src>
import math
from functools import partial

import jax
import jax.numpy as jnp
from jax.experimental import pallas as pl
from jax.experimental.pallas import tpu as pltpu

_NEG_INF = -1.0e9                       # torch uses -1e9 for f32 masked_fill
_VMEM_LIMIT = 48 * 1024 * 1024          # explicit scoped-VMEM budget


# --------------------------- in-kernel helpers ------------------------------

def _layer_norm(x, g, b, eps=1e-5):
    mean = jnp.mean(x, axis=-1, keepdims=True)
    var = jnp.mean(jnp.square(x - mean), axis=-1, keepdims=True)
    return (x - mean) * jax.lax.rsqrt(var + eps) * g + b


def _softmax_rows(s):
    m = jnp.max(s, axis=-1, keepdims=True)
    p = jnp.exp(s - m)
    return p * pl.reciprocal(jnp.sum(p, axis=-1, keepdims=True), approx=True)


def _bf16(x):
    return x.astype(jnp.bfloat16)


def _mha(q, k, v, wo_ref, bo, bias, n_heads, acc_ref):
    """Multi-head attention for one (batch, query-tile).

    q:(TQ,D) f32 (1/sqrt(dk) folded into Wq), k,v:(TK,D) f32,
    bias: additive mask broadcastable to (TQ,TK), wo_ref:(D,D) bf16 VMEM ref.
    Heads are dh-wide lane bands contracted at dh width; each per-head context
    goes straight through the matching Wo band and is summed into a VMEM
    scratch accumulator (sum_h ctx_h @ Wo_h == concat_h(ctx_h) @ Wo).
    """
    TQ, D = q.shape
    dh = D // n_heads
    acc_ref[...] = jnp.zeros_like(acc_ref)
    for h in range(n_heads):
        sl = slice(h * dh, (h + 1) * dh)
        s = jax.lax.dot_general(_bf16(q[:, sl]), _bf16(k[:, sl]),
                                (((1,), (1,)), ((), ())),
                                preferred_element_type=jnp.float32)      # (TQ, TK)
        p = _softmax_rows(s + bias)
        ctx = jnp.dot(_bf16(p), _bf16(v[:, sl]),
                      preferred_element_type=jnp.float32)                # (TQ, dh)
        acc_ref[...] += jnp.dot(_bf16(ctx), wo_ref[sl, :],
                                preferred_element_type=jnp.float32)      # (TQ, D)
    return acc_ref[...] + bo


# ----------------------------- Pallas kernels ------------------------------

def _encoder_block_kernel(lens_ref, x_ref, g1_ref, b1_ref, wq_ref, wkv_ref,
                          wo_ref, bo_ref, g2_ref, b2_ref, w1_ref, fb1_ref,
                          w2_ref, fb2_ref, gf_ref, bf_ref, o_ref, acc_ref,
                          *, n_heads, apply_final_ln):
    b = pl.program_id(0)
    t = pl.program_id(1)
    D = x_ref.shape[2]
    TQ = o_ref.shape[1]
    q0 = pl.multiple_of(t * TQ, TQ)

    # pre-LN over the full sequence (for K/V) and over the query tile (for Q/residual)
    xn_full = _layer_norm(x_ref[0], g1_ref[...], b1_ref[...])
    kv = jnp.dot(_bf16(xn_full), wkv_ref[...],
                 preferred_element_type=jnp.float32)                     # fused K|V (T, 2D)
    k, v = kv[:, :D], kv[:, D:]

    xn_q = _layer_norm(x_ref[0, pl.ds(q0, TQ), :], g1_ref[...], b1_ref[...])
    q = jnp.dot(_bf16(xn_q), wq_ref[...], preferred_element_type=jnp.float32)

    # torch masks QUERY rows in the encoder (mask.unsqueeze(-1)): padded query
    # rows become uniform softmax; valid queries attend to every key.
    rows = q0 + jax.lax.broadcasted_iota(jnp.int32, (TQ, 1), 0)
    bias = jnp.where(rows < lens_ref[b], 0.0, _NEG_INF).astype(jnp.float32)

    attn = _mha(q, k, v, wo_ref, bo_ref[...], bias, n_heads, acc_ref)
    z = xn_q + attn                              # residual from normed stream (as in torch)

    zn = _layer_norm(z, g2_ref[...], b2_ref[...])
    h = jnp.maximum(jnp.dot(_bf16(zn), w1_ref[...],
                            preferred_element_type=jnp.float32) + fb1_ref[...], 0.0)
    ff = jnp.dot(_bf16(h), w2_ref[...],
                 preferred_element_type=jnp.float32) + fb2_ref[...]
    out = zn + ff
    if apply_final_ln:                           # fused enc_norm epilogue (last layer only)
        out = _layer_norm(out, gf_ref[...], bf_ref[...])
    o_ref[0] = out


def _decoder_block_kernel(ulen_ref, vlen_ref, x_ref, mem_ref,
                          gm_ref, bm_ref, wq_m_ref, wkv_m_ref, wo_m_ref, bo_m_ref,
                          gc_ref, bc_ref, wq_c_ref, wkv_c_ref, wo_c_ref, bo_c_ref,
                          gf_ref, bf_ref, w1_ref, fb1_ref, w2_ref, fb2_ref,
                          o_ref, acc_ref, *, n_heads, su):
    b = pl.program_id(0)
    t = pl.program_id(1)
    T, D = x_ref.shape[1], x_ref.shape[2]
    S = mem_ref.shape[1]
    TQ = o_ref.shape[1]
    q0 = pl.multiple_of(t * TQ, TQ)

    # ---- masked (causal) self-attention ------------------------------------
    xn_full = _layer_norm(x_ref[0], gm_ref[...], bm_ref[...])
    kv = jnp.dot(_bf16(xn_full), wkv_m_ref[...], preferred_element_type=jnp.float32)
    k_s, v_s = kv[:, :D], kv[:, D:]

    xn_q = _layer_norm(x_ref[0, pl.ds(q0, TQ), :], gm_ref[...], bm_ref[...])
    q_s = jnp.dot(_bf16(xn_q), wq_m_ref[...], preferred_element_type=jnp.float32)

    rows = q0 + jax.lax.broadcasted_iota(jnp.int32, (TQ, T), 0)
    cols = jax.lax.broadcasted_iota(jnp.int32, (TQ, T), 1)
    causal_bias = jnp.where(rows >= cols, 0.0, _NEG_INF).astype(jnp.float32)

    attn = _mha(q_s, k_s, v_s, wo_m_ref, bo_m_ref[...], causal_bias, n_heads, acc_ref)
    z = xn_q + attn

    # ---- cross-attention over encoder memory --------------------------------
    zn = _layer_norm(z, gc_ref[...], bc_ref[...])
    q_c = jnp.dot(_bf16(zn), wq_c_ref[...], preferred_element_type=jnp.float32)
    kv_c = jnp.dot(_bf16(mem_ref[0]), wkv_c_ref[...], preferred_element_type=jnp.float32)
    k_c, v_c = kv_c[:, :D], kv_c[:, D:]

    # key-column padding mask rebuilt in-kernel from the (u, v) prefix lengths
    col = jax.lax.broadcasted_iota(jnp.int32, (1, S), 1)
    valid = jnp.logical_or(col < ulen_ref[b],
                           jnp.logical_and(col >= su, col < su + vlen_ref[b]))
    cross_bias = jnp.where(valid, 0.0, _NEG_INF).astype(jnp.float32)

    cross = _mha(q_c, k_c, v_c, wo_c_ref, bo_c_ref[...], cross_bias, n_heads, acc_ref)
    c = zn + cross

    # ---- feed-forward --------------------------------------------------------
    cn = _layer_norm(c, gf_ref[...], bf_ref[...])
    h = jnp.maximum(jnp.dot(_bf16(cn), w1_ref[...],
                            preferred_element_type=jnp.float32) + fb1_ref[...], 0.0)
    ff = jnp.dot(_bf16(h), w2_ref[...],
                 preferred_element_type=jnp.float32) + fb2_ref[...]
    o_ref[0] = cn + ff


def _final_kernel(x_ref, g_ref, b_ref, w_ref, wb_ref, o_ref):
    xn = _layer_norm(x_ref[0], g_ref[...], b_ref[...])
    o_ref[0] = jnp.dot(_bf16(xn), w_ref[...],
                       preferred_element_type=jnp.float32) + wb_ref[...]


# ----------------------------- call wrappers --------------------------------

def _const_spec(block):
    zero = (0,) * len(block)
    return pl.BlockSpec(block, lambda *_args, _z=zero: _z)


def _pick_q_tile(T, tq=128):
    if T <= tq:
        return T
    # TODO(synk): pad T to a multiple of the query tile for ragged sequence lengths.
    assert T % tq == 0, "sequence length must divide the query tile"
    return tq


def encoder_block(p, x, lens, enc_g, enc_b, n_heads, apply_final_ln):
    B, T, D = x.shape
    F = p["ff"]["w1"].shape[1]
    TQ = _pick_q_tile(T)
    a, f = p["attn"], p["ff"]
    return pl.pallas_call(
        partial(_encoder_block_kernel, n_heads=n_heads, apply_final_ln=apply_final_ln),
        out_shape=jax.ShapeDtypeStruct((B, T, D), jnp.float32),
        grid_spec=pltpu.PrefetchScalarGridSpec(
            num_scalar_prefetch=1,
            grid=(B, T // TQ),
            in_specs=[
                pl.BlockSpec((1, T, D), lambda b, t, *_: (b, 0, 0)),   # x (full seq: K/V)
                _const_spec((1, D)), _const_spec((1, D)),              # ln_attn g, b
                _const_spec((D, D)),                                   # Wq (scale folded)
                _const_spec((D, 2 * D)),                               # fused Wk|Wv
                _const_spec((D, D)), _const_spec((1, D)),              # Wo, bo
                _const_spec((1, D)), _const_spec((1, D)),              # ln_ff g, b
                _const_spec((D, F)), _const_spec((1, F)),              # W1, b1
                _const_spec((F, D)), _const_spec((1, D)),              # W2, b2
                _const_spec((1, D)), _const_spec((1, D)),              # enc_norm g, b (fused)
            ],
            out_specs=pl.BlockSpec((1, TQ, D), lambda b, t, *_: (b, t, 0)),
            scratch_shapes=[pltpu.VMEM((TQ, D), jnp.float32)],
        ),
        compiler_params=pltpu.CompilerParams(
            dimension_semantics=("parallel", "parallel"),
            vmem_limit_bytes=_VMEM_LIMIT),
    )(lens, x, p["ln_attn_g"], p["ln_attn_b"], a["wq"], a["wkv"], a["wo"], a["bo"],
      p["ln_ff_g"], p["ln_ff_b"], f["w1"], f["b1"], f["w2"], f["b2"], enc_g, enc_b)


def decoder_block(p, x, mem, u_lens, v_lens, su, n_heads):
    B, T, D = x.shape
    S = mem.shape[1]
    F = p["ff"]["w1"].shape[1]
    TQ = _pick_q_tile(T)
    ma, ca, f = p["masked_attn"], p["cross_attn"], p["ff"]
    return pl.pallas_call(
        partial(_decoder_block_kernel, n_heads=n_heads, su=su),
        out_shape=jax.ShapeDtypeStruct((B, T, D), jnp.float32),
        grid_spec=pltpu.PrefetchScalarGridSpec(
            num_scalar_prefetch=2,
            grid=(B, T // TQ),
            in_specs=[
                pl.BlockSpec((1, T, D), lambda b, t, *_: (b, 0, 0)),   # x (full seq)
                pl.BlockSpec((1, S, D), lambda b, t, *_: (b, 0, 0)),   # encoder memory
                _const_spec((1, D)), _const_spec((1, D)),              # ln_masked
                _const_spec((D, D)), _const_spec((D, 2 * D)),          # Wq, Wk|Wv (self)
                _const_spec((D, D)), _const_spec((1, D)),              # Wo, bo (self)
                _const_spec((1, D)), _const_spec((1, D)),              # ln_cross
                _const_spec((D, D)), _const_spec((D, 2 * D)),          # Wq, Wk|Wv (cross)
                _const_spec((D, D)), _const_spec((1, D)),              # Wo, bo (cross)
                _const_spec((1, D)), _const_spec((1, D)),              # ln_ff
                _const_spec((D, F)), _const_spec((1, F)),              # W1, b1
                _const_spec((F, D)), _const_spec((1, D)),              # W2, b2
            ],
            out_specs=pl.BlockSpec((1, TQ, D), lambda b, t, *_: (b, t, 0)),
            scratch_shapes=[pltpu.VMEM((TQ, D), jnp.float32)],
        ),
        compiler_params=pltpu.CompilerParams(
            dimension_semantics=("parallel", "parallel"),
            vmem_limit_bytes=_VMEM_LIMIT),
    )(u_lens, v_lens, x, mem,
      p["ln_masked_g"], p["ln_masked_b"], ma["wq"], ma["wkv"], ma["wo"], ma["bo"],
      p["ln_cross_g"], p["ln_cross_b"], ca["wq"], ca["wkv"], ca["wo"], ca["bo"],
      p["ln_ff_g"], p["ln_ff_b"], f["w1"], f["b1"], f["w2"], f["b2"])


def final_projection(x, g, b, w_pad, b_pad):
    """Fused dec-LayerNorm + output projection; lane-dense (128-padded) vocab."""
    B, T, D = x.shape
    Vp = w_pad.shape[1]
    return pl.pallas_call(
        _final_kernel,
        out_shape=jax.ShapeDtypeStruct((B, T, Vp), jnp.float32),
        grid=(B,),
        in_specs=[
            pl.BlockSpec((1, T, D), lambda i: (i, 0, 0)),
            _const_spec((1, D)), _const_spec((1, D)),
            _const_spec((D, Vp)), _const_spec((1, Vp)),
        ],
        out_specs=pl.BlockSpec((1, T, Vp), lambda i: (i, 0, 0)),
        compiler_params=pltpu.CompilerParams(
            dimension_semantics=("parallel",),
            vmem_limit_bytes=_VMEM_LIMIT),
    )(x, g, b, w_pad, b_pad)


# ----------------------------- model glue ----------------------------------

def token_embed(word_w, pos_w, embed_scale, tokens):
    # TODO(synk): token-embedding gather stays as jnp.take glue outside the kernels.
    T = tokens.shape[1]
    word = jnp.take(word_w, tokens, axis=0)
    return pos_w[:T][None, :, :] + word * embed_scale


def encoder_decoder_forward(params, u, v, tgt, u_mask, v_mask, n_heads, tgt_vocab):
    es = params["embed_scale"]
    # TODO(synk): masks are assumed to be prefix (length) masks; lengths are
    #             scalar-prefetched and the masks rebuilt in-kernel with iota.
    u_lens = jnp.sum(u_mask.astype(jnp.int32), axis=-1)
    v_lens = jnp.sum(v_mask.astype(jnp.int32), axis=-1)

    def encode(tokens, lens):
        e = token_embed(params["src_word_embed"], params["pos_embed"], es, tokens)
        n = len(params["encoder_stack"])
        for i, p in enumerate(params["encoder_stack"]):
            e = encoder_block(p, e, lens, params["enc_norm_g"], params["enc_norm_b"],
                              n_heads, apply_final_ln=(i == n - 1))
        return e

    ue = encode(u, u_lens)
    ve = encode(v, v_lens)
    mem = jnp.concatenate([ue, ve], axis=1)

    te = token_embed(params["tgt_word_embed"], params["pos_embed"], es, tgt)
    for p in params["decoder_stack"]:
        te = decoder_block(p, te, mem, u_lens, v_lens, u.shape[1], n_heads)

    logits_pad = final_projection(te, params["dec_norm_g"], params["dec_norm_b"],
                                  params["out_w_pad"], params["out_b_pad"])
    return logits_pad[..., :tgt_vocab]


# ----------------------------- deterministic init --------------------------

def init_params(key, src_vocab, tgt_vocab, max_seq_len, d_model, n_heads,
                n_enc_layers, n_dec_layers, dim_ff):
    keys = iter(jax.random.split(key, 512))

    def nrm(shape, std):
        return (std * jax.random.normal(next(keys), shape)).astype(jnp.float32)

    qk_std = math.sqrt(2.0 / (d_model + d_model // n_heads))
    lin_std = 1.0 / math.sqrt(d_model)
    inv_scale = 1.0 / math.sqrt(d_model)   # torch: scores / sqrt(dk), dk = qk_dim = d_model

    def attn_params():
        wq = nrm((d_model, d_model), qk_std) * inv_scale       # fold 1/sqrt(dk) into Wq
        wk = nrm((d_model, d_model), qk_std)
        wv = nrm((d_model, d_model), lin_std)
        return dict(
            wq=wq.astype(jnp.bfloat16),
            wkv=jnp.concatenate([wk, wv], axis=1).astype(jnp.bfloat16),  # fused (D, 2D)
            wo=nrm((d_model, d_model), lin_std).astype(jnp.bfloat16),
            bo=jnp.zeros((1, d_model), jnp.float32),
        )

    def ff_params():
        return dict(
            w1=nrm((d_model, dim_ff), lin_std).astype(jnp.bfloat16),
            b1=jnp.zeros((1, dim_ff), jnp.float32),
            w2=nrm((dim_ff, d_model), 1.0 / math.sqrt(dim_ff)).astype(jnp.bfloat16),
            b2=jnp.zeros((1, d_model), jnp.float32),
        )

    ones = lambda: jnp.ones((1, d_model), jnp.float32)
    zeros = lambda: jnp.zeros((1, d_model), jnp.float32)

    def enc_layer():
        return dict(attn=attn_params(), ff=ff_params(),
                    ln_attn_g=ones(), ln_attn_b=zeros(),
                    ln_ff_g=ones(), ln_ff_b=zeros())

    def dec_layer():
        return dict(masked_attn=attn_params(), cross_attn=attn_params(), ff=ff_params(),
                    ln_masked_g=ones(), ln_masked_b=zeros(),
                    ln_cross_g=ones(), ln_cross_b=zeros(),
                    ln_ff_g=ones(), ln_ff_b=zeros())

    scale = math.sqrt(d_model)
    v_pad = ((tgt_vocab + 127) // 128) * 128                   # lane-dense out projection
    out_w = nrm((d_model, tgt_vocab), lin_std)
    out_b = jnp.zeros((tgt_vocab,), jnp.float32)

    return dict(
        pos_embed=nrm((max_seq_len, d_model), 1.0),
        src_word_embed=nrm((src_vocab, d_model), 1.0 / scale),
        tgt_word_embed=nrm((tgt_vocab, d_model), 1.0 / scale),
        # torch: register_buffer('scale', sqrt(FloatTensor([sqrt(d_model)]))) -> d_model**0.25
        embed_scale=jnp.float32(d_model ** 0.25),
        encoder_stack=[enc_layer() for _ in range(n_enc_layers)],
        decoder_stack=[dec_layer() for _ in range(n_dec_layers)],
        enc_norm_g=ones(), enc_norm_b=zeros(),
        dec_norm_g=ones(), dec_norm_b=zeros(),
        out_w_pad=jnp.pad(out_w, ((0, 0), (0, v_pad - tgt_vocab))).astype(jnp.bfloat16),
        out_b_pad=jnp.pad(out_b, (0, v_pad - tgt_vocab)).reshape(1, v_pad),
    )


# ----------------------------------- main -----------------------------------

if __name__ == "__main__":
    src_vocab, tgt_vocab = 50, 40
    max_seq_len = 32
    d_model, n_heads = 32, 4
    n_enc_layers, n_dec_layers = 2, 2
    dim_ff = 64
    B, Su, Sv, Tt = 2, 8, 8, 8

    root = jax.random.PRNGKey(0)
    k_par, k_u, k_v, k_t = jax.random.split(root, 4)

    params = init_params(k_par, src_vocab, tgt_vocab, max_seq_len, d_model,
                         n_heads, n_enc_layers, n_dec_layers, dim_ff)

    u = jax.random.randint(k_u, (B, Su), 0, src_vocab, dtype=jnp.int32)
    v = jax.random.randint(k_v, (B, Sv), 0, src_vocab, dtype=jnp.int32)
    tgt = jax.random.randint(k_t, (B, Tt), 0, tgt_vocab, dtype=jnp.int32)
    u_lens = jnp.array([Su, Su - 2], dtype=jnp.int32)
    v_lens = jnp.array([Sv - 1, Sv], dtype=jnp.int32)
    u_mask = jnp.arange(Su)[None, :] < u_lens[:, None]
    v_mask = jnp.arange(Sv)[None, :] < v_lens[:, None]

    fwd = jax.jit(partial(encoder_decoder_forward, n_heads=n_heads, tgt_vocab=tgt_vocab))
    logits = fwd(params, u, v, tgt, u_mask, v_mask)
    jax.block_until_ready(logits)

    assert logits.shape == (B, Tt, tgt_vocab)
    assert bool(jnp.all(jnp.isfinite(logits)))
    print("KERNEL_OK")
</pallas_src>

<mosaic_0001>
module attributes {stable_mosaic.version = 11 : i64} {
  func.func @_encoder_block_kernel(%arg0: i32, %arg1: i32, %arg2: memref<2xi32, #tpu.memory_space<smem>>, %arg3: memref<1x8x32xf32, #tpu.memory_space<vmem>>, %arg4: memref<1x32xf32, #tpu.memory_space<vmem>>, %arg5: memref<1x32xf32, #tpu.memory_space<vmem>>, %arg6: memref<32x32xbf16, #tpu.memory_space<vmem>>, %arg7: memref<32x64xbf16, #tpu.memory_space<vmem>>, %arg8: memref<32x32xbf16, #tpu.memory_space<vmem>>, %arg9: memref<1x32xf32, #tpu.memory_space<vmem>>, %arg10: memref<1x32xf32, #tpu.memory_space<vmem>>, %arg11: memref<1x32xf32, #tpu.memory_space<vmem>>, %arg12: memref<32x64xbf16, #tpu.memory_space<vmem>>, %arg13: memref<1x64xf32, #tpu.memory_space<vmem>>, %arg14: memref<64x32xbf16, #tpu.memory_space<vmem>>, %arg15: memref<1x32xf32, #tpu.memory_space<vmem>>, %arg16: memref<1x32xf32, #tpu.memory_space<vmem>>, %arg17: memref<1x32xf32, #tpu.memory_space<vmem>>, %arg18: memref<1x8x32xf32, #tpu.memory_space<vmem>>, %arg19: memref<8x32xf32, #tpu.memory_space<vmem>>) attributes {dimension_semantics = [#tpu.dimension_semantics<parallel>, #tpu.dimension_semantics<parallel>], iteration_bounds = array<i64: 2, 1>, scalar_prefetch = 1 : i64, scratch_operands = 1 : i64, tpu.core_type = #tpu.core_type<tc>, window_params = [{transform_indices = @transform_0, window_bounds = array<i64: 1, 8, 32>}, {pipeline_mode = #tpu.pipeline_mode<synchronous>, transform_indices = @transform_1, window_bounds = array<i64: 1, 32>}, {pipeline_mode = #tpu.pipeline_mode<synchronous>, transform_indices = @transform_2, window_bounds = array<i64: 1, 32>}, {pipeline_mode = #tpu.pipeline_mode<synchronous>, transform_indices = @transform_3, window_bounds = array<i64: 32, 32>}, {pipeline_mode = #tpu.pipeline_mode<synchronous>, transform_indices = @transform_4, window_bounds = array<i64: 32, 64>}, {pipeline_mode = #tpu.pipeline_mode<synchronous>, transform_indices = @transform_5, window_bounds = array<i64: 32, 32>}, {pipeline_mode = #tpu.pipeline_mode<synchronous>, transform_indices = @transform_6, window_bounds = array<i64: 1, 32>}, {pipeline_mode = #tpu.pipeline_mode<synchronous>, transform_indices = @transform_7, window_bounds = array<i64: 1, 32>}, {pipeline_mode = #tpu.pipeline_mode<synchronous>, transform_indices = @transform_8, window_bounds = array<i64: 1, 32>}, {pipeline_mode = #tpu.pipeline_mode<synchronous>, transform_indices = @transform_9, window_bounds = array<i64: 32, 64>}, {pipeline_mode = #tpu.pipeline_mode<synchronous>, transform_indices = @transform_10, window_bounds = array<i64: 1, 64>}, {pipeline_mode = #tpu.pipeline_mode<synchronous>, transform_indices = @transform_11, window_bounds = array<i64: 64, 32>}, {pipeline_mode = #tpu.pipeline_mode<synchronous>, transform_indices = @transform_12, window_bounds = array<i64: 1, 32>}, {pipeline_mode = #tpu.pipeline_mode<synchronous>, transform_indices = @transform_13, window_bounds = array<i64: 1, 32>}, {pipeline_mode = #tpu.pipeline_mode<synchronous>, transform_indices = @transform_14, window_bounds = array<i64: 1, 32>}, {transform_indices = @transform_15, window_bounds = array<i64: 1, 8, 32>}]} {
    %c8_i32 = arith.constant 8 : i32
    %0 = arith.muli %arg1, %c8_i32 : i32
    %1 = tpu.assume_multiple %0, 8 : i32
    %c0 = arith.constant 0 : index
    %c0_0 = arith.constant 0 : index
    %c0_1 = arith.constant 0 : index
    %2 = vector.load %arg3[%c0, %c0_0, %c0_1] : memref<1x8x32xf32, #tpu.memory_space<vmem>>, vector<1x8x32xf32>
    %3 = vector.shape_cast %2 : vector<1x8x32xf32> to vector<8x32xf32>
    %c0_2 = arith.constant 0 : index
    %c0_3 = arith.constant 0 : index
    %4 = vector.load %arg4[%c0_2, %c0_3] : memref<1x32xf32, #tpu.memory_space<vmem>>, vector<1x32xf32>
    %c0_4 = arith.constant 0 : index
    %c0_5 = arith.constant 0 : index
    %5 = vector.load %arg5[%c0_4, %c0_5] : memref<1x32xf32, #tpu.memory_space<vmem>>, vector<1x32xf32>
    %cst = arith.constant dense<0.000000e+00> : vector<8xf32>
    %6 = vector.multi_reduction <add>, %3, %cst [1] : vector<8x32xf32> to vector<8xf32>
    %7 = vector.shape_cast %6 : vector<8xf32> to vector<8x1xf32>
    %cst_6 = arith.constant 3.200000e+01 : f32
    %8 = vector.broadcast %cst_6 : f32 to vector<8x1xf32>
    %9 = arith.divf %7, %8 : vector<8x1xf32>
    %10 = vector.broadcast %9 : vector<8x1xf32> to vector<8x32xf32>
    %11 = arith.subf %3, %10 : vector<8x32xf32>
    %12 = arith.mulf %11, %11 : vector<8x32xf32>
    %cst_7 = arith.constant dense<0.000000e+00> : vector<8xf32>
    %13 = vector.multi_reduction <add>, %12, %cst_7 [1] : vector<8x32xf32> to vector<8xf32>
    %14 = vector.shape_cast %13 : vector<8xf32> to vector<8x1xf32>
    %cst_8 = arith.constant 3.200000e+01 : f32
    %15 = vector.broadcast %cst_8 : f32 to vector<8x1xf32>
    %16 = arith.divf %14, %15 : vector<8x1xf32>
    %17 = vector.broadcast %9 : vector<8x1xf32> to vector<8x32xf32>
    %18 = arith.subf %3, %17 : vector<8x32xf32>
    %cst_9 = arith.constant 9.99999974E-6 : f32
    %19 = vector.broadcast %cst_9 : f32 to vector<8x1xf32>
    %20 = arith.addf %16, %19 : vector<8x1xf32>
    %21 = math.rsqrt %20 : vector<8x1xf32>
    %22 = vector.broadcast %21 : vector<8x1xf32> to vector<8x32xf32>
    %23 = arith.mulf %18, %22 : vector<8x32xf32>
    %24 = vector.broadcast %4 : vector<1x32xf32> to vector<8x32xf32>
    %25 = arith.mulf %23, %24 : vector<8x32xf32>
    %26 = vector.broadcast %5 : vector<1x32xf32> to vector<8x32xf32>
    %27 = arith.addf %25, %26 : vector<8x32xf32>
    %28 = arith.truncf %27 : vector<8x32xf32> to vector<8x32xbf16>
    %c0_10 = arith.constant 0 : index
    %c0_11 = arith.constant 0 : index
    %29 = vector.load %arg7[%c0_10, %c0_11] : memref<32x64xbf16, #tpu.memory_space<vmem>>, vector<32x64xbf16>
    %cst_12 = arith.constant dense<0.000000e+00> : vector<8x64xf32>
    %30 = tpu.matmul %28, %29, %cst_12 {dimension_numbers = #tpu.dot_dimension_numbers<[1], [0], [0], [1], [0, 0, 1, 1], [], []>} : vector<8x32xbf16>, vector<32x64xbf16>, vector<8x64xf32> -> vector<8x64xf32>
    %31 = vector.extract_strided_slice %30 {offsets = [0, 0], sizes = [8, 32], strides = [1, 1]} : vector<8x64xf32> to vector<8x32xf32>
    %32 = vector.extract_strided_slice %30 {offsets = [0, 32], sizes = [8, 32], strides = [1, 1]} : vector<8x64xf32> to vector<8x32xf32>
    %c0_13 = arith.constant 0 : index
    %33 = arith.index_cast %1 : i32 to index
    %c0_14 = arith.constant 0 : index
    %34 = vector.load %arg3[%c0_13, %33, %c0_14] : memref<1x8x32xf32, #tpu.memory_space<vmem>>, vector<1x8x32xf32>
    %35 = vector.shape_cast %34 : vector<1x8x32xf32> to vector<8x32xf32>
    %c0_15 = arith.constant 0 : index
    %c0_16 = arith.constant 0 : index
    %36 = vector.load %arg4[%c0_15, %c0_16] : memref<1x32xf32, #tpu.memory_space<vmem>>, vector<1x32xf32>
    %c0_17 = arith.constant 0 : index
    %c0_18 = arith.constant 0 : index
    %37 = vector.load %arg5[%c0_17, %c0_18] : memref<1x32xf32, #tpu.memory_space<vmem>>, vector<1x32xf32>
    %cst_19 = arith.constant dense<0.000000e+00> : vector<8xf32>
    %38 = vector.multi_reduction <add>, %35, %cst_19 [1] : vector<8x32xf32> to vector<8xf32>
    %39 = vector.shape_cast %38 : vector<8xf32> to vector<8x1xf32>
    %cst_20 = arith.constant 3.200000e+01 : f32
    %40 = vector.broadcast %cst_20 : f32 to vector<8x1xf32>
    %41 = arith.divf %39, %40 : vector<8x1xf32>
    %42 = vector.broadcast %41 : vector<8x1xf32> to vector<8x32xf32>
    %43 = arith.subf %35, %42 : vector<8x32xf32>
    %44 = arith.mulf %43, %43 : vector<8x32xf32>
    %cst_21 = arith.constant dense<0.000000e+00> : vector<8xf32>
    %45 = vector.multi_reduction <add>, %44, %cst_21 [1] : vector<8x32xf32> to vector<8xf32>
    %46 = vector.shape_cast %45 : vector<8xf32> to vector<8x1xf32>
    %cst_22 = arith.constant 3.200000e+01 : f32
    %47 = vector.broadcast %cst_22 : f32 to vector<8x1xf32>
    %48 = arith.divf %46, %47 : vector<8x1xf32>
    %49 = vector.broadcast %41 : vector<8x1xf32> to vector<8x32xf32>
    %50 = arith.subf %35, %49 : vector<8x32xf32>
    %cst_23 = arith.constant 9.99999974E-6 : f32
    %51 = vector.broadcast %cst_23 : f32 to vector<8x1xf32>
    %52 = arith.addf %48, %51 : vector<8x1xf32>
    %53 = math.rsqrt %52 : vector<8x1xf32>
    %54 = vector.broadcast %53 : vector<8x1xf32> to vector<8x32xf32>
    %55 = arith.mulf %50, %54 : vector<8x32xf32>
    %56 = vector.broadcast %36 : vector<1x32xf32> to vector<8x32xf32>
    %57 = arith.mulf %55, %56 : vector<8x32xf32>
    %58 = vector.broadcast %37 : vector<1x32xf32> to vector<8x32xf32>
    %59 = arith.addf %57, %58 : vector<8x32xf32>
    %60 = arith.truncf %59 : vector<8x32xf32> to vector<8x32xbf16>
    %c0_24 = arith.constant 0 : index
    %c0_25 = arith.constant 0 : index
    %61 = vector.load %arg6[%c0_24, %c0_25] : memref<32x32xbf16, #tpu.memory_space<vmem>>, vector<32x32xbf16>
    %cst_26 = arith.constant dense<0.000000e+00> : vector<8x32xf32>
    %62 = tpu.matmul %60, %61, %cst_26 {dimension_numbers = #tpu.dot_dimension_numbers<[1], [0], [0], [1], [0, 0, 1, 1], [], []>} : vector<8x32xbf16>, vector<32x32xbf16>, vector<8x32xf32> -> vector<8x32xf32>
    %63 = tpu.iota {dimensions = array<i32: 0>} : vector<8x1xi32>
    %64 = vector.broadcast %1 : i32 to vector<8x1xi32>
    %65 = arith.addi %64, %63 : vector<8x1xi32>
    %66 = arith.index_cast %arg0 : i32 to index
    %67 = memref.load %arg2[%66] : memref<2xi32, #tpu.memory_space<smem>>
    %68 = vector.broadcast %67 : i32 to vector<8x1xi32>
    %69 = arith.cmpi slt, %65, %68 : vector<8x1xi32>
    %cst_27 = arith.constant 0.000000e+00 : f32
    %cst_28 = arith.constant -1.000000e+09 : f32
    %70 = vector.broadcast %cst_27 : f32 to vector<8x1xf32>
    %71 = vector.broadcast %cst_28 : f32 to vector<8x1xf32>
    %72 = arith.select %69, %70, %71 : vector<8x1xi1>, vector<8x1xf32>
    %c0_29 = arith.constant 0 : index
    %c0_30 = arith.constant 0 : index
    %73 = vector.load %arg9[%c0_29, %c0_30] : memref<1x32xf32, #tpu.memory_space<vmem>>, vector<1x32xf32>
    %cst_31 = arith.constant 0.000000e+00 : f32
    %74 = vector.broadcast %cst_31 : f32 to vector<8x32xf32>
    %c0_32 = arith.constant 0 : index
    %c0_33 = arith.constant 0 : index
    %75 = vector.load %arg19[%c0_32, %c0_33] : memref<8x32xf32, #tpu.memory_space<vmem>>, vector<8x32xf32>
    tpu.vector_store %arg19[%c0_32, %c0_33], %74 {strides = array<i32>} : memref<8x32xf32, #tpu.memory_space<vmem>>, vector<8x32xf32>,
    %76 = vector.extract_strided_slice %62 {offsets = [0, 0], sizes = [8, 8], strides = [1, 1]} : vector<8x32xf32> to vector<8x8xf32>
    %77 = arith.truncf %76 : vector<8x8xf32> to vector<8x8xbf16>
    %78 = vector.extract_strided_slice %31 {offsets = [0, 0], sizes = [8, 8], strides = [1, 1]} : vector<8x32xf32> to vector<8x8xf32>
    %79 = arith.truncf %78 : vector<8x8xf32> to vector<8x8xbf16>
    %cst_34 = arith.constant dense<0.000000e+00> : vector<8x8xf32>
    %80 = tpu.matmul %77, %79, %cst_34 {dimension_numbers = #tpu.dot_dimension_numbers<[1], [1], [0], [0], [0, 0, 1, 0], [], []>} : vector<8x8xbf16>, vector<8x8xbf16>, vector<8x8xf32> -> vector<8x8xf32>
    %81 = vector.broadcast %72 : vector<8x1xf32> to vector<8x8xf32>
    %82 = arith.addf %80, %81 : vector<8x8xf32>
    %cst_35 = arith.constant dense<0xFF800000> : vector<8xf32>
    %83 = vector.multi_reduction <maximumf>, %82, %cst_35 [1] : vector<8x8xf32> to vector<8xf32>
    %84 = vector.shape_cast %83 : vector<8xf32> to vector<8x1xf32>
    %85 = vector.broadcast %84 : vector<8x1xf32> to vector<8x8xf32>
    %86 = arith.subf %82, %85 : vector<8x8xf32>
    %87 = math.exp %86 : vector<8x8xf32>
    %cst_36 = arith.constant dense<0.000000e+00> : vector<8xf32>
    %88 = vector.multi_reduction <add>, %87, %cst_36 [1] : vector<8x8xf32> to vector<8xf32>
    %89 = vector.shape_cast %88 : vector<8xf32> to vector<8x1xf32>
    %90 = tpu.reciprocal %89 {approx = true} : vector<8x1xf32> -> vector<8x1xf32>
    %91 = vector.broadcast %90 : vector<8x1xf32> to vector<8x8xf32>
    %92 = arith.mulf %87, %91 : vector<8x8xf32>
    %93 = arith.truncf %92 : vector<8x8xf32> to vector<8x8xbf16>
    %94 = vector.extract_strided_slice %32 {offsets = [0, 0], sizes = [8, 8], strides = [1, 1]} : vector<8x32xf32> to vector<8x8xf32>
    %95 = arith.truncf %94 : vector<8x8xf32> to vector<8x8xbf16>
    %cst_37 = arith.constant dense<0.000000e+00> : vector<8x8xf32>
    %96 = tpu.matmul %93, %95, %cst_37 {dimension_numbers = #tpu.dot_dimension_numbers<[1], [0], [0], [1], [0, 0, 1, 1], [], []>} : vector<8x8xbf16>, vector<8x8xbf16>, vector<8x8xf32> -> vector<8x8xf32>
    %c0_38 = arith.constant 0 : index
    %c0_39 = arith.constant 0 : index
    %97 = vector.load %arg19[%c0_38, %c0_39] : memref<8x32xf32, #tpu.memory_space<vmem>>, vector<8x32xf32>
    %98 = arith.truncf %96 : vector<8x8xf32> to vector<8x8xbf16>
    %c0_40 = arith.constant 0 : index
    %c0_41 = arith.constant 0 : index
    %99 = vector.load %arg8[%c0_40, %c0_41] : memref<32x32xbf16, #tpu.memory_space<vmem>>, vector<8x32xbf16>
    %cst_42 = arith.constant dense<0.000000e+00> : vector<8x32xf32>
    %100 = tpu.matmul %98, %99, %cst_42 {dimension_numbers = #tpu.dot_dimension_numbers<[1], [0], [0], [1], [0, 0, 1, 1], [], []>} : vector<8x8xbf16>, vector<8x32xbf16>, vector<8x32xf32> -> vector<8x32xf32>
    %101 = arith.addf %97, %100 : vector<8x32xf32>
    %c0_43 = arith.constant 0 : index
    %c0_44 = arith.constant 0 : index
    %102 = vector.load %arg19[%c0_43, %c0_44] : memref<8x32xf32, #tpu.memory_space<vmem>>, vector<8x32xf32>
    tpu.vector_store %arg19[%c0_43, %c0_44], %101 {strides = array<i32>} : memref<8x32xf32, #tpu.memory_space<vmem>>, vector<8x32xf32>,
    %103 = vector.extract_strided_slice %62 {offsets = [0, 8], sizes = [8, 8], strides = [1, 1]} : vector<8x32xf32> to vector<8x8xf32>
    %104 = arith.truncf %103 : vector<8x8xf32> to vector<8x8xbf16>
    %105 = vector.extract_strided_slice %31 {offsets = [0, 8], sizes = [8, 8], strides = [1, 1]} : vector<8x32xf32> to vector<8x8xf32>
    %106 = arith.truncf %105 : vector<8x8xf32> to vector<8x8xbf16>
    %cst_45 = arith.constant dense<0.000000e+00> : vector<8x8xf32>
    %107 = tpu.matmul %104, %106, %cst_45 {dimension_numbers = #tpu.dot_dimension_numbers<[1], [1], [0], [0], [0, 0, 1, 0], [], []>} : vector<8x8xbf16>, vector<8x8xbf16>, vector<8x8xf32> -> vector<8x8xf32>
    %108 = vector.broadcast %72 : vector<8x1xf32> to vector<8x8xf32>
    %109 = arith.addf %107, %108 : vector<8x8xf32>
    %cst_46 = arith.constant dense<0xFF800000> : vector<8xf32>
    %110 = vector.multi_reduction <maximumf>, %109, %cst_46 [1] : vector<8x8xf32> to vector<8xf32>
    %111 = vector.shape_cast %110 : vector<8xf32> to vector<8x1xf32>
    %112 = vector.broadcast %111 : vector<8x1xf32> to vector<8x8xf32>
    %113 = arith.subf %109, %112 : vector<8x8xf32>
    %114 = math.exp %113 : vector<8x8xf32>
    %cst_47 = arith.constant dense<0.000000e+00> : vector<8xf32>
    %115 = vector.multi_reduction <add>, %114, %cst_47 [1] : vector<8x8xf32> to vector<8xf32>
    %116 = vector.shape_cast %115 : vector<8xf32> to vector<8x1xf32>
    %117 = tpu.reciprocal %116 {approx = true} : vector<8x1xf32> -> vector<8x1xf32>
    %118 = vector.broadcast %117 : vector<8x1xf32> to vector<8x8xf32>
    %119 = arith.mulf %114, %118 : vector<8x8xf32>
    %120 = arith.truncf %119 : vector<8x8xf32> to vector<8x8xbf16>
    %121 = vector.extract_strided_slice %32 {offsets = [0, 8], sizes = [8, 8], strides = [1, 1]} : vector<8x32xf32> to vector<8x8xf32>
    %122 = arith.truncf %121 : vector<8x8xf32> to vector<8x8xbf16>
    %cst_48 = arith.constant dense<0.000000e+00> : vector<8x8xf32>
    %123 = tpu.matmul %120, %122, %cst_48 {dimension_numbers = #tpu.dot_dimension_numbers<[1], [0], [0], [1], [0, 0, 1, 1], [], []>} : vector<8x8xbf16>, vector<8x8xbf16>, vector<8x8xf32> -> vector<8x8xf32>
    %c0_49 = arith.constant 0 : index
    %c0_50 = arith.constant 0 : index
    %124 = vector.load %arg19[%c0_49, %c0_50] : memref<8x32xf32, #tpu.memory_space<vmem>>, vector<8x32xf32>
    %125 = arith.truncf %123 : vector<8x8xf32> to vector<8x8xbf16>
    %c8 = arith.constant 8 : index
    %c0_51 = arith.constant 0 : index
    %126 = vector.load %arg8[%c8, %c0_51] : memref<32x32xbf16, #tpu.memory_space<vmem>>, vector<8x32xbf16>
    %cst_52 = arith.constant dense<0.000000e+00> : vector<8x32xf32>
    %127 = tpu.matmul %125, %126, %cst_52 {dimension_numbers = #tpu.dot_dimension_numbers<[1], [0], [0], [1], [0, 0, 1, 1], [], []>} : vector<8x8xbf16>, vector<8x32xbf16>, vector<8x32xf32> -> vector<8x32xf32>
    %128 = arith.addf %124, %127 : vector<8x32xf32>
    %c0_53 = arith.constant 0 : index
    %c0_54 = arith.constant 0 : index
    %129 = vector.load %arg19[%c0_53, %c0_54] : memref<8x32xf32, #tpu.memory_space<vmem>>, vector<8x32xf32>
    tpu.vector_store %arg19[%c0_53, %c0_54], %128 {strides = array<i32>} : memref<8x32xf32, #tpu.memory_space<vmem>>, vector<8x32xf32>,
    %130 = vector.extract_strided_slice %62 {offsets = [0, 16], sizes = [8, 8], strides = [1, 1]} : vector<8x32xf32> to vector<8x8xf32>
    %131 = arith.truncf %130 : vector<8x8xf32> to vector<8x8xbf16>
    %132 = vector.extract_strided_slice %31 {offsets = [0, 16], sizes = [8, 8], strides = [1, 1]} : vector<8x32xf32> to vector<8x8xf32>
    %133 = arith.truncf %132 : vector<8x8xf32> to vector<8x8xbf16>
    %cst_55 = arith.constant dense<0.000000e+00> : vector<8x8xf32>
    %134 = tpu.matmul %131, %133, %cst_55 {dimension_numbers = #tpu.dot_dimension_numbers<[1], [1], [0], [0], [0, 0, 1, 0], [], []>} : vector<8x8xbf16>, vector<8x8xbf16>, vector<8x8xf32> -> vector<8x8xf32>
    %135 = vector.broadcast %72 : vector<8x1xf32> to vector<8x8xf32>
    %136 = arith.addf %134, %135 : vector<8x8xf32>
    %cst_56 = arith.constant dense<0xFF800000> : vector<8xf32>
    %137 = vector.multi_reduction <maximumf>, %136, %cst_56 [1] : vector<8x8xf32> to vector<8xf32>
    %138 = vector.shape_cast %137 : vector<8xf32> to vector<8x1xf32>
    %139 = vector.broadcast %138 : vector<8x1xf32> to vector<8x8xf32>
    %140 = arith.subf %136, %139 : vector<8x8xf32>
    %141 = math.exp %140 : vector<8x8xf32>
    %cst_57 = arith.constant dense<0.000000e+00> : vector<8xf32>
    %142 = vector.multi_reduction <add>, %141, %cst_57 [1] : vector<8x8xf32> to vector<8xf32>
    %143 = vector.shape_cast %142 : vector<8xf32> to vector<8x1xf32>
    %144 = tpu.reciprocal %143 {approx = true} : vector<8x1xf32> -> vector<8x1xf32>
    %145 = vector.broadcast %144 : vector<8x1xf32> to vector<8x8xf32>
    %146 = arith.mulf %141, %145 : vector<8x8xf32>
    %147 = arith.truncf %146 : vector<8x8xf32> to vector<8x8xbf16>
    %148 = vector.extract_strided_slice %32 {offsets = [0, 16], sizes = [8, 8], strides = [1, 1]} : vector<8x32xf32> to vector<8x8xf32>
    %149 = arith.truncf %148 : vector<8x8xf32> to vector<8x8xbf16>
    %cst_58 = arith.constant dense<0.000000e+00> : vector<8x8xf32>
    %150 = tpu.matmul %147, %149, %cst_58 {dimension_numbers = #tpu.dot_dimension_numbers<[1], [0], [0], [1], [0, 0, 1, 1], [], []>} : vector<8x8xbf16>, vector<8x8xbf16>, vector<8x8xf32> -> vector<8x8xf32>
    %c0_59 = arith.constant 0 : index
    %c0_60 = arith.constant 0 : index
    %151 = vector.load %arg19[%c0_59, %c0_60] : memref<8x32xf32, #tpu.memory_space<vmem>>, vector<8x32xf32>
    %152 = arith.truncf %150 : vector<8x8xf32> to vector<8x8xbf16>
    %c16 = arith.constant 16 : index
    %c0_61 = arith.constant 0 : index
    %153 = vector.load %arg8[%c16, %c0_61] : memref<32x32xbf16, #tpu.memory_space<vmem>>, vector<8x32xbf16>
    %cst_62 = arith.constant dense<0.000000e+00> : vector<8x32xf32>
    %154 = tpu.matmul %152, %153, %cst_62 {dimension_numbers = #tpu.dot_dimension_numbers<[1], [0], [0], [1], [0, 0, 1, 1], [], []>} : vector<8x8xbf16>, vector<8x32xbf16>, vector<8x32xf32> -> vector<8x32xf32>
    %155 = arith.addf %151, %154 : vector<8x32xf32>
    %c0_63 = arith.constant 0 : index
    %c0_64 = arith.constant 0 : index
    %156 = vector.load %arg19[%c0_63, %c0_64] : memref<8x32xf32, #tpu.memory_space<vmem>>, vector<8x32xf32>
    tpu.vector_store %arg19[%c0_63, %c0_64], %155 {strides = array<i32>} : memref<8x32xf32, #tpu.memory_space<vmem>>, vector<8x32xf32>,
    %157 = vector.extract_strided_slice %62 {offsets = [0, 24], sizes = [8, 8], strides = [1, 1]} : vector<8x32xf32> to vector<8x8xf32>
    %158 = arith.truncf %157 : vector<8x8xf32> to vector<8x8xbf16>
    %159 = vector.extract_strided_slice %31 {offsets = [0, 24], sizes = [8, 8], strides = [1, 1]} : vector<8x32xf32> to vector<8x8xf32>
    %160 = arith.truncf %159 : vector<8x8xf32> to vector<8x8xbf16>
    %cst_65 = arith.constant dense<0.000000e+00> : vector<8x8xf32>
    %161 = tpu.matmul %158, %160, %cst_65 {dimension_numbers = #tpu.dot_dimension_numbers<[1], [1], [0], [0], [0, 0, 1, 0], [], []>} : vector<8x8xbf16>, vector<8x8xbf16>, vector<8x8xf32> -> vector<8x8xf32>
    %162 = vector.broadcast %72 : vector<8x1xf32> to vector<8x8xf32>
    %163 = arith.addf %161, %162 : vector<8x8xf32>
    %cst_66 = arith.constant dense<0xFF800000> : vector<8xf32>
    %164 = vector.multi_reduction <maximumf>, %163, %cst_66 [1] : vector<8x8xf32> to vector<8xf32>
    %165 = vector.shape_cast %164 : vector<8xf32> to vector<8x1xf32>
    %166 = vector.broadcast %165 : vector<8x1xf32> to vector<8x8xf32>
    %167 = arith.subf %163, %166 : vector<8x8xf32>
    %168 = math.exp %167 : vector<8x8xf32>
    %cst_67 = arith.constant dense<0.000000e+00> : vector<8xf32>
    %169 = vector.multi_reduction <add>, %168, %cst_67 [1] : vector<8x8xf32> to vector<8xf32>
    %170 = vector.shape_cast %169 : vector<8xf32> to vector<8x1xf32>
    %171 = tpu.reciprocal %170 {approx = true} : vector<8x1xf32> -> vector<8x1xf32>
    %172 = vector.broadcast %171 : vector<8x1xf32> to vector<8x8xf32>
    %173 = arith.mulf %168, %172 : vector<8x8xf32>
    %174 = arith.truncf %173 : vector<8x8xf32> to vector<8x8xbf16>
    %175 = vector.extract_strided_slice %32 {offsets = [0, 24], sizes = [8, 8], strides = [1, 1]} : vector<8x32xf32> to vector<8x8xf32>
    %176 = arith.truncf %175 : vector<8x8xf32> to vector<8x8xbf16>
    %cst_68 = arith.constant dense<0.000000e+00> : vector<8x8xf32>
    %177 = tpu.matmul %174, %176, %cst_68 {dimension_numbers = #tpu.dot_dimension_numbers<[1], [0], [0], [1], [0, 0, 1, 1], [], []>} : vector<8x8xbf16>, vector<8x8xbf16>, vector<8x8xf32> -> vector<8x8xf32>
    %c0_69 = arith.constant 0 : index
    %c0_70 = arith.constant 0 : index
    %178 = vector.load %arg19[%c0_69, %c0_70] : memref<8x32xf32, #tpu.memory_space<vmem>>, vector<8x32xf32>
    %179 = arith.truncf %177 : vector<8x8xf32> to vector<8x8xbf16>
    %c24 = arith.constant 24 : index
    %c0_71 = arith.constant 0 : index
    %180 = vector.load %arg8[%c24, %c0_71] : memref<32x32xbf16, #tpu.memory_space<vmem>>, vector<8x32xbf16>
    %cst_72 = arith.constant dense<0.000000e+00> : vector<8x32xf32>
    %181 = tpu.matmul %179, %180, %cst_72 {dimension_numbers = #tpu.dot_dimension_numbers<[1], [0], [0], [1], [0, 0, 1, 1], [], []>} : vector<8x8xbf16>, vector<8x32xbf16>, vector<8x32xf32> -> vector<8x32xf32>
    %182 = arith.addf %178, %181 : vector<8x32xf32>
    %c0_73 = arith.constant 0 : index
    %c0_74 = arith.constant 0 : index
    %183 = vector.load %arg19[%c0_73, %c0_74] : memref<8x32xf32, #tpu.memory_space<vmem>>, vector<8x32xf32>
    tpu.vector_store %arg19[%c0_73, %c0_74], %182 {strides = array<i32>} : memref<8x32xf32, #tpu.memory_space<vmem>>, vector<8x32xf32>,
    %c0_75 = arith.constant 0 : index
    %c0_76 = arith.constant 0 : index
    %184 = vector.load %arg19[%c0_75, %c0_76] : memref<8x32xf32, #tpu.memory_space<vmem>>, vector<8x32xf32>
    %185 = vector.broadcast %73 : vector<1x32xf32> to vector<8x32xf32>
    %186 = arith.addf %184, %185 : vector<8x32xf32>
    %187 = arith.addf %59, %186 : vector<8x32xf32>
    %c0_77 = arith.constant 0 : index
    %c0_78 = arith.constant 0 : index
    %188 = vector.load %arg10[%c0_77, %c0_78] : memref<1x32xf32, #tpu.memory_space<vmem>>, vector<1x32xf32>
    %c0_79 = arith.constant 0 : index
    %c0_80 = arith.constant 0 : index
    %189 = vector.load %arg11[%c0_79, %c0_80] : memref<1x32xf32, #tpu.memory_space<vmem>>, vector<1x32xf32>
    %cst_81 = arith.constant dense<0.000000e+00> : vector<8xf32>
    %190 = vector.multi_reduction <add>, %187, %cst_81 [1] : vector<8x32xf32> to vector<8xf32>
    %191 = vector.shape_cast %190 : vector<8xf32> to vector<8x1xf32>
    %cst_82 = arith.constant 3.200000e+01 : f32
    %192 = vector.broadcast %cst_82 : f32 to vector<8x1xf32>
    %193 = arith.divf %191, %192 : vector<8x1xf32>
    %194 = vector.broadcast %193 : vector<8x1xf32> to vector<8x32xf32>
    %195 = arith.subf %187, %194 : vector<8x32xf32>
    %196 = arith.mulf %195, %195 : vector<8x32xf32>
    %cst_83 = arith.constant dense<0.000000e+00> : vector<8xf32>
    %197 = vector.multi_reduction <add>, %196, %cst_83 [1] : vector<8x32xf32> to vector<8xf32>
    %198 = vector.shape_cast %197 : vector<8xf32> to vector<8x1xf32>
    %cst_84 = arith.constant 3.200000e+01 : f32
    %199 = vector.broadcast %cst_84 : f32 to vector<8x1xf32>
    %200 = arith.divf %198, %199 : vector<8x1xf32>
    %201 = vector.broadcast %193 : vector<8x1xf32> to vector<8x32xf32>
    %202 = arith.subf %187, %201 : vector<8x32xf32>
    %cst_85 = arith.constant 9.99999974E-6 : f32
    %203 = vector.broadcast %cst_85 : f32 to vector<8x1xf32>
    %204 = arith.addf %200, %203 : vector<8x1xf32>
    %205 = math.rsqrt %204 : vector<8x1xf32>
    %206 = vector.broadcast %205 : vector<8x1xf32> to vector<8x32xf32>
    %207 = arith.mulf %202, %206 : vector<8x32xf32>
    %208 = vector.broadcast %188 : vector<1x32xf32> to vector<8x32xf32>
    %209 = arith.mulf %207, %208 : vector<8x32xf32>
    %210 = vector.broadcast %189 : vector<1x32xf32> to vector<8x32xf32>
    %211 = arith.addf %209, %210 : vector<8x32xf32>
    %212 = arith.truncf %211 : vector<8x32xf32> to vector<8x32xbf16>
    %c0_86 = arith.constant 0 : index
    %c0_87 = arith.constant 0 : index
    %213 = vector.load %arg12[%c0_86, %c0_87] : memref<32x64xbf16, #tpu.memory_space<vmem>>, vector<32x64xbf16>
    %cst_88 = arith.constant dense<0.000000e+00> : vector<8x64xf32>
    %214 = tpu.matmul %212, %213, %cst_88 {dimension_numbers = #tpu.dot_dimension_numbers<[1], [0], [0], [1], [0, 0, 1, 1], [], []>} : vector<8x32xbf16>, vector<32x64xbf16>, vector<8x64xf32> -> vector<8x64xf32>
    %c0_89 = arith.constant 0 : index
    %c0_90 = arith.constant 0 : index
    %215 = vector.load %arg13[%c0_89, %c0_90] : memref<1x64xf32, #tpu.memory_space<vmem>>, vector<1x64xf32>
    %216 = vector.broadcast %215 : vector<1x64xf32> to vector<8x64xf32>
    %217 = arith.addf %214, %216 : vector<8x64xf32>
    %cst_91 = arith.constant 0.000000e+00 : f32
    %218 = vector.broadcast %cst_91 : f32 to vector<8x64xf32>
    %219 = arith.maximumf %217, %218 : vector<8x64xf32>
    %220 = arith.truncf %219 : vector<8x64xf32> to vector<8x64xbf16>
    %c0_92 = arith.constant 0 : index
    %c0_93 = arith.constant 0 : index
    %221 = vector.load %arg14[%c0_92, %c0_93] : memref<64x32xbf16, #tpu.memory_space<vmem>>, vector<64x32xbf16>
    %cst_94 = arith.constant dense<0.000000e+00> : vector<8x32xf32>
    %222 = tpu.matmul %220, %221, %cst_94 {dimension_numbers = #tpu.dot_dimension_numbers<[1], [0], [0], [1], [0, 0, 1, 1], [], []>} : vector<8x64xbf16>, vector<64x32xbf16>, vector<8x32xf32> -> vector<8x32xf32>
    %c0_95 = arith.constant 0 : index
    %c0_96 = arith.constant 0 : index
    %223 = vector.load %arg15[%c0_95, %c0_96] : memref<1x32xf32, #tpu.memory_space<vmem>>, vector<1x32xf32>
    %224 = vector.broadcast %223 : vector<1x32xf32> to vector<8x32xf32>
    %225 = arith.addf %222, %224 : vector<8x32xf32>
    %226 = arith.addf %211, %225 : vector<8x32xf32>
    %c0_97 = arith.constant 0 : index
    %c0_98 = arith.constant 0 : index
    %c0_99 = arith.constant 0 : index
    %227 = vector.load %arg18[%c0_97, %c0_98, %c0_99] : memref<1x8x32xf32, #tpu.memory_space<vmem>>, vector<1x8x32xf32>
    %228 = vector.shape_cast %227 : vector<1x8x32xf32> to vector<8x32xf32>
    %229 = vector.shape_cast %226 : vector<8x32xf32> to vector<1x8x32xf32>
    tpu.vector_store %arg18[%c0_97, %c0_98, %c0_99], %229 {strides = array<i32>} : memref<1x8x32xf32, #tpu.memory_space<vmem>>, vector<1x8x32xf32>,
    return
  }
  func.func @transform_0(%arg0: i32, %arg1: i32, %arg2: memref<2xi32, #tpu.memory_space<smem>>) -> (i32, i32, i32) {
    %c0_i32 = arith.constant 0 : i32
    %c0_i32_0 = arith.constant 0 : i32
    %c0_i32_1 = arith.constant 0 : i32
    return %arg0, %c0_i32, %c0_i32_0 : i32, i32, i32
  }
  func.func @transform_1(%arg0: i32, %arg1: i32, %arg2: memref<2xi32, #tpu.memory_space<smem>>) -> (i32, i32) {
    %c0_i32 = arith.constant 0 : i32
    %c0_i32_0 = arith.constant 0 : i32
    %c0_i32_1 = arith.constant 0 : i32
    return %c0_i32, %c0_i32_0 : i32, i32
  }
  func.func @transform_2(%arg0: i32, %arg1: i32, %arg2: memref<2xi32, #tpu.memory_space<smem>>) -> (i32, i32) {
    %c0_i32 = arith.constant 0 : i32
    %c0_i32_0 = arith.constant 0 : i32
    %c0_i32_1 = arith.constant 0 : i32
    return %c0_i32, %c0_i32_0 : i32, i32
  }
  func.func @transform_3(%arg0: i32, %arg1: i32, %arg2: memref<2xi32, #tpu.memory_space<smem>>) -> (i32, i32) {
    %c0_i32 = arith.constant 0 : i32
    %c0_i32_0 = arith.constant 0 : i32
    %c0_i32_1 = arith.constant 0 : i32
    return %c0_i32, %c0_i32_0 : i32, i32
  }
  func.func @transform_4(%arg0: i32, %arg1: i32, %arg2: memref<2xi32, #tpu.memory_space<smem>>) -> (i32, i32) {
    %c0_i32 = arith.constant 0 : i32
    %c0_i32_0 = arith.constant 0 : i32
    %c0_i32_1 = arith.constant 0 : i32
    return %c0_i32, %c0_i32_0 : i32, i32
  }
  func.func @transform_5(%arg0: i32, %arg1: i32, %arg2: memref<2xi32, #tpu.memory_space<smem>>) -> (i32, i32) {
    %c0_i32 = arith.constant 0 : i32
    %c0_i32_0 = arith.constant 0 : i32
    %c0_i32_1 = arith.constant 0 : i32
    return %c0_i32, %c0_i32_0 : i32, i32
  }
  func.func @transform_6(%arg0: i32, %arg1: i32, %arg2: memref<2xi32, #tpu.memory_space<smem>>) -> (i32, i32) {
    %c0_i32 = arith.constant 0 : i32
    %c0_i32_0 = arith.constant 0 : i32
    %c0_i32_1 = arith.constant 0 : i32
    return %c0_i32, %c0_i32_0 : i32, i32
  }
  func.func @transform_7(%arg0: i32, %arg1: i32, %arg2: memref<2xi32, #tpu.memory_space<smem>>) -> (i32, i32) {
    %c0_i32 = arith.constant 0 : i32
    %c0_i32_0 = arith.constant 0 : i32
    %c0_i32_1 = arith.constant 0 : i32
    return %c0_i32, %c0_i32_0 : i32, i32
  }
  func.func @transform_8(%arg0: i32, %arg1: i32, %arg2: memref<2xi32, #tpu.memory_space<smem>>) -> (i32, i32) {
    %c0_i32 = arith.constant 0 : i32
    %c0_i32_0 = arith.constant 0 : i32
    %c0_i32_1 = arith.constant 0 : i32
    return %c0_i32, %c0_i32_0 : i32, i32
  }
  func.func @transform_9(%arg0: i32, %arg1: i32, %arg2: memref<2xi32, #tpu.memory_space<smem>>) -> (i32, i32) {
    %c0_i32 = arith.constant 0 : i32
    %c0_i32_0 = arith.constant 0 : i32
    %c0_i32_1 = arith.constant 0 : i32
    return %c0_i32, %c0_i32_0 : i32, i32
  }
  func.func @transform_10(%arg0: i32, %arg1: i32, %arg2: memref<2xi32, #tpu.memory_space<smem>>) -> (i32, i32) {
    %c0_i32 = arith.constant 0 : i32
    %c0_i32_0 = arith.constant 0 : i32
    %c0_i32_1 = arith.constant 0 : i32
    return %c0_i32, %c0_i32_0 : i32, i32
  }
  func.func @transform_11(%arg0: i32, %arg1: i32, %arg2: memref<2xi32, #tpu.memory_space<smem>>) -> (i32, i32) {
    %c0_i32 = arith.constant 0 : i32
    %c0_i32_0 = arith.constant 0 : i32
    %c0_i32_1 = arith.constant 0 : i32
    return %c0_i32, %c0_i32_0 : i32, i32
  }
  func.func @transform_12(%arg0: i32, %arg1: i32, %arg2: memref<2xi32, #tpu.memory_space<smem>>) -> (i32, i32) {
    %c0_i32 = arith.constant 0 : i32
    %c0_i32_0 = arith.constant 0 : i32
    %c0_i32_1 = arith.constant 0 : i32
    return %c0_i32, %c0_i32_0 : i32, i32
  }
  func.func @transform_13(%arg0: i32, %arg1: i32, %arg2: memref<2xi32, #tpu.memory_space<smem>>) -> (i32, i32) {
    %c0_i32 = arith.constant 0 : i32
    %c0_i32_0 = arith.constant 0 : i32
    %c0_i32_1 = arith.constant 0 : i32
    return %c0_i32, %c0_i32_0 : i32, i32
  }
  func.func @transform_14(%arg0: i32, %arg1: i32, %arg2: memref<2xi32, #tpu.memory_space<smem>>) -> (i32, i32) {
    %c0_i32 = arith.constant 0 : i32
    %c0_i32_0 = arith.constant 0 : i32
    %c0_i32_1 = arith.constant 0 : i32
    return %c0_i32, %c0_i32_0 : i32, i32
  }
  func.func @transform_15(%arg0: i32, %arg1: i32, %arg2: memref<2xi32, #tpu.memory_space<smem>>) -> (i32, i32, i32) {
    %c0_i32 = arith.constant 0 : i32
    %c0_i32_0 = arith.constant 0 : i32
    return %arg0, %arg1, %c0_i32 : i32, i32, i32
  }
}

module attributes {stable_mosaic.version = 11 : i64} {
  func.func @_final_kernel(%arg0: i32, %arg1: memref<1x8x32xf32, #tpu.memory_space<vmem>>, %arg2: memref<1x32xf32, #tpu.memory_space<vmem>>, %arg3: memref<1x32xf32, #tpu.memory_space<vmem>>, %arg4: memref<32x128xbf16, #tpu.memory_space<vmem>>, %arg5: memref<1x128xf32, #tpu.memory_space<vmem>>, %arg6: memref<1x8x128xf32, #tpu.memory_space<vmem>>) attributes {dimension_semantics = [#tpu.dimension_semantics<parallel>], iteration_bounds = array<i64: 2>, scalar_prefetch = 0 : i64, scratch_operands = 0 : i64, tpu.core_type = #tpu.core_type<tc>, window_params = [{transform_indices = @transform_0, window_bounds = array<i64: 1, 8, 32>}, {pipeline_mode = #tpu.pipeline_mode<synchronous>, transform_indices = @transform_1, window_bounds = array<i64: 1, 32>}, {pipeline_mode = #tpu.pipeline_mode<synchronous>, transform_indices = @transform_2, window_bounds = array<i64: 1, 32>}, {pipeline_mode = #tpu.pipeline_mode<synchronous>, transform_indices = @transform_3, window_bounds = array<i64: 32, 128>}, {pipeline_mode = #tpu.pipeline_mode<synchronous>, transform_indices = @transform_4, window_bounds = array<i64: 1, 128>}, {transform_indices = @transform_5, window_bounds = array<i64: 1, 8, 128>}]} {
    %c0 = arith.constant 0 : index
    %c0_0 = arith.constant 0 : index
    %c0_1 = arith.constant 0 : index
    %0 = vector.load %arg1[%c0, %c0_0, %c0_1] : memref<1x8x32xf32, #tpu.memory_space<vmem>>, vector<1x8x32xf32>
    %1 = vector.shape_cast %0 : vector<1x8x32xf32> to vector<8x32xf32>
    %c0_2 = arith.constant 0 : index
    %c0_3 = arith.constant 0 : index
    %2 = vector.load %arg2[%c0_2, %c0_3] : memref<1x32xf32, #tpu.memory_space<vmem>>, vector<1x32xf32>
    %c0_4 = arith.constant 0 : index
    %c0_5 = arith.constant 0 : index
    %3 = vector.load %arg3[%c0_4, %c0_5] : memref<1x32xf32, #tpu.memory_space<vmem>>, vector<1x32xf32>
    %cst = arith.constant dense<0.000000e+00> : vector<8xf32>
    %4 = vector.multi_reduction <add>, %1, %cst [1] : vector<8x32xf32> to vector<8xf32>
    %5 = vector.shape_cast %4 : vector<8xf32> to vector<8x1xf32>
    %cst_6 = arith.constant 3.200000e+01 : f32
    %6 = vector.broadcast %cst_6 : f32 to vector<8x1xf32>
    %7 = arith.divf %5, %6 : vector<8x1xf32>
    %8 = vector.broadcast %7 : vector<8x1xf32> to vector<8x32xf32>
    %9 = arith.subf %1, %8 : vector<8x32xf32>
    %10 = arith.mulf %9, %9 : vector<8x32xf32>
    %cst_7 = arith.constant dense<0.000000e+00> : vector<8xf32>
    %11 = vector.multi_reduction <add>, %10, %cst_7 [1] : vector<8x32xf32> to vector<8xf32>
    %12 = vector.shape_cast %11 : vector<8xf32> to vector<8x1xf32>
    %cst_8 = arith.constant 3.200000e+01 : f32
    %13 = vector.broadcast %cst_8 : f32 to vector<8x1xf32>
    %14 = arith.divf %12, %13 : vector<8x1xf32>
    %15 = vector.broadcast %7 : vector<8x1xf32> to vector<8x32xf32>
    %16 = arith.subf %1, %15 : vector<8x32xf32>
    %cst_9 = arith.constant 9.99999974E-6 : f32
    %17 = vector.broadcast %cst_9 : f32 to vector<8x1xf32>
    %18 = arith.addf %14, %17 : vector<8x1xf32>
    %19 = math.rsqrt %18 : vector<8x1xf32>
    %20 = vector.broadcast %19 : vector<8x1xf32> to vector<8x32xf32>
    %21 = arith.mulf %16, %20 : vector<8x32xf32>
    %22 = vector.broadcast %2 : vector<1x32xf32> to vector<8x32xf32>
    %23 = arith.mulf %21, %22 : vector<8x32xf32>
    %24 = vector.broadcast %3 : vector<1x32xf32> to vector<8x32xf32>
    %25 = arith.addf %23, %24 : vector<8x32xf32>
    %26 = arith.truncf %25 : vector<8x32xf32> to vector<8x32xbf16>
    %c0_10 = arith.constant 0 : index
    %c0_11 = arith.constant 0 : index
    %27 = vector.load %arg4[%c0_10, %c0_11] : memref<32x128xbf16, #tpu.memory_space<vmem>>, vector<32x128xbf16>
    %cst_12 = arith.constant dense<0.000000e+00> : vector<8x128xf32>
    %28 = tpu.matmul %26, %27, %cst_12 {dimension_numbers = #tpu.dot_dimension_numbers<[1], [0], [0], [1], [0, 0, 1, 1], [], []>} : vector<8x32xbf16>, vector<32x128xbf16>, vector<8x128xf32> -> vector<8x128xf32>
    %c0_13 = arith.constant 0 : index
    %c0_14 = arith.constant 0 : index
    %29 = vector.load %arg5[%c0_13, %c0_14] : memref<1x128xf32, #tpu.memory_space<vmem>>, vector<1x128xf32>
    %30 = vector.broadcast %29 : vector<1x128xf32> to vector<8x128xf32>
    %31 = arith.addf %28, %30 : vector<8x128xf32>
    %c0_15 = arith.constant 0 : index
    %c0_16 = arith.constant 0 : index
    %c0_17 = arith.constant 0 : index
    %32 = vector.load %arg6[%c0_15, %c0_16, %c0_17] : memref<1x8x128xf32, #tpu.memory_space<vmem>>, vector<1x8x128xf32>
    %33 = vector.shape_cast %32 : vector<1x8x128xf32> to vector<8x128xf32>
    %34 = vector.shape_cast %31 : vector<8x128xf32> to vector<1x8x128xf32>
    tpu.vector_store %arg6[%c0_15, %c0_16, %c0_17], %34 {strides = array<i32>} : memref<1x8x128xf32, #tpu.memory_space<vmem>>, vector<1x8x128xf32>,
    return
  }
  func.func @transform_0(%arg0: i32) -> (i32, i32, i32) {
    %c0_i32 = arith.constant 0 : i32
    %c0_i32_0 = arith.constant 0 : i32
    %c0_i32_1 = arith.constant 0 : i32
    return %arg0, %c0_i32, %c0_i32_0 : i32, i32, i32
  }
  func.func @transform_1(%arg0: i32) -> (i32, i32) {
    %c0_i32 = arith.constant 0 : i32
    %c0_i32_0 = arith.constant 0 : i32
    %c0_i32_1 = arith.constant 0 : i32
    return %c0_i32, %c0_i32_0 : i32, i32
  }
  func.func @transform_2(%arg0: i32) -> (i32, i32) {
    %c0_i32 = arith.constant 0 : i32
    %c0_i32_0 = arith.constant 0 : i32
    %c0_i32_1 = arith.constant 0 : i32
    return %c0_i32, %c0_i32_0 : i32, i32
  }
  func.func @transform_3(%arg0: i32) -> (i32, i32) {
    %c0_i32 = arith.constant 0 : i32
    %c0_i32_0 = arith.constant 0 : i32
    %c0_i32_1 = arith.constant 0 : i32
    return %c0_i32, %c0_i32_0 : i32, i32
  }
  func.func @transform_4(%arg0: i32) -> (i32, i32) {
    %c0_i32 = arith.constant 0 : i32
    %c0_i32_0 = arith.constant 0 : i32
    %c0_i32_1 = arith.constant 0 : i32
    return %c0_i32, %c0_i32_0 : i32, i32
  }
  func.func @transform_5(%arg0: i32) -> (i32, i32, i32) {
    %c0_i32 = arith.constant 0 : i32
    %c0_i32_0 = arith.constant 0 : i32
    %c0_i32_1 = arith.constant 0 : i32
    return %arg0, %c0_i32, %c0_i32_0 : i32, i32, i32
  }
}

module attributes {stable_mosaic.version = 11 : i64} {
  func.func @_encoder_block_kernel(%arg0: i32, %arg1: i32, %arg2: memref<2xi32, #tpu.memory_space<smem>>, %arg3: memref<1x8x32xf32, #tpu.memory_space<vmem>>, %arg4: memref<1x32xf32, #tpu.memory_space<vmem>>, %arg5: memref<1x32xf32, #tpu.memory_space<vmem>>, %arg6: memref<32x32xbf16, #tpu.memory_space<vmem>>, %arg7: memref<32x64xbf16, #tpu.memory_space<vmem>>, %arg8: memref<32x32xbf16, #tpu.memory_space<vmem>>, %arg9: memref<1x32xf32, #tpu.memory_space<vmem>>, %arg10: memref<1x32xf32, #tpu.memory_space<vmem>>, %arg11: memref<1x32xf32, #tpu.memory_space<vmem>>, %arg12: memref<32x64xbf16, #tpu.memory_space<vmem>>, %arg13: memref<1x64xf32, #tpu.memory_space<vmem>>, %arg14: memref<64x32xbf16, #tpu.memory_space<vmem>>, %arg15: memref<1x32xf32, #tpu.memory_space<vmem>>, %arg16: memref<1x32xf32, #tpu.memory_space<vmem>>, %arg17: memref<1x32xf32, #tpu.memory_space<vmem>>, %arg18: memref<1x8x32xf32, #tpu.memory_space<vmem>>, %arg19: memref<8x32xf32, #tpu.memory_space<vmem>>) attributes {dimension_semantics = [#tpu.dimension_semantics<parallel>, #tpu.dimension_semantics<parallel>], iteration_bounds = array<i64: 2, 1>, scalar_prefetch = 1 : i64, scratch_operands = 1 : i64, tpu.core_type = #tpu.core_type<tc>, window_params = [{transform_indices = @transform_0, window_bounds = array<i64: 1, 8, 32>}, {pipeline_mode = #tpu.pipeline_mode<synchronous>, transform_indices = @transform_1, window_bounds = array<i64: 1, 32>}, {pipeline_mode = #tpu.pipeline_mode<synchronous>, transform_indices = @transform_2, window_bounds = array<i64: 1, 32>}, {pipeline_mode = #tpu.pipeline_mode<synchronous>, transform_indices = @transform_3, window_bounds = array<i64: 32, 32>}, {pipeline_mode = #tpu.pipeline_mode<synchronous>, transform_indices = @transform_4, window_bounds = array<i64: 32, 64>}, {pipeline_mode = #tpu.pipeline_mode<synchronous>, transform_indices = @transform_5, window_bounds = array<i64: 32, 32>}, {pipeline_mode = #tpu.pipeline_mode<synchronous>, transform_indices = @transform_6, window_bounds = array<i64: 1, 32>}, {pipeline_mode = #tpu.pipeline_mode<synchronous>, transform_indices = @transform_7, window_bounds = array<i64: 1, 32>}, {pipeline_mode = #tpu.pipeline_mode<synchronous>, transform_indices = @transform_8, window_bounds = array<i64: 1, 32>}, {pipeline_mode = #tpu.pipeline_mode<synchronous>, transform_indices = @transform_9, window_bounds = array<i64: 32, 64>}, {pipeline_mode = #tpu.pipeline_mode<synchronous>, transform_indices = @transform_10, window_bounds = array<i64: 1, 64>}, {pipeline_mode = #tpu.pipeline_mode<synchronous>, transform_indices = @transform_11, window_bounds = array<i64: 64, 32>}, {pipeline_mode = #tpu.pipeline_mode<synchronous>, transform_indices = @transform_12, window_bounds = array<i64: 1, 32>}, {pipeline_mode = #tpu.pipeline_mode<synchronous>, transform_indices = @transform_13, window_bounds = array<i64: 1, 32>}, {pipeline_mode = #tpu.pipeline_mode<synchronous>, transform_indices = @transform_14, window_bounds = array<i64: 1, 32>}, {transform_indices = @transform_15, window_bounds = array<i64: 1, 8, 32>}]} {
    %c8_i32 = arith.constant 8 : i32
    %0 = arith.muli %arg1, %c8_i32 : i32
    %1 = tpu.assume_multiple %0, 8 : i32
    %c0 = arith.constant 0 : index
    %c0_0 = arith.constant 0 : index
    %c0_1 = arith.constant 0 : index
    %2 = vector.load %arg3[%c0, %c0_0, %c0_1] : memref<1x8x32xf32, #tpu.memory_space<vmem>>, vector<1x8x32xf32>
    %3 = vector.shape_cast %2 : vector<1x8x32xf32> to vector<8x32xf32>
    %c0_2 = arith.constant 0 : index
    %c0_3 = arith.constant 0 : index
    %4 = vector.load %arg4[%c0_2, %c0_3] : memref<1x32xf32, #tpu.memory_space<vmem>>, vector<1x32xf32>
    %c0_4 = arith.constant 0 : index
    %c0_5 = arith.constant 0 : index
    %5 = vector.load %arg5[%c0_4, %c0_5] : memref<1x32xf32, #tpu.memory_space<vmem>>, vector<1x32xf32>
    %cst = arith.constant dense<0.000000e+00> : vector<8xf32>
    %6 = vector.multi_reduction <add>, %3, %cst [1] : vector<8x32xf32> to vector<8xf32>
    %7 = vector.shape_cast %6 : vector<8xf32> to vector<8x1xf32>
    %cst_6 = arith.constant 3.200000e+01 : f32
    %8 = vector.broadcast %cst_6 : f32 to vector<8x1xf32>
    %9 = arith.divf %7, %8 : vector<8x1xf32>
    %10 = vector.broadcast %9 : vector<8x1xf32> to vector<8x32xf32>
    %11 = arith.subf %3, %10 : vector<8x32xf32>
    %12 = arith.mulf %11, %11 : vector<8x32xf32>
    %cst_7 = arith.constant dense<0.000000e+00> : vector<8xf32>
    %13 = vector.multi_reduction <add>, %12, %cst_7 [1] : vector<8x32xf32> to vector<8xf32>
    %14 = vector.shape_cast %13 : vector<8xf32> to vector<8x1xf32>
    %cst_8 = arith.constant 3.200000e+01 : f32
    %15 = vector.broadcast %cst_8 : f32 to vector<8x1xf32>
    %16 = arith.divf %14, %15 : vector<8x1xf32>
    %17 = vector.broadcast %9 : vector<8x1xf32> to vector<8x32xf32>
    %18 = arith.subf %3, %17 : vector<8x32xf32>
    %cst_9 = arith.constant 9.99999974E-6 : f32
    %19 = vector.broadcast %cst_9 : f32 to vector<8x1xf32>
    %20 = arith.addf %16, %19 : vector<8x1xf32>
    %21 = math.rsqrt %20 : vector<8x1xf32>
    %22 = vector.broadcast %21 : vector<8x1xf32> to vector<8x32xf32>
    %23 = arith.mulf %18, %22 : vector<8x32xf32>
    %24 = vector.broadcast %4 : vector<1x32xf32> to vector<8x32xf32>
    %25 = arith.mulf %23, %24 : vector<8x32xf32>
    %26 = vector.broadcast %5 : vector<1x32xf32> to vector<8x32xf32>
    %27 = arith.addf %25, %26 : vector<8x32xf32>
    %28 = arith.truncf %27 : vector<8x32xf32> to vector<8x32xbf16>
    %c0_10 = arith.constant 0 : index
    %c0_11 = arith.constant 0 : index
    %29 = vector.load %arg7[%c0_10, %c0_11] : memref<32x64xbf16, #tpu.memory_space<vmem>>, vector<32x64xbf16>
    %cst_12 = arith.constant dense<0.000000e+00> : vector<8x64xf32>
    %30 = tpu.matmul %28, %29, %cst_12 {dimension_numbers = #tpu.dot_dimension_numbers<[1], [0], [0], [1], [0, 0, 1, 1], [], []>} : vector<8x32xbf16>, vector<32x64xbf16>, vector<8x64xf32> -> vector<8x64xf32>
    %31 = vector.extract_strided_slice %30 {offsets = [0, 0], sizes = [8, 32], strides = [1, 1]} : vector<8x64xf32> to vector<8x32xf32>
    %32 = vector.extract_strided_slice %30 {offsets = [0, 32], sizes = [8, 32], strides = [1, 1]} : vector<8x64xf32> to vector<8x32xf32>
    %c0_13 = arith.constant 0 : index
    %33 = arith.index_cast %1 : i32 to index
    %c0_14 = arith.constant 0 : index
    %34 = vector.load %arg3[%c0_13, %33, %c0_14] : memref<1x8x32xf32, #tpu.memory_space<vmem>>, vector<1x8x32xf32>
    %35 = vector.shape_cast %34 : vector<1x8x32xf32> to vector<8x32xf32>
    %c0_15 = arith.constant 0 : index
    %c0_16 = arith.constant 0 : index
    %36 = vector.load %arg4[%c0_15, %c0_16] : memref<1x32xf32, #tpu.memory_space<vmem>>, vector<1x32xf32>
    %c0_17 = arith.constant 0 : index
    %c0_18 = arith.constant 0 : index
    %37 = vector.load %arg5[%c0_17, %c0_18] : memref<1x32xf32, #tpu.memory_space<vmem>>, vector<1x32xf32>
    %cst_19 = arith.constant dense<0.000000e+00> : vector<8xf32>
    %38 = vector.multi_reduction <add>, %35, %cst_19 [1] : vector<8x32xf32> to vector<8xf32>
    %39 = vector.shape_cast %38 : vector<8xf32> to vector<8x1xf32>
    %cst_20 = arith.constant 3.200000e+01 : f32
    %40 = vector.broadcast %cst_20 : f32 to vector<8x1xf32>
    %41 = arith.divf %39, %40 : vector<8x1xf32>
    %42 = vector.broadcast %41 : vector<8x1xf32> to vector<8x32xf32>
    %43 = arith.subf %35, %42 : vector<8x32xf32>
    %44 = arith.mulf %43, %43 : vector<8x32xf32>
    %cst_21 = arith.constant dense<0.000000e+00> : vector<8xf32>
    %45 = vector.multi_reduction <add>, %44, %cst_21 [1] : vector<8x32xf32> to vector<8xf32>
    %46 = vector.shape_cast %45 : vector<8xf32> to vector<8x1xf32>
    %cst_22 = arith.constant 3.200000e+01 : f32
    %47 = vector.broadcast %cst_22 : f32 to vector<8x1xf32>
    %48 = arith.divf %46, %47 : vector<8x1xf32>
    %49 = vector.broadcast %41 : vector<8x1xf32> to vector<8x32xf32>
    %50 = arith.subf %35, %49 : vector<8x32xf32>
    %cst_23 = arith.constant 9.99999974E-6 : f32
    %51 = vector.broadcast %cst_23 : f32 to vector<8x1xf32>
    %52 = arith.addf %48, %51 : vector<8x1xf32>
    %53 = math.rsqrt %52 : vector<8x1xf32>
    %54 = vector.broadcast %53 : vector<8x1xf32> to vector<8x32xf32>
    %55 = arith.mulf %50, %54 : vector<8x32xf32>
    %56 = vector.broadcast %36 : vector<1x32xf32> to vector<8x32xf32>
    %57 = arith.mulf %55, %56 : vector<8x32xf32>
    %58 = vector.broadcast %37 : vector<1x32xf32> to vector<8x32xf32>
    %59 = arith.addf %57, %58 : vector<8x32xf32>
    %60 = arith.truncf %59 : vector<8x32xf32> to vector<8x32xbf16>
    %c0_24 = arith.constant 0 : index
    %c0_25 = arith.constant 0 : index
    %61 = vector.load %arg6[%c0_24, %c0_25] : memref<32x32xbf16, #tpu.memory_space<vmem>>, vector<32x32xbf16>
    %cst_26 = arith.constant dense<0.000000e+00> : vector<8x32xf32>
    %62 = tpu.matmul %60, %61, %cst_26 {dimension_numbers = #tpu.dot_dimension_numbers<[1], [0], [0], [1], [0, 0, 1, 1], [], []>} : vector<8x32xbf16>, vector<32x32xbf16>, vector<8x32xf32> -> vector<8x32xf32>
    %63 = tpu.iota {dimensions = array<i32: 0>} : vector<8x1xi32>
    %64 = vector.broadcast %1 : i32 to vector<8x1xi32>
    %65 = arith.addi %64, %63 : vector<8x1xi32>
    %66 = arith.index_cast %arg0 : i32 to index
    %67 = memref.load %arg2[%66] : memref<2xi32, #tpu.memory_space<smem>>
    %68 = vector.broadcast %67 : i32 to vector<8x1xi32>
    %69 = arith.cmpi slt, %65, %68 : vector<8x1xi32>
    %cst_27 = arith.constant 0.000000e+00 : f32
    %cst_28 = arith.constant -1.000000e+09 : f32
    %70 = vector.broadcast %cst_27 : f32 to vector<8x1xf32>
    %71 = vector.broadcast %cst_28 : f32 to vector<8x1xf32>
    %72 = arith.select %69, %70, %71 : vector<8x1xi1>, vector<8x1xf32>
    %c0_29 = arith.constant 0 : index
    %c0_30 = arith.constant 0 : index
    %73 = vector.load %arg9[%c0_29, %c0_30] : memref<1x32xf32, #tpu.memory_space<vmem>>, vector<1x32xf32>
    %cst_31 = arith.constant 0.000000e+00 : f32
    %74 = vector.broadcast %cst_31 : f32 to vector<8x32xf32>
    %c0_32 = arith.constant 0 : index
    %c0_33 = arith.constant 0 : index
    %75 = vector.load %arg19[%c0_32, %c0_33] : memref<8x32xf32, #tpu.memory_space<vmem>>, vector<8x32xf32>
    tpu.vector_store %arg19[%c0_32, %c0_33], %74 {strides = array<i32>} : memref<8x32xf32, #tpu.memory_space<vmem>>, vector<8x32xf32>,
    %76 = vector.extract_strided_slice %62 {offsets = [0, 0], sizes = [8, 8], strides = [1, 1]} : vector<8x32xf32> to vector<8x8xf32>
    %77 = arith.truncf %76 : vector<8x8xf32> to vector<8x8xbf16>
    %78 = vector.extract_strided_slice %31 {offsets = [0, 0], sizes = [8, 8], strides = [1, 1]} : vector<8x32xf32> to vector<8x8xf32>
    %79 = arith.truncf %78 : vector<8x8xf32> to vector<8x8xbf16>
    %cst_34 = arith.constant dense<0.000000e+00> : vector<8x8xf32>
    %80 = tpu.matmul %77, %79, %cst_34 {dimension_numbers = #tpu.dot_dimension_numbers<[1], [1], [0], [0], [0, 0, 1, 0], [], []>} : vector<8x8xbf16>, vector<8x8xbf16>, vector<8x8xf32> -> vector<8x8xf32>
    %81 = vector.broadcast %72 : vector<8x1xf32> to vector<8x8xf32>
    %82 = arith.addf %80, %81 : vector<8x8xf32>
    %cst_35 = arith.constant dense<0xFF800000> : vector<8xf32>
    %83 = vector.multi_reduction <maximumf>, %82, %cst_35 [1] : vector<8x8xf32> to vector<8xf32>
    %84 = vector.shape_cast %83 : vector<8xf32> to vector<8x1xf32>
    %85 = vector.broadcast %84 : vector<8x1xf32> to vector<8x8xf32>
    %86 = arith.subf %82, %85 : vector<8x8xf32>
    %87 = math.exp %86 : vector<8x8xf32>
    %cst_36 = arith.constant dense<0.000000e+00> : vector<8xf32>
    %88 = vector.multi_reduction <add>, %87, %cst_36 [1] : vector<8x8xf32> to vector<8xf32>
    %89 = vector.shape_cast %88 : vector<8xf32> to vector<8x1xf32>
    %90 = tpu.reciprocal %89 {approx = true} : vector<8x1xf32> -> vector<8x1xf32>
    %91 = vector.broadcast %90 : vector<8x1xf32> to vector<8x8xf32>
    %92 = arith.mulf %87, %91 : vector<8x8xf32>
    %93 = arith.truncf %92 : vector<8x8xf32> to vector<8x8xbf16>
    %94 = vector.extract_strided_slice %32 {offsets = [0, 0], sizes = [8, 8], strides = [1, 1]} : vector<8x32xf32> to vector<8x8xf32>
    %95 = arith.truncf %94 : vector<8x8xf32> to vector<8x8xbf16>
    %cst_37 = arith.constant dense<0.000000e+00> : vector<8x8xf32>
    %96 = tpu.matmul %93, %95, %cst_37 {dimension_numbers = #tpu.dot_dimension_numbers<[1], [0], [0], [1], [0, 0, 1, 1], [], []>} : vector<8x8xbf16>, vector<8x8xbf16>, vector<8x8xf32> -> vector<8x8xf32>
    %c0_38 = arith.constant 0 : index
    %c0_39 = arith.constant 0 : index
    %97 = vector.load %arg19[%c0_38, %c0_39] : memref<8x32xf32, #tpu.memory_space<vmem>>, vector<8x32xf32>
    %98 = arith.truncf %96 : vector<8x8xf32> to vector<8x8xbf16>
    %c0_40 = arith.constant 0 : index
    %c0_41 = arith.constant 0 : index
    %99 = vector.load %arg8[%c0_40, %c0_41] : memref<32x32xbf16, #tpu.memory_space<vmem>>, vector<8x32xbf16>
    %cst_42 = arith.constant dense<0.000000e+00> : vector<8x32xf32>
    %100 = tpu.matmul %98, %99, %cst_42 {dimension_numbers = #tpu.dot_dimension_numbers<[1], [0], [0], [1], [0, 0, 1, 1], [], []>} : vector<8x8xbf16>, vector<8x32xbf16>, vector<8x32xf32> -> vector<8x32xf32>
    %101 = arith.addf %97, %100 : vector<8x32xf32>
    %c0_43 = arith.constant 0 : index
    %c0_44 = arith.constant 0 : index
    %102 = vector.load %arg19[%c0_43, %c0_44] : memref<8x32xf32, #tpu.memory_space<vmem>>, vector<8x32xf32>
    tpu.vector_store %arg19[%c0_43, %c0_44], %101 {strides = array<i32>} : memref<8x32xf32, #tpu.memory_space<vmem>>, vector<8x32xf32>,
    %103 = vector.extract_strided_slice %62 {offsets = [0, 8], sizes = [8, 8], strides = [1, 1]} : vector<8x32xf32> to vector<8x8xf32>
    %104 = arith.truncf %103 : vector<8x8xf32> to vector<8x8xbf16>
    %105 = vector.extract_strided_slice %31 {offsets = [0, 8], sizes = [8, 8], strides = [1, 1]} : vector<8x32xf32> to vector<8x8xf32>
    %106 = arith.truncf %105 : vector<8x8xf32> to vector<8x8xbf16>
    %cst_45 = arith.constant dense<0.000000e+00> : vector<8x8xf32>
    %107 = tpu.matmul %104, %106, %cst_45 {dimension_numbers = #tpu.dot_dimension_numbers<[1], [1], [0], [0], [0, 0, 1, 0], [], []>} : vector<8x8xbf16>, vector<8x8xbf16>, vector<8x8xf32> -> vector<8x8xf32>
    %108 = vector.broadcast %72 : vector<8x1xf32> to vector<8x8xf32>
    %109 = arith.addf %107, %108 : vector<8x8xf32>
    %cst_46 = arith.constant dense<0xFF800000> : vector<8xf32>
    %110 = vector.multi_reduction <maximumf>, %109, %cst_46 [1] : vector<8x8xf32> to vector<8xf32>
    %111 = vector.shape_cast %110 : vector<8xf32> to vector<8x1xf32>
    %112 = vector.broadcast %111 : vector<8x1xf32> to vector<8x8xf32>
    %113 = arith.subf %109, %112 : vector<8x8xf32>
    %114 = math.exp %113 : vector<8x8xf32>
    %cst_47 = arith.constant dense<0.000000e+00> : vector<8xf32>
    %115 = vector.multi_reduction <add>, %114, %cst_47 [1] : vector<8x8xf32> to vector<8xf32>
    %116 = vector.shape_cast %115 : vector<8xf32> to vector<8x1xf32>
    %117 = tpu.reciprocal %116 {approx = true} : vector<8x1xf32> -> vector<8x1xf32>
    %118 = vector.broadcast %117 : vector<8x1xf32> to vector<8x8xf32>
    %119 = arith.mulf %114, %118 : vector<8x8xf32>
    %120 = arith.truncf %119 : vector<8x8xf32> to vector<8x8xbf16>
    %121 = vector.extract_strided_slice %32 {offsets = [0, 8], sizes = [8, 8], strides = [1, 1]} : vector<8x32xf32> to vector<8x8xf32>
    %122 = arith.truncf %121 : vector<8x8xf32> to vector<8x8xbf16>
    %cst_48 = arith.constant dense<0.000000e+00> : vector<8x8xf32>
    %123 = tpu.matmul %120, %122, %cst_48 {dimension_numbers = #tpu.dot_dimension_numbers<[1], [0], [0], [1], [0, 0, 1, 1], [], []>} : vector<8x8xbf16>, vector<8x8xbf16>, vector<8x8xf32> -> vector<8x8xf32>
    %c0_49 = arith.constant 0 : index
    %c0_50 = arith.constant 0 : index
    %124 = vector.load %arg19[%c0_49, %c0_50] : memref<8x32xf32, #tpu.memory_space<vmem>>, vector<8x32xf32>
    %125 = arith.truncf %123 : vector<8x8xf32> to vector<8x8xbf16>
    %c8 = arith.constant 8 : index
    %c0_51 = arith.constant 0 : index
    %126 = vector.load %arg8[%c8, %c0_51] : memref<32x32xbf16, #tpu.memory_space<vmem>>, vector<8x32xbf16>
    %cst_52 = arith.constant dense<0.000000e+00> : vector<8x32xf32>
    %127 = tpu.matmul %125, %126, %cst_52 {dimension_numbers = #tpu.dot_dimension_numbers<[1], [0], [0], [1], [0, 0, 1, 1], [], []>} : vector<8x8xbf16>, vector<8x32xbf16>, vector<8x32xf32> -> vector<8x32xf32>
    %128 = arith.addf %124, %127 : vector<8x32xf32>
    %c0_53 = arith.constant 0 : index
    %c0_54 = arith.constant 0 : index
    %129 = vector.load %arg19[%c0_53, %c0_54] : memref<8x32xf32, #tpu.memory_space<vmem>>, vector<8x32xf32>
    tpu.vector_store %arg19[%c0_53, %c0_54], %128 {strides = array<i32>} : memref<8x32xf32, #tpu.memory_space<vmem>>, vector<8x32xf32>,
    %130 = vector.extract_strided_slice %62 {offsets = [0, 16], sizes = [8, 8], strides = [1, 1]} : vector<8x32xf32> to vector<8x8xf32>
    %131 = arith.truncf %130 : vector<8x8xf32> to vector<8x8xbf16>
    %132 = vector.extract_strided_slice %31 {offsets = [0, 16], sizes = [8, 8], strides = [1, 1]} : vector<8x32xf32> to vector<8x8xf32>
    %133 = arith.truncf %132 : vector<8x8xf32> to vector<8x8xbf16>
    %cst_55 = arith.constant dense<0.000000e+00> : vector<8x8xf32>
    %134 = tpu.matmul %131, %133, %cst_55 {dimension_numbers = #tpu.dot_dimension_numbers<[1], [1], [0], [0], [0, 0, 1, 0], [], []>} : vector<8x8xbf16>, vector<8x8xbf16>, vector<8x8xf32> -> vector<8x8xf32>
    %135 = vector.broadcast %72 : vector<8x1xf32> to vector<8x8xf32>
    %136 = arith.addf %134, %135 : vector<8x8xf32>
    %cst_56 = arith.constant dense<0xFF800000> : vector<8xf32>
    %137 = vector.multi_reduction <maximumf>, %136, %cst_56 [1] : vector<8x8xf32> to vector<8xf32>
    %138 = vector.shape_cast %137 : vector<8xf32> to vector<8x1xf32>
    %139 = vector.broadcast %138 : vector<8x1xf32> to vector<8x8xf32>
    %140 = arith.subf %136, %139 : vector<8x8xf32>
    %141 = math.exp %140 : vector<8x8xf32>
    %cst_57 = arith.constant dense<0.000000e+00> : vector<8xf32>
    %142 = vector.multi_reduction <add>, %141, %cst_57 [1] : vector<8x8xf32> to vector<8xf32>
    %143 = vector.shape_cast %142 : vector<8xf32> to vector<8x1xf32>
    %144 = tpu.reciprocal %143 {approx = true} : vector<8x1xf32> -> vector<8x1xf32>
    %145 = vector.broadcast %144 : vector<8x1xf32> to vector<8x8xf32>
    %146 = arith.mulf %141, %145 : vector<8x8xf32>
    %147 = arith.truncf %146 : vector<8x8xf32> to vector<8x8xbf16>
    %148 = vector.extract_strided_slice %32 {offsets = [0, 16], sizes = [8, 8], strides = [1, 1]} : vector<8x32xf32> to vector<8x8xf32>
    %149 = arith.truncf %148 : vector<8x8xf32> to vector<8x8xbf16>
    %cst_58 = arith.constant dense<0.000000e+00> : vector<8x8xf32>
    %150 = tpu.matmul %147, %149, %cst_58 {dimension_numbers = #tpu.dot_dimension_numbers<[1], [0], [0], [1], [0, 0, 1, 1], [], []>} : vector<8x8xbf16>, vector<8x8xbf16>, vector<8x8xf32> -> vector<8x8xf32>
    %c0_59 = arith.constant 0 : index
    %c0_60 = arith.constant 0 : index
    %151 = vector.load %arg19[%c0_59, %c0_60] : memref<8x32xf32, #tpu.memory_space<vmem>>, vector<8x32xf32>
    %152 = arith.truncf %150 : vector<8x8xf32> to vector<8x8xbf16>
    %c16 = arith.constant 16 : index
    %c0_61 = arith.constant 0 : index
    %153 = vector.load %arg8[%c16, %c0_61] : memref<32x32xbf16, #tpu.memory_space<vmem>>, vector<8x32xbf16>
    %cst_62 = arith.constant dense<0.000000e+00> : vector<8x32xf32>
    %154 = tpu.matmul %152, %153, %cst_62 {dimension_numbers = #tpu.dot_dimension_numbers<[1], [0], [0], [1], [0, 0, 1, 1], [], []>} : vector<8x8xbf16>, vector<8x32xbf16>, vector<8x32xf32> -> vector<8x32xf32>
    %155 = arith.addf %151, %154 : vector<8x32xf32>
    %c0_63 = arith.constant 0 : index
    %c0_64 = arith.constant 0 : index
    %156 = vector.load %arg19[%c0_63, %c0_64] : memref<8x32xf32, #tpu.memory_space<vmem>>, vector<8x32xf32>
    tpu.vector_store %arg19[%c0_63, %c0_64], %155 {strides = array<i32>} : memref<8x32xf32, #tpu.memory_space<vmem>>, vector<8x32xf32>,
    %157 = vector.extract_strided_slice %62 {offsets = [0, 24], sizes = [8, 8], strides = [1, 1]} : vector<8x32xf32> to vector<8x8xf32>
    %158 = arith.truncf %157 : vector<8x8xf32> to vector<8x8xbf16>
    %159 = vector.extract_strided_slice %31 {offsets = [0, 24], sizes = [8, 8], strides = [1, 1]} : vector<8x32xf32> to vector<8x8xf32>
    %160 = arith.truncf %159 : vector<8x8xf32> to vector<8x8xbf16>
    %cst_65 = arith.constant dense<0.000000e+00> : vector<8x8xf32>
    %161 = tpu.matmul %158, %160, %cst_65 {dimension_numbers = #tpu.dot_dimension_numbers<[1], [1], [0], [0], [0, 0, 1, 0], [], []>} : vector<8x8xbf16>, vector<8x8xbf16>, vector<8x8xf32> -> vector<8x8xf32>
    %162 = vector.broadcast %72 : vector<8x1xf32> to vector<8x8xf32>
    %163 = arith.addf %161, %162 : vector<8x8xf32>
    %cst_66 = arith.constant dense<0xFF800000> : vector<8xf32>
    %164 = vector.multi_reduction <maximumf>, %163, %cst_66 [1] : vector<8x8xf32> to vector<8xf32>
    %165 = vector.shape_cast %164 : vector<8xf32> to vector<8x1xf32>
    %166 = vector.broadcast %165 : vector<8x1xf32> to vector<8x8xf32>
    %167 = arith.subf %163, %166 : vector<8x8xf32>
    %168 = math.exp %167 : vector<8x8xf32>
    %cst_67 = arith.constant dense<0.000000e+00> : vector<8xf32>
    %169 = vector.multi_reduction <add>, %168, %cst_67 [1] : vector<8x8xf32> to vector<8xf32>
    %170 = vector.shape_cast %169 : vector<8xf32> to vector<8x1xf32>
    %171 = tpu.reciprocal %170 {approx = true} : vector<8x1xf32> -> vector<8x1xf32>
    %172 = vector.broadcast %171 : vector<8x1xf32> to vector<8x8xf32>
    %173 = arith.mulf %168, %172 : vector<8x8xf32>
    %174 = arith.truncf %173 : vector<8x8xf32> to vector<8x8xbf16>
    %175 = vector.extract_strided_slice %32 {offsets = [0, 24], sizes = [8, 8], strides = [1, 1]} : vector<8x32xf32> to vector<8x8xf32>
    %176 = arith.truncf %175 : vector<8x8xf32> to vector<8x8xbf16>
    %cst_68 = arith.constant dense<0.000000e+00> : vector<8x8xf32>
    %177 = tpu.matmul %174, %176, %cst_68 {dimension_numbers = #tpu.dot_dimension_numbers<[1], [0], [0], [1], [0, 0, 1, 1], [], []>} : vector<8x8xbf16>, vector<8x8xbf16>, vector<8x8xf32> -> vector<8x8xf32>
    %c0_69 = arith.constant 0 : index
    %c0_70 = arith.constant 0 : index
    %178 = vector.load %arg19[%c0_69, %c0_70] : memref<8x32xf32, #tpu.memory_space<vmem>>, vector<8x32xf32>
    %179 = arith.truncf %177 : vector<8x8xf32> to vector<8x8xbf16>
    %c24 = arith.constant 24 : index
    %c0_71 = arith.constant 0 : index
    %180 = vector.load %arg8[%c24, %c0_71] : memref<32x32xbf16, #tpu.memory_space<vmem>>, vector<8x32xbf16>
    %cst_72 = arith.constant dense<0.000000e+00> : vector<8x32xf32>
    %181 = tpu.matmul %179, %180, %cst_72 {dimension_numbers = #tpu.dot_dimension_numbers<[1], [0], [0], [1], [0, 0, 1, 1], [], []>} : vector<8x8xbf16>, vector<8x32xbf16>, vector<8x32xf32> -> vector<8x32xf32>
    %182 = arith.addf %178, %181 : vector<8x32xf32>
    %c0_73 = arith.constant 0 : index
    %c0_74 = arith.constant 0 : index
    %183 = vector.load %arg19[%c0_73, %c0_74] : memref<8x32xf32, #tpu.memory_space<vmem>>, vector<8x32xf32>
    tpu.vector_store %arg19[%c0_73, %c0_74], %182 {strides = array<i32>} : memref<8x32xf32, #tpu.memory_space<vmem>>, vector<8x32xf32>,
    %c0_75 = arith.constant 0 : index
    %c0_76 = arith.constant 0 : index
    %184 = vector.load %arg19[%c0_75, %c0_76] : memref<8x32xf32, #tpu.memory_space<vmem>>, vector<8x32xf32>
    %185 = vector.broadcast %73 : vector<1x32xf32> to vector<8x32xf32>
    %186 = arith.addf %184, %185 : vector<8x32xf32>
    %187 = arith.addf %59, %186 : vector<8x32xf32>
    %c0_77 = arith.constant 0 : index
    %c0_78 = arith.constant 0 : index
    %188 = vector.load %arg10[%c0_77, %c0_78] : memref<1x32xf32, #tpu.memory_space<vmem>>, vector<1x32xf32>
    %c0_79 = arith.constant 0 : index
    %c0_80 = arith.constant 0 : index
    %189 = vector.load %arg11[%c0_79, %c0_80] : memref<1x32xf32, #tpu.memory_space<vmem>>, vector<1x32xf32>
    %cst_81 = arith.constant dense<0.000000e+00> : vector<8xf32>
    %190 = vector.multi_reduction <add>, %187, %cst_81 [1] : vector<8x32xf32> to vector<8xf32>
    %191 = vector.shape_cast %190 : vector<8xf32> to vector<8x1xf32>
    %cst_82 = arith.constant 3.200000e+01 : f32
    %192 = vector.broadcast %cst_82 : f32 to vector<8x1xf32>
    %193 = arith.divf %191, %192 : vector<8x1xf32>
    %194 = vector.broadcast %193 : vector<8x1xf32> to vector<8x32xf32>
    %195 = arith.subf %187, %194 : vector<8x32xf32>
    %196 = arith.mulf %195, %195 : vector<8x32xf32>
    %cst_83 = arith.constant dense<0.000000e+00> : vector<8xf32>
    %197 = vector.multi_reduction <add>, %196, %cst_83 [1] : vector<8x32xf32> to vector<8xf32>
    %198 = vector.shape_cast %197 : vector<8xf32> to vector<8x1xf32>
    %cst_84 = arith.constant 3.200000e+01 : f32
    %199 = vector.broadcast %cst_84 : f32 to vector<8x1xf32>
    %200 = arith.divf %198, %199 : vector<8x1xf32>
    %201 = vector.broadcast %193 : vector<8x1xf32> to vector<8x32xf32>
    %202 = arith.subf %187, %201 : vector<8x32xf32>
    %cst_85 = arith.constant 9.99999974E-6 : f32
    %203 = vector.broadcast %cst_85 : f32 to vector<8x1xf32>
    %204 = arith.addf %200, %203 : vector<8x1xf32>
    %205 = math.rsqrt %204 : vector<8x1xf32>
    %206 = vector.broadcast %205 : vector<8x1xf32> to vector<8x32xf32>
    %207 = arith.mulf %202, %206 : vector<8x32xf32>
    %208 = vector.broadcast %188 : vector<1x32xf32> to vector<8x32xf32>
    %209 = arith.mulf %207, %208 : vector<8x32xf32>
    %210 = vector.broadcast %189 : vector<1x32xf32> to vector<8x32xf32>
    %211 = arith.addf %209, %210 : vector<8x32xf32>
    %212 = arith.truncf %211 : vector<8x32xf32> to vector<8x32xbf16>
    %c0_86 = arith.constant 0 : index
    %c0_87 = arith.constant 0 : index
    %213 = vector.load %arg12[%c0_86, %c0_87] : memref<32x64xbf16, #tpu.memory_space<vmem>>, vector<32x64xbf16>
    %cst_88 = arith.constant dense<0.000000e+00> : vector<8x64xf32>
    %214 = tpu.matmul %212, %213, %cst_88 {dimension_numbers = #tpu.dot_dimension_numbers<[1], [0], [0], [1], [0, 0, 1, 1], [], []>} : vector<8x32xbf16>, vector<32x64xbf16>, vector<8x64xf32> -> vector<8x64xf32>
    %c0_89 = arith.constant 0 : index
    %c0_90 = arith.constant 0 : index
    %215 = vector.load %arg13[%c0_89, %c0_90] : memref<1x64xf32, #tpu.memory_space<vmem>>, vector<1x64xf32>
    %216 = vector.broadcast %215 : vector<1x64xf32> to vector<8x64xf32>
    %217 = arith.addf %214, %216 : vector<8x64xf32>
    %cst_91 = arith.constant 0.000000e+00 : f32
    %218 = vector.broadcast %cst_91 : f32 to vector<8x64xf32>
    %219 = arith.maximumf %217, %218 : vector<8x64xf32>
    %220 = arith.truncf %219 : vector<8x64xf32> to vector<8x64xbf16>
    %c0_92 = arith.constant 0 : index
    %c0_93 = arith.constant 0 : index
    %221 = vector.load %arg14[%c0_92, %c0_93] : memref<64x32xbf16, #tpu.memory_space<vmem>>, vector<64x32xbf16>
    %cst_94 = arith.constant dense<0.000000e+00> : vector<8x32xf32>
    %222 = tpu.matmul %220, %221, %cst_94 {dimension_numbers = #tpu.dot_dimension_numbers<[1], [0], [0], [1], [0, 0, 1, 1], [], []>} : vector<8x64xbf16>, vector<64x32xbf16>, vector<8x32xf32> -> vector<8x32xf32>
    %c0_95 = arith.constant 0 : index
    %c0_96 = arith.constant 0 : index
    %223 = vector.load %arg15[%c0_95, %c0_96] : memref<1x32xf32, #tpu.memory_space<vmem>>, vector<1x32xf32>
    %224 = vector.broadcast %223 : vector<1x32xf32> to vector<8x32xf32>
    %225 = arith.addf %222, %224 : vector<8x32xf32>
    %226 = arith.addf %211, %225 : vector<8x32xf32>
    %c0_97 = arith.constant 0 : index
    %c0_98 = arith.constant 0 : index
    %227 = vector.load %arg16[%c0_97, %c0_98] : memref<1x32xf32, #tpu.memory_space<vmem>>, vector<1x32xf32>
    %c0_99 = arith.constant 0 : index
    %c0_100 = arith.constant 0 : index
    %228 = vector.load %arg17[%c0_99, %c0_100] : memref<1x32xf32, #tpu.memory_space<vmem>>, vector<1x32xf32>
    %cst_101 = arith.constant dense<0.000000e+00> : vector<8xf32>
    %229 = vector.multi_reduction <add>, %226, %cst_101 [1] : vector<8x32xf32> to vector<8xf32>
    %230 = vector.shape_cast %229 : vector<8xf32> to vector<8x1xf32>
    %cst_102 = arith.constant 3.200000e+01 : f32
    %231 = vector.broadcast %cst_102 : f32 to vector<8x1xf32>
    %232 = arith.divf %230, %231 : vector<8x1xf32>
    %233 = vector.broadcast %232 : vector<8x1xf32> to vector<8x32xf32>
    %234 = arith.subf %226, %233 : vector<8x32xf32>
    %235 = arith.mulf %234, %234 : vector<8x32xf32>
    %cst_103 = arith.constant dense<0.000000e+00> : vector<8xf32>
    %236 = vector.multi_reduction <add>, %235, %cst_103 [1] : vector<8x32xf32> to vector<8xf32>
    %237 = vector.shape_cast %236 : vector<8xf32> to vector<8x1xf32>
    %cst_104 = arith.constant 3.200000e+01 : f32
    %238 = vector.broadcast %cst_104 : f32 to vector<8x1xf32>
    %239 = arith.divf %237, %238 : vector<8x1xf32>
    %240 = vector.broadcast %232 : vector<8x1xf32> to vector<8x32xf32>
    %241 = arith.subf %226, %240 : vector<8x32xf32>
    %cst_105 = arith.constant 9.99999974E-6 : f32
    %242 = vector.broadcast %cst_105 : f32 to vector<8x1xf32>
    %243 = arith.addf %239, %242 : vector<8x1xf32>
    %244 = math.rsqrt %243 : vector<8x1xf32>
    %245 = vector.broadcast %244 : vector<8x1xf32> to vector<8x32xf32>
    %246 = arith.mulf %241, %245 : vector<8x32xf32>
    %247 = vector.broadcast %227 : vector<1x32xf32> to vector<8x32xf32>
    %248 = arith.mulf %246, %247 : vector<8x32xf32>
    %249 = vector.broadcast %228 : vector<1x32xf32> to vector<8x32xf32>
    %250 = arith.addf %248, %249 : vector<8x32xf32>
    %c0_106 = arith.constant 0 : index
    %c0_107 = arith.constant 0 : index
    %c0_108 = arith.constant 0 : index
    %251 = vector.load %arg18[%c0_106, %c0_107, %c0_108] : memref<1x8x32xf32, #tpu.memory_space<vmem>>, vector<1x8x32xf32>
    %252 = vector.shape_cast %251 : vector<1x8x32xf32> to vector<8x32xf32>
    %253 = vector.shape_cast %250 : vector<8x32xf32> to vector<1x8x32xf32>
    tpu.vector_store %arg18[%c0_106, %c0_107, %c0_108], %253 {strides = array<i32>} : memref<1x8x32xf32, #tpu.memory_space<vmem>>, vector<1x8x32xf32>,
    return
  }
  func.func @transform_0(%arg0: i32, %arg1: i32, %arg2: memref<2xi32, #tpu.memory_space<smem>>) -> (i32, i32, i32) {
    %c0_i32 = arith.constant 0 : i32
    %c0_i32_0 = arith.constant 0 : i32
    %c0_i32_1 = arith.constant 0 : i32
    return %arg0, %c0_i32, %c0_i32_0 : i32, i32, i32
  }
  func.func @transform_1(%arg0: i32, %arg1: i32, %arg2: memref<2xi32, #tpu.memory_space<smem>>) -> (i32, i32) {
    %c0_i32 = arith.constant 0 : i32
    %c0_i32_0 = arith.constant 0 : i32
    %c0_i32_1 = arith.constant 0 : i32
    return %c0_i32, %c0_i32_0 : i32, i32
  }
  func.func @transform_2(%arg0: i32, %arg1: i32, %arg2: memref<2xi32, #tpu.memory_space<smem>>) -> (i32, i32) {
    %c0_i32 = arith.constant 0 : i32
    %c0_i32_0 = arith.constant 0 : i32
    %c0_i32_1 = arith.constant 0 : i32
    return %c0_i32, %c0_i32_0 : i32, i32
  }
  func.func @transform_3(%arg0: i32, %arg1: i32, %arg2: memref<2xi32, #tpu.memory_space<smem>>) -> (i32, i32) {
    %c0_i32 = arith.constant 0 : i32
    %c0_i32_0 = arith.constant 0 : i32
    %c0_i32_1 = arith.constant 0 : i32
    return %c0_i32, %c0_i32_0 : i32, i32
  }
  func.func @transform_4(%arg0: i32, %arg1: i32, %arg2: memref<2xi32, #tpu.memory_space<smem>>) -> (i32, i32) {
    %c0_i32 = arith.constant 0 : i32
    %c0_i32_0 = arith.constant 0 : i32
    %c0_i32_1 = arith.constant 0 : i32
    return %c0_i32, %c0_i32_0 : i32, i32
  }
  func.func @transform_5(%arg0: i32, %arg1: i32, %arg2: memref<2xi32, #tpu.memory_space<smem>>) -> (i32, i32) {
    %c0_i32 = arith.constant 0 : i32
    %c0_i32_0 = arith.constant 0 : i32
    %c0_i32_1 = arith.constant 0 : i32
    return %c0_i32, %c0_i32_0 : i32, i32
  }
  func.func @transform_6(%arg0: i32, %arg1: i32, %arg2: memref<2xi32, #tpu.memory_space<smem>>) -> (i32, i32) {
    %c0_i32 = arith.constant 0 : i32
    %c0_i32_0 = arith.constant 0 : i32
    %c0_i32_1 = arith.constant 0 : i32
    return %c0_i32, %c0_i32_0 : i32, i32
  }
  func.func @transform_7(%arg0: i32, %arg1: i32, %arg2: memref<2xi32, #tpu.memory_space<smem>>) -> (i32, i32) {
    %c0_i32 = arith.constant 0 : i32
    %c0_i32_0 = arith.constant 0 : i32
    %c0_i32_1 = arith.constant 0 : i32
    return %c0_i32, %c0_i32_0 : i32, i32
  }
  func.func @transform_8(%arg0: i32, %arg1: i32, %arg2: memref<2xi32, #tpu.memory_space<smem>>) -> (i32, i32) {
    %c0_i32 = arith.constant 0 : i32
    %c0_i32_0 = arith.constant 0 : i32
    %c0_i32_1 = arith.constant 0 : i32
    return %c0_i32, %c0_i32_0 : i32, i32
  }
  func.func @transform_9(%arg0: i32, %arg1: i32, %arg2: memref<2xi32, #tpu.memory_space<smem>>) -> (i32, i32) {
    %c0_i32 = arith.constant 0 : i32
    %c0_i32_0 = arith.constant 0 : i32
    %c0_i32_1 = arith.constant 0 : i32
    return %c0_i32, %c0_i32_0 : i32, i32
  }
  func.func @transform_10(%arg0: i32, %arg1: i32, %arg2: memref<2xi32, #tpu.memory_space<smem>>) -> (i32, i32) {
    %c0_i32 = arith.constant 0 : i32
    %c0_i32_0 = arith.constant 0 : i32
    %c0_i32_1 = arith.constant 0 : i32
    return %c0_i32, %c0_i32_0 : i32, i32
  }
  func.func @transform_11(%arg0: i32, %arg1: i32, %arg2: memref<2xi32, #tpu.memory_space<smem>>) -> (i32, i32) {
    %c0_i32 = arith.constant 0 : i32
    %c0_i32_0 = arith.constant 0 : i32
    %c0_i32_1 = arith.constant 0 : i32
    return %c0_i32, %c0_i32_0 : i32, i32
  }
  func.func @transform_12(%arg0: i32, %arg1: i32, %arg2: memref<2xi32, #tpu.memory_space<smem>>) -> (i32, i32) {
    %c0_i32 = arith.constant 0 : i32
    %c0_i32_0 = arith.constant 0 : i32
    %c0_i32_1 = arith.constant 0 : i32
    return %c0_i32, %c0_i32_0 : i32, i32
  }
  func.func @transform_13(%arg0: i32, %arg1: i32, %arg2: memref<2xi32, #tpu.memory_space<smem>>) -> (i32, i32) {
    %c0_i32 = arith.constant 0 : i32
    %c0_i32_0 = arith.constant 0 : i32
    %c0_i32_1 = arith.constant 0 : i32
    return %c0_i32, %c0_i32_0 : i32, i32
  }
  func.func @transform_14(%arg0: i32, %arg1: i32, %arg2: memref<2xi32, #tpu.memory_space<smem>>) -> (i32, i32) {
    %c0_i32 = arith.constant 0 : i32
    %c0_i32_0 = arith.constant 0 : i32
    %c0_i32_1 = arith.constant 0 : i32
    return %c0_i32, %c0_i32_0 : i32, i32
  }
  func.func @transform_15(%arg0: i32, %arg1: i32, %arg2: memref<2xi32, #tpu.memory_space<smem>>) -> (i32, i32, i32) {
    %c0_i32 = arith.constant 0 : i32
    %c0_i32_0 = arith.constant 0 : i32
    return %arg0, %arg1, %c0_i32 : i32, i32, i32
  }
}

module attributes {stable_mosaic.version = 11 : i64} {
  func.func @_decoder_block_kernel(%arg0: i32, %arg1: i32, %arg2: memref<2xi32, #tpu.memory_space<smem>>, %arg3: memref<2xi32, #tpu.memory_space<smem>>, %arg4: memref<1x8x32xf32, #tpu.memory_space<vmem>>, %arg5: memref<1x16x32xf32, #tpu.memory_space<vmem>>, %arg6: memref<1x32xf32, #tpu.memory_space<vmem>>, %arg7: memref<1x32xf32, #tpu.memory_space<vmem>>, %arg8: memref<32x32xbf16, #tpu.memory_space<vmem>>, %arg9: memref<32x64xbf16, #tpu.memory_space<vmem>>, %arg10: memref<32x32xbf16, #tpu.memory_space<vmem>>, %arg11: memref<1x32xf32, #tpu.memory_space<vmem>>, %arg12: memref<1x32xf32, #tpu.memory_space<vmem>>, %arg13: memref<1x32xf32, #tpu.memory_space<vmem>>, %arg14: memref<32x32xbf16, #tpu.memory_space<vmem>>, %arg15: memref<32x64xbf16, #tpu.memory_space<vmem>>, %arg16: memref<32x32xbf16, #tpu.memory_space<vmem>>, %arg17: memref<1x32xf32, #tpu.memory_space<vmem>>, %arg18: memref<1x32xf32, #tpu.memory_space<vmem>>, %arg19: memref<1x32xf32, #tpu.memory_space<vmem>>, %arg20: memref<32x64xbf16, #tpu.memory_space<vmem>>, %arg21: memref<1x64xf32, #tpu.memory_space<vmem>>, %arg22: memref<64x32xbf16, #tpu.memory_space<vmem>>, %arg23: memref<1x32xf32, #tpu.memory_space<vmem>>, %arg24: memref<1x8x32xf32, #tpu.memory_space<vmem>>, %arg25: memref<8x32xf32, #tpu.memory_space<vmem>>) attributes {dimension_semantics = [#tpu.dimension_semantics<parallel>, #tpu.dimension_semantics<parallel>], iteration_bounds = array<i64: 2, 1>, scalar_prefetch = 2 : i64, scratch_operands = 1 : i64, tpu.core_type = #tpu.core_type<tc>, window_params = [{transform_indices = @transform_0, window_bounds = array<i64: 1, 8, 32>}, {transform_indices = @transform_1, window_bounds = array<i64: 1, 16, 32>}, {pipeline_mode = #tpu.pipeline_mode<synchronous>, transform_indices = @transform_2, window_bounds = array<i64: 1, 32>}, {pipeline_mode = #tpu.pipeline_mode<synchronous>, transform_indices = @transform_3, window_bounds = array<i64: 1, 32>}, {pipeline_mode = #tpu.pipeline_mode<synchronous>, transform_indices = @transform_4, window_bounds = array<i64: 32, 32>}, {pipeline_mode = #tpu.pipeline_mode<synchronous>, transform_indices = @transform_5, window_bounds = array<i64: 32, 64>}, {pipeline_mode = #tpu.pipeline_mode<synchronous>, transform_indices = @transform_6, window_bounds = array<i64: 32, 32>}, {pipeline_mode = #tpu.pipeline_mode<synchronous>, transform_indices = @transform_7, window_bounds = array<i64: 1, 32>}, {pipeline_mode = #tpu.pipeline_mode<synchronous>, transform_indices = @transform_8, window_bounds = array<i64: 1, 32>}, {pipeline_mode = #tpu.pipeline_mode<synchronous>, transform_indices = @transform_9, window_bounds = array<i64: 1, 32>}, {pipeline_mode = #tpu.pipeline_mode<synchronous>, transform_indices = @transform_10, window_bounds = array<i64: 32, 32>}, {pipeline_mode = #tpu.pipeline_mode<synchronous>, transform_indices = @transform_11, window_bounds = array<i64: 32, 64>}, {pipeline_mode = #tpu.pipeline_mode<synchronous>, transform_indices = @transform_12, window_bounds = array<i64: 32, 32>}, {pipeline_mode = #tpu.pipeline_mode<synchronous>, transform_indices = @transform_13, window_bounds = array<i64: 1, 32>}, {pipeline_mode = #tpu.pipeline_mode<synchronous>, transform_indices = @transform_14, window_bounds = array<i64: 1, 32>}, {pipeline_mode = #tpu.pipeline_mode<synchronous>, transform_indices = @transform_15, window_bounds = array<i64: 1, 32>}, {pipeline_mode = #tpu.pipeline_mode<synchronous>, transform_indices = @transform_16, window_bounds = array<i64: 32, 64>}, {pipeline_mode = #tpu.pipeline_mode<synchronous>, transform_indices = @transform_17, window_bounds = array<i64: 1, 64>}, {pipeline_mode = #tpu.pipeline_mode<synchronous>, transform_indices = @transform_18, window_bounds = array<i64: 64, 32>}, {pipeline_mode = #tpu.pipeline_mode<synchronous>, transform_indices = @transform_19, window_bounds = array<i64: 1, 32>}, {transform_indices = @transform_20, window_bounds = array<i64: 1, 8, 32>}]} {
    %c8_i32 = arith.constant 8 : i32
    %0 = arith.muli %arg1, %c8_i32 : i32
    %1 = tpu.assume_multiple %0, 8 : i32
    %c0 = arith.constant 0 : index
    %c0_0 = arith.constant 0 : index
    %c0_1 = arith.constant 0 : index
    %2 = vector.load %arg4[%c0, %c0_0, %c0_1] : memref<1x8x32xf32, #tpu.memory_space<vmem>>, vector<1x8x32xf32>
    %3 = vector.shape_cast %2 : vector<1x8x32xf32> to vector<8x32xf32>
    %c0_2 = arith.constant 0 : index
    %c0_3 = arith.constant 0 : index
    %4 = vector.load %arg6[%c0_2, %c0_3] : memref<1x32xf32, #tpu.memory_space<vmem>>, vector<1x32xf32>
    %c0_4 = arith.constant 0 : index
    %c0_5 = arith.constant 0 : index
    %5 = vector.load %arg7[%c0_4, %c0_5] : memref<1x32xf32, #tpu.memory_space<vmem>>, vector<1x32xf32>
    %cst = arith.constant dense<0.000000e+00> : vector<8xf32>
    %6 = vector.multi_reduction <add>, %3, %cst [1] : vector<8x32xf32> to vector<8xf32>
    %7 = vector.shape_cast %6 : vector<8xf32> to vector<8x1xf32>
    %cst_6 = arith.constant 3.200000e+01 : f32
    %8 = vector.broadcast %cst_6 : f32 to vector<8x1xf32>
    %9 = arith.divf %7, %8 : vector<8x1xf32>
    %10 = vector.broadcast %9 : vector<8x1xf32> to vector<8x32xf32>
    %11 = arith.subf %3, %10 : vector<8x32xf32>
    %12 = arith.mulf %11, %11 : vector<8x32xf32>
    %cst_7 = arith.constant dense<0.000000e+00> : vector<8xf32>
    %13 = vector.multi_reduction <add>, %12, %cst_7 [1] : vector<8x32xf32> to vector<8xf32>
    %14 = vector.shape_cast %13 : vector<8xf32> to vector<8x1xf32>
    %cst_8 = arith.constant 3.200000e+01 : f32
    %15 = vector.broadcast %cst_8 : f32 to vector<8x1xf32>
    %16 = arith.divf %14, %15 : vector<8x1xf32>
    %17 = vector.broadcast %9 : vector<8x1xf32> to vector<8x32xf32>
    %18 = arith.subf %3, %17 : vector<8x32xf32>
    %cst_9 = arith.constant 9.99999974E-6 : f32
    %19 = vector.broadcast %cst_9 : f32 to vector<8x1xf32>
    %20 = arith.addf %16, %19 : vector<8x1xf32>
    %21 = math.rsqrt %20 : vector<8x1xf32>
    %22 = vector.broadcast %21 : vector<8x1xf32> to vector<8x32xf32>
    %23 = arith.mulf %18, %22 : vector<8x32xf32>
    %24 = vector.broadcast %4 : vector<1x32xf32> to vector<8x32xf32>
    %25 = arith.mulf %23, %24 : vector<8x32xf32>
    %26 = vector.broadcast %5 : vector<1x32xf32> to vector<8x32xf32>
    %27 = arith.addf %25, %26 : vector<8x32xf32>
    %28 = arith.truncf %27 : vector<8x32xf32> to vector<8x32xbf16>
    %c0_10 = arith.constant 0 : index
    %c0_11 = arith.constant 0 : index
    %29 = vector.load %arg9[%c0_10, %c0_11] : memref<32x64xbf16, #tpu.memory_space<vmem>>, vector<32x64xbf16>
    %cst_12 = arith.constant dense<0.000000e+00> : vector<8x64xf32>
    %30 = tpu.matmul %28, %29, %cst_12 {dimension_numbers = #tpu.dot_dimension_numbers<[1], [0], [0], [1], [0, 0, 1, 1], [], []>} : vector<8x32xbf16>, vector<32x64xbf16>, vector<8x64xf32> -> vector<8x64xf32>
    %31 = vector.extract_strided_slice %30 {offsets = [0, 0], sizes = [8, 32], strides = [1, 1]} : vector<8x64xf32> to vector<8x32xf32>
    %32 = vector.extract_strided_slice %30 {offsets = [0, 32], sizes = [8, 32], strides = [1, 1]} : vector<8x64xf32> to vector<8x32xf32>
    %c0_13 = arith.constant 0 : index
    %33 = arith.index_cast %1 : i32 to index
    %c0_14 = arith.constant 0 : index
    %34 = vector.load %arg4[%c0_13, %33, %c0_14] : memref<1x8x32xf32, #tpu.memory_space<vmem>>, vector<1x8x32xf32>
    %35 = vector.shape_cast %34 : vector<1x8x32xf32> to vector<8x32xf32>
    %c0_15 = arith.constant 0 : index
    %c0_16 = arith.constant 0 : index
    %36 = vector.load %arg6[%c0_15, %c0_16] : memref<1x32xf32, #tpu.memory_space<vmem>>, vector<1x32xf32>
    %c0_17 = arith.constant 0 : index
    %c0_18 = arith.constant 0 : index
    %37 = vector.load %arg7[%c0_17, %c0_18] : memref<1x32xf32, #tpu.memory_space<vmem>>, vector<1x32xf32>
    %cst_19 = arith.constant dense<0.000000e+00> : vector<8xf32>
    %38 = vector.multi_reduction <add>, %35, %cst_19 [1] : vector<8x32xf32> to vector<8xf32>
    %39 = vector.shape_cast %38 : vector<8xf32> to vector<8x1xf32>
    %cst_20 = arith.constant 3.200000e+01 : f32
    %40 = vector.broadcast %cst_20 : f32 to vector<8x1xf32>
    %41 = arith.divf %39, %40 : vector<8x1xf32>
    %42 = vector.broadcast %41 : vector<8x1xf32> to vector<8x32xf32>
    %43 = arith.subf %35, %42 : vector<8x32xf32>
    %44 = arith.mulf %43, %43 : vector<8x32xf32>
    %cst_21 = arith.constant dense<0.000000e+00> : vector<8xf32>
    %45 = vector.multi_reduction <add>, %44, %cst_21 [1] : vector<8x32xf32> to vector<8xf32>
    %46 = vector.shape_cast %45 : vector<8xf32> to vector<8x1xf32>
    %cst_22 = arith.constant 3.200000e+01 : f32
    %47 = vector.broadcast %cst_22 : f32 to vector<8x1xf32>
    %48 = arith.divf %46, %47 : vector<8x1xf32>
    %49 = vector.broadcast %41 : vector<8x1xf32> to vector<8x32xf32>
    %50 = arith.subf %35, %49 : vector<8x32xf32>
    %cst_23 = arith.constant 9.99999974E-6 : f32
    %51 = vector.broadcast %cst_23 : f32 to vector<8x1xf32>
    %52 = arith.addf %48, %51 : vector<8x1xf32>
    %53 = math.rsqrt %52 : vector<8x1xf32>
    %54 = vector.broadcast %53 : vector<8x1xf32> to vector<8x32xf32>
    %55 = arith.mulf %50, %54 : vector<8x32xf32>
    %56 = vector.broadcast %36 : vector<1x32xf32> to vector<8x32xf32>
    %57 = arith.mulf %55, %56 : vector<8x32xf32>
    %58 = vector.broadcast %37 : vector<1x32xf32> to vector<8x32xf32>
    %59 = arith.addf %57, %58 : vector<8x32xf32>
    %60 = arith.truncf %59 : vector<8x32xf32> to vector<8x32xbf16>
    %c0_24 = arith.constant 0 : index
    %c0_25 = arith.constant 0 : index
    %61 = vector.load %arg8[%c0_24, %c0_25] : memref<32x32xbf16, #tpu.memory_space<vmem>>, vector<32x32xbf16>
    %cst_26 = arith.constant dense<0.000000e+00> : vector<8x32xf32>
    %62 = tpu.matmul %60, %61, %cst_26 {dimension_numbers = #tpu.dot_dimension_numbers<[1], [0], [0], [1], [0, 0, 1, 1], [], []>} : vector<8x32xbf16>, vector<32x32xbf16>, vector<8x32xf32> -> vector<8x32xf32>
    %63 = tpu.iota {dimensions = array<i32: 0>} : vector<8x8xi32>
    %64 = vector.broadcast %1 : i32 to vector<8x8xi32>
    %65 = arith.addi %64, %63 : vector<8x8xi32>
    %66 = tpu.iota {dimensions = array<i32: 1>} : vector<8x8xi32>
    %67 = arith.cmpi sge, %65, %66 : vector<8x8xi32>
    %cst_27 = arith.constant 0.000000e+00 : f32
    %cst_28 = arith.constant -1.000000e+09 : f32
    %68 = vector.broadcast %cst_27 : f32 to vector<8x8xf32>
    %69 = vector.broadcast %cst_28 : f32 to vector<8x8xf32>
    %70 = arith.select %67, %68, %69 : vector<8x8xi1>, vector<8x8xf32>
    %c0_29 = arith.constant 0 : index
    %c0_30 = arith.constant 0 : index
    %71 = vector.load %arg11[%c0_29, %c0_30] : memref<1x32xf32, #tpu.memory_space<vmem>>, vector<1x32xf32>
    %cst_31 = arith.constant 0.000000e+00 : f32
    %72 = vector.broadcast %cst_31 : f32 to vector<8x32xf32>
    %c0_32 = arith.constant 0 : index
    %c0_33 = arith.constant 0 : index
    %73 = vector.load %arg25[%c0_32, %c0_33] : memref<8x32xf32, #tpu.memory_space<vmem>>, vector<8x32xf32>
    tpu.vector_store %arg25[%c0_32, %c0_33], %72 {strides = array<i32>} : memref<8x32xf32, #tpu.memory_space<vmem>>, vector<8x32xf32>,
    %74 = vector.extract_strided_slice %62 {offsets = [0, 0], sizes = [8, 8], strides = [1, 1]} : vector<8x32xf32> to vector<8x8xf32>
    %75 = arith.truncf %74 : vector<8x8xf32> to vector<8x8xbf16>
    %76 = vector.extract_strided_slice %31 {offsets = [0, 0], sizes = [8, 8], strides = [1, 1]} : vector<8x32xf32> to vector<8x8xf32>
    %77 = arith.truncf %76 : vector<8x8xf32> to vector<8x8xbf16>
    %cst_34 = arith.constant dense<0.000000e+00> : vector<8x8xf32>
    %78 = tpu.matmul %75, %77, %cst_34 {dimension_numbers = #tpu.dot_dimension_numbers<[1], [1], [0], [0], [0, 0, 1, 0], [], []>} : vector<8x8xbf16>, vector<8x8xbf16>, vector<8x8xf32> -> vector<8x8xf32>
    %79 = arith.addf %78, %70 : vector<8x8xf32>
    %cst_35 = arith.constant dense<0xFF800000> : vector<8xf32>
    %80 = vector.multi_reduction <maximumf>, %79, %cst_35 [1] : vector<8x8xf32> to vector<8xf32>
    %81 = vector.shape_cast %80 : vector<8xf32> to vector<8x1xf32>
    %82 = vector.broadcast %81 : vector<8x1xf32> to vector<8x8xf32>
    %83 = arith.subf %79, %82 : vector<8x8xf32>
    %84 = math.exp %83 : vector<8x8xf32>
    %cst_36 = arith.constant dense<0.000000e+00> : vector<8xf32>
    %85 = vector.multi_reduction <add>, %84, %cst_36 [1] : vector<8x8xf32> to vector<8xf32>
    %86 = vector.shape_cast %85 : vector<8xf32> to vector<8x1xf32>
    %87 = tpu.reciprocal %86 {approx = true} : vector<8x1xf32> -> vector<8x1xf32>
    %88 = vector.broadcast %87 : vector<8x1xf32> to vector<8x8xf32>
    %89 = arith.mulf %84, %88 : vector<8x8xf32>
    %90 = arith.truncf %89 : vector<8x8xf32> to vector<8x8xbf16>
    %91 = vector.extract_strided_slice %32 {offsets = [0, 0], sizes = [8, 8], strides = [1, 1]} : vector<8x32xf32> to vector<8x8xf32>
    %92 = arith.truncf %91 : vector<8x8xf32> to vector<8x8xbf16>
    %cst_37 = arith.constant dense<0.000000e+00> : vector<8x8xf32>
    %93 = tpu.matmul %90, %92, %cst_37 {dimension_numbers = #tpu.dot_dimension_numbers<[1], [0], [0], [1], [0, 0, 1, 1], [], []>} : vector<8x8xbf16>, vector<8x8xbf16>, vector<8x8xf32> -> vector<8x8xf32>
    %c0_38 = arith.constant 0 : index
    %c0_39 = arith.constant 0 : index
    %94 = vector.load %arg25[%c0_38, %c0_39] : memref<8x32xf32, #tpu.memory_space<vmem>>, vector<8x32xf32>
    %95 = arith.truncf %93 : vector<8x8xf32> to vector<8x8xbf16>
    %c0_40 = arith.constant 0 : index
    %c0_41 = arith.constant 0 : index
    %96 = vector.load %arg10[%c0_40, %c0_41] : memref<32x32xbf16, #tpu.memory_space<vmem>>, vector<8x32xbf16>
    %cst_42 = arith.constant dense<0.000000e+00> : vector<8x32xf32>
    %97 = tpu.matmul %95, %96, %cst_42 {dimension_numbers = #tpu.dot_dimension_numbers<[1], [0], [0], [1], [0, 0, 1, 1], [], []>} : vector<8x8xbf16>, vector<8x32xbf16>, vector<8x32xf32> -> vector<8x32xf32>
    %98 = arith.addf %94, %97 : vector<8x32xf32>
    %c0_43 = arith.constant 0 : index
    %c0_44 = arith.constant 0 : index
    %99 = vector.load %arg25[%c0_43, %c0_44] : memref<8x32xf32, #tpu.memory_space<vmem>>, vector<8x32xf32>
    tpu.vector_store %arg25[%c0_43, %c0_44], %98 {strides = array<i32>} : memref<8x32xf32, #tpu.memory_space<vmem>>, vector<8x32xf32>,
    %100 = vector.extract_strided_slice %62 {offsets = [0, 8], sizes = [8, 8], strides = [1, 1]} : vector<8x32xf32> to vector<8x8xf32>
    %101 = arith.truncf %100 : vector<8x8xf32> to vector<8x8xbf16>
    %102 = vector.extract_strided_slice %31 {offsets = [0, 8], sizes = [8, 8], strides = [1, 1]} : vector<8x32xf32> to vector<8x8xf32>
    %103 = arith.truncf %102 : vector<8x8xf32> to vector<8x8xbf16>
    %cst_45 = arith.constant dense<0.000000e+00> : vector<8x8xf32>
    %104 = tpu.matmul %101, %103, %cst_45 {dimension_numbers = #tpu.dot_dimension_numbers<[1], [1], [0], [0], [0, 0, 1, 0], [], []>} : vector<8x8xbf16>, vector<8x8xbf16>, vector<8x8xf32> -> vector<8x8xf32>
    %105 = arith.addf %104, %70 : vector<8x8xf32>
    %cst_46 = arith.constant dense<0xFF800000> : vector<8xf32>
    %106 = vector.multi_reduction <maximumf>, %105, %cst_46 [1] : vector<8x8xf32> to vector<8xf32>
    %107 = vector.shape_cast %106 : vector<8xf32> to vector<8x1xf32>
    %108 = vector.broadcast %107 : vector<8x1xf32> to vector<8x8xf32>
    %109 = arith.subf %105, %108 : vector<8x8xf32>
    %110 = math.exp %109 : vector<8x8xf32>
    %cst_47 = arith.constant dense<0.000000e+00> : vector<8xf32>
    %111 = vector.multi_reduction <add>, %110, %cst_47 [1] : vector<8x8xf32> to vector<8xf32>
    %112 = vector.shape_cast %111 : vector<8xf32> to vector<8x1xf32>
    %113 = tpu.reciprocal %112 {approx = true} : vector<8x1xf32> -> vector<8x1xf32>
    %114 = vector.broadcast %113 : vector<8x1xf32> to vector<8x8xf32>
    %115 = arith.mulf %110, %114 : vector<8x8xf32>
    %116 = arith.truncf %115 : vector<8x8xf32> to vector<8x8xbf16>
    %117 = vector.extract_strided_slice %32 {offsets = [0, 8], sizes = [8, 8], strides = [1, 1]} : vector<8x32xf32> to vector<8x8xf32>
    %118 = arith.truncf %117 : vector<8x8xf32> to vector<8x8xbf16>
    %cst_48 = arith.constant dense<0.000000e+00> : vector<8x8xf32>
    %119 = tpu.matmul %116, %118, %cst_48 {dimension_numbers = #tpu.dot_dimension_numbers<[1], [0], [0], [1], [0, 0, 1, 1], [], []>} : vector<8x8xbf16>, vector<8x8xbf16>, vector<8x8xf32> -> vector<8x8xf32>
    %c0_49 = arith.constant 0 : index
    %c0_50 = arith.constant 0 : index
    %120 = vector.load %arg25[%c0_49, %c0_50] : memref<8x32xf32, #tpu.memory_space<vmem>>, vector<8x32xf32>
    %121 = arith.truncf %119 : vector<8x8xf32> to vector<8x8xbf16>
    %c8 = arith.constant 8 : index
    %c0_51 = arith.constant 0 : index
    %122 = vector.load %arg10[%c8, %c0_51] : memref<32x32xbf16, #tpu.memory_space<vmem>>, vector<8x32xbf16>
    %cst_52 = arith.constant dense<0.000000e+00> : vector<8x32xf32>
    %123 = tpu.matmul %121, %122, %cst_52 {dimension_numbers = #tpu.dot_dimension_numbers<[1], [0], [0], [1], [0, 0, 1, 1], [], []>} : vector<8x8xbf16>, vector<8x32xbf16>, vector<8x32xf32> -> vector<8x32xf32>
    %124 = arith.addf %120, %123 : vector<8x32xf32>
    %c0_53 = arith.constant 0 : index
    %c0_54 = arith.constant 0 : index
    %125 = vector.load %arg25[%c0_53, %c0_54] : memref<8x32xf32, #tpu.memory_space<vmem>>, vector<8x32xf32>
    tpu.vector_store %arg25[%c0_53, %c0_54], %124 {strides = array<i32>} : memref<8x32xf32, #tpu.memory_space<vmem>>, vector<8x32xf32>,
    %126 = vector.extract_strided_slice %62 {offsets = [0, 16], sizes = [8, 8], strides = [1, 1]} : vector<8x32xf32> to vector<8x8xf32>
    %127 = arith.truncf %126 : vector<8x8xf32> to vector<8x8xbf16>
    %128 = vector.extract_strided_slice %31 {offsets = [0, 16], sizes = [8, 8], strides = [1, 1]} : vector<8x32xf32> to vector<8x8xf32>
    %129 = arith.truncf %128 : vector<8x8xf32> to vector<8x8xbf16>
    %cst_55 = arith.constant dense<0.000000e+00> : vector<8x8xf32>
    %130 = tpu.matmul %127, %129, %cst_55 {dimension_numbers = #tpu.dot_dimension_numbers<[1], [1], [0], [0], [0, 0, 1, 0], [], []>} : vector<8x8xbf16>, vector<8x8xbf16>, vector<8x8xf32> -> vector<8x8xf32>
    %131 = arith.addf %130, %70 : vector<8x8xf32>
    %cst_56 = arith.constant dense<0xFF800000> : vector<8xf32>
    %132 = vector.multi_reduction <maximumf>, %131, %cst_56 [1] : vector<8x8xf32> to vector<8xf32>
    %133 = vector.shape_cast %132 : vector<8xf32> to vector<8x1xf32>
    %134 = vector.broadcast %133 : vector<8x1xf32> to vector<8x8xf32>
    %135 = arith.subf %131, %134 : vector<8x8xf32>
    %136 = math.exp %135 : vector<8x8xf32>
    %cst_57 = arith.constant dense<0.000000e+00> : vector<8xf32>
    %137 = vector.multi_reduction <add>, %136, %cst_57 [1] : vector<8x8xf32> to vector<8xf32>
    %138 = vector.shape_cast %137 : vector<8xf32> to vector<8x1xf32>
    %139 = tpu.reciprocal %138 {approx = true} : vector<8x1xf32> -> vector<8x1xf32>
    %140 = vector.broadcast %139 : vector<8x1xf32> to vector<8x8xf32>
    %141 = arith.mulf %136, %140 : vector<8x8xf32>
    %142 = arith.truncf %141 : vector<8x8xf32> to vector<8x8xbf16>
    %143 = vector.extract_strided_slice %32 {offsets = [0, 16], sizes = [8, 8], strides = [1, 1]} : vector<8x32xf32> to vector<8x8xf32>
    %144 = arith.truncf %143 : vector<8x8xf32> to vector<8x8xbf16>
    %cst_58 = arith.constant dense<0.000000e+00> : vector<8x8xf32>
    %145 = tpu.matmul %142, %144, %cst_58 {dimension_numbers = #tpu.dot_dimension_numbers<[1], [0], [0], [1], [0, 0, 1, 1], [], []>} : vector<8x8xbf16>, vector<8x8xbf16>, vector<8x8xf32> -> vector<8x8xf32>
    %c0_59 = arith.constant 0 : index
    %c0_60 = arith.constant 0 : index
    %146 = vector.load %arg25[%c0_59, %c0_60] : memref<8x32xf32, #tpu.memory_space<vmem>>, vector<8x32xf32>
    %147 = arith.truncf %145 : vector<8x8xf32> to vector<8x8xbf16>
    %c16 = arith.constant 16 : index
    %c0_61 = arith.constant 0 : index
    %148 = vector.load %arg10[%c16, %c0_61] : memref<32x32xbf16, #tpu.memory_space<vmem>>, vector<8x32xbf16>
    %cst_62 = arith.constant dense<0.000000e+00> : vector<8x32xf32>
    %149 = tpu.matmul %147, %148, %cst_62 {dimension_numbers = #tpu.dot_dimension_numbers<[1], [0], [0], [1], [0, 0, 1, 1], [], []>} : vector<8x8xbf16>, vector<8x32xbf16>, vector<8x32xf32> -> vector<8x32xf32>
    %150 = arith.addf %146, %149 : vector<8x32xf32>
    %c0_63 = arith.constant 0 : index
    %c0_64 = arith.constant 0 : index
    %151 = vector.load %arg25[%c0_63, %c0_64] : memref<8x32xf32, #tpu.memory_space<vmem>>, vector<8x32xf32>
    tpu.vector_store %arg25[%c0_63, %c0_64], %150 {strides = array<i32>} : memref<8x32xf32, #tpu.memory_space<vmem>>, vector<8x32xf32>,
    %152 = vector.extract_strided_slice %62 {offsets = [0, 24], sizes = [8, 8], strides = [1, 1]} : vector<8x32xf32> to vector<8x8xf32>
    %153 = arith.truncf %152 : vector<8x8xf32> to vector<8x8xbf16>
    %154 = vector.extract_strided_slice %31 {offsets = [0, 24], sizes = [8, 8], strides = [1, 1]} : vector<8x32xf32> to vector<8x8xf32>
    %155 = arith.truncf %154 : vector<8x8xf32> to vector<8x8xbf16>
    %cst_65 = arith.constant dense<0.000000e+00> : vector<8x8xf32>
    %156 = tpu.matmul %153, %155, %cst_65 {dimension_numbers = #tpu.dot_dimension_numbers<[1], [1], [0], [0], [0, 0, 1, 0], [], []>} : vector<8x8xbf16>, vector<8x8xbf16>, vector<8x8xf32> -> vector<8x8xf32>
    %157 = arith.addf %156, %70 : vector<8x8xf32>
    %cst_66 = arith.constant dense<0xFF800000> : vector<8xf32>
    %158 = vector.multi_reduction <maximumf>, %157, %cst_66 [1] : vector<8x8xf32> to vector<8xf32>
    %159 = vector.shape_cast %158 : vector<8xf32> to vector<8x1xf32>
    %160 = vector.broadcast %159 : vector<8x1xf32> to vector<8x8xf32>
    %161 = arith.subf %157, %160 : vector<8x8xf32>
    %162 = math.exp %161 : vector<8x8xf32>
    %cst_67 = arith.constant dense<0.000000e+00> : vector<8xf32>
    %163 = vector.multi_reduction <add>, %162, %cst_67 [1] : vector<8x8xf32> to vector<8xf32>
    %164 = vector.shape_cast %163 : vector<8xf32> to vector<8x1xf32>
    %165 = tpu.reciprocal %164 {approx = true} : vector<8x1xf32> -> vector<8x1xf32>
    %166 = vector.broadcast %165 : vector<8x1xf32> to vector<8x8xf32>
    %167 = arith.mulf %162, %166 : vector<8x8xf32>
    %168 = arith.truncf %167 : vector<8x8xf32> to vector<8x8xbf16>
    %169 = vector.extract_strided_slice %32 {offsets = [0, 24], sizes = [8, 8], strides = [1, 1]} : vector<8x32xf32> to vector<8x8xf32>
    %170 = arith.truncf %169 : vector<8x8xf32> to vector<8x8xbf16>
    %cst_68 = arith.constant dense<0.000000e+00> : vector<8x8xf32>
    %171 = tpu.matmul %168, %170, %cst_68 {dimension_numbers = #tpu.dot_dimension_numbers<[1], [0], [0], [1], [0, 0, 1, 1], [], []>} : vector<8x8xbf16>, vector<8x8xbf16>, vector<8x8xf32> -> vector<8x8xf32>
    %c0_69 = arith.constant 0 : index
    %c0_70 = arith.constant 0 : index
    %172 = vector.load %arg25[%c0_69, %c0_70] : memref<8x32xf32, #tpu.memory_space<vmem>>, vector<8x32xf32>
    %173 = arith.truncf %171 : vector<8x8xf32> to vector<8x8xbf16>
    %c24 = arith.constant 24 : index
    %c0_71 = arith.constant 0 : index
    %174 = vector.load %arg10[%c24, %c0_71] : memref<32x32xbf16, #tpu.memory_space<vmem>>, vector<8x32xbf16>
    %cst_72 = arith.constant dense<0.000000e+00> : vector<8x32xf32>
    %175 = tpu.matmul %173, %174, %cst_72 {dimension_numbers = #tpu.dot_dimension_numbers<[1], [0], [0], [1], [0, 0, 1, 1], [], []>} : vector<8x8xbf16>, vector<8x32xbf16>, vector<8x32xf32> -> vector<8x32xf32>
    %176 = arith.addf %172, %175 : vector<8x32xf32>
    %c0_73 = arith.constant 0 : index
    %c0_74 = arith.constant 0 : index
    %177 = vector.load %arg25[%c0_73, %c0_74] : memref<8x32xf32, #tpu.memory_space<vmem>>, vector<8x32xf32>
    tpu.vector_store %arg25[%c0_73, %c0_74], %176 {strides = array<i32>} : memref<8x32xf32, #tpu.memory_space<vmem>>, vector<8x32xf32>,
    %c0_75 = arith.constant 0 : index
    %c0_76 = arith.constant 0 : index
    %178 = vector.load %arg25[%c0_75, %c0_76] : memref<8x32xf32, #tpu.memory_space<vmem>>, vector<8x32xf32>
    %179 = vector.broadcast %71 : vector<1x32xf32> to vector<8x32xf32>
    %180 = arith.addf %178, %179 : vector<8x32xf32>
    %181 = arith.addf %59, %180 : vector<8x32xf32>
    %c0_77 = arith.constant 0 : index
    %c0_78 = arith.constant 0 : index
    %182 = vector.load %arg12[%c0_77, %c0_78] : memref<1x32xf32, #tpu.memory_space<vmem>>, vector<1x32xf32>
    %c0_79 = arith.constant 0 : index
    %c0_80 = arith.constant 0 : index
    %183 = vector.load %arg13[%c0_79, %c0_80] : memref<1x32xf32, #tpu.memory_space<vmem>>, vector<1x32xf32>
    %cst_81 = arith.constant dense<0.000000e+00> : vector<8xf32>
    %184 = vector.multi_reduction <add>, %181, %cst_81 [1] : vector<8x32xf32> to vector<8xf32>
    %185 = vector.shape_cast %184 : vector<8xf32> to vector<8x1xf32>
    %cst_82 = arith.constant 3.200000e+01 : f32
    %186 = vector.broadcast %cst_82 : f32 to vector<8x1xf32>
    %187 = arith.divf %185, %186 : vector<8x1xf32>
    %188 = vector.broadcast %187 : vector<8x1xf32> to vector<8x32xf32>
    %189 = arith.subf %181, %188 : vector<8x32xf32>
    %190 = arith.mulf %189, %189 : vector<8x32xf32>
    %cst_83 = arith.constant dense<0.000000e+00> : vector<8xf32>
    %191 = vector.multi_reduction <add>, %190, %cst_83 [1] : vector<8x32xf32> to vector<8xf32>
    %192 = vector.shape_cast %191 : vector<8xf32> to vector<8x1xf32>
    %cst_84 = arith.constant 3.200000e+01 : f32
    %193 = vector.broadcast %cst_84 : f32 to vector<8x1xf32>
    %194 = arith.divf %192, %193 : vector<8x1xf32>
    %195 = vector.broadcast %187 : vector<8x1xf32> to vector<8x32xf32>
    %196 = arith.subf %181, %195 : vector<8x32xf32>
    %cst_85 = arith.constant 9.99999974E-6 : f32
    %197 = vector.broadcast %cst_85 : f32 to vector<8x1xf32>
    %198 = arith.addf %194, %197 : vector<8x1xf32>
    %199 = math.rsqrt %198 : vector<8x1xf32>
    %200 = vector.broadcast %199 : vector<8x1xf32> to vector<8x32xf32>
    %201 = arith.mulf %196, %200 : vector<8x32xf32>
    %202 = vector.broadcast %182 : vector<1x32xf32> to vector<8x32xf32>
    %203 = arith.mulf %201, %202 : vector<8x32xf32>
    %204 = vector.broadcast %183 : vector<1x32xf32> to vector<8x32xf32>
    %205 = arith.addf %203, %204 : vector<8x32xf32>
    %206 = arith.truncf %205 : vector<8x32xf32> to vector<8x32xbf16>
    %c0_86 = arith.constant 0 : index
    %c0_87 = arith.constant 0 : index
    %207 = vector.load %arg14[%c0_86, %c0_87] : memref<32x32xbf16, #tpu.memory_space<vmem>>, vector<32x32xbf16>
    %cst_88 = arith.constant dense<0.000000e+00> : vector<8x32xf32>
    %208 = tpu.matmul %206, %207, %cst_88 {dimension_numbers = #tpu.dot_dimension_numbers<[1], [0], [0], [1], [0, 0, 1, 1], [], []>} : vector<8x32xbf16>, vector<32x32xbf16>, vector<8x32xf32> -> vector<8x32xf32>
    %c0_89 = arith.constant 0 : index
    %c0_90 = arith.constant 0 : index
    %c0_91 = arith.constant 0 : index
    %209 = vector.load %arg5[%c0_89, %c0_90, %c0_91] : memref<1x16x32xf32, #tpu.memory_space<vmem>>, vector<1x16x32xf32>
    %210 = vector.shape_cast %209 : vector<1x16x32xf32> to vector<16x32xf32>
    %211 = arith.truncf %210 : vector<16x32xf32> to vector<16x32xbf16>
    %c0_92 = arith.constant 0 : index
    %c0_93 = arith.constant 0 : index
    %212 = vector.load %arg15[%c0_92, %c0_93] : memref<32x64xbf16, #tpu.memory_space<vmem>>, vector<32x64xbf16>
    %cst_94 = arith.constant dense<0.000000e+00> : vector<16x64xf32>
    %213 = tpu.matmul %211, %212, %cst_94 {dimension_numbers = #tpu.dot_dimension_numbers<[1], [0], [0], [1], [0, 0, 1, 1], [], []>} : vector<16x32xbf16>, vector<32x64xbf16>, vector<16x64xf32> -> vector<16x64xf32>
    %214 = vector.extract_strided_slice %213 {offsets = [0, 0], sizes = [16, 32], strides = [1, 1]} : vector<16x64xf32> to vector<16x32xf32>
    %215 = vector.extract_strided_slice %213 {offsets = [0, 32], sizes = [16, 32], strides = [1, 1]} : vector<16x64xf32> to vector<16x32xf32>
    %216 = tpu.iota {dimensions = array<i32: 1>} : vector<1x16xi32>
    %217 = arith.index_cast %arg0 : i32 to index
    %218 = memref.load %arg2[%217] : memref<2xi32, #tpu.memory_space<smem>>
    %219 = vector.broadcast %218 : i32 to vector<1x16xi32>
    %220 = arith.cmpi slt, %216, %219 : vector<1x16xi32>
    %c8_i32_95 = arith.constant 8 : i32
    %221 = vector.broadcast %c8_i32_95 : i32 to vector<1x16xi32>
    %222 = arith.cmpi sge, %216, %221 : vector<1x16xi32>
    %223 = arith.index_cast %arg0 : i32 to index
    %224 = memref.load %arg3[%223] : memref<2xi32, #tpu.memory_space<smem>>
    %c8_i32_96 = arith.constant 8 : i32
    %225 = arith.addi %c8_i32_96, %224 : i32
    %226 = vector.broadcast %225 : i32 to vector<1x16xi32>
    %227 = arith.cmpi slt, %216, %226 : vector<1x16xi32>
    %228 = arith.andi %222, %227 : vector<1x16xi1>
    %229 = arith.ori %220, %228 : vector<1x16xi1>
    %cst_97 = arith.constant 0.000000e+00 : f32
    %cst_98 = arith.constant -1.000000e+09 : f32
    %230 = vector.broadcast %cst_97 : f32 to vector<1x16xf32>
    %231 = vector.broadcast %cst_98 : f32 to vector<1x16xf32>
    %232 = arith.select %229, %230, %231 : vector<1x16xi1>, vector<1x16xf32>
    %c0_99 = arith.constant 0 : index
    %c0_100 = arith.constant 0 : index
    %233 = vector.load %arg17[%c0_99, %c0_100] : memref<1x32xf32, #tpu.memory_space<vmem>>, vector<1x32xf32>
    %cst_101 = arith.constant 0.000000e+00 : f32
    %234 = vector.broadcast %cst_101 : f32 to vector<8x32xf32>
    %c0_102 = arith.constant 0 : index
    %c0_103 = arith.constant 0 : index
    %235 = vector.load %arg25[%c0_102, %c0_103] : memref<8x32xf32, #tpu.memory_space<vmem>>, vector<8x32xf32>
    tpu.vector_store %arg25[%c0_102, %c0_103], %234 {strides = array<i32>} : memref<8x32xf32, #tpu.memory_space<vmem>>, vector<8x32xf32>,
    %236 = vector.extract_strided_slice %208 {offsets = [0, 0], sizes = [8, 8], strides = [1, 1]} : vector<8x32xf32> to vector<8x8xf32>
    %237 = arith.truncf %236 : vector<8x8xf32> to vector<8x8xbf16>
    %238 = vector.extract_strided_slice %214 {offsets = [0, 0], sizes = [16, 8], strides = [1, 1]} : vector<16x32xf32> to vector<16x8xf32>
    %239 = arith.truncf %238 : vector<16x8xf32> to vector<16x8xbf16>
    %cst_104 = arith.constant dense<0.000000e+00> : vector<8x16xf32>
    %240 = tpu.matmul %237, %239, %cst_104 {dimension_numbers = #tpu.dot_dimension_numbers<[1], [1], [0], [0], [0, 0, 1, 0], [], []>} : vector<8x8xbf16>, vector<16x8xbf16>, vector<8x16xf32> -> vector<8x16xf32>
    %241 = vector.broadcast %232 : vector<1x16xf32> to vector<8x16xf32>
    %242 = arith.addf %240, %241 : vector<8x16xf32>
    %cst_105 = arith.constant dense<0xFF800000> : vector<8xf32>
    %243 = vector.multi_reduction <maximumf>, %242, %cst_105 [1] : vector<8x16xf32> to vector<8xf32>
    %244 = vector.shape_cast %243 : vector<8xf32> to vector<8x1xf32>
    %245 = vector.broadcast %244 : vector<8x1xf32> to vector<8x16xf32>
    %246 = arith.subf %242, %245 : vector<8x16xf32>
    %247 = math.exp %246 : vector<8x16xf32>
    %cst_106 = arith.constant dense<0.000000e+00> : vector<8xf32>
    %248 = vector.multi_reduction <add>, %247, %cst_106 [1] : vector<8x16xf32> to vector<8xf32>
    %249 = vector.shape_cast %248 : vector<8xf32> to vector<8x1xf32>
    %250 = tpu.reciprocal %249 {approx = true} : vector<8x1xf32> -> vector<8x1xf32>
    %251 = vector.broadcast %250 : vector<8x1xf32> to vector<8x16xf32>
    %252 = arith.mulf %247, %251 : vector<8x16xf32>
    %253 = arith.truncf %252 : vector<8x16xf32> to vector<8x16xbf16>
    %254 = vector.extract_strided_slice %215 {offsets = [0, 0], sizes = [16, 8], strides = [1, 1]} : vector<16x32xf32> to vector<16x8xf32>
    %255 = arith.truncf %254 : vector<16x8xf32> to vector<16x8xbf16>
    %cst_107 = arith.constant dense<0.000000e+00> : vector<8x8xf32>
    %256 = tpu.matmul %253, %255, %cst_107 {dimension_numbers = #tpu.dot_dimension_numbers<[1], [0], [0], [1], [0, 0, 1, 1], [], []>} : vector<8x16xbf16>, vector<16x8xbf16>, vector<8x8xf32> -> vector<8x8xf32>
    %c0_108 = arith.constant 0 : index
    %c0_109 = arith.constant 0 : index
    %257 = vector.load %arg25[%c0_108, %c0_109] : memref<8x32xf32, #tpu.memory_space<vmem>>, vector<8x32xf32>
    %258 = arith.truncf %256 : vector<8x8xf32> to vector<8x8xbf16>
    %c0_110 = arith.constant 0 : index
    %c0_111 = arith.constant 0 : index
    %259 = vector.load %arg16[%c0_110, %c0_111] : memref<32x32xbf16, #tpu.memory_space<vmem>>, vector<8x32xbf16>
    %cst_112 = arith.constant dense<0.000000e+00> : vector<8x32xf32>
    %260 = tpu.matmul %258, %259, %cst_112 {dimension_numbers = #tpu.dot_dimension_numbers<[1], [0], [0], [1], [0, 0, 1, 1], [], []>} : vector<8x8xbf16>, vector<8x32xbf16>, vector<8x32xf32> -> vector<8x32xf32>
    %261 = arith.addf %257, %260 : vector<8x32xf32>
    %c0_113 = arith.constant 0 : index
    %c0_114 = arith.constant 0 : index
    %262 = vector.load %arg25[%c0_113, %c0_114] : memref<8x32xf32, #tpu.memory_space<vmem>>, vector<8x32xf32>
    tpu.vector_store %arg25[%c0_113, %c0_114], %261 {strides = array<i32>} : memref<8x32xf32, #tpu.memory_space<vmem>>, vector<8x32xf32>,
    %263 = vector.extract_strided_slice %208 {offsets = [0, 8], sizes = [8, 8], strides = [1, 1]} : vector<8x32xf32> to vector<8x8xf32>
    %264 = arith.truncf %263 : vector<8x8xf32> to vector<8x8xbf16>
    %265 = vector.extract_strided_slice %214 {offsets = [0, 8], sizes = [16, 8], strides = [1, 1]} : vector<16x32xf32> to vector<16x8xf32>
    %266 = arith.truncf %265 : vector<16x8xf32> to vector<16x8xbf16>
    %cst_115 = arith.constant dense<0.000000e+00> : vector<8x16xf32>
    %267 = tpu.matmul %264, %266, %cst_115 {dimension_numbers = #tpu.dot_dimension_numbers<[1], [1], [0], [0], [0, 0, 1, 0], [], []>} : vector<8x8xbf16>, vector<16x8xbf16>, vector<8x16xf32> -> vector<8x16xf32>
    %268 = vector.broadcast %232 : vector<1x16xf32> to vector<8x16xf32>
    %269 = arith.addf %267, %268 : vector<8x16xf32>
    %cst_116 = arith.constant dense<0xFF800000> : vector<8xf32>
    %270 = vector.multi_reduction <maximumf>, %269, %cst_116 [1] : vector<8x16xf32> to vector<8xf32>
    %271 = vector.shape_cast %270 : vector<8xf32> to vector<8x1xf32>
    %272 = vector.broadcast %271 : vector<8x1xf32> to vector<8x16xf32>
    %273 = arith.subf %269, %272 : vector<8x16xf32>
    %274 = math.exp %273 : vector<8x16xf32>
    %cst_117 = arith.constant dense<0.000000e+00> : vector<8xf32>
    %275 = vector.multi_reduction <add>, %274, %cst_117 [1] : vector<8x16xf32> to vector<8xf32>
    %276 = vector.shape_cast %275 : vector<8xf32> to vector<8x1xf32>
    %277 = tpu.reciprocal %276 {approx = true} : vector<8x1xf32> -> vector<8x1xf32>
    %278 = vector.broadcast %277 : vector<8x1xf32> to vector<8x16xf32>
    %279 = arith.mulf %274, %278 : vector<8x16xf32>
    %280 = arith.truncf %279 : vector<8x16xf32> to vector<8x16xbf16>
    %281 = vector.extract_strided_slice %215 {offsets = [0, 8], sizes = [16, 8], strides = [1, 1]} : vector<16x32xf32> to vector<16x8xf32>
    %282 = arith.truncf %281 : vector<16x8xf32> to vector<16x8xbf16>
    %cst_118 = arith.constant dense<0.000000e+00> : vector<8x8xf32>
    %283 = tpu.matmul %280, %282, %cst_118 {dimension_numbers = #tpu.dot_dimension_numbers<[1], [0], [0], [1], [0, 0, 1, 1], [], []>} : vector<8x16xbf16>, vector<16x8xbf16>, vector<8x8xf32> -> vector<8x8xf32>
    %c0_119 = arith.constant 0 : index
    %c0_120 = arith.constant 0 : index
    %284 = vector.load %arg25[%c0_119, %c0_120] : memref<8x32xf32, #tpu.memory_space<vmem>>, vector<8x32xf32>
    %285 = arith.truncf %283 : vector<8x8xf32> to vector<8x8xbf16>
    %c8_121 = arith.constant 8 : index
    %c0_122 = arith.constant 0 : index
    %286 = vector.load %arg16[%c8_121, %c0_122] : memref<32x32xbf16, #tpu.memory_space<vmem>>, vector<8x32xbf16>
    %cst_123 = arith.constant dense<0.000000e+00> : vector<8x32xf32>
    %287 = tpu.matmul %285, %286, %cst_123 {dimension_numbers = #tpu.dot_dimension_numbers<[1], [0], [0], [1], [0, 0, 1, 1], [], []>} : vector<8x8xbf16>, vector<8x32xbf16>, vector<8x32xf32> -> vector<8x32xf32>
    %288 = arith.addf %284, %287 : vector<8x32xf32>
    %c0_124 = arith.constant 0 : index
    %c0_125 = arith.constant 0 : index
    %289 = vector.load %arg25[%c0_124, %c0_125] : memref<8x32xf32, #tpu.memory_space<vmem>>, vector<8x32xf32>
    tpu.vector_store %arg25[%c0_124, %c0_125], %288 {strides = array<i32>} : memref<8x32xf32, #tpu.memory_space<vmem>>, vector<8x32xf32>,
    %290 = vector.extract_strided_slice %208 {offsets = [0, 16], sizes = [8, 8], strides = [1, 1]} : vector<8x32xf32> to vector<8x8xf32>
    %291 = arith.truncf %290 : vector<8x8xf32> to vector<8x8xbf16>
    %292 = vector.extract_strided_slice %214 {offsets = [0, 16], sizes = [16, 8], strides = [1, 1]} : vector<16x32xf32> to vector<16x8xf32>
    %293 = arith.truncf %292 : vector<16x8xf32> to vector<16x8xbf16>
    %cst_126 = arith.constant dense<0.000000e+00> : vector<8x16xf32>
    %294 = tpu.matmul %291, %293, %cst_126 {dimension_numbers = #tpu.dot_dimension_numbers<[1], [1], [0], [0], [0, 0, 1, 0], [], []>} : vector<8x8xbf16>, vector<16x8xbf16>, vector<8x16xf32> -> vector<8x16xf32>
    %295 = vector.broadcast %232 : vector<1x16xf32> to vector<8x16xf32>
    %296 = arith.addf %294, %295 : vector<8x16xf32>
    %cst_127 = arith.constant dense<0xFF800000> : vector<8xf32>
    %297 = vector.multi_reduction <maximumf>, %296, %cst_127 [1] : vector<8x16xf32> to vector<8xf32>
    %298 = vector.shape_cast %297 : vector<8xf32> to vector<8x1xf32>
    %299 = vector.broadcast %298 : vector<8x1xf32> to vector<8x16xf32>
    %300 = arith.subf %296, %299 : vector<8x16xf32>
    %301 = math.exp %300 : vector<8x16xf32>
    %cst_128 = arith.constant dense<0.000000e+00> : vector<8xf32>
    %302 = vector.multi_reduction <add>, %301, %cst_128 [1] : vector<8x16xf32> to vector<8xf32>
    %303 = vector.shape_cast %302 : vector<8xf32> to vector<8x1xf32>
    %304 = tpu.reciprocal %303 {approx = true} : vector<8x1xf32> -> vector<8x1xf32>
    %305 = vector.broadcast %304 : vector<8x1xf32> to vector<8x16xf32>
    %306 = arith.mulf %301, %305 : vector<8x16xf32>
    %307 = arith.truncf %306 : vector<8x16xf32> to vector<8x16xbf16>
    %308 = vector.extract_strided_slice %215 {offsets = [0, 16], sizes = [16, 8], strides = [1, 1]} : vector<16x32xf32> to vector<16x8xf32>
    %309 = arith.truncf %308 : vector<16x8xf32> to vector<16x8xbf16>
    %cst_129 = arith.constant dense<0.000000e+00> : vector<8x8xf32>
    %310 = tpu.matmul %307, %309, %cst_129 {dimension_numbers = #tpu.dot_dimension_numbers<[1], [0], [0], [1], [0, 0, 1, 1], [], []>} : vector<8x16xbf16>, vector<16x8xbf16>, vector<8x8xf32> -> vector<8x8xf32>
    %c0_130 = arith.constant 0 : index
    %c0_131 = arith.constant 0 : index
    %311 = vector.load %arg25[%c0_130, %c0_131] : memref<8x32xf32, #tpu.memory_space<vmem>>, vector<8x32xf32>
    %312 = arith.truncf %310 : vector<8x8xf32> to vector<8x8xbf16>
    %c16_132 = arith.constant 16 : index
    %c0_133 = arith.constant 0 : index
    %313 = vector.load %arg16[%c16_132, %c0_133] : memref<32x32xbf16, #tpu.memory_space<vmem>>, vector<8x32xbf16>
    %cst_134 = arith.constant dense<0.000000e+00> : vector<8x32xf32>
    %314 = tpu.matmul %312, %313, %cst_134 {dimension_numbers = #tpu.dot_dimension_numbers<[1], [0], [0], [1], [0, 0, 1, 1], [], []>} : vector<8x8xbf16>, vector<8x32xbf16>, vector<8x32xf32> -> vector<8x32xf32>
    %315 = arith.addf %311, %314 : vector<8x32xf32>
    %c0_135 = arith.constant 0 : index
    %c0_136 = arith.constant 0 : index
    %316 = vector.load %arg25[%c0_135, %c0_136] : memref<8x32xf32, #tpu.memory_space<vmem>>, vector<8x32xf32>
    tpu.vector_store %arg25[%c0_135, %c0_136], %315 {strides = array<i32>} : memref<8x32xf32, #tpu.memory_space<vmem>>, vector<8x32xf32>,
    %317 = vector.extract_strided_slice %208 {offsets = [0, 24], sizes = [8, 8], strides = [1, 1]} : vector<8x32xf32> to vector<8x8xf32>
    %318 = arith.truncf %317 : vector<8x8xf32> to vector<8x8xbf16>
    %319 = vector.extract_strided_slice %214 {offsets = [0, 24], sizes = [16, 8], strides = [1, 1]} : vector<16x32xf32> to vector<16x8xf32>
    %320 = arith.truncf %319 : vector<16x8xf32> to vector<16x8xbf16>
    %cst_137 = arith.constant dense<0.000000e+00> : vector<8x16xf32>
    %321 = tpu.matmul %318, %320, %cst_137 {dimension_numbers = #tpu.dot_dimension_numbers<[1], [1], [0], [0], [0, 0, 1, 0], [], []>} : vector<8x8xbf16>, vector<16x8xbf16>, vector<8x16xf32> -> vector<8x16xf32>
    %322 = vector.broadcast %232 : vector<1x16xf32> to vector<8x16xf32>
    %323 = arith.addf %321, %322 : vector<8x16xf32>
    %cst_138 = arith.constant dense<0xFF800000> : vector<8xf32>
    %324 = vector.multi_reduction <maximumf>, %323, %cst_138 [1] : vector<8x16xf32> to vector<8xf32>
    %325 = vector.shape_cast %324 : vector<8xf32> to vector<8x1xf32>
    %326 = vector.broadcast %325 : vector<8x1xf32> to vector<8x16xf32>
    %327 = arith.subf %323, %326 : vector<8x16xf32>
    %328 = math.exp %327 : vector<8x16xf32>
    %cst_139 = arith.constant dense<0.000000e+00> : vector<8xf32>
    %329 = vector.multi_reduction <add>, %328, %cst_139 [1] : vector<8x16xf32> to vector<8xf32>
    %330 = vector.shape_cast %329 : vector<8xf32> to vector<8x1xf32>
    %331 = tpu.reciprocal %330 {approx = true} : vector<8x1xf32> -> vector<8x1xf32>
    %332 = vector.broadcast %331 : vector<8x1xf32> to vector<8x16xf32>
    %333 = arith.mulf %328, %332 : vector<8x16xf32>
    %334 = arith.truncf %333 : vector<8x16xf32> to vector<8x16xbf16>
    %335 = vector.extract_strided_slice %215 {offsets = [0, 24], sizes = [16, 8], strides = [1, 1]} : vector<16x32xf32> to vector<16x8xf32>
    %336 = arith.truncf %335 : vector<16x8xf32> to vector<16x8xbf16>
    %cst_140 = arith.constant dense<0.000000e+00> : vector<8x8xf32>
    %337 = tpu.matmul %334, %336, %cst_140 {dimension_numbers = #tpu.dot_dimension_numbers<[1], [0], [0], [1], [0, 0, 1, 1], [], []>} : vector<8x16xbf16>, vector<16x8xbf16>, vector<8x8xf32> -> vector<8x8xf32>
    %c0_141 = arith.constant 0 : index
    %c0_142 = arith.constant 0 : index
    %338 = vector.load %arg25[%c0_141, %c0_142] : memref<8x32xf32, #tpu.memory_space<vmem>>, vector<8x32xf32>
    %339 = arith.truncf %337 : vector<8x8xf32> to vector<8x8xbf16>
    %c24_143 = arith.constant 24 : index
    %c0_144 = arith.constant 0 : index
    %340 = vector.load %arg16[%c24_143, %c0_144] : memref<32x32xbf16, #tpu.memory_space<vmem>>, vector<8x32xbf16>
    %cst_145 = arith.constant dense<0.000000e+00> : vector<8x32xf32>
    %341 = tpu.matmul %339, %340, %cst_145 {dimension_numbers = #tpu.dot_dimension_numbers<[1], [0], [0], [1], [0, 0, 1, 1], [], []>} : vector<8x8xbf16>, vector<8x32xbf16>, vector<8x32xf32> -> vector<8x32xf32>
    %342 = arith.addf %338, %341 : vector<8x32xf32>
    %c0_146 = arith.constant 0 : index
    %c0_147 = arith.constant 0 : index
    %343 = vector.load %arg25[%c0_146, %c0_147] : memref<8x32xf32, #tpu.memory_space<vmem>>, vector<8x32xf32>
    tpu.vector_store %arg25[%c0_146, %c0_147], %342 {strides = array<i32>} : memref<8x32xf32, #tpu.memory_space<vmem>>, vector<8x32xf32>,
    %c0_148 = arith.constant 0 : index
    %c0_149 = arith.constant 0 : index
    %344 = vector.load %arg25[%c0_148, %c0_149] : memref<8x32xf32, #tpu.memory_space<vmem>>, vector<8x32xf32>
    %345 = vector.broadcast %233 : vector<1x32xf32> to vector<8x32xf32>
    %346 = arith.addf %344, %345 : vector<8x32xf32>
    %347 = arith.addf %205, %346 : vector<8x32xf32>
    %c0_150 = arith.constant 0 : index
    %c0_151 = arith.constant 0 : index
    %348 = vector.load %arg18[%c0_150, %c0_151] : memref<1x32xf32, #tpu.memory_space<vmem>>, vector<1x32xf32>
    %c0_152 = arith.constant 0 : index
    %c0_153 = arith.constant 0 : index
    %349 = vector.load %arg19[%c0_152, %c0_153] : memref<1x32xf32, #tpu.memory_space<vmem>>, vector<1x32xf32>
    %cst_154 = arith.constant dense<0.000000e+00> : vector<8xf32>
    %350 = vector.multi_reduction <add>, %347, %cst_154 [1] : vector<8x32xf32> to vector<8xf32>
    %351 = vector.shape_cast %350 : vector<8xf32> to vector<8x1xf32>
    %cst_155 = arith.constant 3.200000e+01 : f32
    %352 = vector.broadcast %cst_155 : f32 to vector<8x1xf32>
    %353 = arith.divf %351, %352 : vector<8x1xf32>
    %354 = vector.broadcast %353 : vector<8x1xf32> to vector<8x32xf32>
    %355 = arith.subf %347, %354 : vector<8x32xf32>
    %356 = arith.mulf %355, %355 : vector<8x32xf32>
    %cst_156 = arith.constant dense<0.000000e+00> : vector<8xf32>
    %357 = vector.multi_reduction <add>, %356, %cst_156 [1] : vector<8x32xf32> to vector<8xf32>
    %358 = vector.shape_cast %357 : vector<8xf32> to vector<8x1xf32>
    %cst_157 = arith.constant 3.200000e+01 : f32
    %359 = vector.broadcast %cst_157 : f32 to vector<8x1xf32>
    %360 = arith.divf %358, %359 : vector<8x1xf32>
    %361 = vector.broadcast %353 : vector<8x1xf32> to vector<8x32xf32>
    %362 = arith.subf %347, %361 : vector<8x32xf32>
    %cst_158 = arith.constant 9.99999974E-6 : f32
    %363 = vector.broadcast %cst_158 : f32 to vector<8x1xf32>
    %364 = arith.addf %360, %363 : vector<8x1xf32>
    %365 = math.rsqrt %364 : vector<8x1xf32>
    %366 = vector.broadcast %365 : vector<8x1xf32> to vector<8x32xf32>
    %367 = arith.mulf %362, %366 : vector<8x32xf32>
    %368 = vector.broadcast %348 : vector<1x32xf32> to vector<8x32xf32>
    %369 = arith.mulf %367, %368 : vector<8x32xf32>
    %370 = vector.broadcast %349 : vector<1x32xf32> to vector<8x32xf32>
    %371 = arith.addf %369, %370 : vector<8x32xf32>
    %372 = arith.truncf %371 : vector<8x32xf32> to vector<8x32xbf16>
    %c0_159 = arith.constant 0 : index
    %c0_160 = arith.constant 0 : index
    %373 = vector.load %arg20[%c0_159, %c0_160] : memref<32x64xbf16, #tpu.memory_space<vmem>>, vector<32x64xbf16>
    %cst_161 = arith.constant dense<0.000000e+00> : vector<8x64xf32>
    %374 = tpu.matmul %372, %373, %cst_161 {dimension_numbers = #tpu.dot_dimension_numbers<[1], [0], [0], [1], [0, 0, 1, 1], [], []>} : vector<8x32xbf16>, vector<32x64xbf16>, vector<8x64xf32> -> vector<8x64xf32>
    %c0_162 = arith.constant 0 : index
    %c0_163 = arith.constant 0 : index
    %375 = vector.load %arg21[%c0_162, %c0_163] : memref<1x64xf32, #tpu.memory_space<vmem>>, vector<1x64xf32>
    %376 = vector.broadcast %375 : vector<1x64xf32> to vector<8x64xf32>
    %377 = arith.addf %374, %376 : vector<8x64xf32>
    %cst_164 = arith.constant 0.000000e+00 : f32
    %378 = vector.broadcast %cst_164 : f32 to vector<8x64xf32>
    %379 = arith.maximumf %377, %378 : vector<8x64xf32>
    %380 = arith.truncf %379 : vector<8x64xf32> to vector<8x64xbf16>
    %c0_165 = arith.constant 0 : index
    %c0_166 = arith.constant 0 : index
    %381 = vector.load %arg22[%c0_165, %c0_166] : memref<64x32xbf16, #tpu.memory_space<vmem>>, vector<64x32xbf16>
    %cst_167 = arith.constant dense<0.000000e+00> : vector<8x32xf32>
    %382 = tpu.matmul %380, %381, %cst_167 {dimension_numbers = #tpu.dot_dimension_numbers<[1], [0], [0], [1], [0, 0, 1, 1], [], []>} : vector<8x64xbf16>, vector<64x32xbf16>, vector<8x32xf32> -> vector<8x32xf32>
    %c0_168 = arith.constant 0 : index
    %c0_169 = arith.constant 0 : index
    %383 = vector.load %arg23[%c0_168, %c0_169] : memref<1x32xf32, #tpu.memory_space<vmem>>, vector<1x32xf32>
    %384 = vector.broadcast %383 : vector<1x32xf32> to vector<8x32xf32>
    %385 = arith.addf %382, %384 : vector<8x32xf32>
    %386 = arith.addf %371, %385 : vector<8x32xf32>
    %c0_170 = arith.constant 0 : index
    %c0_171 = arith.constant 0 : index
    %c0_172 = arith.constant 0 : index
    %387 = vector.load %arg24[%c0_170, %c0_171, %c0_172] : memref<1x8x32xf32, #tpu.memory_space<vmem>>, vector<1x8x32xf32>
    %388 = vector.shape_cast %387 : vector<1x8x32xf32> to vector<8x32xf32>
    %389 = vector.shape_cast %386 : vector<8x32xf32> to vector<1x8x32xf32>
    tpu.vector_store %arg24[%c0_170, %c0_171, %c0_172], %389 {strides = array<i32>} : memref<1x8x32xf32, #tpu.memory_space<vmem>>, vector<1x8x32xf32>,
    return
  }
  func.func @transform_0(%arg0: i32, %arg1: i32, %arg2: memref<2xi32, #tpu.memory_space<smem>>, %arg3: memref<2xi32, #tpu.memory_space<smem>>) -> (i32, i32, i32) {
    %c0_i32 = arith.constant 0 : i32
    %c0_i32_0 = arith.constant 0 : i32
    %c0_i32_1 = arith.constant 0 : i32
    return %arg0, %c0_i32, %c0_i32_0 : i32, i32, i32
  }
  func.func @transform_1(%arg0: i32, %arg1: i32, %arg2: memref<2xi32, #tpu.memory_space<smem>>, %arg3: memref<2xi32, #tpu.memory_space<smem>>) -> (i32, i32, i32) {
    %c0_i32 = arith.constant 0 : i32
    %c0_i32_0 = arith.constant 0 : i32
    %c0_i32_1 = arith.constant 0 : i32
    return %arg0, %c0_i32, %c0_i32_0 : i32, i32, i32
  }
  func.func @transform_2(%arg0: i32, %arg1: i32, %arg2: memref<2xi32, #tpu.memory_space<smem>>, %arg3: memref<2xi32, #tpu.memory_space<smem>>) -> (i32, i32) {
    %c0_i32 = arith.constant 0 : i32
    %c0_i32_0 = arith.constant 0 : i32
    %c0_i32_1 = arith.constant 0 : i32
    return %c0_i32, %c0_i32_0 : i32, i32
  }
  func.func @transform_3(%arg0: i32, %arg1: i32, %arg2: memref<2xi32, #tpu.memory_space<smem>>, %arg3: memref<2xi32, #tpu.memory_space<smem>>) -> (i32, i32) {
    %c0_i32 = arith.constant 0 : i32
    %c0_i32_0 = arith.constant 0 : i32
    %c0_i32_1 = arith.constant 0 : i32
    return %c0_i32, %c0_i32_0 : i32, i32
  }
  func.func @transform_4(%arg0: i32, %arg1: i32, %arg2: memref<2xi32, #tpu.memory_space<smem>>, %arg3: memref<2xi32, #tpu.memory_space<smem>>) -> (i32, i32) {
    %c0_i32 = arith.constant 0 : i32
    %c0_i32_0 = arith.constant 0 : i32
    %c0_i32_1 = arith.constant 0 : i32
    return %c0_i32, %c0_i32_0 : i32, i32
  }
  func.func @transform_5(%arg0: i32, %arg1: i32, %arg2: memref<2xi32, #tpu.memory_space<smem>>, %arg3: memref<2xi32, #tpu.memory_space<smem>>) -> (i32, i32) {
    %c0_i32 = arith.constant 0 : i32
    %c0_i32_0 = arith.constant 0 : i32
    %c0_i32_1 = arith.constant 0 : i32
    return %c0_i32, %c0_i32_0 : i32, i32
  }
  func.func @transform_6(%arg0: i32, %arg1: i32, %arg2: memref<2xi32, #tpu.memory_space<smem>>, %arg3: memref<2xi32, #tpu.memory_space<smem>>) -> (i32, i32) {
    %c0_i32 = arith.constant 0 : i32
    %c0_i32_0 = arith.constant 0 : i32
    %c0_i32_1 = arith.constant 0 : i32
    return %c0_i32, %c0_i32_0 : i32, i32
  }
  func.func @transform_7(%arg0: i32, %arg1: i32, %arg2: memref<2xi32, #tpu.memory_space<smem>>, %arg3: memref<2xi32, #tpu.memory_space<smem>>) -> (i32, i32) {
    %c0_i32 = arith.constant 0 : i32
    %c0_i32_0 = arith.constant 0 : i32
    %c0_i32_1 = arith.constant 0 : i32
    return %c0_i32, %c0_i32_0 : i32, i32
  }
  func.func @transform_8(%arg0: i32, %arg1: i32, %arg2: memref<2xi32, #tpu.memory_space<smem>>, %arg3: memref<2xi32, #tpu.memory_space<smem>>) -> (i32, i32) {
    %c0_i32 = arith.constant 0 : i32
    %c0_i32_0 = arith.constant 0 : i32
    %c0_i32_1 = arith.constant 0 : i32
    return %c0_i32, %c0_i32_0 : i32, i32
  }
  func.func @transform_9(%arg0: i32, %arg1: i32, %arg2: memref<2xi32, #tpu.memory_space<smem>>, %arg3: memref<2xi32, #tpu.memory_space<smem>>) -> (i32, i32) {
    %c0_i32 = arith.constant 0 : i32
    %c0_i32_0 = arith.constant 0 : i32
    %c0_i32_1 = arith.constant 0 : i32
    return %c0_i32, %c0_i32_0 : i32, i32
  }
  func.func @transform_10(%arg0: i32, %arg1: i32, %arg2: memref<2xi32, #tpu.memory_space<smem>>, %arg3: memref<2xi32, #tpu.memory_space<smem>>) -> (i32, i32) {
    %c0_i32 = arith.constant 0 : i32
    %c0_i32_0 = arith.constant 0 : i32
    %c0_i32_1 = arith.constant 0 : i32
    return %c0_i32, %c0_i32_0 : i32, i32
  }
  func.func @transform_11(%arg0: i32, %arg1: i32, %arg2: memref<2xi32, #tpu.memory_space<smem>>, %arg3: memref<2xi32, #tpu.memory_space<smem>>) -> (i32, i32) {
    %c0_i32 = arith.constant 0 : i32
    %c0_i32_0 = arith.constant 0 : i32
    %c0_i32_1 = arith.constant 0 : i32
    return %c0_i32, %c0_i32_0 : i32, i32
  }
  func.func @transform_12(%arg0: i32, %arg1: i32, %arg2: memref<2xi32, #tpu.memory_space<smem>>, %arg3: memref<2xi32, #tpu.memory_space<smem>>) -> (i32, i32) {
    %c0_i32 = arith.constant 0 : i32
    %c0_i32_0 = arith.constant 0 : i32
    %c0_i32_1 = arith.constant 0 : i32
    return %c0_i32, %c0_i32_0 : i32, i32
  }
  func.func @transform_13(%arg0: i32, %arg1: i32, %arg2: memref<2xi32, #tpu.memory_space<smem>>, %arg3: memref<2xi32, #tpu.memory_space<smem>>) -> (i32, i32) {
    %c0_i32 = arith.constant 0 : i32
    %c0_i32_0 = arith.constant 0 : i32
    %c0_i32_1 = arith.constant 0 : i32
    return %c0_i32, %c0_i32_0 : i32, i32
  }
  func.func @transform_14(%arg0: i32, %arg1: i32, %arg2: memref<2xi32, #tpu.memory_space<smem>>, %arg3: memref<2xi32, #tpu.memory_space<smem>>) -> (i32, i32) {
    %c0_i32 = arith.constant 0 : i32
    %c0_i32_0 = arith.constant 0 : i32
    %c0_i32_1 = arith.constant 0 : i32
    return %c0_i32, %c0_i32_0 : i32, i32
  }
  func.func @transform_15(%arg0: i32, %arg1: i32, %arg2: memref<2xi32, #tpu.memory_space<smem>>, %arg3: memref<2xi32, #tpu.memory_space<smem>>) -> (i32, i32) {
    %c0_i32 = arith.constant 0 : i32
    %c0_i32_0 = arith.constant 0 : i32
    %c0_i32_1 = arith.constant 0 : i32
    return %c0_i32, %c0_i32_0 : i32, i32
  }
  func.func @transform_16(%arg0: i32, %arg1: i32, %arg2: memref<2xi32, #tpu.memory_space<smem>>, %arg3: memref<2xi32, #tpu.memory_space<smem>>) -> (i32, i32) {
    %c0_i32 = arith.constant 0 : i32
    %c0_i32_0 = arith.constant 0 : i32
    %c0_i32_1 = arith.constant 0 : i32
    return %c0_i32, %c0_i32_0 : i32, i32
  }
  func.func @transform_17(%arg0: i32, %arg1: i32, %arg2: memref<2xi32, #tpu.memory_space<smem>>, %arg3: memref<2xi32, #tpu.memory_space<smem>>) -> (i32, i32) {
    %c0_i32 = arith.constant 0 : i32
    %c0_i32_0 = arith.constant 0 : i32
    %c0_i32_1 = arith.constant 0 : i32
    return %c0_i32, %c0_i32_0 : i32, i32
  }
  func.func @transform_18(%arg0: i32, %arg1: i32, %arg2: memref<2xi32, #tpu.memory_space<smem>>, %arg3: memref<2xi32, #tpu.memory_space<smem>>) -> (i32, i32) {
    %c0_i32 = arith.constant 0 : i32
    %c0_i32_0 = arith.constant 0 : i32
    %c0_i32_1 = arith.constant 0 : i32
    return %c0_i32, %c0_i32_0 : i32, i32
  }
  func.func @transform_19(%arg0: i32, %arg1: i32, %arg2: memref<2xi32, #tpu.memory_space<smem>>, %arg3: memref<2xi32, #tpu.memory_space<smem>>) -> (i32, i32) {
    %c0_i32 = arith.constant 0 : i32
    %c0_i32_0 = arith.constant 0 : i32
    %c0_i32_1 = arith.constant 0 : i32
    return %c0_i32, %c0_i32_0 : i32, i32
  }
  func.func @transform_20(%arg0: i32, %arg1: i32, %arg2: memref<2xi32, #tpu.memory_space<smem>>, %arg3: memref<2xi32, #tpu.memory_space<smem>>) -> (i32, i32, i32) {
    %c0_i32 = arith.constant 0 : i32
    %c0_i32_0 = arith.constant 0 : i32
    return %arg0, %arg1, %c0_i32 : i32, i32, i32
  }
}

</mosaic_0001>

<llo_original>
// kernel: encoder_decoder_forward.13
$region0: #{encoder_decoder_forward.13}
  #allocation0 [shape = 'u32[]', space=smem, size = 0x4, offset = 0x4, fixed_abs, tag = 'smem constant byte address 0x4 - core index']
  #allocation1 [shape = 'u32[144,128]{1,0:T(1,128)}', space=vmem, size = 0x12000, scoped, tag = 'internal scratch']
  %s0 = inlined_call_operand.vmem [shape: f32[2,8,32], index: 0, kind: input, shape index: {}]
  %s1 = inlined_call_operand.vmem [shape: f32[1,32], index: 1, kind: input, shape index: {}]
  %s2 = inlined_call_operand.vmem [shape: f32[1,32], index: 2, kind: input, shape index: {}]
  %s3 = inlined_call_operand.vmem [shape: bf16[32,128], index: 3, kind: input, shape index: {}]
  %s4 = inlined_call_operand.vmem [shape: f32[1,128], index: 4, kind: input, shape index: {}]
  %s5 = inlined_call_operand.hbm [shape: f32[2,8,128], index: 5, kind: output, shape index: {}]
  %s6 = sld [smem:[#allocation0]]
  $region53: #{encoder_decoder_forward.13} parent=0
    _
  %s8 = ssub.s32 1, %s6
  %s9 = scalar_select 0, %s8, %s6
  $region1: #{encoder_decoder_forward.13} parent=0
    #allocation2 [shape = 'u8[8192]{0}', space=vmem, size = 0x2000, scoped, tag = 'output window, operand 0']
    #allocation3 [shape = 's32[2]{0}', space=sflag, size = 0x8, scoped, tag = 'scoped memory for encoder_decoder_forward.13']
    %10 = vsyncpa [#allocation3], 0
    %s11 = scalar_lea.sflag [#allocation3], 1
    %12 = vsyncpa %s11, 0
    loop: start=0, step=1, limit=4
    $region2: #{encoder_decoder_forward.13} parent=1 // loop_pre_header
      _
    $region3: #{encoder_decoder_forward.13} parent=1 // loop_header
      %s14 = sphi 0, %s18
      %p15 = scmp.ge.s32.totalorder %s14, 4
      %s24 = sphi 0, %s26
      %s27 = sphi 0, %s24
      %s28 = sphi 0, %s27
      %s44 = sphi 0, %s28
      %s48 = sphi 0, %s48
      %s50 = sphi 0, %s48
      %s51 = sphi 0, %s50
      %s65 = sphi 0, %s51
      %s69 = sphi 0, %s69
      %s71 = sphi 0, %s69
      %s72 = sphi 0, %s71
      %s86 = sphi 0, %s72
      %s90 = sphi 0, %s90
      %s92 = sphi 0, %s90
      %s93 = sphi 0, %s92
      %s107 = sphi 0, %s93
      %s111 = sphi 0, %s111
      %s113 = sphi 0, %s111
      %s114 = sphi 0, %s113
      %s128 = sphi 0, %s114
      %s134 = sphi 0, %s136
      %s137 = sphi 0, %s134
      %s138 = sphi 0, %s137
      %s154 = sphi 0, %s138
    $region4: #{encoder_decoder_forward.13} parent=1 // loop_header_branch
      %17 = sbr.rel (%p15) target = $region8
    $region5: #{encoder_decoder_forward.13} parent=1 // loop_body
      %s19 = ssub.s32 %s14, 1
      %s20 = ssub.s32 %s14, 2
      %s21 = sadd.s32 %s14, 1
      %s22 = ssub.s32 %s14, %s21
      %p23 = scmp.eq.s32.totalorder %s22, 0
      %s25 = sadd.s32 %s24, 1
      %s26 = scalar_select %p23, %s24, %s25
      %p29 = pneg %p23
      %p30 = scmp.eq.s32.totalorder %s14, 1
      %p31 = por %p29, %p30
      %p32 = scmp.ne.s32.totalorder %s24, %s27
      %p33 = scmp.eq.s32.totalorder %s14, 0
      %p34 = por %p32, %p33
      %p35 = scmp.ne.s32.totalorder %s24, %s27
      %p36 = scmp.eq.s32.totalorder %s19, 1
      %p37 = por %p35, %p36
      %p38 = scmp.ne.s32.totalorder %s27, %s28
      %p39 = scmp.eq.s32.totalorder %s19, 0
      %p40 = por %p38, %p39
      %p41 = scmp.ne.s32.totalorder %s27, %s28
      %p42 = scmp.eq.s32.totalorder %s20, 1
      %p43 = por %p41, %p42
      %p45 = scmp.ne.s32.totalorder %s28, %s44
      %p46 = scmp.eq.s32.totalorder %s20, 0
      %p47 = por %p45, %p46
      %s49 = sadd.s32 %s48, 1
      %p52 = scmp.eq.s32.totalorder %s14, 1
      %p53 = scmp.ne.s32.totalorder %s48, %s50
      %p54 = scmp.eq.s32.totalorder %s14, 0
      %p55 = por %p53, %p54
      %p56 = scmp.ne.s32.totalorder %s48, %s50
      %p57 = scmp.eq.s32.totalorder %s19, 1
      %p58 = por %p56, %p57
      %p59 = scmp.ne.s32.totalorder %s50, %s51
      %p60 = scmp.eq.s32.totalorder %s19, 0
      %p61 = por %p59, %p60
      %p62 = scmp.ne.s32.totalorder %s50, %s51
      %p63 = scmp.eq.s32.totalorder %s20, 1
      %p64 = por %p62, %p63
      %p66 = scmp.ne.s32.totalorder %s51, %s65
      %p67 = scmp.eq.s32.totalorder %s20, 0
      %p68 = por %p66, %p67
      %s70 = sadd.s32 %s69, 1
      %p73 = scmp.eq.s32.totalorder %s14, 1
      %p74 = scmp.ne.s32.totalorder %s69, %s71
      %p75 = scmp.eq.s32.totalorder %s14, 0
      %p76 = por %p74, %p75
      %p77 = scmp.ne.s32.totalorder %s69, %s71
      %p78 = scmp.eq.s32.totalorder %s19, 1
      %p79 = por %p77, %p78
      %p80 = scmp.ne.s32.totalorder %s71, %s72
      %p81 = scmp.eq.s32.totalorder %s19, 0
      %p82 = por %p80, %p81
      %p83 = scmp.ne.s32.totalorder %s71, %s72
      %p84 = scmp.eq.s32.totalorder %s20, 1
      %p85 = por %p83, %p84
      %p87 = scmp.ne.s32.totalorder %s72, %s86
      %p88 = scmp.eq.s32.totalorder %s20, 0
      %p89 = por %p87, %p88
      %s91 = sadd.s32 %s90, 1
      %p94 = scmp.eq.s32.totalorder %s14, 1
      %p95 = scmp.ne.s32.totalorder %s90, %s92
      %p96 = scmp.eq.s32.totalorder %s14, 0
      %p97 = por %p95, %p96
      %p98 = scmp.ne.s32.totalorder %s90, %s92
      %p99 = scmp.eq.s32.totalorder %s19, 1
      %p100 = por %p98, %p99
      %p101 = scmp.ne.s32.totalorder %s92, %s93
      %p102 = scmp.eq.s32.totalorder %s19, 0
      %p103 = por %p101, %p102
      %p104 = scmp.ne.s32.totalorder %s92, %s93
      %p105 = scmp.eq.s32.totalorder %s20, 1
      %p106 = por %p104, %p105
      %p108 = scmp.ne.s32.totalorder %s93, %s107
      %p109 = scmp.eq.s32.totalorder %s20, 0
      %p110 = por %p108, %p109
      %s112 = sadd.s32 %s111, 1
      %p115 = scmp.eq.s32.totalorder %s14, 1
      %p116 = scmp.ne.s32.totalorder %s111, %s113
      %p117 = scmp.eq.s32.totalorder %s14, 0
      %p118 = por %p116, %p117
      %p119 = scmp.ne.s32.totalorder %s111, %s113
      %p120 = scmp.eq.s32.totalorder %s19, 1
      %p121 = por %p119, %p120
      %p122 = scmp.ne.s32.totalorder %s113, %s114
      %p123 = scmp.eq.s32.totalorder %s19, 0
      %p124 = por %p122, %p123
      %p125 = scmp.ne.s32.totalorder %s113, %s114
      %p126 = scmp.eq.s32.totalorder %s20, 1
      %p127 = por %p125, %p126
      %p129 = scmp.ne.s32.totalorder %s114, %s128
      %p130 = scmp.eq.s32.totalorder %s20, 0
      %p131 = por %p129, %p130
      %s132 = ssub.s32 %s14, %s21
      %p133 = scmp.eq.s32.totalorder %s132, 0
      %s135 = sadd.s32 %s134, 1
      %s136 = scalar_select %p133, %s134, %s135
      %p139 = pneg %p133
      %p140 = scmp.eq.s32.totalorder %s14, 1
      %p141 = por %p139, %p140
      %p142 = scmp.ne.s32.totalorder %s134, %s137
      %p143 = scmp.eq.s32.totalorder %s14, 0
      %p144 = por %p142, %p143
      %p145 = scmp.ne.s32.totalorder %s134, %s137
      %p146 = scmp.eq.s32.totalorder %s19, 1
      %p147 = por %p145, %p146
      %p148 = scmp.ne.s32.totalorder %s137, %s138
      %p149 = scmp.eq.s32.totalorder %s19, 0
      %p150 = por %p148, %p149
      %p151 = scmp.ne.s32.totalorder %s137, %s138
      %p152 = scmp.eq.s32.totalorder %s20, 1
      %p153 = por %p151, %p152
      %p155 = scmp.ne.s32.totalorder %s138, %s154
      %p156 = scmp.eq.s32.totalorder %s20, 0
      %p157 = por %p155, %p156
      %p158 = scmp.le.s32.totalorder 1, %s14
      %p159 = scmp.lt.s32.totalorder %s14, 3
      %p160 = pnand %p158, %p159
      %p161 = pneg %p160
      // Predicated region
      $region9: #{encoder_decoder_forward.13} parent=5 // pred_check
        _
      $region10: #{encoder_decoder_forward.13} parent=5 // pred_check_branch
        %163 = sbr.rel (%p160) target = $region12
      $region11: #{encoder_decoder_forward.13} parent=5 // pred_region
        %s164 = ssub.s32 %s14, 1
        // Predicated region
        $region13: #{encoder_decoder_forward.13} parent=11 // pred_check
          %p165 = pneg %p61
        $region14: #{encoder_decoder_forward.13} parent=11 // pred_check_branch
          %167 = sbr.rel (%p165) target = $region16
        $region15: #{encoder_decoder_forward.13} parent=11 // pred_region
          _
        $region16: #{encoder_decoder_forward.13} parent=11 // pred_fallthru
          _
        // Predicated region
        $region17: #{encoder_decoder_forward.13} parent=11 // pred_check
          %p168 = pneg %p82
        $region18: #{encoder_decoder_forward.13} parent=11 // pred_check_branch
          %170 = sbr.rel (%p168) target = $region20
        $region19: #{encoder_decoder_forward.13} parent=11 // pred_region
          _
        $region20: #{encoder_decoder_forward.13} parent=11 // pred_fallthru
          _
        // Predicated region
        $region21: #{encoder_decoder_forward.13} parent=11 // pred_check
          %p171 = pneg %p103
        $region22: #{encoder_decoder_forward.13} parent=11 // pred_check_branch
          %173 = sbr.rel (%p171) target = $region24
        $region23: #{encoder_decoder_forward.13} parent=11 // pred_region
          _
        $region24: #{encoder_decoder_forward.13} parent=11 // pred_fallthru
          _
        // Predicated region
        $region25: #{encoder_decoder_forward.13} parent=11 // pred_check
          %p174 = pneg %p124
        $region26: #{encoder_decoder_forward.13} parent=11 // pred_check_branch
          %176 = sbr.rel (%p174) target = $region28
        $region27: #{encoder_decoder_forward.13} parent=11 // pred_region
          _
        $region28: #{encoder_decoder_forward.13} parent=11 // pred_fallthru
          _
      $region12: #{encoder_decoder_forward.13} parent=5 // pred_fallthru
        _
      %p177 = scmp.lt.s32.totalorder %s14, 2
      // Predicated region
      $region29: #{encoder_decoder_forward.13} parent=5 // pred_check
        %p178 = pneg %p177
      $region30: #{encoder_decoder_forward.13} parent=5 // pred_check_branch
        %180 = sbr.rel (%p178) target = $region32
      $region31: #{encoder_decoder_forward.13} parent=5 // pred_region
        // Predicated region
        $region33: #{encoder_decoder_forward.13} parent=31 // pred_check
          %p181 = pneg %p34
        $region34: #{encoder_decoder_forward.13} parent=31 // pred_check_branch
          %183 = sbr.rel (%p181) target = $region36
        $region35: #{encoder_decoder_forward.13} parent=31 // pred_region
          %p184 = scmp.lt.s32.totalorder %s14, 1
          %s185 = scalar_select %p184, %s14, 1
          %s186 = smul.addr %s185, 8
          %s187 = scalar_lea.vmem %s0, %s186
        $region36: #{encoder_decoder_forward.13} parent=31 // pred_fallthru
          _
      $region32: #{encoder_decoder_forward.13} parent=5 // pred_fallthru
        _
      %p188 = scmp.le.s32.totalorder 1, %s14
      %p189 = scmp.lt.s32.totalorder %s14, 3
      %p190 = pnand %p188, %p189
      %p191 = pneg %p190
      // Predicated region
      $region37: #{encoder_decoder_forward.13} parent=5 // pred_check
        _
      $region38: #{encoder_decoder_forward.13} parent=5 // pred_check_branch
        %193 = sbr.rel (%p190) target = $region40
      $region39: #{encoder_decoder_forward.13} parent=5 // pred_region
        %s194 = ssub.s32 %s14, 1
        %p195 = scmp.lt.s32.totalorder %s19, 1
        %s196 = scalar_select %p195, %s19, 1
        %s197 = smul.addr %s196, 8
        %s198 = scalar_lea.vmem %s0, %s197
        %p199 = pneg %p40
        %p200 = pneg %p37
        %p201 = pneg %p61
        %p202 = pneg %p58
        %p203 = pneg %p82
        %p204 = pneg %p79
        %p205 = pneg %p103
        %p206 = pneg %p100
        %p207 = pneg %p124
        %p208 = pneg %p121
        %p209 = pneg %p150
        %p210 = pneg %p147
        %s211 = sand.u32 %s137, 1
        %s212 = scalar_lea.sflag [#allocation3], %s211
        %s213 = sand.u32 %s137, 1
        %s214 = smul.addr %s213, 8
        %s215 = scalar_lea.vmem [#allocation2], %s214
        %p216 = scmp.lt.s32.totalorder %s19, 1
        %s217 = scalar_select %p216, %s19, 1
        %s218 = smul.addr %s217, 8
        %s219 = scalar_lea.vmem %s0, %s218
        %v221 = vld [vmem:[%s219] sm:$0xff]
        %v222 = vld [vmem:[%s1] sm:$0x1]
        %v223 = vld [vmem:[%s2] sm:$0x1]
        %vm224 = vcmask 261120
        %v225 = vsel %vm224, %v221, 0.0
        %226 = vadd.xlane.f32.xlu0 %v225
        %v227 = vpop.xlane.xlu0 %226
        %v228 = vrcp.pop 32.0
        %v229 = vmul.f32 %v227, %v228
        %v230 = vsub.f32 %v221, %v229
        %v231 = vmul.f32 %v230, %v230
        %v232 = vsel %vm224, %v231, 0.0
        %233 = vadd.xlane.f32.xlu0 %v232
        %v234 = vpop.xlane.xlu0 %233
        %v235 = vmul.f32 %v234, %v228
        %v236 = vadd.f32 %v235, 1e-05
        %v237 = vrsqrt.pop %v236
        %v238 = vmul.f32 %v230, %v237
        %v240 = vlaneseq
        %v241 = vshrl.u32 %v240, 7
        %v242 = vsub.s32 0, %v241
        %v243 = vrot.slane %v222, %v242
        %v245 = vmul.f32 %v238, %v243
        %v247 = vlaneseq
        %v248 = vshrl.u32 %v247, 7
        %v249 = vsub.s32 0, %v248
        %v250 = vrot.slane %v223, %v249
        %v252 = vadd.f32 %v245, %v250
        %v253 = vpack.c.bf16 %v252, %v252
        %v254 = vld [vmem:[%s3] sm:$0xf]
        %v255 = vld [vmem:[%s3 + $0x4] sm:$0xf]
        %v256 = vld [vmem:[%s3 + $0x8] sm:$0xf]
        %v257 = vld [vmem:[%s3 + $0xc] sm:$0xf]
        %v258 = vld [vmem:[%s4] sm:$0x1]
        %v260 = vlaneseq
        %v261 = vshrl.u32 %v260, 7
        %v262 = vsub.s32 0, %v261
        %v263 = vrot.slane %v258, %v262
        %v269 = vunpack.c.l.b16 %v254
        %v270 = vunpack.c.l.b16 %v255
        %v271 = vunpack.c.l.b16 %v256
        %v272 = vunpack.c.l.b16 %v257
        %v273 = vpack.c.b16 %v270, %v269
        %v274 = vpack.c.b16 %v272, %v271
        %v278 = vsel %vm224, %v253, 0
        %280 = vmatprep.subr.bf16.mxu0 0
        %281 = vmatpush1.bf16.msra.mxu0 %v273
        %282 = vmatprep.subr.bf16.mxu0 0
        %283 = vmatpush1.bf16.msra.mxu0 %v274
        %284 = vmatprep.subr.bf16.mxu0 0
        %285 = vmatpush1.bf16.msra.mxu0 0
        %286 = vmatprep.subr.bf16.mxu0 0
        %287 = vmatpush1.bf16.msra.mxu0 0
        %288 = vmatprep.subr.bf16.mxu0 0
        %289 = vmatpush1.bf16.msra.mxu0 0
        %290 = vmatprep.subr.bf16.mxu0 0
        %291 = vmatpush1.bf16.msra.mxu0 0
        %292 = vmatprep.subr.bf16.mxu0 0
        %293 = vmatpush1.bf16.msra.mxu0 0
        %294 = vmatprep.subr.bf16.mxu0 0
        %295 = vmatpush1.bf16.msra.mxu0 0
        %296 = vmatprep.subr.bf16.mxu0 0
        %297 = vmatpush1.bf16.msra.mxu0 0
        %298 = vmatprep.subr.bf16.mxu0 0
        %299 = vmatpush1.bf16.msra.mxu0 0
        %300 = vmatprep.subr.bf16.mxu0 0
        %301 = vmatpush1.bf16.msra.mxu0 0
        %302 = vmatprep.subr.bf16.mxu0 0
        %303 = vmatpush1.bf16.msra.mxu0 0
        %304 = vmatprep.subr.bf16.mxu0 0
        %305 = vmatpush1.bf16.msra.mxu0 0
        %306 = vmatprep.subr.bf16.mxu0 0
        %307 = vmatpush1.bf16.msra.mxu0 0
        %308 = vmatprep.subr.bf16.mxu0 0
        %309 = vmatpush1.bf16.msra.mxu0 0
        %310 = vmatprep.subr.bf16.mxu0 0
        %311 = vmatpush1.bf16.msra.mxu0 0
        %312 = vmatprep.mubr.bf16.mxu0 0
        %313 = vmatmul.mubr.bf16.gmra.mrb[0].mxu0 %v278
        %v314 = vpop.f32.mrb[0].mxu0
        %v315 = vadd.f32 %v263, %v314
        %v316 = vpop.f32.mrb[0].mxu0
        %v317 = vpop.f32.mrb[0].mxu0
        %v318 = vpop.f32.mrb[0].mxu0
        %319 = vdwg.mxu0
        %320 = vst [vmem:[%s215] sm:$0xff] %v315
        %s321 = sand.u32 %s137, 1
        %s322 = scalar_lea.sflag [#allocation3], %s321
        %s323 = sand.u32 %s137, 1
        %s324 = smul.addr %s323, 8
        %s325 = scalar_lea.vmem [#allocation2], %s324
        // Predicated region
        $region41: #{encoder_decoder_forward.13} parent=39 // pred_check
          %p326 = pneg %p147
        $region42: #{encoder_decoder_forward.13} parent=39 // pred_check_branch
          %328 = sbr.rel (%p326) target = $region44
        $region43: #{encoder_decoder_forward.13} parent=39 // pred_region
          %s330 = ssub.s32 128, 128
          %331 = vsyncadd %s322, %s330
          %s332 = smul.addr %s19, 128
          %s333 = scalar_lea.hbm %s5, %s332
          %s335 = sshll.u32 %s325, 4
          %s336 = int_to_ptr.vmem [resolvable:$true] %s335
          %338 = dma.vmem_to_hbm [thread:$0]  %s336, 128, %s333, %s322
        $region44: #{encoder_decoder_forward.13} parent=39 // pred_fallthru
          _
      $region40: #{encoder_decoder_forward.13} parent=5 // pred_fallthru
        _
      %p339 = scmp.le.s32.totalorder 2, %s14
      // Predicated region
      $region45: #{encoder_decoder_forward.13} parent=5 // pred_check
        %p340 = pneg %p339
      $region46: #{encoder_decoder_forward.13} parent=5 // pred_check_branch
        %342 = sbr.rel (%p340) target = $region48
      $region47: #{encoder_decoder_forward.13} parent=5 // pred_region
        %s343 = ssub.s32 %s14, 2
        // Predicated region
        $region49: #{encoder_decoder_forward.13} parent=47 // pred_check
          %p344 = pneg %p153
        $region50: #{encoder_decoder_forward.13} parent=47 // pred_check_branch
          %346 = sbr.rel (%p344) target = $region52
        $region51: #{encoder_decoder_forward.13} parent=47 // pred_region
          %s347 = sand.u32 %s138, 1
          %s348 = scalar_lea.sflag [#allocation3], %s347
          %s349 = sand.u32 %s138, 1
          %s350 = smul.addr %s349, 8
          %s351 = scalar_lea.vmem [#allocation2], %s350
          %352 = dma.done %s348, 128
        $region52: #{encoder_decoder_forward.13} parent=47 // pred_fallthru
          _
      $region48: #{encoder_decoder_forward.13} parent=5 // pred_fallthru
        _
    $region6: #{encoder_decoder_forward.13} parent=1 // loop_footer
      %s18 = sadd.s32 1, %s14
    $region7: #{encoder_decoder_forward.13} parent=1 // loop_footer_branch
      %13 = sbr.rel target = $region3
    $region8: #{encoder_decoder_forward.13} parent=1 // loop_exit
      _
    %353 = vsyncpa [#allocation3], 1
    %s354 = scalar_lea.sflag [#allocation3], 1
    %355 = vsyncpa %s354, 1

// kernel: encoder_decoder_forward.9
$region0: #{encoder_decoder_forward.9}
  #allocation0 [shape = 'u32[]', space=smem, size = 0x4, offset = 0x4, fixed_abs, tag = 'smem constant byte address 0x4 - core index']
  #allocation1 [shape = 'u32[144,128]{1,0:T(1,128)}', space=vmem, size = 0x12000, scoped, tag = 'internal scratch']
  #allocation2 [shape = 'f32[8,32]{1,0:T(8,128)}', space=vmem, size = 0x1000, scoped, tag = 'scratch operand']
  #allocation3 [shape = 's32[1]{0}', space=sflag, size = 0x4, scoped, tag = 'scoped memory for encoder_decoder_forward.9']
  #allocation4 [shape = 'u8[512]{0}', space=smem, size = 0x200, scoped, tag = 'prefetched SMEM operand 0']
  %s0 = inlined_call_operand.vmem [shape: s32[2], index: 0, kind: input, shape index: {}]
  %s1 = inlined_call_operand.vmem [shape: f32[2,8,32], index: 1, kind: input, shape index: {}]
  %s2 = inlined_call_operand.vmem [shape: f32[1,32], index: 2, kind: input, shape index: {}]
  %s3 = inlined_call_operand.vmem [shape: f32[1,32], index: 3, kind: input, shape index: {}]
  %s4 = inlined_call_operand.vmem [shape: bf16[32,32], index: 4, kind: input, shape index: {}]
  %s5 = inlined_call_operand.vmem [shape: bf16[32,64], index: 5, kind: input, shape index: {}]
  %s6 = inlined_call_operand.vmem [shape: bf16[32,32], index: 6, kind: input, shape index: {}]
  %s7 = inlined_call_operand.vmem [shape: f32[1,32], index: 7, kind: input, shape index: {}]
  %s8 = inlined_call_operand.vmem [shape: f32[1,32], index: 8, kind: input, shape index: {}]
  %s9 = inlined_call_operand.vmem [shape: f32[1,32], index: 9, kind: input, shape index: {}]
  %s10 = inlined_call_operand.vmem [shape: bf16[32,64], index: 10, kind: input, shape index: {}]
  %s11 = inlined_call_operand.vmem [shape: f32[1,64], index: 11, kind: input, shape index: {}]
  %s12 = inlined_call_operand.vmem [shape: bf16[64,32], index: 12, kind: input, shape index: {}]
  %s13 = inlined_call_operand.vmem [shape: f32[1,32], index: 13, kind: input, shape index: {}]
  %s14 = inlined_call_operand.vmem [shape: f32[1,32], index: 14, kind: input, shape index: {}]
  %s15 = inlined_call_operand.vmem [shape: f32[1,32], index: 15, kind: input, shape index: {}]
  %s16 = inlined_call_operand.vmem [shape: f32[2,8,32], index: 16, kind: output, shape index: {}]
  %s17 = sld [smem:[#allocation0]]
  $region93: #{encoder_decoder_forward.9} parent=0
    _
  %s19 = ssub.s32 1, %s17
  %s20 = scalar_select 0, %s19, %s17
  %s21 = sshll.u32 %s0, 4
  %s22 = int_to_ptr.vmem [resolvable:$true] %s21
  %24 = dma.vmem_to_smem %s22, 16, [#allocation4], [#allocation3]
  %25 = dma.done [#allocation3], 16
  %26 = sfence
  loop: start=0, step=1, limit=4
  $region2: #{encoder_decoder_forward.9} parent=0 // loop_pre_header
    _
  $region3: #{encoder_decoder_forward.9} parent=0 // loop_header
    %s28 = sphi 0, %s32
    %p29 = scmp.ge.s32.totalorder %s28, 4
    %s35 = sphi 0, %s47
    %s36 = sphi 0, %s43
    %s37 = sphi 0, %s35
    %s38 = sphi 0, %s36
    %s39 = sphi 0, %s37
    %s40 = sphi 0, %s38
    %s50 = sphi 0, %s52
    %s53 = sphi 0, %s50
    %s54 = sphi 0, %s53
    %s70 = sphi 0, %s54
    %s74 = sphi 0, %s74
    %s76 = sphi 0, %s74
    %s77 = sphi 0, %s76
    %s91 = sphi 0, %s77
    %s95 = sphi 0, %s95
    %s97 = sphi 0, %s95
    %s98 = sphi 0, %s97
    %s112 = sphi 0, %s98
    %s116 = sphi 0, %s116
    %s118 = sphi 0, %s116
    %s119 = sphi 0, %s118
    %s133 = sphi 0, %s119
    %s137 = sphi 0, %s137
    %s139 = sphi 0, %s137
    %s140 = sphi 0, %s139
    %s154 = sphi 0, %s140
    %s158 = sphi 0, %s158
    %s160 = sphi 0, %s158
    %s161 = sphi 0, %s160
    %s175 = sphi 0, %s161
    %s179 = sphi 0, %s179
    %s181 = sphi 0, %s179
    %s182 = sphi 0, %s181
    %s196 = sphi 0, %s182
    %s200 = sphi 0, %s200
    %s202 = sphi 0, %s200
    %s203 = sphi 0, %s202
    %s217 = sphi 0, %s203
    %s221 = sphi 0, %s221
    %s223 = sphi 0, %s221
    %s224 = sphi 0, %s223
    %s238 = sphi 0, %s224
    %s242 = sphi 0, %s242
    %s244 = sphi 0, %s242
    %s245 = sphi 0, %s244
    %s259 = sphi 0, %s245
    %s263 = sphi 0, %s263
    %s265 = sphi 0, %s263
    %s266 = sphi 0, %s265
    %s280 = sphi 0, %s266
    %s284 = sphi 0, %s284
    %s286 = sphi 0, %s284
    %s287 = sphi 0, %s286
    %s301 = sphi 0, %s287
    %s305 = sphi 0, %s305
    %s307 = sphi 0, %s305
    %s308 = sphi 0, %s307
    %s322 = sphi 0, %s308
    %s326 = sphi 0, %s326
    %s328 = sphi 0, %s326
    %s329 = sphi 0, %s328
    %s343 = sphi 0, %s329
    %s347 = sphi 0, %s347
    %s349 = sphi 0, %s347
    %s350 = sphi 0, %s349
    %s364 = sphi 0, %s350
    %s372 = sphi 0, %s374
    %s375 = sphi 0, %s372
    %s376 = sphi 0, %s375
    %s392 = sphi 0, %s376
  $region4: #{encoder_decoder_forward.9} parent=0 // loop_header_branch
    %31 = sbr.rel (%p29) target = $region8
  $region5: #{encoder_decoder_forward.9} parent=0 // loop_body
    %s33 = ssub.s32 %s28, 1
    %s34 = ssub.s32 %s28, 2
    %s41 = sadd.s32 1, %s36
    %p42 = scmp.ge.s32.totalorder %s41, 1
    %s43 = scalar_select %p42, 0, %s41
    %s44 = sadd.s32 1, %s35
    %s45 = scalar_select %p42, %s44, %s35
    %p46 = scmp.ge.s32.totalorder %s45, 2
    %s47 = scalar_select %p46, 0, %s45
    %s48 = ssub.s32 %s35, %s47
    %p49 = scmp.eq.s32.totalorder %s48, 0
    %s51 = sadd.s32 %s50, 1
    %s52 = scalar_select %p49, %s50, %s51
    %p55 = pneg %p49
    %p56 = scmp.eq.s32.totalorder %s28, 1
    %p57 = por %p55, %p56
    %p58 = scmp.ne.s32.totalorder %s50, %s53
    %p59 = scmp.eq.s32.totalorder %s28, 0
    %p60 = por %p58, %p59
    %p61 = scmp.ne.s32.totalorder %s50, %s53
    %p62 = scmp.eq.s32.totalorder %s33, 1
    %p63 = por %p61, %p62
    %p64 = scmp.ne.s32.totalorder %s53, %s54
    %p65 = scmp.eq.s32.totalorder %s33, 0
    %p66 = por %p64, %p65
    %p67 = scmp.ne.s32.totalorder %s53, %s54
    %p68 = scmp.eq.s32.totalorder %s34, 1
    %p69 = por %p67, %p68
    %p71 = scmp.ne.s32.totalorder %s54, %s70
    %p72 = scmp.eq.s32.totalorder %s34, 0
    %p73 = por %p71, %p72
    %s75 = sadd.s32 %s74, 1
    %p78 = scmp.eq.s32.totalorder %s28, 1
    %p79 = scmp.ne.s32.totalorder %s74, %s76
    %p80 = scmp.eq.s32.totalorder %s28, 0
    %p81 = por %p79, %p80
    %p82 = scmp.ne.s32.totalorder %s74, %s76
    %p83 = scmp.eq.s32.totalorder %s33, 1
    %p84 = por %p82, %p83
    %p85 = scmp.ne.s32.totalorder %s76, %s77
    %p86 = scmp.eq.s32.totalorder %s33, 0
    %p87 = por %p85, %p86
    %p88 = scmp.ne.s32.totalorder %s76, %s77
    %p89 = scmp.eq.s32.totalorder %s34, 1
    %p90 = por %p88, %p89
    %p92 = scmp.ne.s32.totalorder %s77, %s91
    %p93 = scmp.eq.s32.totalorder %s34, 0
    %p94 = por %p92, %p93
    %s96 = sadd.s32 %s95, 1
    %p99 = scmp.eq.s32.totalorder %s28, 1
    %p100 = scmp.ne.s32.totalorder %s95, %s97
    %p101 = scmp.eq.s32.totalorder %s28, 0
    %p102 = por %p100, %p101
    %p103 = scmp.ne.s32.totalorder %s95, %s97
    %p104 = scmp.eq.s32.totalorder %s33, 1
    %p105 = por %p103, %p104
    %p106 = scmp.ne.s32.totalorder %s97, %s98
    %p107 = scmp.eq.s32.totalorder %s33, 0
    %p108 = por %p106, %p107
    %p109 = scmp.ne.s32.totalorder %s97, %s98
    %p110 = scmp.eq.s32.totalorder %s34, 1
    %p111 = por %p109, %p110
    %p113 = scmp.ne.s32.totalorder %s98, %s112
    %p114 = scmp.eq.s32.totalorder %s34, 0
    %p115 = por %p113, %p114
    %s117 = sadd.s32 %s116, 1
    %p120 = scmp.eq.s32.totalorder %s28, 1
    %p121 = scmp.ne.s32.totalorder %s116, %s118
    %p122 = scmp.eq.s32.totalorder %s28, 0
    %p123 = por %p121, %p122
    %p124 = scmp.ne.s32.totalorder %s116, %s118
    %p125 = scmp.eq.s32.totalorder %s33, 1
    %p126 = por %p124, %p125
    %p127 = scmp.ne.s32.totalorder %s118, %s119
    %p128 = scmp.eq.s32.totalorder %s33, 0
    %p129 = por %p127, %p128
    %p130 = scmp.ne.s32.totalorder %s118, %s119
    %p131 = scmp.eq.s32.totalorder %s34, 1
    %p132 = por %p130, %p131
    %p134 = scmp.ne.s32.totalorder %s119, %s133
    %p135 = scmp.eq.s32.totalorder %s34, 0
    %p136 = por %p134, %p135
    %s138 = sadd.s32 %s137, 1
    %p141 = scmp.eq.s32.totalorder %s28, 1
    %p142 = scmp.ne.s32.totalorder %s137, %s139
    %p143 = scmp.eq.s32.totalorder %s28, 0
    %p144 = por %p142, %p143
    %p145 = scmp.ne.s32.totalorder %s137, %s139
    %p146 = scmp.eq.s32.totalorder %s33, 1
    %p147 = por %p145, %p146
    %p148 = scmp.ne.s32.totalorder %s139, %s140
    %p149 = scmp.eq.s32.totalorder %s33, 0
    %p150 = por %p148, %p149
    %p151 = scmp.ne.s32.totalorder %s139, %s140
    %p152 = scmp.eq.s32.totalorder %s34, 1
    %p153 = por %p151, %p152
    %p155 = scmp.ne.s32.totalorder %s140, %s154
    %p156 = scmp.eq.s32.totalorder %s34, 0
    %p157 = por %p155, %p156
    %s159 = sadd.s32 %s158, 1
    %p162 = scmp.eq.s32.totalorder %s28, 1
    %p163 = scmp.ne.s32.totalorder %s158, %s160
    %p164 = scmp.eq.s32.totalorder %s28, 0
    %p165 = por %p163, %p164
    %p166 = scmp.ne.s32.totalorder %s158, %s160
    %p167 = scmp.eq.s32.totalorder %s33, 1
    %p168 = por %p166, %p167
    %p169 = scmp.ne.s32.totalorder %s160, %s161
    %p170 = scmp.eq.s32.totalorder %s33, 0
    %p171 = por %p169, %p170
    %p172 = scmp.ne.s32.totalorder %s160, %s161
    %p173 = scmp.eq.s32.totalorder %s34, 1
    %p174 = por %p172, %p173
    %p176 = scmp.ne.s32.totalorder %s161, %s175
    %p177 = scmp.eq.s32.totalorder %s34, 0
    %p178 = por %p176, %p177
    %s180 = sadd.s32 %s179, 1
    %p183 = scmp.eq.s32.totalorder %s28, 1
    %p184 = scmp.ne.s32.totalorder %s179, %s181
    %p185 = scmp.eq.s32.totalorder %s28, 0
    %p186 = por %p184, %p185
    %p187 = scmp.ne.s32.totalorder %s179, %s181
    %p188 = scmp.eq.s32.totalorder %s33, 1
    %p189 = por %p187, %p188
    %p190 = scmp.ne.s32.totalorder %s181, %s182
    %p191 = scmp.eq.s32.totalorder %s33, 0
    %p192 = por %p190, %p191
    %p193 = scmp.ne.s32.totalorder %s181, %s182
    %p194 = scmp.eq.s32.totalorder %s34, 1
    %p195 = por %p193, %p194
    %p197 = scmp.ne.s32.totalorder %s182, %s196
    %p198 = scmp.eq.s32.totalorder %s34, 0
    %p199 = por %p197, %p198
    %s201 = sadd.s32 %s200, 1
    %p204 = scmp.eq.s32.totalorder %s28, 1
    %p205 = scmp.ne.s32.totalorder %s200, %s202
    %p206 = scmp.eq.s32.totalorder %s28, 0
    %p207 = por %p205, %p206
    %p208 = scmp.ne.s32.totalorder %s200, %s202
    %p209 = scmp.eq.s32.totalorder %s33, 1
    %p210 = por %p208, %p209
    %p211 = scmp.ne.s32.totalorder %s202, %s203
    %p212 = scmp.eq.s32.totalorder %s33, 0
    %p213 = por %p211, %p212
    %p214 = scmp.ne.s32.totalorder %s202, %s203
    %p215 = scmp.eq.s32.totalorder %s34, 1
    %p216 = por %p214, %p215
    %p218 = scmp.ne.s32.totalorder %s203, %s217
    %p219 = scmp.eq.s32.totalorder %s34, 0
    %p220 = por %p218, %p219
    %s222 = sadd.s32 %s221, 1
    %p225 = scmp.eq.s32.totalorder %s28, 1
    %p226 = scmp.ne.s32.totalorder %s221, %s223
    %p227 = scmp.eq.s32.totalorder %s28, 0
    %p228 = por %p226, %p227
    %p229 = scmp.ne.s32.totalorder %s221, %s223
    %p230 = scmp.eq.s32.totalorder %s33, 1
    %p231 = por %p229, %p230
    %p232 = scmp.ne.s32.totalorder %s223, %s224
    %p233 = scmp.eq.s32.totalorder %s33, 0
    %p234 = por %p232, %p233
    %p235 = scmp.ne.s32.totalorder %s223, %s224
    %p236 = scmp.eq.s32.totalorder %s34, 1
    %p237 = por %p235, %p236
    %p239 = scmp.ne.s32.totalorder %s224, %s238
    %p240 = scmp.eq.s32.totalorder %s34, 0
    %p241 = por %p239, %p240
    %s243 = sadd.s32 %s242, 1
    %p246 = scmp.eq.s32.totalorder %s28, 1
    %p247 = scmp.ne.s32.totalorder %s242, %s244
    %p248 = scmp.eq.s32.totalorder %s28, 0
    %p249 = por %p247, %p248
    %p250 = scmp.ne.s32.totalorder %s242, %s244
    %p251 = scmp.eq.s32.totalorder %s33, 1
    %p252 = por %p250, %p251
    %p253 = scmp.ne.s32.totalorder %s244, %s245
    %p254 = scmp.eq.s32.totalorder %s33, 0
    %p255 = por %p253, %p254
    %p256 = scmp.ne.s32.totalorder %s244, %s245
    %p257 = scmp.eq.s32.totalorder %s34, 1
    %p258 = por %p256, %p257
    %p260 = scmp.ne.s32.totalorder %s245, %s259
    %p261 = scmp.eq.s32.totalorder %s34, 0
    %p262 = por %p260, %p261
    %s264 = sadd.s32 %s263, 1
    %p267 = scmp.eq.s32.totalorder %s28, 1
    %p268 = scmp.ne.s32.totalorder %s263, %s265
    %p269 = scmp.eq.s32.totalorder %s28, 0
    %p270 = por %p268, %p269
    %p271 = scmp.ne.s32.totalorder %s263, %s265
    %p272 = scmp.eq.s32.totalorder %s33, 1
    %p273 = por %p271, %p272
    %p274 = scmp.ne.s32.totalorder %s265, %s266
    %p275 = scmp.eq.s32.totalorder %s33, 0
    %p276 = por %p274, %p275
    %p277 = scmp.ne.s32.totalorder %s265, %s266
    %p278 = scmp.eq.s32.totalorder %s34, 1
    %p279 = por %p277, %p278
    %p281 = scmp.ne.s32.totalorder %s266, %s280
    %p282 = scmp.eq.s32.totalorder %s34, 0
    %p283 = por %p281, %p282
    %s285 = sadd.s32 %s284, 1
    %p288 = scmp.eq.s32.totalorder %s28, 1
    %p289 = scmp.ne.s32.totalorder %s284, %s286
    %p290 = scmp.eq.s32.totalorder %s28, 0
    %p291 = por %p289, %p290
    %p292 = scmp.ne.s32.totalorder %s284, %s286
    %p293 = scmp.eq.s32.totalorder %s33, 1
    %p294 = por %p292, %p293
    %p295 = scmp.ne.s32.totalorder %s286, %s287
    %p296 = scmp.eq.s32.totalorder %s33, 0
    %p297 = por %p295, %p296
    %p298 = scmp.ne.s32.totalorder %s286, %s287
    %p299 = scmp.eq.s32.totalorder %s34, 1
    %p300 = por %p298, %p299
    %p302 = scmp.ne.s32.totalorder %s287, %s301
    %p303 = scmp.eq.s32.totalorder %s34, 0
    %p304 = por %p302, %p303
    %s306 = sadd.s32 %s305, 1
    %p309 = scmp.eq.s32.totalorder %s28, 1
    %p310 = scmp.ne.s32.totalorder %s305, %s307
    %p311 = scmp.eq.s32.totalorder %s28, 0
    %p312 = por %p310, %p311
    %p313 = scmp.ne.s32.totalorder %s305, %s307
    %p314 = scmp.eq.s32.totalorder %s33, 1
    %p315 = por %p313, %p314
    %p316 = scmp.ne.s32.totalorder %s307, %s308
    %p317 = scmp.eq.s32.totalorder %s33, 0
    %p318 = por %p316, %p317
    %p319 = scmp.ne.s32.totalorder %s307, %s308
    %p320 = scmp.eq.s32.totalorder %s34, 1
    %p321 = por %p319, %p320
    %p323 = scmp.ne.s32.totalorder %s308, %s322
    %p324 = scmp.eq.s32.totalorder %s34, 0
    %p325 = por %p323, %p324
    %s327 = sadd.s32 %s326, 1
    %p330 = scmp.eq.s32.totalorder %s28, 1
    %p331 = scmp.ne.s32.totalorder %s326, %s328
    %p332 = scmp.eq.s32.totalorder %s28, 0
    %p333 = por %p331, %p332
    %p334 = scmp.ne.s32.totalorder %s326, %s328
    %p335 = scmp.eq.s32.totalorder %s33, 1
    %p336 = por %p334, %p335
    %p337 = scmp.ne.s32.totalorder %s328, %s329
    %p338 = scmp.eq.s32.totalorder %s33, 0
    %p339 = por %p337, %p338
    %p340 = scmp.ne.s32.totalorder %s328, %s329
    %p341 = scmp.eq.s32.totalorder %s34, 1
    %p342 = por %p340, %p341
    %p344 = scmp.ne.s32.totalorder %s329, %s343
    %p345 = scmp.eq.s32.totalorder %s34, 0
    %p346 = por %p344, %p345
    %s348 = sadd.s32 %s347, 1
    %p351 = scmp.eq.s32.totalorder %s28, 1
    %p352 = scmp.ne.s32.totalorder %s347, %s349
    %p353 = scmp.eq.s32.totalorder %s28, 0
    %p354 = por %p352, %p353
    %p355 = scmp.ne.s32.totalorder %s347, %s349
    %p356 = scmp.eq.s32.totalorder %s33, 1
    %p357 = por %p355, %p356
    %p358 = scmp.ne.s32.totalorder %s349, %s350
    %p359 = scmp.eq.s32.totalorder %s33, 0
    %p360 = por %p358, %p359
    %p361 = scmp.ne.s32.totalorder %s349, %s350
    %p362 = scmp.eq.s32.totalorder %s34, 1
    %p363 = por %p361, %p362
    %p365 = scmp.ne.s32.totalorder %s350, %s364
    %p366 = scmp.eq.s32.totalorder %s34, 0
    %p367 = por %p365, %p366
    %s368 = ssub.s32 %s35, %s47
    %s369 = ssub.s32 %s36, %s43
    %s370 = sor.u32 %s368, %s369
    %p371 = scmp.eq.s32.totalorder %s370, 0
    %s373 = sadd.s32 %s372, 1
    %s374 = scalar_select %p371, %s372, %s373
    %p377 = pneg %p371
    %p378 = scmp.eq.s32.totalorder %s28, 1
    %p379 = por %p377, %p378
    %p380 = scmp.ne.s32.totalorder %s372, %s375
    %p381 = scmp.eq.s32.totalorder %s28, 0
    %p382 = por %p380, %p381
    %p383 = scmp.ne.s32.totalorder %s372, %s375
    %p384 = scmp.eq.s32.totalorder %s33, 1
    %p385 = por %p383, %p384
    %p386 = scmp.ne.s32.totalorder %s375, %s376
    %p387 = scmp.eq.s32.totalorder %s33, 0
    %p388 = por %p386, %p387
    %p389 = scmp.ne.s32.totalorder %s375, %s376
    %p390 = scmp.eq.s32.totalorder %s34, 1
    %p391 = por %p389, %p390
    %p393 = scmp.ne.s32.totalorder %s376, %s392
    %p394 = scmp.eq.s32.totalorder %s34, 0
    %p395 = por %p393, %p394
    %p396 = scmp.le.s32.totalorder 1, %s28
    %p397 = scmp.lt.s32.totalorder %s28, 3
    %p398 = pnand %p396, %p397
    %p399 = pneg %p398
    // Predicated region
    $region9: #{encoder_decoder_forward.9} parent=5 // pred_check
      _
    $region10: #{encoder_decoder_forward.9} parent=5 // pred_check_branch
      %401 = sbr.rel (%p398) target = $region12
    $region11: #{encoder_decoder_forward.9} parent=5 // pred_region
      %s402 = ssub.s32 %s28, 1
      // Predicated region
      $region13: #{encoder_decoder_forward.9} parent=11 // pred_check
        %p403 = pneg %p87
      $region14: #{encoder_decoder_forward.9} parent=11 // pred_check_branch
        %405 = sbr.rel (%p403) target = $region16
      $region15: #{encoder_decoder_forward.9} parent=11 // pred_region
        _
      $region16: #{encoder_decoder_forward.9} parent=11 // pred_fallthru
        _
      // Predicated region
      $region17: #{encoder_decoder_forward.9} parent=11 // pred_check
        %p406 = pneg %p108
      $region18: #{encoder_decoder_forward.9} parent=11 // pred_check_branch
        %408 = sbr.rel (%p406) target = $region20
      $region19: #{encoder_decoder_forward.9} parent=11 // pred_region
        _
      $region20: #{encoder_decoder_forward.9} parent=11 // pred_fallthru
        _
      // Predicated region
      $region21: #{encoder_decoder_forward.9} parent=11 // pred_check
        %p409 = pneg %p129
      $region22: #{encoder_decoder_forward.9} parent=11 // pred_check_branch
        %411 = sbr.rel (%p409) target = $region24
      $region23: #{encoder_decoder_forward.9} parent=11 // pred_region
        _
      $region24: #{encoder_decoder_forward.9} parent=11 // pred_fallthru
        _
      // Predicated region
      $region25: #{encoder_decoder_forward.9} parent=11 // pred_check
        %p412 = pneg %p150
      $region26: #{encoder_decoder_forward.9} parent=11 // pred_check_branch
        %414 = sbr.rel (%p412) target = $region28
      $region27: #{encoder_decoder_forward.9} parent=11 // pred_region
        _
      $region28: #{encoder_decoder_forward.9} parent=11 // pred_fallthru
        _
      // Predicated region
      $region29: #{encoder_decoder_forward.9} parent=11 // pred_check
        %p415 = pneg %p171
      $region30: #{encoder_decoder_forward.9} parent=11 // pred_check_branch
        %417 = sbr.rel (%p415) target = $region32
      $region31: #{encoder_decoder_forward.9} parent=11 // pred_region
        _
      $region32: #{encoder_decoder_forward.9} parent=11 // pred_fallthru
        _
      // Predicated region
      $region33: #{encoder_decoder_forward.9} parent=11 // pred_check
        %p418 = pneg %p192
      $region34: #{encoder_decoder_forward.9} parent=11 // pred_check_branch
        %420 = sbr.rel (%p418) target = $region36
      $region35: #{encoder_decoder_forward.9} parent=11 // pred_region
        _
      $region36: #{encoder_decoder_forward.9} parent=11 // pred_fallthru
        _
      // Predicated region
      $region37: #{encoder_decoder_forward.9} parent=11 // pred_check
        %p421 = pneg %p213
      $region38: #{encoder_decoder_forward.9} parent=11 // pred_check_branch
        %423 = sbr.rel (%p421) target = $region40
      $region39: #{encoder_decoder_forward.9} parent=11 // pred_region
        _
      $region40: #{encoder_decoder_forward.9} parent=11 // pred_fallthru
        _
      // Predicated region
      $region41: #{encoder_decoder_forward.9} parent=11 // pred_check
        %p424 = pneg %p234
      $region42: #{encoder_decoder_forward.9} parent=11 // pred_check_branch
        %426 = sbr.rel (%p424) target = $region44
      $region43: #{encoder_decoder_forward.9} parent=11 // pred_region
        _
      $region44: #{encoder_decoder_forward.9} parent=11 // pred_fallthru
        _
      // Predicated region
      $region45: #{encoder_decoder_forward.9} parent=11 // pred_check
        %p427 = pneg %p255
      $region46: #{encoder_decoder_forward.9} parent=11 // pred_check_branch
        %429 = sbr.rel (%p427) target = $region48
      $region47: #{encoder_decoder_forward.9} parent=11 // pred_region
        _
      $region48: #{encoder_decoder_forward.9} parent=11 // pred_fallthru
        _
      // Predicated region
      $region49: #{encoder_decoder_forward.9} parent=11 // pred_check
        %p430 = pneg %p276
      $region50: #{encoder_decoder_forward.9} parent=11 // pred_check_branch
        %432 = sbr.rel (%p430) target = $region52
      $region51: #{encoder_decoder_forward.9} parent=11 // pred_region
        _
      $region52: #{encoder_decoder_forward.9} parent=11 // pred_fallthru
        _
      // Predicated region
      $region53: #{encoder_decoder_forward.9} parent=11 // pred_check
        %p433 = pneg %p297
      $region54: #{encoder_decoder_forward.9} parent=11 // pred_check_branch
        %435 = sbr.rel (%p433) target = $region56
      $region55: #{encoder_decoder_forward.9} parent=11 // pred_region
        _
      $region56: #{encoder_decoder_forward.9} parent=11 // pred_fallthru
        _
      // Predicated region
      $region57: #{encoder_decoder_forward.9} parent=11 // pred_check
        %p436 = pneg %p318
      $region58: #{encoder_decoder_forward.9} parent=11 // pred_check_branch
        %438 = sbr.rel (%p436) target = $region60
      $region59: #{encoder_decoder_forward.9} parent=11 // pred_region
        _
      $region60: #{encoder_decoder_forward.9} parent=11 // pred_fallthru
        _
      // Predicated region
      $region61: #{encoder_decoder_forward.9} parent=11 // pred_check
        %p439 = pneg %p339
      $region62: #{encoder_decoder_forward.9} parent=11 // pred_check_branch
        %441 = sbr.rel (%p439) target = $region64
      $region63: #{encoder_decoder_forward.9} parent=11 // pred_region
        _
      $region64: #{encoder_decoder_forward.9} parent=11 // pred_fallthru
        _
      // Predicated region
      $region65: #{encoder_decoder_forward.9} parent=11 // pred_check
        %p442 = pneg %p360
      $region66: #{encoder_decoder_forward.9} parent=11 // pred_check_branch
        %444 = sbr.rel (%p442) target = $region68
      $region67: #{encoder_decoder_forward.9} parent=11 // pred_region
        _
      $region68: #{encoder_decoder_forward.9} parent=11 // pred_fallthru
        _
    $region12: #{encoder_decoder_forward.9} parent=5 // pred_fallthru
      _
    %p445 = scmp.lt.s32.totalorder %s28, 2
    // Predicated region
    $region69: #{encoder_decoder_forward.9} parent=5 // pred_check
      %p446 = pneg %p445
    $region70: #{encoder_decoder_forward.9} parent=5 // pred_check_branch
      %448 = sbr.rel (%p446) target = $region72
    $region71: #{encoder_decoder_forward.9} parent=5 // pred_region
      // Predicated region
      $region73: #{encoder_decoder_forward.9} parent=71 // pred_check
        %p449 = pneg %p60
      $region74: #{encoder_decoder_forward.9} parent=71 // pred_check_branch
        %451 = sbr.rel (%p449) target = $region76
      $region75: #{encoder_decoder_forward.9} parent=71 // pred_region
        %p452 = scmp.lt.s32.totalorder %s35, 1
        %s453 = scalar_select %p452, %s35, 1
        %s454 = smul.addr %s453, 8
        %s455 = scalar_lea.vmem %s1, %s454
      $region76: #{encoder_decoder_forward.9} parent=71 // pred_fallthru
        _
    $region72: #{encoder_decoder_forward.9} parent=5 // pred_fallthru
      _
    %p456 = scmp.le.s32.totalorder 1, %s28
    %p457 = scmp.lt.s32.totalorder %s28, 3
    %p458 = pnand %p456, %p457
    %p459 = pneg %p458
    // Predicated region
    $region77: #{encoder_decoder_forward.9} parent=5 // pred_check
      _
    $region78: #{encoder_decoder_forward.9} parent=5 // pred_check_branch
      %461 = sbr.rel (%p458) target = $region80
    $region79: #{encoder_decoder_forward.9} parent=5 // pred_region
      %s462 = ssub.s32 %s28, 1
      %p463 = scmp.lt.s32.totalorder %s37, 1
      %s464 = scalar_select %p463, %s37, 1
      %s465 = smul.addr %s464, 8
      %s466 = scalar_lea.vmem %s1, %s465
      %p467 = pneg %p66
      %p468 = pneg %p63
      %p469 = pneg %p87
      %p470 = pneg %p84
      %p471 = pneg %p108
      %p472 = pneg %p105
      %p473 = pneg %p129
      %p474 = pneg %p126
      %p475 = pneg %p150
      %p476 = pneg %p147
      %p477 = pneg %p171
      %p478 = pneg %p168
      %p479 = pneg %p192
      %p480 = pneg %p189
      %p481 = pneg %p213
      %p482 = pneg %p210
      %p483 = pneg %p234
      %p484 = pneg %p231
      %p485 = pneg %p255
      %p486 = pneg %p252
      %p487 = pneg %p276
      %p488 = pneg %p273
      %p489 = pneg %p297
      %p490 = pneg %p294
      %p491 = pneg %p318
      %p492 = pneg %p315
      %p493 = pneg %p339
      %p494 = pneg %p336
      %p495 = pneg %p360
      %p496 = pneg %p357
      %p497 = pneg %p388
      %p498 = pneg %p385
      %p499 = scmp.lt.s32.totalorder %s37, 1
      %s500 = scalar_select %p499, %s37, 1
      %p501 = scmp.lt.s32.totalorder %s38, 0
      %s502 = scalar_select %p501, %s38, 0
      %s503 = sadd.s32 %s502, %s500
      %s504 = smul.addr %s503, 8
      %s505 = scalar_lea.vmem %s16, %s504
      %p506 = scmp.lt.s32.totalorder %s37, 1
      %s507 = scalar_select %p506, %s37, 1
      %s508 = smul.addr %s507, 8
      %s509 = scalar_lea.vmem %s1, %s508
      %p510 = scmp.lt.s32.totalorder %s37, 1
      %s511 = scalar_select %p510, %s37, 1
      %p512 = scmp.lt.s32.totalorder %s38, 0
      %s513 = scalar_select %p512, %s38, 0
      %s514 = sadd.s32 %s513, %s511
      %s515 = smul.addr %s514, 8
      %s516 = scalar_lea.vmem %s16, %s515
      %s518 = smul.u32 %s38, 8
      %v519 = vld [vmem:[%s509] sm:$0xff]
      %v520 = vld [vmem:[%s2] sm:$0x1]
      %v521 = vld [vmem:[%s3] sm:$0x1]
      %vm522 = vcmask 261120
      %v523 = vsel %vm522, %v519, 0.0
      %524 = vadd.xlane.f32.xlu0 %v523
      %v525 = vpop.xlane.xlu0 %524
      %v526 = vrcp.pop 32.0
      %v527 = vmul.f32 %v525, %v526
      %v528 = vsub.f32 %v519, %v527
      %v529 = vmul.f32 %v528, %v528
      %v530 = vsel %vm522, %v529, 0.0
      %531 = vadd.xlane.f32.xlu0 %v530
      %v532 = vpop.xlane.xlu0 %531
      %v533 = vmul.f32 %v532, %v526
      %v534 = vadd.f32 %v533, 1e-05
      %v535 = vrsqrt.pop %v534
      %v536 = vmul.f32 %v528, %v535
      %v538 = vlaneseq
      %v539 = vshrl.u32 %v538, 7
      %v540 = vsub.s32 0, %v539
      %v541 = vrot.slane %v520, %v540
      %v543 = vmul.f32 %v536, %v541
      %v545 = vlaneseq
      %v546 = vshrl.u32 %v545, 7
      %v547 = vsub.s32 0, %v546
      %v548 = vrot.slane %v521, %v547
      %v550 = vadd.f32 %v543, %v548
      %v551 = vpack.c.bf16 %v550, %v550
      %v552 = vld [vmem:[%s5] sm:$0xf]
      %v553 = vld [vmem:[%s5 + $0x4] sm:$0xf]
      %v554 = vld [vmem:[%s5 + $0x8] sm:$0xf]
      %v555 = vld [vmem:[%s5 + $0xc] sm:$0xf]
      %v560 = vunpack.c.l.b16 %v552
      %v561 = vunpack.c.l.b16 %v553
      %v562 = vunpack.c.l.b16 %v554
      %v563 = vunpack.c.l.b16 %v555
      %v564 = vpack.c.b16 %v561, %v560
      %v565 = vpack.c.b16 %v563, %v562
      %v569 = vsel %vm522, %v551, 0
      %571 = vmatprep.subr.bf16.mxu0 0
      %572 = vmatpush1.bf16.msra.mxu0 %v564
      %573 = vmatprep.subr.bf16.mxu0 0
      %574 = vmatpush1.bf16.msra.mxu0 %v565
      %575 = vmatprep.subr.bf16.mxu0 0
      %576 = vmatpush1.bf16.msra.mxu0 0
      %577 = vmatprep.subr.bf16.mxu0 0
      %578 = vmatpush1.bf16.msra.mxu0 0
      %579 = vmatprep.subr.bf16.mxu0 0
      %580 = vmatpush1.bf16.msra.mxu0 0
      %581 = vmatprep.subr.bf16.mxu0 0
      %582 = vmatpush1.bf16.msra.mxu0 0
      %583 = vmatprep.subr.bf16.mxu0 0
      %584 = vmatpush1.bf16.msra.mxu0 0
      %585 = vmatprep.subr.bf16.mxu0 0
      %586 = vmatpush1.bf16.msra.mxu0 0
      %587 = vmatprep.subr.bf16.mxu0 0
      %588 = vmatpush1.bf16.msra.mxu0 0
      %589 = vmatprep.subr.bf16.mxu0 0
      %590 = vmatpush1.bf16.msra.mxu0 0
      %591 = vmatprep.subr.bf16.mxu0 0
      %592 = vmatpush1.bf16.msra.mxu0 0
      %593 = vmatprep.subr.bf16.mxu0 0
      %594 = vmatpush1.bf16.msra.mxu0 0
      %595 = vmatprep.subr.bf16.mxu0 0
      %596 = vmatpush1.bf16.msra.mxu0 0
      %597 = vmatprep.subr.bf16.mxu0 0
      %598 = vmatpush1.bf16.msra.mxu0 0
      %599 = vmatprep.subr.bf16.mxu0 0
      %600 = vmatpush1.bf16.msra.mxu0 0
      %601 = vmatprep.subr.bf16.mxu0 0
      %602 = vmatpush1.bf16.msra.mxu0 0
      %603 = vmatprep.mubr.bf16.mxu0 0
      %604 = vmatmul.mubr.bf16.gmra.mrb[0].mxu0 %v569
      %v605 = vpop.f32.mrb[0].mxu0
      %v606 = vadd.f32 0.0, %v605
      %v607 = vpop.f32.mrb[0].mxu0
      %v608 = vpop.f32.mrb[0].mxu0
      %v609 = vpop.f32.mrb[0].mxu0
      %610 = vdwg.mxu0
      %s611 = scalar_lea.vmem %s509, %s518
      %v612 = vld [vmem:[%s611] sm:$0xff]
      %v613 = vsel %vm522, %v612, 0.0
      %614 = vadd.xlane.f32.xlu0 %v613
      %v615 = vpop.xlane.xlu0 %614
      %v616 = vmul.f32 %v615, %v526
      %v617 = vsub.f32 %v612, %v616
      %v618 = vmul.f32 %v617, %v617
      %v619 = vsel %vm522, %v618, 0.0
      %620 = vadd.xlane.f32.xlu0 %v619
      %v621 = vpop.xlane.xlu0 %620
      %v622 = vmul.f32 %v621, %v526
      %v623 = vadd.f32 %v622, 1e-05
      %v624 = vrsqrt.pop %v623
      %v625 = vmul.f32 %v617, %v624
      %v626 = vmul.f32 %v625, %v541
      %v627 = vadd.f32 %v626, %v548
      %v628 = vpack.c.bf16 %v627, %v627
      %v629 = vld [vmem:[%s4] sm:$0xf]
      %v630 = vld [vmem:[%s4 + $0x4] sm:$0xf]
      %v631 = vld [vmem:[%s4 + $0x8] sm:$0xf]
      %v632 = vld [vmem:[%s4 + $0xc] sm:$0xf]
      %v637 = vunpack.c.l.b16 %v629
      %v638 = vunpack.c.l.b16 %v630
      %v639 = vunpack.c.l.b16 %v631
      %v640 = vunpack.c.l.b16 %v632
      %v641 = vpack.c.b16 %v638, %v637
      %v642 = vpack.c.b16 %v640, %v639
      %v646 = vsel %vm522, %v628, 0
      %648 = vmatprep.subr.bf16.mxu0 0
      %649 = vmatpush1.bf16.msra.mxu0 %v641
      %650 = vmatprep.subr.bf16.mxu0 0
      %651 = vmatpush1.bf16.msra.mxu0 %v642
      %652 = vmatprep.subr.bf16.mxu0 0
      %653 = vmatpush1.bf16.msra.mxu0 0
      %654 = vmatprep.subr.bf16.mxu0 0
      %655 = vmatpush1.bf16.msra.mxu0 0
      %656 = vmatprep.subr.bf16.mxu0 0
      %657 = vmatpush1.bf16.msra.mxu0 0
      %658 = vmatprep.subr.bf16.mxu0 0
      %659 = vmatpush1.bf16.msra.mxu0 0
      %660 = vmatprep.subr.bf16.mxu0 0
      %661 = vmatpush1.bf16.msra.mxu0 0
      %662 = vmatprep.subr.bf16.mxu0 0
      %663 = vmatpush1.bf16.msra.mxu0 0
      %664 = vmatprep.subr.bf16.mxu0 0
      %665 = vmatpush1.bf16.msra.mxu0 0
      %666 = vmatprep.subr.bf16.mxu0 0
      %667 = vmatpush1.bf16.msra.mxu0 0
      %668 = vmatprep.subr.bf16.mxu0 0
      %669 = vmatpush1.bf16.msra.mxu0 0
      %670 = vmatprep.subr.bf16.mxu0 0
      %671 = vmatpush1.bf16.msra.mxu0 0
      %672 = vmatprep.subr.bf16.mxu0 0
      %673 = vmatpush1.bf16.msra.mxu0 0
      %674 = vmatprep.subr.bf16.mxu0 0
      %675 = vmatpush1.bf16.msra.mxu0 0
      %676 = vmatprep.subr.bf16.mxu0 0
      %677 = vmatpush1.bf16.msra.mxu0 0
      %678 = vmatprep.subr.bf16.mxu0 0
      %679 = vmatpush1.bf16.msra.mxu0 0
      %680 = vmatprep.mubr.bf16.mxu0 0
      %681 = vmatmul.mubr.bf16.gmra.mrb[0].mxu0 %v646
      %v682 = vpop.f32.mrb[0].mxu0
      %v683 = vadd.f32 0.0, %v682
      %v684 = vpop.f32.mrb[0].mxu0
      %v685 = vpop.f32.mrb[0].mxu0
      %v686 = vpop.f32.mrb[0].mxu0
      %687 = vdwg.mxu0
      %v688 = vlaneseq
      %v689 = vshrl.u32 %v688, 7
      %v690 = vstv %s518
      %v691 = vadd.s32 %v690, %v689
      %s692 = sld [smem:[#allocation4 + %s37]]
      %v693 = vstv %s692
      %vm694 = vcmp.lt.s32.totalorder %v691, %v693
      %v695 = vsel %vm694, 0.0, -1e+09
      %v696 = vld [vmem:[%s7] sm:$0x1]
      %697 = vst.msk [vmem:[#allocation2] sm:$0xff] %vm522, 0.0
      %v698 = vpack.c.bf16 %v683, %v683
      %v699 = vpack.c.bf16 %v606, %v606
      %vm700 = vcmask 64512
      %v702 = vsel %vm700, %v698, 0
      %v705 = vsel %vm700, %v699, 0
      %707 = vmatprep.subr.bf16.mxu0 0
      %708 = vmatpush1.bf16.xpose.msra.mxu0 %v705
      %709 = vmatprep.subr.bf16.mxu0 0
      %710 = vmatpush1.bf16.xpose.msra.mxu0 0
      %711 = vmatprep.subr.bf16.mxu0 0
      %712 = vmatpush1.bf16.xpose.msra.mxu0 0
      %713 = vmatprep.subr.bf16.mxu0 0
      %714 = vmatpush1.bf16.xpose.msra.mxu0 0
      %715 = vmatprep.subr.bf16.mxu0 0
      %716 = vmatpush1.bf16.xpose.msra.mxu0 0
      %717 = vmatprep.subr.bf16.mxu0 0
      %718 = vmatpush1.bf16.xpose.msra.mxu0 0
      %719 = vmatprep.subr.bf16.mxu0 0
      %720 = vmatpush1.bf16.xpose.msra.mxu0 0
      %721 = vmatprep.subr.bf16.mxu0 0
      %722 = vmatpush1.bf16.xpose.msra.mxu0 0
      %723 = vmatprep.subr.bf16.mxu0 0
      %724 = vmatpush1.bf16.xpose.msra.mxu0 0
      %725 = vmatprep.subr.bf16.mxu0 0
      %726 = vmatpush1.bf16.xpose.msra.mxu0 0
      %727 = vmatprep.subr.bf16.mxu0 0
      %728 = vmatpush1.bf16.xpose.msra.mxu0 0
      %729 = vmatprep.subr.bf16.mxu0 0
      %730 = vmatpush1.bf16.xpose.msra.mxu0 0
      %731 = vmatprep.subr.bf16.mxu0 0
      %732 = vmatpush1.bf16.xpose.msra.mxu0 0
      %733 = vmatprep.subr.bf16.mxu0 0
      %734 = vmatpush1.bf16.xpose.msra.mxu0 0
      %735 = vmatprep.subr.bf16.mxu0 0
      %736 = vmatpush1.bf16.xpose.msra.mxu0 0
      %737 = vmatprep.subr.bf16.mxu0 0
      %738 = vmatpush1.bf16.xpose.msra.mxu0 0
      %739 = vmatprep.mubr.bf16.mxu0 0
      %740 = vmatmul.mubr.bf16.gmra.mrb[0].mxu0 %v702
      %v741 = vpop.f32.mrb[0].mxu0
      %v742 = vadd.f32 %v695, %v741
      %v743 = vpop.f32.mrb[0].mxu0
      %v744 = vpop.f32.mrb[0].mxu0
      %v745 = vpop.f32.mrb[0].mxu0
      %746 = vdwg.mxu0
      %v747 = vsel %vm700, %v742, -inf
      %748 = vmax.xlane.f32.xlu0 %v747
      %v749 = vpop.xlane.xlu0 %748
      %v750 = vsub.f32 %v742, %v749
      %v751 = vmul.f32 %v750, 1.442695
      %v752 = vpow.pop %v751
      %v753 = vsel %vm700, %v752, 0.0
      %754 = vadd.xlane.f32.xlu0 %v753
      %v755 = vpop.xlane.xlu0 %754
      %v756 = vrcp.pop %v755
      %v757 = vmul.f32 %v752, %v756
      %v758 = vpack.c.bf16 %v757, %v757
      %760 = vrot.lane.b32.xlu0 %v699, 96
      %v761 = vpop.permute.xlu0 %760
      %v763 = vsel %vm700, %v758, 0
      %vm765 = vcmask 1043456
      %v767 = vsel %vm765, %v761, 0
      %769 = vmatprep.subr.bf16.mxu0 0
      %770 = vmatpush1.bf16.msra.mxu0 %v767
      %771 = vmatprep.subr.bf16.mxu0 0
      %772 = vmatpush1.bf16.msra.mxu0 0
      %773 = vmatprep.subr.bf16.mxu0 0
      %774 = vmatpush1.bf16.msra.mxu0 0
      %775 = vmatprep.subr.bf16.mxu0 0
      %776 = vmatpush1.bf16.msra.mxu0 0
      %777 = vmatprep.subr.bf16.mxu0 0
      %778 = vmatpush1.bf16.msra.mxu0 0
      %779 = vmatprep.subr.bf16.mxu0 0
      %780 = vmatpush1.bf16.msra.mxu0 0
      %781 = vmatprep.subr.bf16.mxu0 0
      %782 = vmatpush1.bf16.msra.mxu0 0
      %783 = vmatprep.subr.bf16.mxu0 0
      %784 = vmatpush1.bf16.msra.mxu0 0
      %785 = vmatprep.subr.bf16.mxu0 0
      %786 = vmatpush1.bf16.msra.mxu0 0
      %787 = vmatprep.subr.bf16.mxu0 0
      %788 = vmatpush1.bf16.msra.mxu0 0
      %789 = vmatprep.subr.bf16.mxu0 0
      %790 = vmatpush1.bf16.msra.mxu0 0
      %791 = vmatprep.subr.bf16.mxu0 0
      %792 = vmatpush1.bf16.msra.mxu0 0
      %793 = vmatprep.subr.bf16.mxu0 0
      %794 = vmatpush1.bf16.msra.mxu0 0
      %795 = vmatprep.subr.bf16.mxu0 0
      %796 = vmatpush1.bf16.msra.mxu0 0
      %797 = vmatprep.subr.bf16.mxu0 0
      %798 = vmatpush1.bf16.msra.mxu0 0
      %799 = vmatprep.subr.bf16.mxu0 0
      %800 = vmatpush1.bf16.msra.mxu0 0
      %801 = vmatprep.mubr.bf16.mxu0 0
      %802 = vmatmul.mubr.bf16.gmra.mrb[0].mxu0 %v763
      %v803 = vpop.f32.mrb[0].mxu0
      %v804 = vadd.f32 0.0, %v803
      %v805 = vpop.f32.mrb[0].mxu0
      %v806 = vpop.f32.mrb[0].mxu0
      %v807 = vpop.f32.mrb[0].mxu0
      %808 = vdwg.mxu0
      %v809 = vld [vmem:[#allocation2] sm:$0xff]
      %v810 = vpack.c.bf16 %v804, %v804
      %v811 = vld [vmem:[%s6] sm:$0xf]
      %v813 = vsel %vm700, %v810, 0
      %v816 = vsel %vm765, %v811, 0
      %818 = vmatprep.subr.bf16.mxu0 0
      %819 = vmatpush1.bf16.msra.mxu0 %v816
      %820 = vmatprep.subr.bf16.mxu0 0
      %821 = vmatpush1.bf16.msra.mxu0 0
      %822 = vmatprep.subr.bf16.mxu0 0
      %823 = vmatpush1.bf16.msra.mxu0 0
      %824 = vmatprep.subr.bf16.mxu0 0
      %825 = vmatpush1.bf16.msra.mxu0 0
      %826 = vmatprep.subr.bf16.mxu0 0
      %827 = vmatpush1.bf16.msra.mxu0 0
      %828 = vmatprep.subr.bf16.mxu0 0
      %829 = vmatpush1.bf16.msra.mxu0 0
      %830 = vmatprep.subr.bf16.mxu0 0
      %831 = vmatpush1.bf16.msra.mxu0 0
      %832 = vmatprep.subr.bf16.mxu0 0
      %833 = vmatpush1.bf16.msra.mxu0 0
      %834 = vmatprep.subr.bf16.mxu0 0
      %835 = vmatpush1.bf16.msra.mxu0 0
      %836 = vmatprep.subr.bf16.mxu0 0
      %837 = vmatpush1.bf16.msra.mxu0 0
      %838 = vmatprep.subr.bf16.mxu0 0
      %839 = vmatpush1.bf16.msra.mxu0 0
      %840 = vmatprep.subr.bf16.mxu0 0
      %841 = vmatpush1.bf16.msra.mxu0 0
      %842 = vmatprep.subr.bf16.mxu0 0
      %843 = vmatpush1.bf16.msra.mxu0 0
      %844 = vmatprep.subr.bf16.mxu0 0
      %845 = vmatpush1.bf16.msra.mxu0 0
      %846 = vmatprep.subr.bf16.mxu0 0
      %847 = vmatpush1.bf16.msra.mxu0 0
      %848 = vmatprep.subr.bf16.mxu0 0
      %849 = vmatpush1.bf16.msra.mxu0 0
      %850 = vmatprep.mubr.bf16.mxu0 0
      %851 = vmatmul.mubr.bf16.gmra.mrb[0].mxu0 %v813
      %v852 = vpop.f32.mrb[0].mxu0
      %v853 = vadd.f32 0.0, %v852
      %v854 = vpop.f32.mrb[0].mxu0
      %v855 = vpop.f32.mrb[0].mxu0
      %v856 = vpop.f32.mrb[0].mxu0
      %857 = vdwg.mxu0
      %v858 = vadd.f32 %v809, %v853
      %859 = vst.msk [vmem:[#allocation2] sm:$0xff] %vm522, %v858
      %861 = vrot.lane.b32.xlu0 %v698, 120
      %v862 = vpop.permute.xlu0 %861
      %863 = vrot.lane.b32.xlu0 %v699, 120
      %v864 = vpop.permute.xlu0 %863
      %v866 = vsel %vm700, %v862, 0
      %v869 = vsel %vm700, %v864, 0
      %871 = vmatprep.subr.bf16.mxu0 0
      %872 = vmatpush1.bf16.xpose.msra.mxu0 %v869
      %873 = vmatprep.subr.bf16.mxu0 0
      %874 = vmatpush1.bf16.xpose.msra.mxu0 0
      %875 = vmatprep.subr.bf16.mxu0 0
      %876 = vmatpush1.bf16.xpose.msra.mxu0 0
      %877 = vmatprep.subr.bf16.mxu0 0
      %878 = vmatpush1.bf16.xpose.msra.mxu0 0
      %879 = vmatprep.subr.bf16.mxu0 0
      %880 = vmatpush1.bf16.xpose.msra.mxu0 0
      %881 = vmatprep.subr.bf16.mxu0 0
      %882 = vmatpush1.bf16.xpose.msra.mxu0 0
      %883 = vmatprep.subr.bf16.mxu0 0
      %884 = vmatpush1.bf16.xpose.msra.mxu0 0
      %885 = vmatprep.subr.bf16.mxu0 0
      %886 = vmatpush1.bf16.xpose.msra.mxu0 0
      %887 = vmatprep.subr.bf16.mxu0 0
      %888 = vmatpush1.bf16.xpose.msra.mxu0 0
      %889 = vmatprep.subr.bf16.mxu0 0
      %890 = vmatpush1.bf16.xpose.msra.mxu0 0
      %891 = vmatprep.subr.bf16.mxu0 0
      %892 = vmatpush1.bf16.xpose.msra.mxu0 0
      %893 = vmatprep.subr.bf16.mxu0 0
      %894 = vmatpush1.bf16.xpose.msra.mxu0 0
      %895 = vmatprep.subr.bf16.mxu0 0
      %896 = vmatpush1.bf16.xpose.msra.mxu0 0
      %897 = vmatprep.subr.bf16.mxu0 0
      %898 = vmatpush1.bf16.xpose.msra.mxu0 0
      %899 = vmatprep.subr.bf16.mxu0 0
      %900 = vmatpush1.bf16.xpose.msra.mxu0 0
      %901 = vmatprep.subr.bf16.mxu0 0
      %902 = vmatpush1.bf16.xpose.msra.mxu0 0
      %903 = vmatprep.mubr.bf16.mxu0 0
      %904 = vmatmul.mubr.bf16.gmra.mrb[0].mxu0 %v866
      %v905 = vpop.f32.mrb[0].mxu0
      %v906 = vadd.f32 %v695, %v905
      %v907 = vpop.f32.mrb[0].mxu0
      %v908 = vpop.f32.mrb[0].mxu0
      %v909 = vpop.f32.mrb[0].mxu0
      %910 = vdwg.mxu0
      %v911 = vsel %vm700, %v906, -inf
      %912 = vmax.xlane.f32.xlu0 %v911
      %v913 = vpop.xlane.xlu0 %912
      %v914 = vsub.f32 %v906, %v913
      %v915 = vmul.f32 %v914, 1.442695
      %v916 = vpow.pop %v915
      %v917 = vsel %vm700, %v916, 0.0
      %918 = vadd.xlane.f32.xlu0 %v917
      %v919 = vpop.xlane.xlu0 %918
      %v920 = vrcp.pop %v919
      %v921 = vmul.f32 %v916, %v920
      %v922 = vpack.c.bf16 %v921, %v921
      %923 = vrot.lane.b32.xlu0 %v699, 88
      %v924 = vpop.permute.xlu0 %923
      %v926 = vsel %vm700, %v922, 0
      %v929 = vsel %vm765, %v924, 0
      %931 = vmatprep.subr.bf16.mxu0 0
      %932 = vmatpush1.bf16.msra.mxu0 %v929
      %933 = vmatprep.subr.bf16.mxu0 0
      %934 = vmatpush1.bf16.msra.mxu0 0
      %935 = vmatprep.subr.bf16.mxu0 0
      %936 = vmatpush1.bf16.msra.mxu0 0
      %937 = vmatprep.subr.bf16.mxu0 0
      %938 = vmatpush1.bf16.msra.mxu0 0
      %939 = vmatprep.subr.bf16.mxu0 0
      %940 = vmatpush1.bf16.msra.mxu0 0
      %941 = vmatprep.subr.bf16.mxu0 0
      %942 = vmatpush1.bf16.msra.mxu0 0
      %943 = vmatprep.subr.bf16.mxu0 0
      %944 = vmatpush1.bf16.msra.mxu0 0
      %945 = vmatprep.subr.bf16.mxu0 0
      %946 = vmatpush1.bf16.msra.mxu0 0
      %947 = vmatprep.subr.bf16.mxu0 0
      %948 = vmatpush1.bf16.msra.mxu0 0
      %949 = vmatprep.subr.bf16.mxu0 0
      %950 = vmatpush1.bf16.msra.mxu0 0
      %951 = vmatprep.subr.bf16.mxu0 0
      %952 = vmatpush1.bf16.msra.mxu0 0
      %953 = vmatprep.subr.bf16.mxu0 0
      %954 = vmatpush1.bf16.msra.mxu0 0
      %955 = vmatprep.subr.bf16.mxu0 0
      %956 = vmatpush1.bf16.msra.mxu0 0
      %957 = vmatprep.subr.bf16.mxu0 0
      %958 = vmatpush1.bf16.msra.mxu0 0
      %959 = vmatprep.subr.bf16.mxu0 0
      %960 = vmatpush1.bf16.msra.mxu0 0
      %961 = vmatprep.subr.bf16.mxu0 0
      %962 = vmatpush1.bf16.msra.mxu0 0
      %963 = vmatprep.mubr.bf16.mxu0 0
      %964 = vmatmul.mubr.bf16.gmra.mrb[0].mxu0 %v926
      %v965 = vpop.f32.mrb[0].mxu0
      %v966 = vadd.f32 0.0, %v965
      %v967 = vpop.f32.mrb[0].mxu0
      %v968 = vpop.f32.mrb[0].mxu0
      %v969 = vpop.f32.mrb[0].mxu0
      %970 = vdwg.mxu0
      %v971 = vld [vmem:[#allocation2] sm:$0xff]
      %v972 = vpack.c.bf16 %v966, %v966
      %v973 = vld [vmem:[%s6 + $0x4] sm:$0xf]
      %v975 = vsel %vm700, %v972, 0
      %v978 = vsel %vm765, %v973, 0
      %980 = vmatprep.subr.bf16.mxu0 0
      %981 = vmatpush1.bf16.msra.mxu0 %v978
      %982 = vmatprep.subr.bf16.mxu0 0
      %983 = vmatpush1.bf16.msra.mxu0 0
      %984 = vmatprep.subr.bf16.mxu0 0
      %985 = vmatpush1.bf16.msra.mxu0 0
      %986 = vmatprep.subr.bf16.mxu0 0
      %987 = vmatpush1.bf16.msra.mxu0 0
      %988 = vmatprep.subr.bf16.mxu0 0
      %989 = vmatpush1.bf16.msra.mxu0 0
      %990 = vmatprep.subr.bf16.mxu0 0
      %991 = vmatpush1.bf16.msra.mxu0 0
      %992 = vmatprep.subr.bf16.mxu0 0
      %993 = vmatpush1.bf16.msra.mxu0 0
      %994 = vmatprep.subr.bf16.mxu0 0
      %995 = vmatpush1.bf16.msra.mxu0 0
      %996 = vmatprep.subr.bf16.mxu0 0
      %997 = vmatpush1.bf16.msra.mxu0 0
      %998 = vmatprep.subr.bf16.mxu0 0
      %999 = vmatpush1.bf16.msra.mxu0 0
      %1000 = vmatprep.subr.bf16.mxu0 0
      %1001 = vmatpush1.bf16.msra.mxu0 0
      %1002 = vmatprep.subr.bf16.mxu0 0
      %1003 = vmatpush1.bf16.msra.mxu0 0
      %1004 = vmatprep.subr.bf16.mxu0 0
      %1005 = vmatpush1.bf16.msra.mxu0 0
      %1006 = vmatprep.subr.bf16.mxu0 0
      %1007 = vmatpush1.bf16.msra.mxu0 0
      %1008 = vmatprep.subr.bf16.mxu0 0
      %1009 = vmatpush1.bf16.msra.mxu0 0
      %1010 = vmatprep.subr.bf16.mxu0 0
      %1011 = vmatpush1.bf16.msra.mxu0 0
      %1012 = vmatprep.mubr.bf16.mxu0 0
      %1013 = vmatmul.mubr.bf16.gmra.mrb[0].mxu0 %v975
      %v1014 = vpop.f32.mrb[0].mxu0
      %v1015 = vadd.f32 0.0, %v1014
      %v1016 = vpop.f32.mrb[0].mxu0
      %v1017 = vpop.f32.mrb[0].mxu0
      %v1018 = vpop.f32.mrb[0].mxu0
      %1019 = vdwg.mxu0
      %v1020 = vadd.f32 %v971, %v1015
      %1021 = vst.msk [vmem:[#allocation2] sm:$0xff] %vm522, %v1020
      %1022 = vrot.lane.b32.xlu0 %v698, 112
      %v1023 = vpop.permute.xlu0 %1022
      %1024 = vrot.lane.b32.xlu0 %v699, 112
      %v1025 = vpop.permute.xlu0 %1024
      %v1027 = vsel %vm700, %v1023, 0
      %v1030 = vsel %vm700, %v1025, 0
      %1032 = vmatprep.subr.bf16.mxu0 0
      %1033 = vmatpush1.bf16.xpose.msra.mxu0 %v1030
      %1034 = vmatprep.subr.bf16.mxu0 0
      %1035 = vmatpush1.bf16.xpose.msra.mxu0 0
      %1036 = vmatprep.subr.bf16.mxu0 0
      %1037 = vmatpush1.bf16.xpose.msra.mxu0 0
      %1038 = vmatprep.subr.bf16.mxu0 0
      %1039 = vmatpush1.bf16.xpose.msra.mxu0 0
      %1040 = vmatprep.subr.bf16.mxu0 0
      %1041 = vmatpush1.bf16.xpose.msra.mxu0 0
      %1042 = vmatprep.subr.bf16.mxu0 0
      %1043 = vmatpush1.bf16.xpose.msra.mxu0 0
      %1044 = vmatprep.subr.bf16.mxu0 0
      %1045 = vmatpush1.bf16.xpose.msra.mxu0 0
      %1046 = vmatprep.subr.bf16.mxu0 0
      %1047 = vmatpush1.bf16.xpose.msra.mxu0 0
      %1048 = vmatprep.subr.bf16.mxu0 0
      %1049 = vmatpush1.bf16.xpose.msra.mxu0 0
      %1050 = vmatprep.subr.bf16.mxu0 0
      %1051 = vmatpush1.bf16.xpose.msra.mxu0 0
      %1052 = vmatprep.subr.bf16.mxu0 0
      %1053 = vmatpush1.bf16.xpose.msra.mxu0 0
      %1054 = vmatprep.subr.bf16.mxu0 0
      %1055 = vmatpush1.bf16.xpose.msra.mxu0 0
      %1056 = vmatprep.subr.bf16.mxu0 0
      %1057 = vmatpush1.bf16.xpose.msra.mxu0 0
      %1058 = vmatprep.subr.bf16.mxu0 0
      %1059 = vmatpush1.bf16.xpose.msra.mxu0 0
      %1060 = vmatprep.subr.bf16.mxu0 0
      %1061 = vmatpush1.bf16.xpose.msra.mxu0 0
      %1062 = vmatprep.subr.bf16.mxu0 0
      %1063 = vmatpush1.bf16.xpose.msra.mxu0 0
      %1064 = vmatprep.mubr.bf16.mxu0 0
      %1065 = vmatmul.mubr.bf16.gmra.mrb[0].mxu0 %v1027
      %v1066 = vpop.f32.mrb[0].mxu0
      %v1067 = vadd.f32 %v695, %v1066
      %v1068 = vpop.f32.mrb[0].mxu0
      %v1069 = vpop.f32.mrb[0].mxu0
      %v1070 = vpop.f32.mrb[0].mxu0
      %1071 = vdwg.mxu0
      %v1072 = vsel %vm700, %v1067, -inf
      %1073 = vmax.xlane.f32.xlu0 %v1072
      %v1074 = vpop.xlane.xlu0 %1073
      %v1075 = vsub.f32 %v1067, %v1074
      %v1076 = vmul.f32 %v1075, 1.442695
      %v1077 = vpow.pop %v1076
      %v1078 = vsel %vm700, %v1077, 0.0
      %1079 = vadd.xlane.f32.xlu0 %v1078
      %v1080 = vpop.xlane.xlu0 %1079
      %v1081 = vrcp.pop %v1080
      %v1082 = vmul.f32 %v1077, %v1081
      %v1083 = vpack.c.bf16 %v1082, %v1082
      %1084 = vrot.lane.b32.xlu0 %v699, 80
      %v1085 = vpop.permute.xlu0 %1084
      %v1087 = vsel %vm700, %v1083, 0
      %v1090 = vsel %vm765, %v1085, 0
      %1092 = vmatprep.subr.bf16.mxu0 0
      %1093 = vmatpush1.bf16.msra.mxu0 %v1090
      %1094 = vmatprep.subr.bf16.mxu0 0
      %1095 = vmatpush1.bf16.msra.mxu0 0
      %1096 = vmatprep.subr.bf16.mxu0 0
      %1097 = vmatpush1.bf16.msra.mxu0 0
      %1098 = vmatprep.subr.bf16.mxu0 0
      %1099 = vmatpush1.bf16.msra.mxu0 0
      %1100 = vmatprep.subr.bf16.mxu0 0
      %1101 = vmatpush1.bf16.msra.mxu0 0
      %1102 = vmatprep.subr.bf16.mxu0 0
      %1103 = vmatpush1.bf16.msra.mxu0 0
      %1104 = vmatprep.subr.bf16.mxu0 0
      %1105 = vmatpush1.bf16.msra.mxu0 0
      %1106 = vmatprep.subr.bf16.mxu0 0
      %1107 = vmatpush1.bf16.msra.mxu0 0
      %1108 = vmatprep.subr.bf16.mxu0 0
      %1109 = vmatpush1.bf16.msra.mxu0 0
      %1110 = vmatprep.subr.bf16.mxu0 0
      %1111 = vmatpush1.bf16.msra.mxu0 0
      %1112 = vmatprep.subr.bf16.mxu0 0
      %1113 = vmatpush1.bf16.msra.mxu0 0
      %1114 = vmatprep.subr.bf16.mxu0 0
      %1115 = vmatpush1.bf16.msra.mxu0 0
      %1116 = vmatprep.subr.bf16.mxu0 0
      %1117 = vmatpush1.bf16.msra.mxu0 0
      %1118 = vmatprep.subr.bf16.mxu0 0
      %1119 = vmatpush1.bf16.msra.mxu0 0
      %1120 = vmatprep.subr.bf16.mxu0 0
      %1121 = vmatpush1.bf16.msra.mxu0 0
      %1122 = vmatprep.subr.bf16.mxu0 0
      %1123 = vmatpush1.bf16.msra.mxu0 0
      %1124 = vmatprep.mubr.bf16.mxu0 0
      %1125 = vmatmul.mubr.bf16.gmra.mrb[0].mxu0 %v1087
      %v1126 = vpop.f32.mrb[0].mxu0
      %v1127 = vadd.f32 0.0, %v1126
      %v1128 = vpop.f32.mrb[0].mxu0
      %v1129 = vpop.f32.mrb[0].mxu0
      %v1130 = vpop.f32.mrb[0].mxu0
      %1131 = vdwg.mxu0
      %v1132 = vld [vmem:[#allocation2] sm:$0xff]
      %v1133 = vpack.c.bf16 %v1127, %v1127
      %v1134 = vld [vmem:[%s6 + $0x8] sm:$0xf]
      %v1136 = vsel %vm700, %v1133, 0
      %v1139 = vsel %vm765, %v1134, 0
      %1141 = vmatprep.subr.bf16.mxu0 0
      %1142 = vmatpush1.bf16.msra.mxu0 %v1139
      %1143 = vmatprep.subr.bf16.mxu0 0
      %1144 = vmatpush1.bf16.msra.mxu0 0
      %1145 = vmatprep.subr.bf16.mxu0 0
      %1146 = vmatpush1.bf16.msra.mxu0 0
      %1147 = vmatprep.subr.bf16.mxu0 0
      %1148 = vmatpush1.bf16.msra.mxu0 0
      %1149 = vmatprep.subr.bf16.mxu0 0
      %1150 = vmatpush1.bf16.msra.mxu0 0
      %1151 = vmatprep.subr.bf16.mxu0 0
      %1152 = vmatpush1.bf16.msra.mxu0 0
      %1153 = vmatprep.subr.bf16.mxu0 0
      %1154 = vmatpush1.bf16.msra.mxu0 0
      %1155 = vmatprep.subr.bf16.mxu0 0
      %1156 = vmatpush1.bf16.msra.mxu0 0
      %1157 = vmatprep.subr.bf16.mxu0 0
      %1158 = vmatpush1.bf16.msra.mxu0 0
      %1159 = vmatprep.subr.bf16.mxu0 0
      %1160 = vmatpush1.bf16.msra.mxu0 0
      %1161 = vmatprep.subr.bf16.mxu0 0
      %1162 = vmatpush1.bf16.msra.mxu0 0
      %1163 = vmatprep.subr.bf16.mxu0 0
      %1164 = vmatpush1.bf16.msra.mxu0 0
      %1165 = vmatprep.subr.bf16.mxu0 0
      %1166 = vmatpush1.bf16.msra.mxu0 0
      %1167 = vmatprep.subr.bf16.mxu0 0
      %1168 = vmatpush1.bf16.msra.mxu0 0
      %1169 = vmatprep.subr.bf16.mxu0 0
      %1170 = vmatpush1.bf16.msra.mxu0 0
      %1171 = vmatprep.subr.bf16.mxu0 0
      %1172 = vmatpush1.bf16.msra.mxu0 0
      %1173 = vmatprep.mubr.bf16.mxu0 0
      %1174 = vmatmul.mubr.bf16.gmra.mrb[0].mxu0 %v1136
      %v1175 = vpop.f32.mrb[0].mxu0
      %v1176 = vadd.f32 0.0, %v1175
      %v1177 = vpop.f32.mrb[0].mxu0
      %v1178 = vpop.f32.mrb[0].mxu0
      %v1179 = vpop.f32.mrb[0].mxu0
      %1180 = vdwg.mxu0
      %v1181 = vadd.f32 %v1132, %v1176
      %1182 = vst.msk [vmem:[#allocation2] sm:$0xff] %vm522, %v1181
      %1183 = vrot.lane.b32.xlu0 %v698, 104
      %v1184 = vpop.permute.xlu0 %1183
      %1185 = vrot.lane.b32.xlu0 %v699, 104
      %v1186 = vpop.permute.xlu0 %1185
      %v1188 = vsel %vm700, %v1184, 0
      %v1191 = vsel %vm700, %v1186, 0
      %1193 = vmatprep.subr.bf16.mxu0 0
      %1194 = vmatpush1.bf16.xpose.msra.mxu0 %v1191
      %1195 = vmatprep.subr.bf16.mxu0 0
      %1196 = vmatpush1.bf16.xpose.msra.mxu0 0
      %1197 = vmatprep.subr.bf16.mxu0 0
      %1198 = vmatpush1.bf16.xpose.msra.mxu0 0
      %1199 = vmatprep.subr.bf16.mxu0 0
      %1200 = vmatpush1.bf16.xpose.msra.mxu0 0
      %1201 = vmatprep.subr.bf16.mxu0 0
      %1202 = vmatpush1.bf16.xpose.msra.mxu0 0
      %1203 = vmatprep.subr.bf16.mxu0 0
      %1204 = vmatpush1.bf16.xpose.msra.mxu0 0
      %1205 = vmatprep.subr.bf16.mxu0 0
      %1206 = vmatpush1.bf16.xpose.msra.mxu0 0
      %1207 = vmatprep.subr.bf16.mxu0 0
      %1208 = vmatpush1.bf16.xpose.msra.mxu0 0
      %1209 = vmatprep.subr.bf16.mxu0 0
      %1210 = vmatpush1.bf16.xpose.msra.mxu0 0
      %1211 = vmatprep.subr.bf16.mxu0 0
      %1212 = vmatpush1.bf16.xpose.msra.mxu0 0
      %1213 = vmatprep.subr.bf16.mxu0 0
      %1214 = vmatpush1.bf16.xpose.msra.mxu0 0
      %1215 = vmatprep.subr.bf16.mxu0 0
      %1216 = vmatpush1.bf16.xpose.msra.mxu0 0
      %1217 = vmatprep.subr.bf16.mxu0 0
      %1218 = vmatpush1.bf16.xpose.msra.mxu0 0
      %1219 = vmatprep.subr.bf16.mxu0 0
      %1220 = vmatpush1.bf16.xpose.msra.mxu0 0
      %1221 = vmatprep.subr.bf16.mxu0 0
      %1222 = vmatpush1.bf16.xpose.msra.mxu0 0
      %1223 = vmatprep.subr.bf16.mxu0 0
      %1224 = vmatpush1.bf16.xpose.msra.mxu0 0
      %1225 = vmatprep.mubr.bf16.mxu0 0
      %1226 = vmatmul.mubr.bf16.gmra.mrb[0].mxu0 %v1188
      %v1227 = vpop.f32.mrb[0].mxu0
      %v1228 = vadd.f32 %v695, %v1227
      %v1229 = vpop.f32.mrb[0].mxu0
      %v1230 = vpop.f32.mrb[0].mxu0
      %v1231 = vpop.f32.mrb[0].mxu0
      %1232 = vdwg.mxu0
      %v1233 = vsel %vm700, %v1228, -inf
      %1234 = vmax.xlane.f32.xlu0 %v1233
      %v1235 = vpop.xlane.xlu0 %1234
      %v1236 = vsub.f32 %v1228, %v1235
      %v1237 = vmul.f32 %v1236, 1.442695
      %v1238 = vpow.pop %v1237
      %v1239 = vsel %vm700, %v1238, 0.0
      %1240 = vadd.xlane.f32.xlu0 %v1239
      %v1241 = vpop.xlane.xlu0 %1240
      %v1242 = vrcp.pop %v1241
      %v1243 = vmul.f32 %v1238, %v1242
      %v1244 = vpack.c.bf16 %v1243, %v1243
      %1245 = vrot.lane.b32.xlu0 %v699, 72
      %v1246 = vpop.permute.xlu0 %1245
      %v1248 = vsel %vm700, %v1244, 0
      %v1251 = vsel %vm765, %v1246, 0
      %1253 = vmatprep.subr.bf16.mxu0 0
      %1254 = vmatpush1.bf16.msra.mxu0 %v1251
      %1255 = vmatprep.subr.bf16.mxu0 0
      %1256 = vmatpush1.bf16.msra.mxu0 0
      %1257 = vmatprep.subr.bf16.mxu0 0
      %1258 = vmatpush1.bf16.msra.mxu0 0
      %1259 = vmatprep.subr.bf16.mxu0 0
      %1260 = vmatpush1.bf16.msra.mxu0 0
      %1261 = vmatprep.subr.bf16.mxu0 0
      %1262 = vmatpush1.bf16.msra.mxu0 0
      %1263 = vmatprep.subr.bf16.mxu0 0
      %1264 = vmatpush1.bf16.msra.mxu0 0
      %1265 = vmatprep.subr.bf16.mxu0 0
      %1266 = vmatpush1.bf16.msra.mxu0 0
      %1267 = vmatprep.subr.bf16.mxu0 0
      %1268 = vmatpush1.bf16.msra.mxu0 0
      %1269 = vmatprep.subr.bf16.mxu0 0
      %1270 = vmatpush1.bf16.msra.mxu0 0
      %1271 = vmatprep.subr.bf16.mxu0 0
      %1272 = vmatpush1.bf16.msra.mxu0 0
      %1273 = vmatprep.subr.bf16.mxu0 0
      %1274 = vmatpush1.bf16.msra.mxu0 0
      %1275 = vmatprep.subr.bf16.mxu0 0
      %1276 = vmatpush1.bf16.msra.mxu0 0
      %1277 = vmatprep.subr.bf16.mxu0 0
      %1278 = vmatpush1.bf16.msra.mxu0 0
      %1279 = vmatprep.subr.bf16.mxu0 0
      %1280 = vmatpush1.bf16.msra.mxu0 0
      %1281 = vmatprep.subr.bf16.mxu0 0
      %1282 = vmatpush1.bf16.msra.mxu0 0
      %1283 = vmatprep.subr.bf16.mxu0 0
      %1284 = vmatpush1.bf16.msra.mxu0 0
      %1285 = vmatprep.mubr.bf16.mxu0 0
      %1286 = vmatmul.mubr.bf16.gmra.mrb[0].mxu0 %v1248
      %v1287 = vpop.f32.mrb[0].mxu0
      %v1288 = vadd.f32 0.0, %v1287
      %v1289 = vpop.f32.mrb[0].mxu0
      %v1290 = vpop.f32.mrb[0].mxu0
      %v1291 = vpop.f32.mrb[0].mxu0
      %1292 = vdwg.mxu0
      %v1293 = vld [vmem:[#allocation2] sm:$0xff]
      %v1294 = vpack.c.bf16 %v1288, %v1288
      %v1295 = vld [vmem:[%s6 + $0xc] sm:$0xf]
      %v1297 = vsel %vm700, %v1294, 0
      %v1300 = vsel %vm765, %v1295, 0
      %1302 = vmatprep.subr.bf16.mxu0 0
      %1303 = vmatpush1.bf16.msra.mxu0 %v1300
      %1304 = vmatprep.subr.bf16.mxu0 0
      %1305 = vmatpush1.bf16.msra.mxu0 0
      %1306 = vmatprep.subr.bf16.mxu0 0
      %1307 = vmatpush1.bf16.msra.mxu0 0
      %1308 = vmatprep.subr.bf16.mxu0 0
      %1309 = vmatpush1.bf16.msra.mxu0 0
      %1310 = vmatprep.subr.bf16.mxu0 0
      %1311 = vmatpush1.bf16.msra.mxu0 0
      %1312 = vmatprep.subr.bf16.mxu0 0
      %1313 = vmatpush1.bf16.msra.mxu0 0
      %1314 = vmatprep.subr.bf16.mxu0 0
      %1315 = vmatpush1.bf16.msra.mxu0 0
      %1316 = vmatprep.subr.bf16.mxu0 0
      %1317 = vmatpush1.bf16.msra.mxu0 0
      %1318 = vmatprep.subr.bf16.mxu0 0
      %1319 = vmatpush1.bf16.msra.mxu0 0
      %1320 = vmatprep.subr.bf16.mxu0 0
      %1321 = vmatpush1.bf16.msra.mxu0 0
      %1322 = vmatprep.subr.bf16.mxu0 0
      %1323 = vmatpush1.bf16.msra.mxu0 0
      %1324 = vmatprep.subr.bf16.mxu0 0
      %1325 = vmatpush1.bf16.msra.mxu0 0
      %1326 = vmatprep.subr.bf16.mxu0 0
      %1327 = vmatpush1.bf16.msra.mxu0 0
      %1328 = vmatprep.subr.bf16.mxu0 0
      %1329 = vmatpush1.bf16.msra.mxu0 0
      %1330 = vmatprep.subr.bf16.mxu0 0
      %1331 = vmatpush1.bf16.msra.mxu0 0
      %1332 = vmatprep.subr.bf16.mxu0 0
      %1333 = vmatpush1.bf16.msra.mxu0 0
      %1334 = vmatprep.mubr.bf16.mxu0 0
      %1335 = vmatmul.mubr.bf16.gmra.mrb[0].mxu0 %v1297
      %v1336 = vpop.f32.mrb[0].mxu0
      %v1337 = vadd.f32 0.0, %v1336
      %v1338 = vpop.f32.mrb[0].mxu0
      %v1339 = vpop.f32.mrb[0].mxu0
      %v1340 = vpop.f32.mrb[0].mxu0
      %1341 = vdwg.mxu0
      %v1342 = vadd.f32 %v1293, %v1337
      %1343 = vst.msk [vmem:[#allocation2] sm:$0xff] %vm522, %v1342
      %v1344 = vld [vmem:[#allocation2] sm:$0xff]
      %v1346 = vlaneseq
      %v1347 = vshrl.u32 %v1346, 7
      %v1348 = vsub.s32 0, %v1347
      %v1349 = vrot.slane %v696, %v1348
      %v1351 = vadd.f32 %v1344, %v1349
      %v1352 = vadd.f32 %v627, %v1351
      %v1353 = vld [vmem:[%s8] sm:$0x1]
      %v1354 = vld [vmem:[%s9] sm:$0x1]
      %v1355 = vsel %vm522, %v1352, 0.0
      %1356 = vadd.xlane.f32.xlu0 %v1355
      %v1357 = vpop.xlane.xlu0 %1356
      %v1358 = vmul.f32 %v1357, %v526
      %v1359 = vsub.f32 %v1352, %v1358
      %v1360 = vmul.f32 %v1359, %v1359
      %v1361 = vsel %vm522, %v1360, 0.0
      %1362 = vadd.xlane.f32.xlu0 %v1361
      %v1363 = vpop.xlane.xlu0 %1362
      %v1364 = vmul.f32 %v1363, %v526
      %v1365 = vadd.f32 %v1364, 1e-05
      %v1366 = vrsqrt.pop %v1365
      %v1367 = vmul.f32 %v1359, %v1366
      %v1369 = vlaneseq
      %v1370 = vshrl.u32 %v1369, 7
      %v1371 = vsub.s32 0, %v1370
      %v1372 = vrot.slane %v1353, %v1371
      %v1374 = vmul.f32 %v1367, %v1372
      %v1376 = vlaneseq
      %v1377 = vshrl.u32 %v1376, 7
      %v1378 = vsub.s32 0, %v1377
      %v1379 = vrot.slane %v1354, %v1378
      %v1381 = vadd.f32 %v1374, %v1379
      %v1382 = vpack.c.bf16 %v1381, %v1381
      %v1383 = vld [vmem:[%s10] sm:$0xf]
      %v1384 = vld [vmem:[%s10 + $0x4] sm:$0xf]
      %v1385 = vld [vmem:[%s10 + $0x8] sm:$0xf]
      %v1386 = vld [vmem:[%s10 + $0xc] sm:$0xf]
      %v1387 = vld [vmem:[%s11] sm:$0x1]
      %v1389 = vlaneseq
      %v1390 = vshrl.u32 %v1389, 7
      %v1391 = vsub.s32 0, %v1390
      %v1392 = vrot.slane %v1387, %v1391
      %v1398 = vunpack.c.l.b16 %v1383
      %v1399 = vunpack.c.l.b16 %v1384
      %v1400 = vunpack.c.l.b16 %v1385
      %v1401 = vunpack.c.l.b16 %v1386
      %v1402 = vpack.c.b16 %v1399, %v1398
      %v1403 = vpack.c.b16 %v1401, %v1400
      %v1407 = vsel %vm522, %v1382, 0
      %1409 = vmatprep.subr.bf16.mxu0 0
      %1410 = vmatpush1.bf16.msra.mxu0 %v1402
      %1411 = vmatprep.subr.bf16.mxu0 0
      %1412 = vmatpush1.bf16.msra.mxu0 %v1403
      %1413 = vmatprep.subr.bf16.mxu0 0
      %1414 = vmatpush1.bf16.msra.mxu0 0
      %1415 = vmatprep.subr.bf16.mxu0 0
      %1416 = vmatpush1.bf16.msra.mxu0 0
      %1417 = vmatprep.subr.bf16.mxu0 0
      %1418 = vmatpush1.bf16.msra.mxu0 0
      %1419 = vmatprep.subr.bf16.mxu0 0
      %1420 = vmatpush1.bf16.msra.mxu0 0
      %1421 = vmatprep.subr.bf16.mxu0 0
      %1422 = vmatpush1.bf16.msra.mxu0 0
      %1423 = vmatprep.subr.bf16.mxu0 0
      %1424 = vmatpush1.bf16.msra.mxu0 0
      %1425 = vmatprep.subr.bf16.mxu0 0
      %1426 = vmatpush1.bf16.msra.mxu0 0
      %1427 = vmatprep.subr.bf16.mxu0 0
      %1428 = vmatpush1.bf16.msra.mxu0 0
      %1429 = vmatprep.subr.bf16.mxu0 0
      %1430 = vmatpush1.bf16.msra.mxu0 0
      %1431 = vmatprep.subr.bf16.mxu0 0
      %1432 = vmatpush1.bf16.msra.mxu0 0
      %1433 = vmatprep.subr.bf16.mxu0 0
      %1434 = vmatpush1.bf16.msra.mxu0 0
      %1435 = vmatprep.subr.bf16.mxu0 0
      %1436 = vmatpush1.bf16.msra.mxu0 0
      %1437 = vmatprep.subr.bf16.mxu0 0
      %1438 = vmatpush1.bf16.msra.mxu0 0
      %1439 = vmatprep.subr.bf16.mxu0 0
      %1440 = vmatpush1.bf16.msra.mxu0 0
      %1441 = vmatprep.mubr.bf16.mxu0 0
      %1442 = vmatmul.mubr.bf16.gmra.mrb[0].mxu0 %v1407
      %v1443 = vpop.f32.mrb[0].mxu0
      %v1444 = vadd.f32 %v1392, %v1443
      %v1445 = vpop.f32.mrb[0].mxu0
      %v1446 = vpop.f32.mrb[0].mxu0
      %v1447 = vpop.f32.mrb[0].mxu0
      %1448 = vdwg.mxu0
      %v1449 = vmax.f32 %v1444, 0.0
      %v1450 = vpack.c.bf16 %v1449, %v1449
      %v1451 = vld [vmem:[%s12] sm:$0xf]
      %v1452 = vld [vmem:[%s12 + $0x4] sm:$0xf]
      %v1453 = vld [vmem:[%s12 + $0x8] sm:$0xf]
      %v1454 = vld [vmem:[%s12 + $0xc] sm:$0xf]
      %v1455 = vld [vmem:[%s12 + $0x10] sm:$0xf]
      %v1456 = vld [vmem:[%s12 + $0x14] sm:$0xf]
      %v1457 = vld [vmem:[%s12 + $0x18] sm:$0xf]
      %v1458 = vld [vmem:[%s12 + $0x1c] sm:$0xf]
      %v1459 = vld [vmem:[%s13] sm:$0x1]
      %v1461 = vlaneseq
      %v1462 = vshrl.u32 %v1461, 7
      %v1463 = vsub.s32 0, %v1462
      %v1464 = vrot.slane %v1459, %v1463
      %v1474 = vunpack.c.l.b16 %v1451
      %v1475 = vunpack.c.l.b16 %v1452
      %v1476 = vunpack.c.l.b16 %v1453
      %v1477 = vunpack.c.l.b16 %v1454
      %v1478 = vunpack.c.l.b16 %v1455
      %v1479 = vunpack.c.l.b16 %v1456
      %v1480 = vunpack.c.l.b16 %v1457
      %v1481 = vunpack.c.l.b16 %v1458
      %v1482 = vpack.c.b16 %v1475, %v1474
      %v1483 = vpack.c.b16 %v1477, %v1476
      %v1484 = vpack.c.b16 %v1479, %v1478
      %v1485 = vpack.c.b16 %v1481, %v1480
      %vm1490 = vcmask 523264
      %v1492 = vsel %vm1490, %v1450, 0
      %1494 = vmatprep.subr.bf16.mxu0 0
      %1495 = vmatpush1.bf16.msra.mxu0 %v1482
      %1496 = vmatprep.subr.bf16.mxu0 0
      %1497 = vmatpush1.bf16.msra.mxu0 %v1483
      %1498 = vmatprep.subr.bf16.mxu0 0
      %1499 = vmatpush1.bf16.msra.mxu0 %v1484
      %1500 = vmatprep.subr.bf16.mxu0 0
      %1501 = vmatpush1.bf16.msra.mxu0 %v1485
      %1502 = vmatprep.subr.bf16.mxu0 0
      %1503 = vmatpush1.bf16.msra.mxu0 0
      %1504 = vmatprep.subr.bf16.mxu0 0
      %1505 = vmatpush1.bf16.msra.mxu0 0
      %1506 = vmatprep.subr.bf16.mxu0 0
      %1507 = vmatpush1.bf16.msra.mxu0 0
      %1508 = vmatprep.subr.bf16.mxu0 0
      %1509 = vmatpush1.bf16.msra.mxu0 0
      %1510 = vmatprep.subr.bf16.mxu0 0
      %1511 = vmatpush1.bf16.msra.mxu0 0
      %1512 = vmatprep.subr.bf16.mxu0 0
      %1513 = vmatpush1.bf16.msra.mxu0 0
      %1514 = vmatprep.subr.bf16.mxu0 0
      %1515 = vmatpush1.bf16.msra.mxu0 0
      %1516 = vmatprep.subr.bf16.mxu0 0
      %1517 = vmatpush1.bf16.msra.mxu0 0
      %1518 = vmatprep.subr.bf16.mxu0 0
      %1519 = vmatpush1.bf16.msra.mxu0 0
      %1520 = vmatprep.subr.bf16.mxu0 0
      %1521 = vmatpush1.bf16.msra.mxu0 0
      %1522 = vmatprep.subr.bf16.mxu0 0
      %1523 = vmatpush1.bf16.msra.mxu0 0
      %1524 = vmatprep.subr.bf16.mxu0 0
      %1525 = vmatpush1.bf16.msra.mxu0 0
      %1526 = vmatprep.mubr.bf16.mxu0 0
      %1527 = vmatmul.mubr.bf16.gmra.mrb[0].mxu0 %v1492
      %v1528 = vpop.f32.mrb[0].mxu0
      %v1529 = vadd.f32 %v1464, %v1528
      %v1530 = vpop.f32.mrb[0].mxu0
      %v1531 = vpop.f32.mrb[0].mxu0
      %v1532 = vpop.f32.mrb[0].mxu0
      %1533 = vdwg.mxu0
      %v1534 = vadd.f32 %v1381, %v1529
      %1535 = vst.msk [vmem:[%s516] sm:$0xff] %vm522, %v1534
      %p1536 = scmp.lt.s32.totalorder %s37, 1
      %s1537 = scalar_select %p1536, %s37, 1
      %p1538 = scmp.lt.s32.totalorder %s38, 0
      %s1539 = scalar_select %p1538, %s38, 0
      %s1540 = sadd.s32 %s1539, %s1537
      %s1541 = smul.addr %s1540, 8
      %s1542 = scalar_lea.vmem %s16, %s1541
      // Predicated region
      $region81: #{encoder_decoder_forward.9} parent=79 // pred_check
        %p1543 = pneg %p385
      $region82: #{encoder_decoder_forward.9} parent=79 // pred_check_branch
        %1545 = sbr.rel (%p1543) target = $region84
      $region83: #{encoder_decoder_forward.9} parent=79 // pred_region
        _
      $region84: #{encoder_decoder_forward.9} parent=79 // pred_fallthru
        _
    $region80: #{encoder_decoder_forward.9} parent=5 // pred_fallthru
      _
    %p1546 = scmp.le.s32.totalorder 2, %s28
    // Predicated region
    $region85: #{encoder_decoder_forward.9} parent=5 // pred_check
      %p1547 = pneg %p1546
    $region86: #{encoder_decoder_forward.9} parent=5 // pred_check_branch
      %1549 = sbr.rel (%p1547) target = $region88
    $region87: #{encoder_decoder_forward.9} parent=5 // pred_region
      %s1550 = ssub.s32 %s28, 2
      // Predicated region
      $region89: #{encoder_decoder_forward.9} parent=87 // pred_check
        %p1551 = pneg %p391
      $region90: #{encoder_decoder_forward.9} parent=87 // pred_check_branch
        %1553 = sbr.rel (%p1551) target = $region92
      $region91: #{encoder_decoder_forward.9} parent=87 // pred_region
        %p1554 = scmp.lt.s32.totalorder %s39, 1
        %s1555 = scalar_select %p1554, %s39, 1
        %p1556 = scmp.lt.s32.totalorder %s40, 0
        %s1557 = scalar_select %p1556, %s40, 0
        %s1558 = sadd.s32 %s1557, %s1555
        %s1559 = smul.addr %s1558, 8
        %s1560 = scalar_lea.vmem %s16, %s1559
      $region92: #{encoder_decoder_forward.9} parent=87 // pred_fallthru
        _
    $region88: #{encoder_decoder_forward.9} parent=5 // pred_fallthru
      _
  $region6: #{encoder_decoder_forward.9} parent=0 // loop_footer
    %s32 = sadd.s32 1, %s28
  $region7: #{encoder_decoder_forward.9} parent=0 // loop_footer_branch
    %27 = sbr.rel target = $region3
  $region8: #{encoder_decoder_forward.9} parent=0 // loop_exit
    _

// kernel: encoder_decoder_forward.10
$region0: #{encoder_decoder_forward.10}
  #allocation0 [shape = 'u32[]', space=smem, size = 0x4, offset = 0x4, fixed_abs, tag = 'smem constant byte address 0x4 - core index']
  #allocation1 [shape = 'u32[144,128]{1,0:T(1,128)}', space=vmem, size = 0x12000, scoped, tag = 'internal scratch']
  #allocation2 [shape = 'f32[8,32]{1,0:T(8,128)}', space=vmem, size = 0x1000, scoped, tag = 'scratch operand']
  #allocation3 [shape = 's32[1]{0}', space=sflag, size = 0x4, scoped, tag = 'scoped memory for encoder_decoder_forward.10']
  #allocation4 [shape = 'u8[512]{0}', space=smem, size = 0x200, scoped, tag = 'prefetched SMEM operand 0']
  %s0 = inlined_call_operand.vmem [shape: s32[2], index: 0, kind: input, shape index: {}]
  %s1 = inlined_call_operand.vmem [shape: f32[2,8,32], index: 1, kind: input, shape index: {}]
  %s2 = inlined_call_operand.vmem [shape: f32[1,32], index: 2, kind: input, shape index: {}]
  %s3 = inlined_call_operand.vmem [shape: f32[1,32], index: 3, kind: input, shape index: {}]
  %s4 = inlined_call_operand.vmem [shape: bf16[32,32], index: 4, kind: input, shape index: {}]
  %s5 = inlined_call_operand.vmem [shape: bf16[32,64], index: 5, kind: input, shape index: {}]
  %s6 = inlined_call_operand.vmem [shape: bf16[32,32], index: 6, kind: input, shape index: {}]
  %s7 = inlined_call_operand.vmem [shape: f32[1,32], index: 7, kind: input, shape index: {}]
  %s8 = inlined_call_operand.vmem [shape: f32[1,32], index: 8, kind: input, shape index: {}]
  %s9 = inlined_call_operand.vmem [shape: f32[1,32], index: 9, kind: input, shape index: {}]
  %s10 = inlined_call_operand.vmem [shape: bf16[32,64], index: 10, kind: input, shape index: {}]
  %s11 = inlined_call_operand.vmem [shape: f32[1,64], index: 11, kind: input, shape index: {}]
  %s12 = inlined_call_operand.vmem [shape: bf16[64,32], index: 12, kind: input, shape index: {}]
  %s13 = inlined_call_operand.vmem [shape: f32[1,32], index: 13, kind: input, shape index: {}]
  %s14 = inlined_call_operand.vmem [shape: f32[1,32], index: 14, kind: input, shape index: {}]
  %s15 = inlined_call_operand.vmem [shape: f32[1,32], index: 15, kind: input, shape index: {}]
  %s16 = inlined_call_operand.vmem [shape: f32[2,8,32], index: 16, kind: output, shape index: {}]
  %s17 = sld [smem:[#allocation0]]
  $region93: #{encoder_decoder_forward.10} parent=0
    _
  %s19 = ssub.s32 1, %s17
  %s20 = scalar_select 0, %s19, %s17
  %s21 = sshll.u32 %s0, 4
  %s22 = int_to_ptr.vmem [resolvable:$true] %s21
  %24 = dma.vmem_to_smem %s22, 16, [#allocation4], [#allocation3]
  %25 = dma.done [#allocation3], 16
  %26 = sfence
  loop: start=0, step=1, limit=4
  $region2: #{encoder_decoder_forward.10} parent=0 // loop_pre_header
    _
  $region3: #{encoder_decoder_forward.10} parent=0 // loop_header
    %s28 = sphi 0, %s32
    %p29 = scmp.ge.s32.totalorder %s28, 4
    %s35 = sphi 0, %s47
    %s36 = sphi 0, %s43
    %s37 = sphi 0, %s35
    %s38 = sphi 0, %s36
    %s39 = sphi 0, %s37
    %s40 = sphi 0, %s38
    %s50 = sphi 0, %s52
    %s53 = sphi 0, %s50
    %s54 = sphi 0, %s53
    %s70 = sphi 0, %s54
    %s74 = sphi 0, %s74
    %s76 = sphi 0, %s74
    %s77 = sphi 0, %s76
    %s91 = sphi 0, %s77
    %s95 = sphi 0, %s95
    %s97 = sphi 0, %s95
    %s98 = sphi 0, %s97
    %s112 = sphi 0, %s98
    %s116 = sphi 0, %s116
    %s118 = sphi 0, %s116
    %s119 = sphi 0, %s118
    %s133 = sphi 0, %s119
    %s137 = sphi 0, %s137
    %s139 = sphi 0, %s137
    %s140 = sphi 0, %s139
    %s154 = sphi 0, %s140
    %s158 = sphi 0, %s158
    %s160 = sphi 0, %s158
    %s161 = sphi 0, %s160
    %s175 = sphi 0, %s161
    %s179 = sphi 0, %s179
    %s181 = sphi 0, %s179
    %s182 = sphi 0, %s181
    %s196 = sphi 0, %s182
    %s200 = sphi 0, %s200
    %s202 = sphi 0, %s200
    %s203 = sphi 0, %s202
    %s217 = sphi 0, %s203
    %s221 = sphi 0, %s221
    %s223 = sphi 0, %s221
    %s224 = sphi 0, %s223
    %s238 = sphi 0, %s224
    %s242 = sphi 0, %s242
    %s244 = sphi 0, %s242
    %s245 = sphi 0, %s244
    %s259 = sphi 0, %s245
    %s263 = sphi 0, %s263
    %s265 = sphi 0, %s263
    %s266 = sphi 0, %s265
    %s280 = sphi 0, %s266
    %s284 = sphi 0, %s284
    %s286 = sphi 0, %s284
    %s287 = sphi 0, %s286
    %s301 = sphi 0, %s287
    %s305 = sphi 0, %s305
    %s307 = sphi 0, %s305
    %s308 = sphi 0, %s307
    %s322 = sphi 0, %s308
    %s326 = sphi 0, %s326
    %s328 = sphi 0, %s326
    %s329 = sphi 0, %s328
    %s343 = sphi 0, %s329
    %s347 = sphi 0, %s347
    %s349 = sphi 0, %s347
    %s350 = sphi 0, %s349
    %s364 = sphi 0, %s350
    %s372 = sphi 0, %s374
    %s375 = sphi 0, %s372
    %s376 = sphi 0, %s375
    %s392 = sphi 0, %s376
  $region4: #{encoder_decoder_forward.10} parent=0 // loop_header_branch
    %31 = sbr.rel (%p29) target = $region8
  $region5: #{encoder_decoder_forward.10} parent=0 // loop_body
    %s33 = ssub.s32 %s28, 1
    %s34 = ssub.s32 %s28, 2
    %s41 = sadd.s32 1, %s36
    %p42 = scmp.ge.s32.totalorder %s41, 1
    %s43 = scalar_select %p42, 0, %s41
    %s44 = sadd.s32 1, %s35
    %s45 = scalar_select %p42, %s44, %s35
    %p46 = scmp.ge.s32.totalorder %s45, 2
    %s47 = scalar_select %p46, 0, %s45
    %s48 = ssub.s32 %s35, %s47
    %p49 = scmp.eq.s32.totalorder %s48, 0
    %s51 = sadd.s32 %s50, 1
    %s52 = scalar_select %p49, %s50, %s51
    %p55 = pneg %p49
    %p56 = scmp.eq.s32.totalorder %s28, 1
    %p57 = por %p55, %p56
    %p58 = scmp.ne.s32.totalorder %s50, %s53
    %p59 = scmp.eq.s32.totalorder %s28, 0
    %p60 = por %p58, %p59
    %p61 = scmp.ne.s32.totalorder %s50, %s53
    %p62 = scmp.eq.s32.totalorder %s33, 1
    %p63 = por %p61, %p62
    %p64 = scmp.ne.s32.totalorder %s53, %s54
    %p65 = scmp.eq.s32.totalorder %s33, 0
    %p66 = por %p64, %p65
    %p67 = scmp.ne.s32.totalorder %s53, %s54
    %p68 = scmp.eq.s32.totalorder %s34, 1
    %p69 = por %p67, %p68
    %p71 = scmp.ne.s32.totalorder %s54, %s70
    %p72 = scmp.eq.s32.totalorder %s34, 0
    %p73 = por %p71, %p72
    %s75 = sadd.s32 %s74, 1
    %p78 = scmp.eq.s32.totalorder %s28, 1
    %p79 = scmp.ne.s32.totalorder %s74, %s76
    %p80 = scmp.eq.s32.totalorder %s28, 0
    %p81 = por %p79, %p80
    %p82 = scmp.ne.s32.totalorder %s74, %s76
    %p83 = scmp.eq.s32.totalorder %s33, 1
    %p84 = por %p82, %p83
    %p85 = scmp.ne.s32.totalorder %s76, %s77
    %p86 = scmp.eq.s32.totalorder %s33, 0
    %p87 = por %p85, %p86
    %p88 = scmp.ne.s32.totalorder %s76, %s77
    %p89 = scmp.eq.s32.totalorder %s34, 1
    %p90 = por %p88, %p89
    %p92 = scmp.ne.s32.totalorder %s77, %s91
    %p93 = scmp.eq.s32.totalorder %s34, 0
    %p94 = por %p92, %p93
    %s96 = sadd.s32 %s95, 1
    %p99 = scmp.eq.s32.totalorder %s28, 1
    %p100 = scmp.ne.s32.totalorder %s95, %s97
    %p101 = scmp.eq.s32.totalorder %s28, 0
    %p102 = por %p100, %p101
    %p103 = scmp.ne.s32.totalorder %s95, %s97
    %p104 = scmp.eq.s32.totalorder %s33, 1
    %p105 = por %p103, %p104
    %p106 = scmp.ne.s32.totalorder %s97, %s98
    %p107 = scmp.eq.s32.totalorder %s33, 0
    %p108 = por %p106, %p107
    %p109 = scmp.ne.s32.totalorder %s97, %s98
    %p110 = scmp.eq.s32.totalorder %s34, 1
    %p111 = por %p109, %p110
    %p113 = scmp.ne.s32.totalorder %s98, %s112
    %p114 = scmp.eq.s32.totalorder %s34, 0
    %p115 = por %p113, %p114
    %s117 = sadd.s32 %s116, 1
    %p120 = scmp.eq.s32.totalorder %s28, 1
    %p121 = scmp.ne.s32.totalorder %s116, %s118
    %p122 = scmp.eq.s32.totalorder %s28, 0
    %p123 = por %p121, %p122
    %p124 = scmp.ne.s32.totalorder %s116, %s118
    %p125 = scmp.eq.s32.totalorder %s33, 1
    %p126 = por %p124, %p125
    %p127 = scmp.ne.s32.totalorder %s118, %s119
    %p128 = scmp.eq.s32.totalorder %s33, 0
    %p129 = por %p127, %p128
    %p130 = scmp.ne.s32.totalorder %s118, %s119
    %p131 = scmp.eq.s32.totalorder %s34, 1
    %p132 = por %p130, %p131
    %p134 = scmp.ne.s32.totalorder %s119, %s133
    %p135 = scmp.eq.s32.totalorder %s34, 0
    %p136 = por %p134, %p135
    %s138 = sadd.s32 %s137, 1
    %p141 = scmp.eq.s32.totalorder %s28, 1
    %p142 = scmp.ne.s32.totalorder %s137, %s139
    %p143 = scmp.eq.s32.totalorder %s28, 0
    %p144 = por %p142, %p143
    %p145 = scmp.ne.s32.totalorder %s137, %s139
    %p146 = scmp.eq.s32.totalorder %s33, 1
    %p147 = por %p145, %p146
    %p148 = scmp.ne.s32.totalorder %s139, %s140
    %p149 = scmp.eq.s32.totalorder %s33, 0
    %p150 = por %p148, %p149
    %p151 = scmp.ne.s32.totalorder %s139, %s140
    %p152 = scmp.eq.s32.totalorder %s34, 1
    %p153 = por %p151, %p152
    %p155 = scmp.ne.s32.totalorder %s140, %s154
    %p156 = scmp.eq.s32.totalorder %s34, 0
    %p157 = por %p155, %p156
    %s159 = sadd.s32 %s158, 1
    %p162 = scmp.eq.s32.totalorder %s28, 1
    %p163 = scmp.ne.s32.totalorder %s158, %s160
    %p164 = scmp.eq.s32.totalorder %s28, 0
    %p165 = por %p163, %p164
    %p166 = scmp.ne.s32.totalorder %s158, %s160
    %p167 = scmp.eq.s32.totalorder %s33, 1
    %p168 = por %p166, %p167
    %p169 = scmp.ne.s32.totalorder %s160, %s161
    %p170 = scmp.eq.s32.totalorder %s33, 0
    %p171 = por %p169, %p170
    %p172 = scmp.ne.s32.totalorder %s160, %s161
    %p173 = scmp.eq.s32.totalorder %s34, 1
    %p174 = por %p172, %p173
    %p176 = scmp.ne.s32.totalorder %s161, %s175
    %p177 = scmp.eq.s32.totalorder %s34, 0
    %p178 = por %p176, %p177
    %s180 = sadd.s32 %s179, 1
    %p183 = scmp.eq.s32.totalorder %s28, 1
    %p184 = scmp.ne.s32.totalorder %s179, %s181
    %p185 = scmp.eq.s32.totalorder %s28, 0
    %p186 = por %p184, %p185
    %p187 = scmp.ne.s32.totalorder %s179, %s181
    %p188 = scmp.eq.s32.totalorder %s33, 1
    %p189 = por %p187, %p188
    %p190 = scmp.ne.s32.totalorder %s181, %s182
    %p191 = scmp.eq.s32.totalorder %s33, 0
    %p192 = por %p190, %p191
    %p193 = scmp.ne.s32.totalorder %s181, %s182
    %p194 = scmp.eq.s32.totalorder %s34, 1
    %p195 = por %p193, %p194
    %p197 = scmp.ne.s32.totalorder %s182, %s196
    %p198 = scmp.eq.s32.totalorder %s34, 0
    %p199 = por %p197, %p198
    %s201 = sadd.s32 %s200, 1
    %p204 = scmp.eq.s32.totalorder %s28, 1
    %p205 = scmp.ne.s32.totalorder %s200, %s202
    %p206 = scmp.eq.s32.totalorder %s28, 0
    %p207 = por %p205, %p206
    %p208 = scmp.ne.s32.totalorder %s200, %s202
    %p209 = scmp.eq.s32.totalorder %s33, 1
    %p210 = por %p208, %p209
    %p211 = scmp.ne.s32.totalorder %s202, %s203
    %p212 = scmp.eq.s32.totalorder %s33, 0
    %p213 = por %p211, %p212
    %p214 = scmp.ne.s32.totalorder %s202, %s203
    %p215 = scmp.eq.s32.totalorder %s34, 1
    %p216 = por %p214, %p215
    %p218 = scmp.ne.s32.totalorder %s203, %s217
    %p219 = scmp.eq.s32.totalorder %s34, 0
    %p220 = por %p218, %p219
    %s222 = sadd.s32 %s221, 1
    %p225 = scmp.eq.s32.totalorder %s28, 1
    %p226 = scmp.ne.s32.totalorder %s221, %s223
    %p227 = scmp.eq.s32.totalorder %s28, 0
    %p228 = por %p226, %p227
    %p229 = scmp.ne.s32.totalorder %s221, %s223
    %p230 = scmp.eq.s32.totalorder %s33, 1
    %p231 = por %p229, %p230
    %p232 = scmp.ne.s32.totalorder %s223, %s224
    %p233 = scmp.eq.s32.totalorder %s33, 0
    %p234 = por %p232, %p233
    %p235 = scmp.ne.s32.totalorder %s223, %s224
    %p236 = scmp.eq.s32.totalorder %s34, 1
    %p237 = por %p235, %p236
    %p239 = scmp.ne.s32.totalorder %s224, %s238
    %p240 = scmp.eq.s32.totalorder %s34, 0
    %p241 = por %p239, %p240
    %s243 = sadd.s32 %s242, 1
    %p246 = scmp.eq.s32.totalorder %s28, 1
    %p247 = scmp.ne.s32.totalorder %s242, %s244
    %p248 = scmp.eq.s32.totalorder %s28, 0
    %p249 = por %p247, %p248
    %p250 = scmp.ne.s32.totalorder %s242, %s244
    %p251 = scmp.eq.s32.totalorder %s33, 1
    %p252 = por %p250, %p251
    %p253 = scmp.ne.s32.totalorder %s244, %s245
    %p254 = scmp.eq.s32.totalorder %s33, 0
    %p255 = por %p253, %p254
    %p256 = scmp.ne.s32.totalorder %s244, %s245
    %p257 = scmp.eq.s32.totalorder %s34, 1
    %p258 = por %p256, %p257
    %p260 = scmp.ne.s32.totalorder %s245, %s259
    %p261 = scmp.eq.s32.totalorder %s34, 0
    %p262 = por %p260, %p261
    %s264 = sadd.s32 %s263, 1
    %p267 = scmp.eq.s32.totalorder %s28, 1
    %p268 = scmp.ne.s32.totalorder %s263, %s265
    %p269 = scmp.eq.s32.totalorder %s28, 0
    %p270 = por %p268, %p269
    %p271 = scmp.ne.s32.totalorder %s263, %s265
    %p272 = scmp.eq.s32.totalorder %s33, 1
    %p273 = por %p271, %p272
    %p274 = scmp.ne.s32.totalorder %s265, %s266
    %p275 = scmp.eq.s32.totalorder %s33, 0
    %p276 = por %p274, %p275
    %p277 = scmp.ne.s32.totalorder %s265, %s266
    %p278 = scmp.eq.s32.totalorder %s34, 1
    %p279 = por %p277, %p278
    %p281 = scmp.ne.s32.totalorder %s266, %s280
    %p282 = scmp.eq.s32.totalorder %s34, 0
    %p283 = por %p281, %p282
    %s285 = sadd.s32 %s284, 1
    %p288 = scmp.eq.s32.totalorder %s28, 1
    %p289 = scmp.ne.s32.totalorder %s284, %s286
    %p290 = scmp.eq.s32.totalorder %s28, 0
    %p291 = por %p289, %p290
    %p292 = scmp.ne.s32.totalorder %s284, %s286
    %p293 = scmp.eq.s32.totalorder %s33, 1
    %p294 = por %p292, %p293
    %p295 = scmp.ne.s32.totalorder %s286, %s287
    %p296 = scmp.eq.s32.totalorder %s33, 0
    %p297 = por %p295, %p296
    %p298 = scmp.ne.s32.totalorder %s286, %s287
    %p299 = scmp.eq.s32.totalorder %s34, 1
    %p300 = por %p298, %p299
    %p302 = scmp.ne.s32.totalorder %s287, %s301
    %p303 = scmp.eq.s32.totalorder %s34, 0
    %p304 = por %p302, %p303
    %s306 = sadd.s32 %s305, 1
    %p309 = scmp.eq.s32.totalorder %s28, 1
    %p310 = scmp.ne.s32.totalorder %s305, %s307
    %p311 = scmp.eq.s32.totalorder %s28, 0
    %p312 = por %p310, %p311
    %p313 = scmp.ne.s32.totalorder %s305, %s307
    %p314 = scmp.eq.s32.totalorder %s33, 1
    %p315 = por %p313, %p314
    %p316 = scmp.ne.s32.totalorder %s307, %s308
    %p317 = scmp.eq.s32.totalorder %s33, 0
    %p318 = por %p316, %p317
    %p319 = scmp.ne.s32.totalorder %s307, %s308
    %p320 = scmp.eq.s32.totalorder %s34, 1
    %p321 = por %p319, %p320
    %p323 = scmp.ne.s32.totalorder %s308, %s322
    %p324 = scmp.eq.s32.totalorder %s34, 0
    %p325 = por %p323, %p324
    %s327 = sadd.s32 %s326, 1
    %p330 = scmp.eq.s32.totalorder %s28, 1
    %p331 = scmp.ne.s32.totalorder %s326, %s328
    %p332 = scmp.eq.s32.totalorder %s28, 0
    %p333 = por %p331, %p332
    %p334 = scmp.ne.s32.totalorder %s326, %s328
    %p335 = scmp.eq.s32.totalorder %s33, 1
    %p336 = por %p334, %p335
    %p337 = scmp.ne.s32.totalorder %s328, %s329
    %p338 = scmp.eq.s32.totalorder %s33, 0
    %p339 = por %p337, %p338
    %p340 = scmp.ne.s32.totalorder %s328, %s329
    %p341 = scmp.eq.s32.totalorder %s34, 1
    %p342 = por %p340, %p341
    %p344 = scmp.ne.s32.totalorder %s329, %s343
    %p345 = scmp.eq.s32.totalorder %s34, 0
    %p346 = por %p344, %p345
    %s348 = sadd.s32 %s347, 1
    %p351 = scmp.eq.s32.totalorder %s28, 1
    %p352 = scmp.ne.s32.totalorder %s347, %s349
    %p353 = scmp.eq.s32.totalorder %s28, 0
    %p354 = por %p352, %p353
    %p355 = scmp.ne.s32.totalorder %s347, %s349
    %p356 = scmp.eq.s32.totalorder %s33, 1
    %p357 = por %p355, %p356
    %p358 = scmp.ne.s32.totalorder %s349, %s350
    %p359 = scmp.eq.s32.totalorder %s33, 0
    %p360 = por %p358, %p359
    %p361 = scmp.ne.s32.totalorder %s349, %s350
    %p362 = scmp.eq.s32.totalorder %s34, 1
    %p363 = por %p361, %p362
    %p365 = scmp.ne.s32.totalorder %s350, %s364
    %p366 = scmp.eq.s32.totalorder %s34, 0
    %p367 = por %p365, %p366
    %s368 = ssub.s32 %s35, %s47
    %s369 = ssub.s32 %s36, %s43
    %s370 = sor.u32 %s368, %s369
    %p371 = scmp.eq.s32.totalorder %s370, 0
    %s373 = sadd.s32 %s372, 1
    %s374 = scalar_select %p371, %s372, %s373
    %p377 = pneg %p371
    %p378 = scmp.eq.s32.totalorder %s28, 1
    %p379 = por %p377, %p378
    %p380 = scmp.ne.s32.totalorder %s372, %s375
    %p381 = scmp.eq.s32.totalorder %s28, 0
    %p382 = por %p380, %p381
    %p383 = scmp.ne.s32.totalorder %s372, %s375
    %p384 = scmp.eq.s32.totalorder %s33, 1
    %p385 = por %p383, %p384
    %p386 = scmp.ne.s32.totalorder %s375, %s376
    %p387 = scmp.eq.s32.totalorder %s33, 0
    %p388 = por %p386, %p387
    %p389 = scmp.ne.s32.totalorder %s375, %s376
    %p390 = scmp.eq.s32.totalorder %s34, 1
    %p391 = por %p389, %p390
    %p393 = scmp.ne.s32.totalorder %s376, %s392
    %p394 = scmp.eq.s32.totalorder %s34, 0
    %p395 = por %p393, %p394
    %p396 = scmp.le.s32.totalorder 1, %s28
    %p397 = scmp.lt.s32.totalorder %s28, 3
    %p398 = pnand %p396, %p397
    %p399 = pneg %p398
    // Predicated region
    $region9: #{encoder_decoder_forward.10} parent=5 // pred_check
      _
    $region10: #{encoder_decoder_forward.10} parent=5 // pred_check_branch
      %401 = sbr.rel (%p398) target = $region12
    $region11: #{encoder_decoder_forward.10} parent=5 // pred_region
      %s402 = ssub.s32 %s28, 1
      // Predicated region
      $region13: #{encoder_decoder_forward.10} parent=11 // pred_check
        %p403 = pneg %p87
      $region14: #{encoder_decoder_forward.10} parent=11 // pred_check_branch
        %405 = sbr.rel (%p403) target = $region16
      $region15: #{encoder_decoder_forward.10} parent=11 // pred_region
        _
      $region16: #{encoder_decoder_forward.10} parent=11 // pred_fallthru
        _
      // Predicated region
      $region17: #{encoder_decoder_forward.10} parent=11 // pred_check
        %p406 = pneg %p108
      $region18: #{encoder_decoder_forward.10} parent=11 // pred_check_branch
        %408 = sbr.rel (%p406) target = $region20
      $region19: #{encoder_decoder_forward.10} parent=11 // pred_region
        _
      $region20: #{encoder_decoder_forward.10} parent=11 // pred_fallthru
        _
      // Predicated region
      $region21: #{encoder_decoder_forward.10} parent=11 // pred_check
        %p409 = pneg %p129
      $region22: #{encoder_decoder_forward.10} parent=11 // pred_check_branch
        %411 = sbr.rel (%p409) target = $region24
      $region23: #{encoder_decoder_forward.10} parent=11 // pred_region
        _
      $region24: #{encoder_decoder_forward.10} parent=11 // pred_fallthru
        _
      // Predicated region
      $region25: #{encoder_decoder_forward.10} parent=11 // pred_check
        %p412 = pneg %p150
      $region26: #{encoder_decoder_forward.10} parent=11 // pred_check_branch
        %414 = sbr.rel (%p412) target = $region28
      $region27: #{encoder_decoder_forward.10} parent=11 // pred_region
        _
      $region28: #{encoder_decoder_forward.10} parent=11 // pred_fallthru
        _
      // Predicated region
      $region29: #{encoder_decoder_forward.10} parent=11 // pred_check
        %p415 = pneg %p171
      $region30: #{encoder_decoder_forward.10} parent=11 // pred_check_branch
        %417 = sbr.rel (%p415) target = $region32
      $region31: #{encoder_decoder_forward.10} parent=11 // pred_region
        _
      $region32: #{encoder_decoder_forward.10} parent=11 // pred_fallthru
        _
      // Predicated region
      $region33: #{encoder_decoder_forward.10} parent=11 // pred_check
        %p418 = pneg %p192
      $region34: #{encoder_decoder_forward.10} parent=11 // pred_check_branch
        %420 = sbr.rel (%p418) target = $region36
      $region35: #{encoder_decoder_forward.10} parent=11 // pred_region
        _
      $region36: #{encoder_decoder_forward.10} parent=11 // pred_fallthru
        _
      // Predicated region
      $region37: #{encoder_decoder_forward.10} parent=11 // pred_check
        %p421 = pneg %p213
      $region38: #{encoder_decoder_forward.10} parent=11 // pred_check_branch
        %423 = sbr.rel (%p421) target = $region40
      $region39: #{encoder_decoder_forward.10} parent=11 // pred_region
        _
      $region40: #{encoder_decoder_forward.10} parent=11 // pred_fallthru
        _
      // Predicated region
      $region41: #{encoder_decoder_forward.10} parent=11 // pred_check
        %p424 = pneg %p234
      $region42: #{encoder_decoder_forward.10} parent=11 // pred_check_branch
        %426 = sbr.rel (%p424) target = $region44
      $region43: #{encoder_decoder_forward.10} parent=11 // pred_region
        _
      $region44: #{encoder_decoder_forward.10} parent=11 // pred_fallthru
        _
      // Predicated region
      $region45: #{encoder_decoder_forward.10} parent=11 // pred_check
        %p427 = pneg %p255
      $region46: #{encoder_decoder_forward.10} parent=11 // pred_check_branch
        %429 = sbr.rel (%p427) target = $region48
      $region47: #{encoder_decoder_forward.10} parent=11 // pred_region
        _
      $region48: #{encoder_decoder_forward.10} parent=11 // pred_fallthru
        _
      // Predicated region
      $region49: #{encoder_decoder_forward.10} parent=11 // pred_check
        %p430 = pneg %p276
      $region50: #{encoder_decoder_forward.10} parent=11 // pred_check_branch
        %432 = sbr.rel (%p430) target = $region52
      $region51: #{encoder_decoder_forward.10} parent=11 // pred_region
        _
      $region52: #{encoder_decoder_forward.10} parent=11 // pred_fallthru
        _
      // Predicated region
      $region53: #{encoder_decoder_forward.10} parent=11 // pred_check
        %p433 = pneg %p297
      $region54: #{encoder_decoder_forward.10} parent=11 // pred_check_branch
        %435 = sbr.rel (%p433) target = $region56
      $region55: #{encoder_decoder_forward.10} parent=11 // pred_region
        _
      $region56: #{encoder_decoder_forward.10} parent=11 // pred_fallthru
        _
      // Predicated region
      $region57: #{encoder_decoder_forward.10} parent=11 // pred_check
        %p436 = pneg %p318
      $region58: #{encoder_decoder_forward.10} parent=11 // pred_check_branch
        %438 = sbr.rel (%p436) target = $region60
      $region59: #{encoder_decoder_forward.10} parent=11 // pred_region
        _
      $region60: #{encoder_decoder_forward.10} parent=11 // pred_fallthru
        _
      // Predicated region
      $region61: #{encoder_decoder_forward.10} parent=11 // pred_check
        %p439 = pneg %p339
      $region62: #{encoder_decoder_forward.10} parent=11 // pred_check_branch
        %441 = sbr.rel (%p439) target = $region64
      $region63: #{encoder_decoder_forward.10} parent=11 // pred_region
        _
      $region64: #{encoder_decoder_forward.10} parent=11 // pred_fallthru
        _
      // Predicated region
      $region65: #{encoder_decoder_forward.10} parent=11 // pred_check
        %p442 = pneg %p360
      $region66: #{encoder_decoder_forward.10} parent=11 // pred_check_branch
        %444 = sbr.rel (%p442) target = $region68
      $region67: #{encoder_decoder_forward.10} parent=11 // pred_region
        _
      $region68: #{encoder_decoder_forward.10} parent=11 // pred_fallthru
        _
    $region12: #{encoder_decoder_forward.10} parent=5 // pred_fallthru
      _
    %p445 = scmp.lt.s32.totalorder %s28, 2
    // Predicated region
    $region69: #{encoder_decoder_forward.10} parent=5 // pred_check
      %p446 = pneg %p445
    $region70: #{encoder_decoder_forward.10} parent=5 // pred_check_branch
      %448 = sbr.rel (%p446) target = $region72
    $region71: #{encoder_decoder_forward.10} parent=5 // pred_region
      // Predicated region
      $region73: #{encoder_decoder_forward.10} parent=71 // pred_check
        %p449 = pneg %p60
      $region74: #{encoder_decoder_forward.10} parent=71 // pred_check_branch
        %451 = sbr.rel (%p449) target = $region76
      $region75: #{encoder_decoder_forward.10} parent=71 // pred_region
        %p452 = scmp.lt.s32.totalorder %s35, 1
        %s453 = scalar_select %p452, %s35, 1
        %s454 = smul.addr %s453, 8
        %s455 = scalar_lea.vmem %s1, %s454
      $region76: #{encoder_decoder_forward.10} parent=71 // pred_fallthru
        _
    $region72: #{encoder_decoder_forward.10} parent=5 // pred_fallthru
      _
    %p456 = scmp.le.s32.totalorder 1, %s28
    %p457 = scmp.lt.s32.totalorder %s28, 3
    %p458 = pnand %p456, %p457
    %p459 = pneg %p458
    // Predicated region
    $region77: #{encoder_decoder_forward.10} parent=5 // pred_check
      _
    $region78: #{encoder_decoder_forward.10} parent=5 // pred_check_branch
      %461 = sbr.rel (%p458) target = $region80
    $region79: #{encoder_decoder_forward.10} parent=5 // pred_region
      %s462 = ssub.s32 %s28, 1
      %p463 = scmp.lt.s32.totalorder %s37, 1
      %s464 = scalar_select %p463, %s37, 1
      %s465 = smul.addr %s464, 8
      %s466 = scalar_lea.vmem %s1, %s465
      %p467 = pneg %p66
      %p468 = pneg %p63
      %p469 = pneg %p87
      %p470 = pneg %p84
      %p471 = pneg %p108
      %p472 = pneg %p105
      %p473 = pneg %p129
      %p474 = pneg %p126
      %p475 = pneg %p150
      %p476 = pneg %p147
      %p477 = pneg %p171
      %p478 = pneg %p168
      %p479 = pneg %p192
      %p480 = pneg %p189
      %p481 = pneg %p213
      %p482 = pneg %p210
      %p483 = pneg %p234
      %p484 = pneg %p231
      %p485 = pneg %p255
      %p486 = pneg %p252
      %p487 = pneg %p276
      %p488 = pneg %p273
      %p489 = pneg %p297
      %p490 = pneg %p294
      %p491 = pneg %p318
      %p492 = pneg %p315
      %p493 = pneg %p339
      %p494 = pneg %p336
      %p495 = pneg %p360
      %p496 = pneg %p357
      %p497 = pneg %p388
      %p498 = pneg %p385
      %p499 = scmp.lt.s32.totalorder %s37, 1
      %s500 = scalar_select %p499, %s37, 1
      %p501 = scmp.lt.s32.totalorder %s38, 0
      %s502 = scalar_select %p501, %s38, 0
      %s503 = sadd.s32 %s502, %s500
      %s504 = smul.addr %s503, 8
      %s505 = scalar_lea.vmem %s16, %s504
      %p506 = scmp.lt.s32.totalorder %s37, 1
      %s507 = scalar_select %p506, %s37, 1
      %s508 = smul.addr %s507, 8
      %s509 = scalar_lea.vmem %s1, %s508
      %p510 = scmp.lt.s32.totalorder %s37, 1
      %s511 = scalar_select %p510, %s37, 1
      %p512 = scmp.lt.s32.totalorder %s38, 0
      %s513 = scalar_select %p512, %s38, 0
      %s514 = sadd.s32 %s513, %s511
      %s515 = smul.addr %s514, 8
      %s516 = scalar_lea.vmem %s16, %s515
      %s518 = smul.u32 %s38, 8
      %v519 = vld [vmem:[%s509] sm:$0xff]
      %v520 = vld [vmem:[%s2] sm:$0x1]
      %v521 = vld [vmem:[%s3] sm:$0x1]
      %vm522 = vcmask 261120
      %v523 = vsel %vm522, %v519, 0.0
      %524 = vadd.xlane.f32.xlu0 %v523
      %v525 = vpop.xlane.xlu0 %524
      %v526 = vrcp.pop 32.0
      %v527 = vmul.f32 %v525, %v526
      %v528 = vsub.f32 %v519, %v527
      %v529 = vmul.f32 %v528, %v528
      %v530 = vsel %vm522, %v529, 0.0
      %531 = vadd.xlane.f32.xlu0 %v530
      %v532 = vpop.xlane.xlu0 %531
      %v533 = vmul.f32 %v532, %v526
      %v534 = vadd.f32 %v533, 1e-05
      %v535 = vrsqrt.pop %v534
      %v536 = vmul.f32 %v528, %v535
      %v538 = vlaneseq
      %v539 = vshrl.u32 %v538, 7
      %v540 = vsub.s32 0, %v539
      %v541 = vrot.slane %v520, %v540
      %v543 = vmul.f32 %v536, %v541
      %v545 = vlaneseq
      %v546 = vshrl.u32 %v545, 7
      %v547 = vsub.s32 0, %v546
      %v548 = vrot.slane %v521, %v547
      %v550 = vadd.f32 %v543, %v548
      %v551 = vpack.c.bf16 %v550, %v550
      %v552 = vld [vmem:[%s5] sm:$0xf]
      %v553 = vld [vmem:[%s5 + $0x4] sm:$0xf]
      %v554 = vld [vmem:[%s5 + $0x8] sm:$0xf]
      %v555 = vld [vmem:[%s5 + $0xc] sm:$0xf]
      %v560 = vunpack.c.l.b16 %v552
      %v561 = vunpack.c.l.b16 %v553
      %v562 = vunpack.c.l.b16 %v554
      %v563 = vunpack.c.l.b16 %v555
      %v564 = vpack.c.b16 %v561, %v560
      %v565 = vpack.c.b16 %v563, %v562
      %v569 = vsel %vm522, %v551, 0
      %571 = vmatprep.subr.bf16.mxu0 0
      %572 = vmatpush1.bf16.msra.mxu0 %v564
      %573 = vmatprep.subr.bf16.mxu0 0
      %574 = vmatpush1.bf16.msra.mxu0 %v565
      %575 = vmatprep.subr.bf16.mxu0 0
      %576 = vmatpush1.bf16.msra.mxu0 0
      %577 = vmatprep.subr.bf16.mxu0 0
      %578 = vmatpush1.bf16.msra.mxu0 0
      %579 = vmatprep.subr.bf16.mxu0 0
      %580 = vmatpush1.bf16.msra.mxu0 0
      %581 = vmatprep.subr.bf16.mxu0 0
      %582 = vmatpush1.bf16.msra.mxu0 0
      %583 = vmatprep.subr.bf16.mxu0 0
      %584 = vmatpush1.bf16.msra.mxu0 0
      %585 = vmatprep.subr.bf16.mxu0 0
      %586 = vmatpush1.bf16.msra.mxu0 0
      %587 = vmatprep.subr.bf16.mxu0 0
      %588 = vmatpush1.bf16.msra.mxu0 0
      %589 = vmatprep.subr.bf16.mxu0 0
      %590 = vmatpush1.bf16.msra.mxu0 0
      %591 = vmatprep.subr.bf16.mxu0 0
      %592 = vmatpush1.bf16.msra.mxu0 0
      %593 = vmatprep.subr.bf16.mxu0 0
      %594 = vmatpush1.bf16.msra.mxu0 0
      %595 = vmatprep.subr.bf16.mxu0 0
      %596 = vmatpush1.bf16.msra.mxu0 0
      %597 = vmatprep.subr.bf16.mxu0 0
      %598 = vmatpush1.bf16.msra.mxu0 0
      %599 = vmatprep.subr.bf16.mxu0 0
      %600 = vmatpush1.bf16.msra.mxu0 0
      %601 = vmatprep.subr.bf16.mxu0 0
      %602 = vmatpush1.bf16.msra.mxu0 0
      %603 = vmatprep.mubr.bf16.mxu0 0
      %604 = vmatmul.mubr.bf16.gmra.mrb[0].mxu0 %v569
      %v605 = vpop.f32.mrb[0].mxu0
      %v606 = vadd.f32 0.0, %v605
      %v607 = vpop.f32.mrb[0].mxu0
      %v608 = vpop.f32.mrb[0].mxu0
      %v609 = vpop.f32.mrb[0].mxu0
      %610 = vdwg.mxu0
      %s611 = scalar_lea.vmem %s509, %s518
      %v612 = vld [vmem:[%s611] sm:$0xff]
      %v613 = vsel %vm522, %v612, 0.0
      %614 = vadd.xlane.f32.xlu0 %v613
      %v615 = vpop.xlane.xlu0 %614
      %v616 = vmul.f32 %v615, %v526
      %v617 = vsub.f32 %v612, %v616
      %v618 = vmul.f32 %v617, %v617
      %v619 = vsel %vm522, %v618, 0.0
      %620 = vadd.xlane.f32.xlu0 %v619
      %v621 = vpop.xlane.xlu0 %620
      %v622 = vmul.f32 %v621, %v526
      %v623 = vadd.f32 %v622, 1e-05
      %v624 = vrsqrt.pop %v623
      %v625 = vmul.f32 %v617, %v624
      %v626 = vmul.f32 %v625, %v541
      %v627 = vadd.f32 %v626, %v548
      %v628 = vpack.c.bf16 %v627, %v627
      %v629 = vld [vmem:[%s4] sm:$0xf]
      %v630 = vld [vmem:[%s4 + $0x4] sm:$0xf]
      %v631 = vld [vmem:[%s4 + $0x8] sm:$0xf]
      %v632 = vld [vmem:[%s4 + $0xc] sm:$0xf]
      %v637 = vunpack.c.l.b16 %v629
      %v638 = vunpack.c.l.b16 %v630
      %v639 = vunpack.c.l.b16 %v631
      %v640 = vunpack.c.l.b16 %v632
      %v641 = vpack.c.b16 %v638, %v637
      %v642 = vpack.c.b16 %v640, %v639
      %v646 = vsel %vm522, %v628, 0
      %648 = vmatprep.subr.bf16.mxu0 0
      %649 = vmatpush1.bf16.msra.mxu0 %v641
      %650 = vmatprep.subr.bf16.mxu0 0
      %651 = vmatpush1.bf16.msra.mxu0 %v642
      %652 = vmatprep.subr.bf16.mxu0 0
      %653 = vmatpush1.bf16.msra.mxu0 0
      %654 = vmatprep.subr.bf16.mxu0 0
      %655 = vmatpush1.bf16.msra.mxu0 0
      %656 = vmatprep.subr.bf16.mxu0 0
      %657 = vmatpush1.bf16.msra.mxu0 0
      %658 = vmatprep.subr.bf16.mxu0 0
      %659 = vmatpush1.bf16.msra.mxu0 0
      %660 = vmatprep.subr.bf16.mxu0 0
      %661 = vmatpush1.bf16.msra.mxu0 0
      %662 = vmatprep.subr.bf16.mxu0 0
      %663 = vmatpush1.bf16.msra.mxu0 0
      %664 = vmatprep.subr.bf16.mxu0 0
      %665 = vmatpush1.bf16.msra.mxu0 0
      %666 = vmatprep.subr.bf16.mxu0 0
      %667 = vmatpush1.bf16.msra.mxu0 0
      %668 = vmatprep.subr.bf16.mxu0 0
      %669 = vmatpush1.bf16.msra.mxu0 0
      %670 = vmatprep.subr.bf16.mxu0 0
      %671 = vmatpush1.bf16.msra.mxu0 0
      %672 = vmatprep.subr.bf16.mxu0 0
      %673 = vmatpush1.bf16.msra.mxu0 0
      %674 = vmatprep.subr.bf16.mxu0 0
      %675 = vmatpush1.bf16.msra.mxu0 0
      %676 = vmatprep.subr.bf16.mxu0 0
      %677 = vmatpush1.bf16.msra.mxu0 0
      %678 = vmatprep.subr.bf16.mxu0 0
      %679 = vmatpush1.bf16.msra.mxu0 0
      %680 = vmatprep.mubr.bf16.mxu0 0
      %681 = vmatmul.mubr.bf16.gmra.mrb[0].mxu0 %v646
      %v682 = vpop.f32.mrb[0].mxu0
      %v683 = vadd.f32 0.0, %v682
      %v684 = vpop.f32.mrb[0].mxu0
      %v685 = vpop.f32.mrb[0].mxu0
      %v686 = vpop.f32.mrb[0].mxu0
      %687 = vdwg.mxu0
      %v688 = vlaneseq
      %v689 = vshrl.u32 %v688, 7
      %v690 = vstv %s518
      %v691 = vadd.s32 %v690, %v689
      %s692 = sld [smem:[#allocation4 + %s37]]
      %v693 = vstv %s692
      %vm694 = vcmp.lt.s32.totalorder %v691, %v693
      %v695 = vsel %vm694, 0.0, -1e+09
      %v696 = vld [vmem:[%s7] sm:$0x1]
      %697 = vst.msk [vmem:[#allocation2] sm:$0xff] %vm522, 0.0
      %v698 = vpack.c.bf16 %v683, %v683
      %v699 = vpack.c.bf16 %v606, %v606
      %vm700 = vcmask 64512
      %v702 = vsel %vm700, %v698, 0
      %v705 = vsel %vm700, %v699, 0
      %707 = vmatprep.subr.bf16.mxu0 0
      %708 = vmatpush1.bf16.xpose.msra.mxu0 %v705
      %709 = vmatprep.subr.bf16.mxu0 0
      %710 = vmatpush1.bf16.xpose.msra.mxu0 0
      %711 = vmatprep.subr.bf16.mxu0 0
      %712 = vmatpush1.bf16.xpose.msra.mxu0 0
      %713 = vmatprep.subr.bf16.mxu0 0
      %714 = vmatpush1.bf16.xpose.msra.mxu0 0
      %715 = vmatprep.subr.bf16.mxu0 0
      %716 = vmatpush1.bf16.xpose.msra.mxu0 0
      %717 = vmatprep.subr.bf16.mxu0 0
      %718 = vmatpush1.bf16.xpose.msra.mxu0 0
      %719 = vmatprep.subr.bf16.mxu0 0
      %720 = vmatpush1.bf16.xpose.msra.mxu0 0
      %721 = vmatprep.subr.bf16.mxu0 0
      %722 = vmatpush1.bf16.xpose.msra.mxu0 0
      %723 = vmatprep.subr.bf16.mxu0 0
      %724 = vmatpush1.bf16.xpose.msra.mxu0 0
      %725 = vmatprep.subr.bf16.mxu0 0
      %726 = vmatpush1.bf16.xpose.msra.mxu0 0
      %727 = vmatprep.subr.bf16.mxu0 0
      %728 = vmatpush1.bf16.xpose.msra.mxu0 0
      %729 = vmatprep.subr.bf16.mxu0 0
      %730 = vmatpush1.bf16.xpose.msra.mxu0 0
      %731 = vmatprep.subr.bf16.mxu0 0
      %732 = vmatpush1.bf16.xpose.msra.mxu0 0
      %733 = vmatprep.subr.bf16.mxu0 0
      %734 = vmatpush1.bf16.xpose.msra.mxu0 0
      %735 = vmatprep.subr.bf16.mxu0 0
      %736 = vmatpush1.bf16.xpose.msra.mxu0 0
      %737 = vmatprep.subr.bf16.mxu0 0
      %738 = vmatpush1.bf16.xpose.msra.mxu0 0
      %739 = vmatprep.mubr.bf16.mxu0 0
      %740 = vmatmul.mubr.bf16.gmra.mrb[0].mxu0 %v702
      %v741 = vpop.f32.mrb[0].mxu0
      %v742 = vadd.f32 %v695, %v741
      %v743 = vpop.f32.mrb[0].mxu0
      %v744 = vpop.f32.mrb[0].mxu0
      %v745 = vpop.f32.mrb[0].mxu0
      %746 = vdwg.mxu0
      %v747 = vsel %vm700, %v742, -inf
      %748 = vmax.xlane.f32.xlu0 %v747
      %v749 = vpop.xlane.xlu0 %748
      %v750 = vsub.f32 %v742, %v749
      %v751 = vmul.f32 %v750, 1.442695
      %v752 = vpow.pop %v751
      %v753 = vsel %vm700, %v752, 0.0
      %754 = vadd.xlane.f32.xlu0 %v753
      %v755 = vpop.xlane.xlu0 %754
      %v756 = vrcp.pop %v755
      %v757 = vmul.f32 %v752, %v756
      %v758 = vpack.c.bf16 %v757, %v757
      %760 = vrot.lane.b32.xlu0 %v699, 96
      %v761 = vpop.permute.xlu0 %760
      %v763 = vsel %vm700, %v758, 0
      %vm765 = vcmask 1043456
      %v767 = vsel %vm765, %v761, 0
      %769 = vmatprep.subr.bf16.mxu0 0
      %770 = vmatpush1.bf16.msra.mxu0 %v767
      %771 = vmatprep.subr.bf16.mxu0 0
      %772 = vmatpush1.bf16.msra.mxu0 0
      %773 = vmatprep.subr.bf16.mxu0 0
      %774 = vmatpush1.bf16.msra.mxu0 0
      %775 = vmatprep.subr.bf16.mxu0 0
      %776 = vmatpush1.bf16.msra.mxu0 0
      %777 = vmatprep.subr.bf16.mxu0 0
      %778 = vmatpush1.bf16.msra.mxu0 0
      %779 = vmatprep.subr.bf16.mxu0 0
      %780 = vmatpush1.bf16.msra.mxu0 0
      %781 = vmatprep.subr.bf16.mxu0 0
      %782 = vmatpush1.bf16.msra.mxu0 0
      %783 = vmatprep.subr.bf16.mxu0 0
      %784 = vmatpush1.bf16.msra.mxu0 0
      %785 = vmatprep.subr.bf16.mxu0 0
      %786 = vmatpush1.bf16.msra.mxu0 0
      %787 = vmatprep.subr.bf16.mxu0 0
      %788 = vmatpush1.bf16.msra.mxu0 0
      %789 = vmatprep.subr.bf16.mxu0 0
      %790 = vmatpush1.bf16.msra.mxu0 0
      %791 = vmatprep.subr.bf16.mxu0 0
      %792 = vmatpush1.bf16.msra.mxu0 0
      %793 = vmatprep.subr.bf16.mxu0 0
      %794 = vmatpush1.bf16.msra.mxu0 0
      %795 = vmatprep.subr.bf16.mxu0 0
      %796 = vmatpush1.bf16.msra.mxu0 0
      %797 = vmatprep.subr.bf16.mxu0 0
      %798 = vmatpush1.bf16.msra.mxu0 0
      %799 = vmatprep.subr.bf16.mxu0 0
      %800 = vmatpush1.bf16.msra.mxu0 0
      %801 = vmatprep.mubr.bf16.mxu0 0
      %802 = vmatmul.mubr.bf16.gmra.mrb[0].mxu0 %v763
      %v803 = vpop.f32.mrb[0].mxu0
      %v804 = vadd.f32 0.0, %v803
      %v805 = vpop.f32.mrb[0].mxu0
      %v806 = vpop.f32.mrb[0].mxu0
      %v807 = vpop.f32.mrb[0].mxu0
      %808 = vdwg.mxu0
      %v809 = vld [vmem:[#allocation2] sm:$0xff]
      %v810 = vpack.c.bf16 %v804, %v804
      %v811 = vld [vmem:[%s6] sm:$0xf]
      %v813 = vsel %vm700, %v810, 0
      %v816 = vsel %vm765, %v811, 0
      %818 = vmatprep.subr.bf16.mxu0 0
      %819 = vmatpush1.bf16.msra.mxu0 %v816
      %820 = vmatprep.subr.bf16.mxu0 0
      %821 = vmatpush1.bf16.msra.mxu0 0
      %822 = vmatprep.subr.bf16.mxu0 0
      %823 = vmatpush1.bf16.msra.mxu0 0
      %824 = vmatprep.subr.bf16.mxu0 0
      %825 = vmatpush1.bf16.msra.mxu0 0
      %826 = vmatprep.subr.bf16.mxu0 0
      %827 = vmatpush1.bf16.msra.mxu0 0
      %828 = vmatprep.subr.bf16.mxu0 0
      %829 = vmatpush1.bf16.msra.mxu0 0
      %830 = vmatprep.subr.bf16.mxu0 0
      %831 = vmatpush1.bf16.msra.mxu0 0
      %832 = vmatprep.subr.bf16.mxu0 0
      %833 = vmatpush1.bf16.msra.mxu0 0
      %834 = vmatprep.subr.bf16.mxu0 0
      %835 = vmatpush1.bf16.msra.mxu0 0
      %836 = vmatprep.subr.bf16.mxu0 0
      %837 = vmatpush1.bf16.msra.mxu0 0
      %838 = vmatprep.subr.bf16.mxu0 0
      %839 = vmatpush1.bf16.msra.mxu0 0
      %840 = vmatprep.subr.bf16.mxu0 0
      %841 = vmatpush1.bf16.msra.mxu0 0
      %842 = vmatprep.subr.bf16.mxu0 0
      %843 = vmatpush1.bf16.msra.mxu0 0
      %844 = vmatprep.subr.bf16.mxu0 0
      %845 = vmatpush1.bf16.msra.mxu0 0
      %846 = vmatprep.subr.bf16.mxu0 0
      %847 = vmatpush1.bf16.msra.mxu0 0
      %848 = vmatprep.subr.bf16.mxu0 0
      %849 = vmatpush1.bf16.msra.mxu0 0
      %850 = vmatprep.mubr.bf16.mxu0 0
      %851 = vmatmul.mubr.bf16.gmra.mrb[0].mxu0 %v813
      %v852 = vpop.f32.mrb[0].mxu0
      %v853 = vadd.f32 0.0, %v852
      %v854 = vpop.f32.mrb[0].mxu0
      %v855 = vpop.f32.mrb[0].mxu0
      %v856 = vpop.f32.mrb[0].mxu0
      %857 = vdwg.mxu0
      %v858 = vadd.f32 %v809, %v853
      %859 = vst.msk [vmem:[#allocation2] sm:$0xff] %vm522, %v858
      %861 = vrot.lane.b32.xlu0 %v698, 120
      %v862 = vpop.permute.xlu0 %861
      %863 = vrot.lane.b32.xlu0 %v699, 120
      %v864 = vpop.permute.xlu0 %863
      %v866 = vsel %vm700, %v862, 0
      %v869 = vsel %vm700, %v864, 0
      %871 = vmatprep.subr.bf16.mxu0 0
      %872 = vmatpush1.bf16.xpose.msra.mxu0 %v869
      %873 = vmatprep.subr.bf16.mxu0 0
      %874 = vmatpush1.bf16.xpose.msra.mxu0 0
      %875 = vmatprep.subr.bf16.mxu0 0
      %876 = vmatpush1.bf16.xpose.msra.mxu0 0
      %877 = vmatprep.subr.bf16.mxu0 0
      %878 = vmatpush1.bf16.xpose.msra.mxu0 0
      %879 = vmatprep.subr.bf16.mxu0 0
      %880 = vmatpush1.bf16.xpose.msra.mxu0 0
      %881 = vmatprep.subr.bf16.mxu0 0
      %882 = vmatpush1.bf16.xpose.msra.mxu0 0
      %883 = vmatprep.subr.bf16.mxu0 0
      %884 = vmatpush1.bf16.xpose.msra.mxu0 0
      %885 = vmatprep.subr.bf16.mxu0 0
      %886 = vmatpush1.bf16.xpose.msra.mxu0 0
      %887 = vmatprep.subr.bf16.mxu0 0
      %888 = vmatpush1.bf16.xpose.msra.mxu0 0
      %889 = vmatprep.subr.bf16.mxu0 0
      %890 = vmatpush1.bf16.xpose.msra.mxu0 0
      %891 = vmatprep.subr.bf16.mxu0 0
      %892 = vmatpush1.bf16.xpose.msra.mxu0 0
      %893 = vmatprep.subr.bf16.mxu0 0
      %894 = vmatpush1.bf16.xpose.msra.mxu0 0
      %895 = vmatprep.subr.bf16.mxu0 0
      %896 = vmatpush1.bf16.xpose.msra.mxu0 0
      %897 = vmatprep.subr.bf16.mxu0 0
      %898 = vmatpush1.bf16.xpose.msra.mxu0 0
      %899 = vmatprep.subr.bf16.mxu0 0
      %900 = vmatpush1.bf16.xpose.msra.mxu0 0
      %901 = vmatprep.subr.bf16.mxu0 0
      %902 = vmatpush1.bf16.xpose.msra.mxu0 0
      %903 = vmatprep.mubr.bf16.mxu0 0
      %904 = vmatmul.mubr.bf16.gmra.mrb[0].mxu0 %v866
      %v905 = vpop.f32.mrb[0].mxu0
      %v906 = vadd.f32 %v695, %v905
      %v907 = vpop.f32.mrb[0].mxu0
      %v908 = vpop.f32.mrb[0].mxu0
      %v909 = vpop.f32.mrb[0].mxu0
      %910 = vdwg.mxu0
      %v911 = vsel %vm700, %v906, -inf
      %912 = vmax.xlane.f32.xlu0 %v911
      %v913 = vpop.xlane.xlu0 %912
      %v914 = vsub.f32 %v906, %v913
      %v915 = vmul.f32 %v914, 1.442695
      %v916 = vpow.pop %v915
      %v917 = vsel %vm700, %v916, 0.0
      %918 = vadd.xlane.f32.xlu0 %v917
      %v919 = vpop.xlane.xlu0 %918
      %v920 = vrcp.pop %v919
      %v921 = vmul.f32 %v916, %v920
      %v922 = vpack.c.bf16 %v921, %v921
      %923 = vrot.lane.b32.xlu0 %v699, 88
      %v924 = vpop.permute.xlu0 %923
      %v926 = vsel %vm700, %v922, 0
      %v929 = vsel %vm765, %v924, 0
      %931 = vmatprep.subr.bf16.mxu0 0
      %932 = vmatpush1.bf16.msra.mxu0 %v929
      %933 = vmatprep.subr.bf16.mxu0 0
      %934 = vmatpush1.bf16.msra.mxu0 0
      %935 = vmatprep.subr.bf16.mxu0 0
      %936 = vmatpush1.bf16.msra.mxu0 0
      %937 = vmatprep.subr.bf16.mxu0 0
      %938 = vmatpush1.bf16.msra.mxu0 0
      %939 = vmatprep.subr.bf16.mxu0 0
      %940 = vmatpush1.bf16.msra.mxu0 0
      %941 = vmatprep.subr.bf16.mxu0 0
      %942 = vmatpush1.bf16.msra.mxu0 0
      %943 = vmatprep.subr.bf16.mxu0 0
      %944 = vmatpush1.bf16.msra.mxu0 0
      %945 = vmatprep.subr.bf16.mxu0 0
      %946 = vmatpush1.bf16.msra.mxu0 0
      %947 = vmatprep.subr.bf16.mxu0 0
      %948 = vmatpush1.bf16.msra.mxu0 0
      %949 = vmatprep.subr.bf16.mxu0 0
      %950 = vmatpush1.bf16.msra.mxu0 0
      %951 = vmatprep.subr.bf16.mxu0 0
      %952 = vmatpush1.bf16.msra.mxu0 0
      %953 = vmatprep.subr.bf16.mxu0 0
      %954 = vmatpush1.bf16.msra.mxu0 0
      %955 = vmatprep.subr.bf16.mxu0 0
      %956 = vmatpush1.bf16.msra.mxu0 0
      %957 = vmatprep.subr.bf16.mxu0 0
      %958 = vmatpush1.bf16.msra.mxu0 0
      %959 = vmatprep.subr.bf16.mxu0 0
      %960 = vmatpush1.bf16.msra.mxu0 0
      %961 = vmatprep.subr.bf16.mxu0 0
      %962 = vmatpush1.bf16.msra.mxu0 0
      %963 = vmatprep.mubr.bf16.mxu0 0
      %964 = vmatmul.mubr.bf16.gmra.mrb[0].mxu0 %v926
      %v965 = vpop.f32.mrb[0].mxu0
      %v966 = vadd.f32 0.0, %v965
      %v967 = vpop.f32.mrb[0].mxu0
      %v968 = vpop.f32.mrb[0].mxu0
      %v969 = vpop.f32.mrb[0].mxu0
      %970 = vdwg.mxu0
      %v971 = vld [vmem:[#allocation2] sm:$0xff]
      %v972 = vpack.c.bf16 %v966, %v966
      %v973 = vld [vmem:[%s6 + $0x4] sm:$0xf]
      %v975 = vsel %vm700, %v972, 0
      %v978 = vsel %vm765, %v973, 0
      %980 = vmatprep.subr.bf16.mxu0 0
      %981 = vmatpush1.bf16.msra.mxu0 %v978
      %982 = vmatprep.subr.bf16.mxu0 0
      %983 = vmatpush1.bf16.msra.mxu0 0
      %984 = vmatprep.subr.bf16.mxu0 0
      %985 = vmatpush1.bf16.msra.mxu0 0
      %986 = vmatprep.subr.bf16.mxu0 0
      %987 = vmatpush1.bf16.msra.mxu0 0
      %988 = vmatprep.subr.bf16.mxu0 0
      %989 = vmatpush1.bf16.msra.mxu0 0
      %990 = vmatprep.subr.bf16.mxu0 0
      %991 = vmatpush1.bf16.msra.mxu0 0
      %992 = vmatprep.subr.bf16.mxu0 0
      %993 = vmatpush1.bf16.msra.mxu0 0
      %994 = vmatprep.subr.bf16.mxu0 0
      %995 = vmatpush1.bf16.msra.mxu0 0
      %996 = vmatprep.subr.bf16.mxu0 0
      %997 = vmatpush1.bf16.msra.mxu0 0
      %998 = vmatprep.subr.bf16.mxu0 0
      %999 = vmatpush1.bf16.msra.mxu0 0
      %1000 = vmatprep.subr.bf16.mxu0 0
      %1001 = vmatpush1.bf16.msra.mxu0 0
      %1002 = vmatprep.subr.bf16.mxu0 0
      %1003 = vmatpush1.bf16.msra.mxu0 0
      %1004 = vmatprep.subr.bf16.mxu0 0
      %1005 = vmatpush1.bf16.msra.mxu0 0
      %1006 = vmatprep.subr.bf16.mxu0 0
      %1007 = vmatpush1.bf16.msra.mxu0 0
      %1008 = vmatprep.subr.bf16.mxu0 0
      %1009 = vmatpush1.bf16.msra.mxu0 0
      %1010 = vmatprep.subr.bf16.mxu0 0
      %1011 = vmatpush1.bf16.msra.mxu0 0
      %1012 = vmatprep.mubr.bf16.mxu0 0
      %1013 = vmatmul.mubr.bf16.gmra.mrb[0].mxu0 %v975
      %v1014 = vpop.f32.mrb[0].mxu0
      %v1015 = vadd.f32 0.0, %v1014
      %v1016 = vpop.f32.mrb[0].mxu0
      %v1017 = vpop.f32.mrb[0].mxu0
      %v1018 = vpop.f32.mrb[0].mxu0
      %1019 = vdwg.mxu0
      %v1020 = vadd.f32 %v971, %v1015
      %1021 = vst.msk [vmem:[#allocation2] sm:$0xff] %vm522, %v1020
      %1022 = vrot.lane.b32.xlu0 %v698, 112
      %v1023 = vpop.permute.xlu0 %1022
      %1024 = vrot.lane.b32.xlu0 %v699, 112
      %v1025 = vpop.permute.xlu0 %1024
      %v1027 = vsel %vm700, %v1023, 0
      %v1030 = vsel %vm700, %v1025, 0
      %1032 = vmatprep.subr.bf16.mxu0 0
      %1033 = vmatpush1.bf16.xpose.msra.mxu0 %v1030
      %1034 = vmatprep.subr.bf16.mxu0 0
      %1035 = vmatpush1.bf16.xpose.msra.mxu0 0
      %1036 = vmatprep.subr.bf16.mxu0 0
      %1037 = vmatpush1.bf16.xpose.msra.mxu0 0
      %1038 = vmatprep.subr.bf16.mxu0 0
      %1039 = vmatpush1.bf16.xpose.msra.mxu0 0
      %1040 = vmatprep.subr.bf16.mxu0 0
      %1041 = vmatpush1.bf16.xpose.msra.mxu0 0
      %1042 = vmatprep.subr.bf16.mxu0 0
      %1043 = vmatpush1.bf16.xpose.msra.mxu0 0
      %1044 = vmatprep.subr.bf16.mxu0 0
      %1045 = vmatpush1.bf16.xpose.msra.mxu0 0
      %1046 = vmatprep.subr.bf16.mxu0 0
      %1047 = vmatpush1.bf16.xpose.msra.mxu0 0
      %1048 = vmatprep.subr.bf16.mxu0 0
      %1049 = vmatpush1.bf16.xpose.msra.mxu0 0
      %1050 = vmatprep.subr.bf16.mxu0 0
      %1051 = vmatpush1.bf16.xpose.msra.mxu0 0
      %1052 = vmatprep.subr.bf16.mxu0 0
      %1053 = vmatpush1.bf16.xpose.msra.mxu0 0
      %1054 = vmatprep.subr.bf16.mxu0 0
      %1055 = vmatpush1.bf16.xpose.msra.mxu0 0
      %1056 = vmatprep.subr.bf16.mxu0 0
      %1057 = vmatpush1.bf16.xpose.msra.mxu0 0
      %1058 = vmatprep.subr.bf16.mxu0 0
      %1059 = vmatpush1.bf16.xpose.msra.mxu0 0
      %1060 = vmatprep.subr.bf16.mxu0 0
      %1061 = vmatpush1.bf16.xpose.msra.mxu0 0
      %1062 = vmatprep.subr.bf16.mxu0 0
      %1063 = vmatpush1.bf16.xpose.msra.mxu0 0
      %1064 = vmatprep.mubr.bf16.mxu0 0
      %1065 = vmatmul.mubr.bf16.gmra.mrb[0].mxu0 %v1027
      %v1066 = vpop.f32.mrb[0].mxu0
      %v1067 = vadd.f32 %v695, %v1066
      %v1068 = vpop.f32.mrb[0].mxu0
      %v1069 = vpop.f32.mrb[0].mxu0
      %v1070 = vpop.f32.mrb[0].mxu0
      %1071 = vdwg.mxu0
      %v1072 = vsel %vm700, %v1067, -inf
      %1073 = vmax.xlane.f32.xlu0 %v1072
      %v1074 = vpop.xlane.xlu0 %1073
      %v1075 = vsub.f32 %v1067, %v1074
      %v1076 = vmul.f32 %v1075, 1.442695
      %v1077 = vpow.pop %v1076
      %v1078 = vsel %vm700, %v1077, 0.0
      %1079 = vadd.xlane.f32.xlu0 %v1078
      %v1080 = vpop.xlane.xlu0 %1079
      %v1081 = vrcp.pop %v1080
      %v1082 = vmul.f32 %v1077, %v1081
      %v1083 = vpack.c.bf16 %v1082, %v1082
      %1084 = vrot.lane.b32.xlu0 %v699, 80
      %v1085 = vpop.permute.xlu0 %1084
      %v1087 = vsel %vm700, %v1083, 0
      %v1090 = vsel %vm765, %v1085, 0
      %1092 = vmatprep.subr.bf16.mxu0 0
      %1093 = vmatpush1.bf16.msra.mxu0 %v1090
      %1094 = vmatprep.subr.bf16.mxu0 0
      %1095 = vmatpush1.bf16.msra.mxu0 0
      %1096 = vmatprep.subr.bf16.mxu0 0
      %1097 = vmatpush1.bf16.msra.mxu0 0
      %1098 = vmatprep.subr.bf16.mxu0 0
      %1099 = vmatpush1.bf16.msra.mxu0 0
      %1100 = vmatprep.subr.bf16.mxu0 0
      %1101 = vmatpush1.bf16.msra.mxu0 0
      %1102 = vmatprep.subr.bf16.mxu0 0
      %1103 = vmatpush1.bf16.msra.mxu0 0
      %1104 = vmatprep.subr.bf16.mxu0 0
      %1105 = vmatpush1.bf16.msra.mxu0 0
      %1106 = vmatprep.subr.bf16.mxu0 0
      %1107 = vmatpush1.bf16.msra.mxu0 0
      %1108 = vmatprep.subr.bf16.mxu0 0
      %1109 = vmatpush1.bf16.msra.mxu0 0
      %1110 = vmatprep.subr.bf16.mxu0 0
      %1111 = vmatpush1.bf16.msra.mxu0 0
      %1112 = vmatprep.subr.bf16.mxu0 0
      %1113 = vmatpush1.bf16.msra.mxu0 0
      %1114 = vmatprep.subr.bf16.mxu0 0
      %1115 = vmatpush1.bf16.msra.mxu0 0
      %1116 = vmatprep.subr.bf16.mxu0 0
      %1117 = vmatpush1.bf16.msra.mxu0 0
      %1118 = vmatprep.subr.bf16.mxu0 0
      %1119 = vmatpush1.bf16.msra.mxu0 0
      %1120 = vmatprep.subr.bf16.mxu0 0
      %1121 = vmatpush1.bf16.msra.mxu0 0
      %1122 = vmatprep.subr.bf16.mxu0 0
      %1123 = vmatpush1.bf16.msra.mxu0 0
      %1124 = vmatprep.mubr.bf16.mxu0 0
      %1125 = vmatmul.mubr.bf16.gmra.mrb[0].mxu0 %v1087
      %v1126 = vpop.f32.mrb[0].mxu0
      %v1127 = vadd.f32 0.0, %v1126
      %v1128 = vpop.f32.mrb[0].mxu0
      %v1129 = vpop.f32.mrb[0].mxu0
      %v1130 = vpop.f32.mrb[0].mxu0
      %1131 = vdwg.mxu0
      %v1132 = vld [vmem:[#allocation2] sm:$0xff]
      %v1133 = vpack.c.bf16 %v1127, %v1127
      %v1134 = vld [vmem:[%s6 + $0x8] sm:$0xf]
      %v1136 = vsel %vm700, %v1133, 0
      %v1139 = vsel %vm765, %v1134, 0
      %1141 = vmatprep.subr.bf16.mxu0 0
      %1142 = vmatpush1.bf16.msra.mxu0 %v1139
      %1143 = vmatprep.subr.bf16.mxu0 0
      %1144 = vmatpush1.bf16.msra.mxu0 0
      %1145 = vmatprep.subr.bf16.mxu0 0
      %1146 = vmatpush1.bf16.msra.mxu0 0
      %1147 = vmatprep.subr.bf16.mxu0 0
      %1148 = vmatpush1.bf16.msra.mxu0 0
      %1149 = vmatprep.subr.bf16.mxu0 0
      %1150 = vmatpush1.bf16.msra.mxu0 0
      %1151 = vmatprep.subr.bf16.mxu0 0
      %1152 = vmatpush1.bf16.msra.mxu0 0
      %1153 = vmatprep.subr.bf16.mxu0 0
      %1154 = vmatpush1.bf16.msra.mxu0 0
      %1155 = vmatprep.subr.bf16.mxu0 0
      %1156 = vmatpush1.bf16.msra.mxu0 0
      %1157 = vmatprep.subr.bf16.mxu0 0
      %1158 = vmatpush1.bf16.msra.mxu0 0
      %1159 = vmatprep.subr.bf16.mxu0 0
      %1160 = vmatpush1.bf16.msra.mxu0 0
      %1161 = vmatprep.subr.bf16.mxu0 0
      %1162 = vmatpush1.bf16.msra.mxu0 0
      %1163 = vmatprep.subr.bf16.mxu0 0
      %1164 = vmatpush1.bf16.msra.mxu0 0
      %1165 = vmatprep.subr.bf16.mxu0 0
      %1166 = vmatpush1.bf16.msra.mxu0 0
      %1167 = vmatprep.subr.bf16.mxu0 0
      %1168 = vmatpush1.bf16.msra.mxu0 0
      %1169 = vmatprep.subr.bf16.mxu0 0
      %1170 = vmatpush1.bf16.msra.mxu0 0
      %1171 = vmatprep.subr.bf16.mxu0 0
      %1172 = vmatpush1.bf16.msra.mxu0 0
      %1173 = vmatprep.mubr.bf16.mxu0 0
      %1174 = vmatmul.mubr.bf16.gmra.mrb[0].mxu0 %v1136
      %v1175 = vpop.f32.mrb[0].mxu0
      %v1176 = vadd.f32 0.0, %v1175
      %v1177 = vpop.f32.mrb[0].mxu0
      %v1178 = vpop.f32.mrb[0].mxu0
      %v1179 = vpop.f32.mrb[0].mxu0
      %1180 = vdwg.mxu0
      %v1181 = vadd.f32 %v1132, %v1176
      %1182 = vst.msk [vmem:[#allocation2] sm:$0xff] %vm522, %v1181
      %1183 = vrot.lane.b32.xlu0 %v698, 104
      %v1184 = vpop.permute.xlu0 %1183
      %1185 = vrot.lane.b32.xlu0 %v699, 104
      %v1186 = vpop.permute.xlu0 %1185
      %v1188 = vsel %vm700, %v1184, 0
      %v1191 = vsel %vm700, %v1186, 0
      %1193 = vmatprep.subr.bf16.mxu0 0
      %1194 = vmatpush1.bf16.xpose.msra.mxu0 %v1191
      %1195 = vmatprep.subr.bf16.mxu0 0
      %1196 = vmatpush1.bf16.xpose.msra.mxu0 0
      %1197 = vmatprep.subr.bf16.mxu0 0
      %1198 = vmatpush1.bf16.xpose.msra.mxu0 0
      %1199 = vmatprep.subr.bf16.mxu0 0
      %1200 = vmatpush1.bf16.xpose.msra.mxu0 0
      %1201 = vmatprep.subr.bf16.mxu0 0
      %1202 = vmatpush1.bf16.xpose.msra.mxu0 0
      %1203 = vmatprep.subr.bf16.mxu0 0
      %1204 = vmatpush1.bf16.xpose.msra.mxu0 0
      %1205 = vmatprep.subr.bf16.mxu0 0
      %1206 = vmatpush1.bf16.xpose.msra.mxu0 0
      %1207 = vmatprep.subr.bf16.mxu0 0
      %1208 = vmatpush1.bf16.xpose.msra.mxu0 0
      %1209 = vmatprep.subr.bf16.mxu0 0
      %1210 = vmatpush1.bf16.xpose.msra.mxu0 0
      %1211 = vmatprep.subr.bf16.mxu0 0
      %1212 = vmatpush1.bf16.xpose.msra.mxu0 0
      %1213 = vmatprep.subr.bf16.mxu0 0
      %1214 = vmatpush1.bf16.xpose.msra.mxu0 0
      %1215 = vmatprep.subr.bf16.mxu0 0
      %1216 = vmatpush1.bf16.xpose.msra.mxu0 0
      %1217 = vmatprep.subr.bf16.mxu0 0
      %1218 = vmatpush1.bf16.xpose.msra.mxu0 0
      %1219 = vmatprep.subr.bf16.mxu0 0
      %1220 = vmatpush1.bf16.xpose.msra.mxu0 0
      %1221 = vmatprep.subr.bf16.mxu0 0
      %1222 = vmatpush1.bf16.xpose.msra.mxu0 0
      %1223 = vmatprep.subr.bf16.mxu0 0
      %1224 = vmatpush1.bf16.xpose.msra.mxu0 0
      %1225 = vmatprep.mubr.bf16.mxu0 0
      %1226 = vmatmul.mubr.bf16.gmra.mrb[0].mxu0 %v1188
      %v1227 = vpop.f32.mrb[0].mxu0
      %v1228 = vadd.f32 %v695, %v1227
      %v1229 = vpop.f32.mrb[0].mxu0
      %v1230 = vpop.f32.mrb[0].mxu0
      %v1231 = vpop.f32.mrb[0].mxu0
      %1232 = vdwg.mxu0
      %v1233 = vsel %vm700, %v1228, -inf
      %1234 = vmax.xlane.f32.xlu0 %v1233
      %v1235 = vpop.xlane.xlu0 %1234
      %v1236 = vsub.f32 %v1228, %v1235
      %v1237 = vmul.f32 %v1236, 1.442695
      %v1238 = vpow.pop %v1237
      %v1239 = vsel %vm700, %v1238, 0.0
      %1240 = vadd.xlane.f32.xlu0 %v1239
      %v1241 = vpop.xlane.xlu0 %1240
      %v1242 = vrcp.pop %v1241
      %v1243 = vmul.f32 %v1238, %v1242
      %v1244 = vpack.c.bf16 %v1243, %v1243
      %1245 = vrot.lane.b32.xlu0 %v699, 72
      %v1246 = vpop.permute.xlu0 %1245
      %v1248 = vsel %vm700, %v1244, 0
      %v1251 = vsel %vm765, %v1246, 0
      %1253 = vmatprep.subr.bf16.mxu0 0
      %1254 = vmatpush1.bf16.msra.mxu0 %v1251
      %1255 = vmatprep.subr.bf16.mxu0 0
      %1256 = vmatpush1.bf16.msra.mxu0 0
      %1257 = vmatprep.subr.bf16.mxu0 0
      %1258 = vmatpush1.bf16.msra.mxu0 0
      %1259 = vmatprep.subr.bf16.mxu0 0
      %1260 = vmatpush1.bf16.msra.mxu0 0
      %1261 = vmatprep.subr.bf16.mxu0 0
      %1262 = vmatpush1.bf16.msra.mxu0 0
      %1263 = vmatprep.subr.bf16.mxu0 0
      %1264 = vmatpush1.bf16.msra.mxu0 0
      %1265 = vmatprep.subr.bf16.mxu0 0
      %1266 = vmatpush1.bf16.msra.mxu0 0
      %1267 = vmatprep.subr.bf16.mxu0 0
      %1268 = vmatpush1.bf16.msra.mxu0 0
      %1269 = vmatprep.subr.bf16.mxu0 0
      %1270 = vmatpush1.bf16.msra.mxu0 0
      %1271 = vmatprep.subr.bf16.mxu0 0
      %1272 = vmatpush1.bf16.msra.mxu0 0
      %1273 = vmatprep.subr.bf16.mxu0 0
      %1274 = vmatpush1.bf16.msra.mxu0 0
      %1275 = vmatprep.subr.bf16.mxu0 0
      %1276 = vmatpush1.bf16.msra.mxu0 0
      %1277 = vmatprep.subr.bf16.mxu0 0
      %1278 = vmatpush1.bf16.msra.mxu0 0
      %1279 = vmatprep.subr.bf16.mxu0 0
      %1280 = vmatpush1.bf16.msra.mxu0 0
      %1281 = vmatprep.subr.bf16.mxu0 0
      %1282 = vmatpush1.bf16.msra.mxu0 0
      %1283 = vmatprep.subr.bf16.mxu0 0
      %1284 = vmatpush1.bf16.msra.mxu0 0
      %1285 = vmatprep.mubr.bf16.mxu0 0
      %1286 = vmatmul.mubr.bf16.gmra.mrb[0].mxu0 %v1248
      %v1287 = vpop.f32.mrb[0].mxu0
      %v1288 = vadd.f32 0.0, %v1287
      %v1289 = vpop.f32.mrb[0].mxu0
      %v1290 = vpop.f32.mrb[0].mxu0
      %v1291 = vpop.f32.mrb[0].mxu0
      %1292 = vdwg.mxu0
      %v1293 = vld [vmem:[#allocation2] sm:$0xff]
      %v1294 = vpack.c.bf16 %v1288, %v1288
      %v1295 = vld [vmem:[%s6 + $0xc] sm:$0xf]
      %v1297 = vsel %vm700, %v1294, 0
      %v1300 = vsel %vm765, %v1295, 0
      %1302 = vmatprep.subr.bf16.mxu0 0
      %1303 = vmatpush1.bf16.msra.mxu0 %v1300
      %1304 = vmatprep.subr.bf16.mxu0 0
      %1305 = vmatpush1.bf16.msra.mxu0 0
      %1306 = vmatprep.subr.bf16.mxu0 0
      %1307 = vmatpush1.bf16.msra.mxu0 0
      %1308 = vmatprep.subr.bf16.mxu0 0
      %1309 = vmatpush1.bf16.msra.mxu0 0
      %1310 = vmatprep.subr.bf16.mxu0 0
      %1311 = vmatpush1.bf16.msra.mxu0 0
      %1312 = vmatprep.subr.bf16.mxu0 0
      %1313 = vmatpush1.bf16.msra.mxu0 0
      %1314 = vmatprep.subr.bf16.mxu0 0
      %1315 = vmatpush1.bf16.msra.mxu0 0
      %1316 = vmatprep.subr.bf16.mxu0 0
      %1317 = vmatpush1.bf16.msra.mxu0 0
      %1318 = vmatprep.subr.bf16.mxu0 0
      %1319 = vmatpush1.bf16.msra.mxu0 0
      %1320 = vmatprep.subr.bf16.mxu0 0
      %1321 = vmatpush1.bf16.msra.mxu0 0
      %1322 = vmatprep.subr.bf16.mxu0 0
      %1323 = vmatpush1.bf16.msra.mxu0 0
      %1324 = vmatprep.subr.bf16.mxu0 0
      %1325 = vmatpush1.bf16.msra.mxu0 0
      %1326 = vmatprep.subr.bf16.mxu0 0
      %1327 = vmatpush1.bf16.msra.mxu0 0
      %1328 = vmatprep.subr.bf16.mxu0 0
      %1329 = vmatpush1.bf16.msra.mxu0 0
      %1330 = vmatprep.subr.bf16.mxu0 0
      %1331 = vmatpush1.bf16.msra.mxu0 0
      %1332 = vmatprep.subr.bf16.mxu0 0
      %1333 = vmatpush1.bf16.msra.mxu0 0
      %1334 = vmatprep.mubr.bf16.mxu0 0
      %1335 = vmatmul.mubr.bf16.gmra.mrb[0].mxu0 %v1297
      %v1336 = vpop.f32.mrb[0].mxu0
      %v1337 = vadd.f32 0.0, %v1336
      %v1338 = vpop.f32.mrb[0].mxu0
      %v1339 = vpop.f32.mrb[0].mxu0
      %v1340 = vpop.f32.mrb[0].mxu0
      %1341 = vdwg.mxu0
      %v1342 = vadd.f32 %v1293, %v1337
      %1343 = vst.msk [vmem:[#allocation2] sm:$0xff] %vm522, %v1342
      %v1344 = vld [vmem:[#allocation2] sm:$0xff]
      %v1346 = vlaneseq
      %v1347 = vshrl.u32 %v1346, 7
      %v1348 = vsub.s32 0, %v1347
      %v1349 = vrot.slane %v696, %v1348
      %v1351 = vadd.f32 %v1344, %v1349
      %v1352 = vadd.f32 %v627, %v1351
      %v1353 = vld [vmem:[%s8] sm:$0x1]
      %v1354 = vld [vmem:[%s9] sm:$0x1]
      %v1355 = vsel %vm522, %v1352, 0.0
      %1356 = vadd.xlane.f32.xlu0 %v1355
      %v1357 = vpop.xlane.xlu0 %1356
      %v1358 = vmul.f32 %v1357, %v526
      %v1359 = vsub.f32 %v1352, %v1358
      %v1360 = vmul.f32 %v1359, %v1359
      %v1361 = vsel %vm522, %v1360, 0.0
      %1362 = vadd.xlane.f32.xlu0 %v1361
      %v1363 = vpop.xlane.xlu0 %1362
      %v1364 = vmul.f32 %v1363, %v526
      %v1365 = vadd.f32 %v1364, 1e-05
      %v1366 = vrsqrt.pop %v1365
      %v1367 = vmul.f32 %v1359, %v1366
      %v1369 = vlaneseq
      %v1370 = vshrl.u32 %v1369, 7
      %v1371 = vsub.s32 0, %v1370
      %v1372 = vrot.slane %v1353, %v1371
      %v1374 = vmul.f32 %v1367, %v1372
      %v1376 = vlaneseq
      %v1377 = vshrl.u32 %v1376, 7
      %v1378 = vsub.s32 0, %v1377
      %v1379 = vrot.slane %v1354, %v1378
      %v1381 = vadd.f32 %v1374, %v1379
      %v1382 = vpack.c.bf16 %v1381, %v1381
      %v1383 = vld [vmem:[%s10] sm:$0xf]
      %v1384 = vld [vmem:[%s10 + $0x4] sm:$0xf]
      %v1385 = vld [vmem:[%s10 + $0x8] sm:$0xf]
      %v1386 = vld [vmem:[%s10 + $0xc] sm:$0xf]
      %v1387 = vld [vmem:[%s11] sm:$0x1]
      %v1389 = vlaneseq
      %v1390 = vshrl.u32 %v1389, 7
      %v1391 = vsub.s32 0, %v1390
      %v1392 = vrot.slane %v1387, %v1391
      %v1398 = vunpack.c.l.b16 %v1383
      %v1399 = vunpack.c.l.b16 %v1384
      %v1400 = vunpack.c.l.b16 %v1385
      %v1401 = vunpack.c.l.b16 %v1386
      %v1402 = vpack.c.b16 %v1399, %v1398
      %v1403 = vpack.c.b16 %v1401, %v1400
      %v1407 = vsel %vm522, %v1382, 0
      %1409 = vmatprep.subr.bf16.mxu0 0
      %1410 = vmatpush1.bf16.msra.mxu0 %v1402
      %1411 = vmatprep.subr.bf16.mxu0 0
      %1412 = vmatpush1.bf16.msra.mxu0 %v1403
      %1413 = vmatprep.subr.bf16.mxu0 0
      %1414 = vmatpush1.bf16.msra.mxu0 0
      %1415 = vmatprep.subr.bf16.mxu0 0
      %1416 = vmatpush1.bf16.msra.mxu0 0
      %1417 = vmatprep.subr.bf16.mxu0 0
      %1418 = vmatpush1.bf16.msra.mxu0 0
      %1419 = vmatprep.subr.bf16.mxu0 0
      %1420 = vmatpush1.bf16.msra.mxu0 0
      %1421 = vmatprep.subr.bf16.mxu0 0
      %1422 = vmatpush1.bf16.msra.mxu0 0
      %1423 = vmatprep.subr.bf16.mxu0 0
      %1424 = vmatpush1.bf16.msra.mxu0 0
      %1425 = vmatprep.subr.bf16.mxu0 0
      %1426 = vmatpush1.bf16.msra.mxu0 0
      %1427 = vmatprep.subr.bf16.mxu0 0
      %1428 = vmatpush1.bf16.msra.mxu0 0
      %1429 = vmatprep.subr.bf16.mxu0 0
      %1430 = vmatpush1.bf16.msra.mxu0 0
      %1431 = vmatprep.subr.bf16.mxu0 0
      %1432 = vmatpush1.bf16.msra.mxu0 0
      %1433 = vmatprep.subr.bf16.mxu0 0
      %1434 = vmatpush1.bf16.msra.mxu0 0
      %1435 = vmatprep.subr.bf16.mxu0 0
      %1436 = vmatpush1.bf16.msra.mxu0 0
      %1437 = vmatprep.subr.bf16.mxu0 0
      %1438 = vmatpush1.bf16.msra.mxu0 0
      %1439 = vmatprep.subr.bf16.mxu0 0
      %1440 = vmatpush1.bf16.msra.mxu0 0
      %1441 = vmatprep.mubr.bf16.mxu0 0
      %1442 = vmatmul.mubr.bf16.gmra.mrb[0].mxu0 %v1407
      %v1443 = vpop.f32.mrb[0].mxu0
      %v1444 = vadd.f32 %v1392, %v1443
      %v1445 = vpop.f32.mrb[0].mxu0
      %v1446 = vpop.f32.mrb[0].mxu0
      %v1447 = vpop.f32.mrb[0].mxu0
      %1448 = vdwg.mxu0
      %v1449 = vmax.f32 %v1444, 0.0
      %v1450 = vpack.c.bf16 %v1449, %v1449
      %v1451 = vld [vmem:[%s12] sm:$0xf]
      %v1452 = vld [vmem:[%s12 + $0x4] sm:$0xf]
      %v1453 = vld [vmem:[%s12 + $0x8] sm:$0xf]
      %v1454 = vld [vmem:[%s12 + $0xc] sm:$0xf]
      %v1455 = vld [vmem:[%s12 + $0x10] sm:$0xf]
      %v1456 = vld [vmem:[%s12 + $0x14] sm:$0xf]
      %v1457 = vld [vmem:[%s12 + $0x18] sm:$0xf]
      %v1458 = vld [vmem:[%s12 + $0x1c] sm:$0xf]
      %v1459 = vld [vmem:[%s13] sm:$0x1]
      %v1461 = vlaneseq
      %v1462 = vshrl.u32 %v1461, 7
      %v1463 = vsub.s32 0, %v1462
      %v1464 = vrot.slane %v1459, %v1463
      %v1474 = vunpack.c.l.b16 %v1451
      %v1475 = vunpack.c.l.b16 %v1452
      %v1476 = vunpack.c.l.b16 %v1453
      %v1477 = vunpack.c.l.b16 %v1454
      %v1478 = vunpack.c.l.b16 %v1455
      %v1479 = vunpack.c.l.b16 %v1456
      %v1480 = vunpack.c.l.b16 %v1457
      %v1481 = vunpack.c.l.b16 %v1458
      %v1482 = vpack.c.b16 %v1475, %v1474
      %v1483 = vpack.c.b16 %v1477, %v1476
      %v1484 = vpack.c.b16 %v1479, %v1478
      %v1485 = vpack.c.b16 %v1481, %v1480
      %vm1490 = vcmask 523264
      %v1492 = vsel %vm1490, %v1450, 0
      %1494 = vmatprep.subr.bf16.mxu0 0
      %1495 = vmatpush1.bf16.msra.mxu0 %v1482
      %1496 = vmatprep.subr.bf16.mxu0 0
      %1497 = vmatpush1.bf16.msra.mxu0 %v1483
      %1498 = vmatprep.subr.bf16.mxu0 0
      %1499 = vmatpush1.bf16.msra.mxu0 %v1484
      %1500 = vmatprep.subr.bf16.mxu0 0
      %1501 = vmatpush1.bf16.msra.mxu0 %v1485
      %1502 = vmatprep.subr.bf16.mxu0 0
      %1503 = vmatpush1.bf16.msra.mxu0 0
      %1504 = vmatprep.subr.bf16.mxu0 0
      %1505 = vmatpush1.bf16.msra.mxu0 0
      %1506 = vmatprep.subr.bf16.mxu0 0
      %1507 = vmatpush1.bf16.msra.mxu0 0
      %1508 = vmatprep.subr.bf16.mxu0 0
      %1509 = vmatpush1.bf16.msra.mxu0 0
      %1510 = vmatprep.subr.bf16.mxu0 0
      %1511 = vmatpush1.bf16.msra.mxu0 0
      %1512 = vmatprep.subr.bf16.mxu0 0
      %1513 = vmatpush1.bf16.msra.mxu0 0
      %1514 = vmatprep.subr.bf16.mxu0 0
      %1515 = vmatpush1.bf16.msra.mxu0 0
      %1516 = vmatprep.subr.bf16.mxu0 0
      %1517 = vmatpush1.bf16.msra.mxu0 0
      %1518 = vmatprep.subr.bf16.mxu0 0
      %1519 = vmatpush1.bf16.msra.mxu0 0
      %1520 = vmatprep.subr.bf16.mxu0 0
      %1521 = vmatpush1.bf16.msra.mxu0 0
      %1522 = vmatprep.subr.bf16.mxu0 0
      %1523 = vmatpush1.bf16.msra.mxu0 0
      %1524 = vmatprep.subr.bf16.mxu0 0
      %1525 = vmatpush1.bf16.msra.mxu0 0
      %1526 = vmatprep.mubr.bf16.mxu0 0
      %1527 = vmatmul.mubr.bf16.gmra.mrb[0].mxu0 %v1492
      %v1528 = vpop.f32.mrb[0].mxu0
      %v1529 = vadd.f32 %v1464, %v1528
      %v1530 = vpop.f32.mrb[0].mxu0
      %v1531 = vpop.f32.mrb[0].mxu0
      %v1532 = vpop.f32.mrb[0].mxu0
      %1533 = vdwg.mxu0
      %v1534 = vadd.f32 %v1381, %v1529
      %v1535 = vld [vmem:[%s14] sm:$0x1]
      %v1536 = vld [vmem:[%s15] sm:$0x1]
      %v1537 = vsel %vm522, %v1534, 0.0
      %1538 = vadd.xlane.f32.xlu0 %v1537
      %v1539 = vpop.xlane.xlu0 %1538
      %v1540 = vmul.f32 %v1539, %v526
      %v1541 = vsub.f32 %v1534, %v1540
      %v1542 = vmul.f32 %v1541, %v1541
      %v1543 = vsel %vm522, %v1542, 0.0
      %1544 = vadd.xlane.f32.xlu0 %v1543
      %v1545 = vpop.xlane.xlu0 %1544
      %v1546 = vmul.f32 %v1545, %v526
      %v1547 = vadd.f32 %v1546, 1e-05
      %v1548 = vrsqrt.pop %v1547
      %v1549 = vmul.f32 %v1541, %v1548
      %v1551 = vlaneseq
      %v1552 = vshrl.u32 %v1551, 7
      %v1553 = vsub.s32 0, %v1552
      %v1554 = vrot.slane %v1535, %v1553
      %v1556 = vmul.f32 %v1549, %v1554
      %v1558 = vlaneseq
      %v1559 = vshrl.u32 %v1558, 7
      %v1560 = vsub.s32 0, %v1559
      %v1561 = vrot.slane %v1536, %v1560
      %v1563 = vadd.f32 %v1556, %v1561
      %1564 = vst.msk [vmem:[%s516] sm:$0xff] %vm522, %v1563
      %p1565 = scmp.lt.s32.totalorder %s37, 1
      %s1566 = scalar_select %p1565, %s37, 1
      %p1567 = scmp.lt.s32.totalorder %s38, 0
      %s1568 = scalar_select %p1567, %s38, 0
      %s1569 = sadd.s32 %s1568, %s1566
      %s1570 = smul.addr %s1569, 8
      %s1571 = scalar_lea.vmem %s16, %s1570
      // Predicated region
      $region81: #{encoder_decoder_forward.10} parent=79 // pred_check
        %p1572 = pneg %p385
      $region82: #{encoder_decoder_forward.10} parent=79 // pred_check_branch
        %1574 = sbr.rel (%p1572) target = $region84
      $region83: #{encoder_decoder_forward.10} parent=79 // pred_region
        _
      $region84: #{encoder_decoder_forward.10} parent=79 // pred_fallthru
        _
    $region80: #{encoder_decoder_forward.10} parent=5 // pred_fallthru
      _
    %p1575 = scmp.le.s32.totalorder 2, %s28
    // Predicated region
    $region85: #{encoder_decoder_forward.10} parent=5 // pred_check
      %p1576 = pneg %p1575
    $region86: #{encoder_decoder_forward.10} parent=5 // pred_check_branch
      %1578 = sbr.rel (%p1576) target = $region88
    $region87: #{encoder_decoder_forward.10} parent=5 // pred_region
      %s1579 = ssub.s32 %s28, 2
      // Predicated region
      $region89: #{encoder_decoder_forward.10} parent=87 // pred_check
        %p1580 = pneg %p391
      $region90: #{encoder_decoder_forward.10} parent=87 // pred_check_branch
        %1582 = sbr.rel (%p1580) target = $region92
      $region91: #{encoder_decoder_forward.10} parent=87 // pred_region
        %p1583 = scmp.lt.s32.totalorder %s39, 1
        %s1584 = scalar_select %p1583, %s39, 1
        %p1585 = scmp.lt.s32.totalorder %s40, 0
        %s1586 = scalar_select %p1585, %s40, 0
        %s1587 = sadd.s32 %s1586, %s1584
        %s1588 = smul.addr %s1587, 8
        %s1589 = scalar_lea.vmem %s16, %s1588
      $region92: #{encoder_decoder_forward.10} parent=87 // pred_fallthru
        _
    $region88: #{encoder_decoder_forward.10} parent=5 // pred_fallthru
      _
  $region6: #{encoder_decoder_forward.10} parent=0 // loop_footer
    %s32 = sadd.s32 1, %s28
  $region7: #{encoder_decoder_forward.10} parent=0 // loop_footer_branch
    %27 = sbr.rel target = $region3
  $region8: #{encoder_decoder_forward.10} parent=0 // loop_exit
    _

// kernel: encoder_decoder_forward.11
$region0: #{encoder_decoder_forward.11}
  #allocation0 [shape = 'u32[]', space=smem, size = 0x4, offset = 0x4, fixed_abs, tag = 'smem constant byte address 0x4 - core index']
  #allocation1 [shape = 'u32[144,128]{1,0:T(1,128)}', space=vmem, size = 0x12000, scoped, tag = 'internal scratch']
  #allocation2 [shape = 'f32[8,32]{1,0:T(8,128)}', space=vmem, size = 0x1000, scoped, tag = 'scratch operand']
  #allocation3 [shape = 's32[1]{0}', space=sflag, size = 0x4, scoped, tag = 'scoped memory for encoder_decoder_forward.11']
  #allocation4 [shape = 'u8[512]{0}', space=smem, size = 0x200, scoped, tag = 'prefetched SMEM operand 0']
  #allocation5 [shape = 'u8[512]{0}', space=smem, size = 0x200, scoped, tag = 'prefetched SMEM operand 1']
  %s0 = inlined_call_operand.vmem [shape: s32[2], index: 0, kind: input, shape index: {}]
  %s1 = inlined_call_operand.vmem [shape: s32[2], index: 1, kind: input, shape index: {}]
  %s2 = inlined_call_operand.vmem [shape: f32[2,8,32], index: 2, kind: input, shape index: {}]
  %s3 = inlined_call_operand.vmem [shape: f32[2,16,32], index: 3, kind: input, shape index: {}]
  %s4 = inlined_call_operand.vmem [shape: f32[1,32], index: 4, kind: input, shape index: {}]
  %s5 = inlined_call_operand.vmem [shape: f32[1,32], index: 5, kind: input, shape index: {}]
  %s6 = inlined_call_operand.vmem [shape: bf16[32,32], index: 6, kind: input, shape index: {}]
  %s7 = inlined_call_operand.vmem [shape: bf16[32,64], index: 7, kind: input, shape index: {}]
  %s8 = inlined_call_operand.vmem [shape: bf16[32,32], index: 8, kind: input, shape index: {}]
  %s9 = inlined_call_operand.vmem [shape: f32[1,32], index: 9, kind: input, shape index: {}]
  %s10 = inlined_call_operand.vmem [shape: f32[1,32], index: 10, kind: input, shape index: {}]
  %s11 = inlined_call_operand.vmem [shape: f32[1,32], index: 11, kind: input, shape index: {}]
  %s12 = inlined_call_operand.vmem [shape: bf16[32,32], index: 12, kind: input, shape index: {}]
  %s13 = inlined_call_operand.vmem [shape: bf16[32,64], index: 13, kind: input, shape index: {}]
  %s14 = inlined_call_operand.vmem [shape: bf16[32,32], index: 14, kind: input, shape index: {}]
  %s15 = inlined_call_operand.vmem [shape: f32[1,32], index: 15, kind: input, shape index: {}]
  %s16 = inlined_call_operand.vmem [shape: f32[1,32], index: 16, kind: input, shape index: {}]
  %s17 = inlined_call_operand.vmem [shape: f32[1,32], index: 17, kind: input, shape index: {}]
  %s18 = inlined_call_operand.vmem [shape: bf16[32,64], index: 18, kind: input, shape index: {}]
  %s19 = inlined_call_operand.vmem [shape: f32[1,64], index: 19, kind: input, shape index: {}]
  %s20 = inlined_call_operand.vmem [shape: bf16[64,32], index: 20, kind: input, shape index: {}]
  %s21 = inlined_call_operand.vmem [shape: f32[1,32], index: 21, kind: input, shape index: {}]
  %s22 = inlined_call_operand.vmem [shape: f32[2,8,32], index: 22, kind: output, shape index: {}]
  %s23 = sld [smem:[#allocation0]]
  $region113: #{encoder_decoder_forward.11} parent=0
    _
  %s25 = ssub.s32 1, %s23
  %s26 = scalar_select 0, %s25, %s23
  %s27 = sshll.u32 %s0, 4
  %s28 = int_to_ptr.vmem [resolvable:$true] %s27
  %30 = dma.vmem_to_smem %s28, 16, [#allocation4], [#allocation3]
  %s31 = sshll.u32 %s1, 4
  %s32 = int_to_ptr.vmem [resolvable:$true] %s31
  %34 = dma.vmem_to_smem %s32, 16, [#allocation5], [#allocation3]
  %35 = dma.done [#allocation3], 32
  %36 = sfence
  loop: start=0, step=1, limit=4
  $region2: #{encoder_decoder_forward.11} parent=0 // loop_pre_header
    _
  $region3: #{encoder_decoder_forward.11} parent=0 // loop_header
    %s38 = sphi 0, %s42
    %p39 = scmp.ge.s32.totalorder %s38, 4
    %s45 = sphi 0, %s57
    %s46 = sphi 0, %s53
    %s47 = sphi 0, %s45
    %s48 = sphi 0, %s46
    %s49 = sphi 0, %s47
    %s50 = sphi 0, %s48
    %s60 = sphi 0, %s62
    %s63 = sphi 0, %s60
    %s64 = sphi 0, %s63
    %s80 = sphi 0, %s64
    %s86 = sphi 0, %s88
    %s89 = sphi 0, %s86
    %s90 = sphi 0, %s89
    %s106 = sphi 0, %s90
    %s110 = sphi 0, %s110
    %s112 = sphi 0, %s110
    %s113 = sphi 0, %s112
    %s127 = sphi 0, %s113
    %s131 = sphi 0, %s131
    %s133 = sphi 0, %s131
    %s134 = sphi 0, %s133
    %s148 = sphi 0, %s134
    %s152 = sphi 0, %s152
    %s154 = sphi 0, %s152
    %s155 = sphi 0, %s154
    %s169 = sphi 0, %s155
    %s173 = sphi 0, %s173
    %s175 = sphi 0, %s173
    %s176 = sphi 0, %s175
    %s190 = sphi 0, %s176
    %s194 = sphi 0, %s194
    %s196 = sphi 0, %s194
    %s197 = sphi 0, %s196
    %s211 = sphi 0, %s197
    %s215 = sphi 0, %s215
    %s217 = sphi 0, %s215
    %s218 = sphi 0, %s217
    %s232 = sphi 0, %s218
    %s236 = sphi 0, %s236
    %s238 = sphi 0, %s236
    %s239 = sphi 0, %s238
    %s253 = sphi 0, %s239
    %s257 = sphi 0, %s257
    %s259 = sphi 0, %s257
    %s260 = sphi 0, %s259
    %s274 = sphi 0, %s260
    %s278 = sphi 0, %s278
    %s280 = sphi 0, %s278
    %s281 = sphi 0, %s280
    %s295 = sphi 0, %s281
    %s299 = sphi 0, %s299
    %s301 = sphi 0, %s299
    %s302 = sphi 0, %s301
    %s316 = sphi 0, %s302
    %s320 = sphi 0, %s320
    %s322 = sphi 0, %s320
    %s323 = sphi 0, %s322
    %s337 = sphi 0, %s323
    %s341 = sphi 0, %s341
    %s343 = sphi 0, %s341
    %s344 = sphi 0, %s343
    %s358 = sphi 0, %s344
    %s362 = sphi 0, %s362
    %s364 = sphi 0, %s362
    %s365 = sphi 0, %s364
    %s379 = sphi 0, %s365
    %s383 = sphi 0, %s383
    %s385 = sphi 0, %s383
    %s386 = sphi 0, %s385
    %s400 = sphi 0, %s386
    %s404 = sphi 0, %s404
    %s406 = sphi 0, %s404
    %s407 = sphi 0, %s406
    %s421 = sphi 0, %s407
    %s425 = sphi 0, %s425
    %s427 = sphi 0, %s425
    %s428 = sphi 0, %s427
    %s442 = sphi 0, %s428
    %s446 = sphi 0, %s446
    %s448 = sphi 0, %s446
    %s449 = sphi 0, %s448
    %s463 = sphi 0, %s449
    %s467 = sphi 0, %s467
    %s469 = sphi 0, %s467
    %s470 = sphi 0, %s469
    %s484 = sphi 0, %s470
    %s492 = sphi 0, %s494
    %s495 = sphi 0, %s492
    %s496 = sphi 0, %s495
    %s512 = sphi 0, %s496
  $region4: #{encoder_decoder_forward.11} parent=0 // loop_header_branch
    %41 = sbr.rel (%p39) target = $region8
  $region5: #{encoder_decoder_forward.11} parent=0 // loop_body
    %s43 = ssub.s32 %s38, 1
    %s44 = ssub.s32 %s38, 2
    %s51 = sadd.s32 1, %s46
    %p52 = scmp.ge.s32.totalorder %s51, 1
    %s53 = scalar_select %p52, 0, %s51
    %s54 = sadd.s32 1, %s45
    %s55 = scalar_select %p52, %s54, %s45
    %p56 = scmp.ge.s32.totalorder %s55, 2
    %s57 = scalar_select %p56, 0, %s55
    %s58 = ssub.s32 %s45, %s57
    %p59 = scmp.eq.s32.totalorder %s58, 0
    %s61 = sadd.s32 %s60, 1
    %s62 = scalar_select %p59, %s60, %s61
    %p65 = pneg %p59
    %p66 = scmp.eq.s32.totalorder %s38, 1
    %p67 = por %p65, %p66
    %p68 = scmp.ne.s32.totalorder %s60, %s63
    %p69 = scmp.eq.s32.totalorder %s38, 0
    %p70 = por %p68, %p69
    %p71 = scmp.ne.s32.totalorder %s60, %s63
    %p72 = scmp.eq.s32.totalorder %s43, 1
    %p73 = por %p71, %p72
    %p74 = scmp.ne.s32.totalorder %s63, %s64
    %p75 = scmp.eq.s32.totalorder %s43, 0
    %p76 = por %p74, %p75
    %p77 = scmp.ne.s32.totalorder %s63, %s64
    %p78 = scmp.eq.s32.totalorder %s44, 1
    %p79 = por %p77, %p78
    %p81 = scmp.ne.s32.totalorder %s64, %s80
    %p82 = scmp.eq.s32.totalorder %s44, 0
    %p83 = por %p81, %p82
    %s84 = ssub.s32 %s45, %s57
    %p85 = scmp.eq.s32.totalorder %s84, 0
    %s87 = sadd.s32 %s86, 1
    %s88 = scalar_select %p85, %s86, %s87
    %p91 = pneg %p85
    %p92 = scmp.eq.s32.totalorder %s38, 1
    %p93 = por %p91, %p92
    %p94 = scmp.ne.s32.totalorder %s86, %s89
    %p95 = scmp.eq.s32.totalorder %s38, 0
    %p96 = por %p94, %p95
    %p97 = scmp.ne.s32.totalorder %s86, %s89
    %p98 = scmp.eq.s32.totalorder %s43, 1
    %p99 = por %p97, %p98
    %p100 = scmp.ne.s32.totalorder %s89, %s90
    %p101 = scmp.eq.s32.totalorder %s43, 0
    %p102 = por %p100, %p101
    %p103 = scmp.ne.s32.totalorder %s89, %s90
    %p104 = scmp.eq.s32.totalorder %s44, 1
    %p105 = por %p103, %p104
    %p107 = scmp.ne.s32.totalorder %s90, %s106
    %p108 = scmp.eq.s32.totalorder %s44, 0
    %p109 = por %p107, %p108
    %s111 = sadd.s32 %s110, 1
    %p114 = scmp.eq.s32.totalorder %s38, 1
    %p115 = scmp.ne.s32.totalorder %s110, %s112
    %p116 = scmp.eq.s32.totalorder %s38, 0
    %p117 = por %p115, %p116
    %p118 = scmp.ne.s32.totalorder %s110, %s112
    %p119 = scmp.eq.s32.totalorder %s43, 1
    %p120 = por %p118, %p119
    %p121 = scmp.ne.s32.totalorder %s112, %s113
    %p122 = scmp.eq.s32.totalorder %s43, 0
    %p123 = por %p121, %p122
    %p124 = scmp.ne.s32.totalorder %s112, %s113
    %p125 = scmp.eq.s32.totalorder %s44, 1
    %p126 = por %p124, %p125
    %p128 = scmp.ne.s32.totalorder %s113, %s127
    %p129 = scmp.eq.s32.totalorder %s44, 0
    %p130 = por %p128, %p129
    %s132 = sadd.s32 %s131, 1
    %p135 = scmp.eq.s32.totalorder %s38, 1
    %p136 = scmp.ne.s32.totalorder %s131, %s133
    %p137 = scmp.eq.s32.totalorder %s38, 0
    %p138 = por %p136, %p137
    %p139 = scmp.ne.s32.totalorder %s131, %s133
    %p140 = scmp.eq.s32.totalorder %s43, 1
    %p141 = por %p139, %p140
    %p142 = scmp.ne.s32.totalorder %s133, %s134
    %p143 = scmp.eq.s32.totalorder %s43, 0
    %p144 = por %p142, %p143
    %p145 = scmp.ne.s32.totalorder %s133, %s134
    %p146 = scmp.eq.s32.totalorder %s44, 1
    %p147 = por %p145, %p146
    %p149 = scmp.ne.s32.totalorder %s134, %s148
    %p150 = scmp.eq.s32.totalorder %s44, 0
    %p151 = por %p149, %p150
    %s153 = sadd.s32 %s152, 1
    %p156 = scmp.eq.s32.totalorder %s38, 1
    %p157 = scmp.ne.s32.totalorder %s152, %s154
    %p158 = scmp.eq.s32.totalorder %s38, 0
    %p159 = por %p157, %p158
    %p160 = scmp.ne.s32.totalorder %s152, %s154
    %p161 = scmp.eq.s32.totalorder %s43, 1
    %p162 = por %p160, %p161
    %p163 = scmp.ne.s32.totalorder %s154, %s155
    %p164 = scmp.eq.s32.totalorder %s43, 0
    %p165 = por %p163, %p164
    %p166 = scmp.ne.s32.totalorder %s154, %s155
    %p167 = scmp.eq.s32.totalorder %s44, 1
    %p168 = por %p166, %p167
    %p170 = scmp.ne.s32.totalorder %s155, %s169
    %p171 = scmp.eq.s32.totalorder %s44, 0
    %p172 = por %p170, %p171
    %s174 = sadd.s32 %s173, 1
    %p177 = scmp.eq.s32.totalorder %s38, 1
    %p178 = scmp.ne.s32.totalorder %s173, %s175
    %p179 = scmp.eq.s32.totalorder %s38, 0
    %p180 = por %p178, %p179
    %p181 = scmp.ne.s32.totalorder %s173, %s175
    %p182 = scmp.eq.s32.totalorder %s43, 1
    %p183 = por %p181, %p182
    %p184 = scmp.ne.s32.totalorder %s175, %s176
    %p185 = scmp.eq.s32.totalorder %s43, 0
    %p186 = por %p184, %p185
    %p187 = scmp.ne.s32.totalorder %s175, %s176
    %p188 = scmp.eq.s32.totalorder %s44, 1
    %p189 = por %p187, %p188
    %p191 = scmp.ne.s32.totalorder %s176, %s190
    %p192 = scmp.eq.s32.totalorder %s44, 0
    %p193 = por %p191, %p192
    %s195 = sadd.s32 %s194, 1
    %p198 = scmp.eq.s32.totalorder %s38, 1
    %p199 = scmp.ne.s32.totalorder %s194, %s196
    %p200 = scmp.eq.s32.totalorder %s38, 0
    %p201 = por %p199, %p200
    %p202 = scmp.ne.s32.totalorder %s194, %s196
    %p203 = scmp.eq.s32.totalorder %s43, 1
    %p204 = por %p202, %p203
    %p205 = scmp.ne.s32.totalorder %s196, %s197
    %p206 = scmp.eq.s32.totalorder %s43, 0
    %p207 = por %p205, %p206
    %p208 = scmp.ne.s32.totalorder %s196, %s197
    %p209 = scmp.eq.s32.totalorder %s44, 1
    %p210 = por %p208, %p209
    %p212 = scmp.ne.s32.totalorder %s197, %s211
    %p213 = scmp.eq.s32.totalorder %s44, 0
    %p214 = por %p212, %p213
    %s216 = sadd.s32 %s215, 1
    %p219 = scmp.eq.s32.totalorder %s38, 1
    %p220 = scmp.ne.s32.totalorder %s215, %s217
    %p221 = scmp.eq.s32.totalorder %s38, 0
    %p222 = por %p220, %p221
    %p223 = scmp.ne.s32.totalorder %s215, %s217
    %p224 = scmp.eq.s32.totalorder %s43, 1
    %p225 = por %p223, %p224
    %p226 = scmp.ne.s32.totalorder %s217, %s218
    %p227 = scmp.eq.s32.totalorder %s43, 0
    %p228 = por %p226, %p227
    %p229 = scmp.ne.s32.totalorder %s217, %s218
    %p230 = scmp.eq.s32.totalorder %s44, 1
    %p231 = por %p229, %p230
    %p233 = scmp.ne.s32.totalorder %s218, %s232
    %p234 = scmp.eq.s32.totalorder %s44, 0
    %p235 = por %p233, %p234
    %s237 = sadd.s32 %s236, 1
    %p240 = scmp.eq.s32.totalorder %s38, 1
    %p241 = scmp.ne.s32.totalorder %s236, %s238
    %p242 = scmp.eq.s32.totalorder %s38, 0
    %p243 = por %p241, %p242
    %p244 = scmp.ne.s32.totalorder %s236, %s238
    %p245 = scmp.eq.s32.totalorder %s43, 1
    %p246 = por %p244, %p245
    %p247 = scmp.ne.s32.totalorder %s238, %s239
    %p248 = scmp.eq.s32.totalorder %s43, 0
    %p249 = por %p247, %p248
    %p250 = scmp.ne.s32.totalorder %s238, %s239
    %p251 = scmp.eq.s32.totalorder %s44, 1
    %p252 = por %p250, %p251
    %p254 = scmp.ne.s32.totalorder %s239, %s253
    %p255 = scmp.eq.s32.totalorder %s44, 0
    %p256 = por %p254, %p255
    %s258 = sadd.s32 %s257, 1
    %p261 = scmp.eq.s32.totalorder %s38, 1
    %p262 = scmp.ne.s32.totalorder %s257, %s259
    %p263 = scmp.eq.s32.totalorder %s38, 0
    %p264 = por %p262, %p263
    %p265 = scmp.ne.s32.totalorder %s257, %s259
    %p266 = scmp.eq.s32.totalorder %s43, 1
    %p267 = por %p265, %p266
    %p268 = scmp.ne.s32.totalorder %s259, %s260
    %p269 = scmp.eq.s32.totalorder %s43, 0
    %p270 = por %p268, %p269
    %p271 = scmp.ne.s32.totalorder %s259, %s260
    %p272 = scmp.eq.s32.totalorder %s44, 1
    %p273 = por %p271, %p272
    %p275 = scmp.ne.s32.totalorder %s260, %s274
    %p276 = scmp.eq.s32.totalorder %s44, 0
    %p277 = por %p275, %p276
    %s279 = sadd.s32 %s278, 1
    %p282 = scmp.eq.s32.totalorder %s38, 1
    %p283 = scmp.ne.s32.totalorder %s278, %s280
    %p284 = scmp.eq.s32.totalorder %s38, 0
    %p285 = por %p283, %p284
    %p286 = scmp.ne.s32.totalorder %s278, %s280
    %p287 = scmp.eq.s32.totalorder %s43, 1
    %p288 = por %p286, %p287
    %p289 = scmp.ne.s32.totalorder %s280, %s281
    %p290 = scmp.eq.s32.totalorder %s43, 0
    %p291 = por %p289, %p290
    %p292 = scmp.ne.s32.totalorder %s280, %s281
    %p293 = scmp.eq.s32.totalorder %s44, 1
    %p294 = por %p292, %p293
    %p296 = scmp.ne.s32.totalorder %s281, %s295
    %p297 = scmp.eq.s32.totalorder %s44, 0
    %p298 = por %p296, %p297
    %s300 = sadd.s32 %s299, 1
    %p303 = scmp.eq.s32.totalorder %s38, 1
    %p304 = scmp.ne.s32.totalorder %s299, %s301
    %p305 = scmp.eq.s32.totalorder %s38, 0
    %p306 = por %p304, %p305
    %p307 = scmp.ne.s32.totalorder %s299, %s301
    %p308 = scmp.eq.s32.totalorder %s43, 1
    %p309 = por %p307, %p308
    %p310 = scmp.ne.s32.totalorder %s301, %s302
    %p311 = scmp.eq.s32.totalorder %s43, 0
    %p312 = por %p310, %p311
    %p313 = scmp.ne.s32.totalorder %s301, %s302
    %p314 = scmp.eq.s32.totalorder %s44, 1
    %p315 = por %p313, %p314
    %p317 = scmp.ne.s32.totalorder %s302, %s316
    %p318 = scmp.eq.s32.totalorder %s44, 0
    %p319 = por %p317, %p318
    %s321 = sadd.s32 %s320, 1
    %p324 = scmp.eq.s32.totalorder %s38, 1
    %p325 = scmp.ne.s32.totalorder %s320, %s322
    %p326 = scmp.eq.s32.totalorder %s38, 0
    %p327 = por %p325, %p326
    %p328 = scmp.ne.s32.totalorder %s320, %s322
    %p329 = scmp.eq.s32.totalorder %s43, 1
    %p330 = por %p328, %p329
    %p331 = scmp.ne.s32.totalorder %s322, %s323
    %p332 = scmp.eq.s32.totalorder %s43, 0
    %p333 = por %p331, %p332
    %p334 = scmp.ne.s32.totalorder %s322, %s323
    %p335 = scmp.eq.s32.totalorder %s44, 1
    %p336 = por %p334, %p335
    %p338 = scmp.ne.s32.totalorder %s323, %s337
    %p339 = scmp.eq.s32.totalorder %s44, 0
    %p340 = por %p338, %p339
    %s342 = sadd.s32 %s341, 1
    %p345 = scmp.eq.s32.totalorder %s38, 1
    %p346 = scmp.ne.s32.totalorder %s341, %s343
    %p347 = scmp.eq.s32.totalorder %s38, 0
    %p348 = por %p346, %p347
    %p349 = scmp.ne.s32.totalorder %s341, %s343
    %p350 = scmp.eq.s32.totalorder %s43, 1
    %p351 = por %p349, %p350
    %p352 = scmp.ne.s32.totalorder %s343, %s344
    %p353 = scmp.eq.s32.totalorder %s43, 0
    %p354 = por %p352, %p353
    %p355 = scmp.ne.s32.totalorder %s343, %s344
    %p356 = scmp.eq.s32.totalorder %s44, 1
    %p357 = por %p355, %p356
    %p359 = scmp.ne.s32.totalorder %s344, %s358
    %p360 = scmp.eq.s32.totalorder %s44, 0
    %p361 = por %p359, %p360
    %s363 = sadd.s32 %s362, 1
    %p366 = scmp.eq.s32.totalorder %s38, 1
    %p367 = scmp.ne.s32.totalorder %s362, %s364
    %p368 = scmp.eq.s32.totalorder %s38, 0
    %p369 = por %p367, %p368
    %p370 = scmp.ne.s32.totalorder %s362, %s364
    %p371 = scmp.eq.s32.totalorder %s43, 1
    %p372 = por %p370, %p371
    %p373 = scmp.ne.s32.totalorder %s364, %s365
    %p374 = scmp.eq.s32.totalorder %s43, 0
    %p375 = por %p373, %p374
    %p376 = scmp.ne.s32.totalorder %s364, %s365
    %p377 = scmp.eq.s32.totalorder %s44, 1
    %p378 = por %p376, %p377
    %p380 = scmp.ne.s32.totalorder %s365, %s379
    %p381 = scmp.eq.s32.totalorder %s44, 0
    %p382 = por %p380, %p381
    %s384 = sadd.s32 %s383, 1
    %p387 = scmp.eq.s32.totalorder %s38, 1
    %p388 = scmp.ne.s32.totalorder %s383, %s385
    %p389 = scmp.eq.s32.totalorder %s38, 0
    %p390 = por %p388, %p389
    %p391 = scmp.ne.s32.totalorder %s383, %s385
    %p392 = scmp.eq.s32.totalorder %s43, 1
    %p393 = por %p391, %p392
    %p394 = scmp.ne.s32.totalorder %s385, %s386
    %p395 = scmp.eq.s32.totalorder %s43, 0
    %p396 = por %p394, %p395
    %p397 = scmp.ne.s32.totalorder %s385, %s386
    %p398 = scmp.eq.s32.totalorder %s44, 1
    %p399 = por %p397, %p398
    %p401 = scmp.ne.s32.totalorder %s386, %s400
    %p402 = scmp.eq.s32.totalorder %s44, 0
    %p403 = por %p401, %p402
    %s405 = sadd.s32 %s404, 1
    %p408 = scmp.eq.s32.totalorder %s38, 1
    %p409 = scmp.ne.s32.totalorder %s404, %s406
    %p410 = scmp.eq.s32.totalorder %s38, 0
    %p411 = por %p409, %p410
    %p412 = scmp.ne.s32.totalorder %s404, %s406
    %p413 = scmp.eq.s32.totalorder %s43, 1
    %p414 = por %p412, %p413
    %p415 = scmp.ne.s32.totalorder %s406, %s407
    %p416 = scmp.eq.s32.totalorder %s43, 0
    %p417 = por %p415, %p416
    %p418 = scmp.ne.s32.totalorder %s406, %s407
    %p419 = scmp.eq.s32.totalorder %s44, 1
    %p420 = por %p418, %p419
    %p422 = scmp.ne.s32.totalorder %s407, %s421
    %p423 = scmp.eq.s32.totalorder %s44, 0
    %p424 = por %p422, %p423
    %s426 = sadd.s32 %s425, 1
    %p429 = scmp.eq.s32.totalorder %s38, 1
    %p430 = scmp.ne.s32.totalorder %s425, %s427
    %p431 = scmp.eq.s32.totalorder %s38, 0
    %p432 = por %p430, %p431
    %p433 = scmp.ne.s32.totalorder %s425, %s427
    %p434 = scmp.eq.s32.totalorder %s43, 1
    %p435 = por %p433, %p434
    %p436 = scmp.ne.s32.totalorder %s427, %s428
    %p437 = scmp.eq.s32.totalorder %s43, 0
    %p438 = por %p436, %p437
    %p439 = scmp.ne.s32.totalorder %s427, %s428
    %p440 = scmp.eq.s32.totalorder %s44, 1
    %p441 = por %p439, %p440
    %p443 = scmp.ne.s32.totalorder %s428, %s442
    %p444 = scmp.eq.s32.totalorder %s44, 0
    %p445 = por %p443, %p444
    %s447 = sadd.s32 %s446, 1
    %p450 = scmp.eq.s32.totalorder %s38, 1
    %p451 = scmp.ne.s32.totalorder %s446, %s448
    %p452 = scmp.eq.s32.totalorder %s38, 0
    %p453 = por %p451, %p452
    %p454 = scmp.ne.s32.totalorder %s446, %s448
    %p455 = scmp.eq.s32.totalorder %s43, 1
    %p456 = por %p454, %p455
    %p457 = scmp.ne.s32.totalorder %s448, %s449
    %p458 = scmp.eq.s32.totalorder %s43, 0
    %p459 = por %p457, %p458
    %p460 = scmp.ne.s32.totalorder %s448, %s449
    %p461 = scmp.eq.s32.totalorder %s44, 1
    %p462 = por %p460, %p461
    %p464 = scmp.ne.s32.totalorder %s449, %s463
    %p465 = scmp.eq.s32.totalorder %s44, 0
    %p466 = por %p464, %p465
    %s468 = sadd.s32 %s467, 1
    %p471 = scmp.eq.s32.totalorder %s38, 1
    %p472 = scmp.ne.s32.totalorder %s467, %s469
    %p473 = scmp.eq.s32.totalorder %s38, 0
    %p474 = por %p472, %p473
    %p475 = scmp.ne.s32.totalorder %s467, %s469
    %p476 = scmp.eq.s32.totalorder %s43, 1
    %p477 = por %p475, %p476
    %p478 = scmp.ne.s32.totalorder %s469, %s470
    %p479 = scmp.eq.s32.totalorder %s43, 0
    %p480 = por %p478, %p479
    %p481 = scmp.ne.s32.totalorder %s469, %s470
    %p482 = scmp.eq.s32.totalorder %s44, 1
    %p483 = por %p481, %p482
    %p485 = scmp.ne.s32.totalorder %s470, %s484
    %p486 = scmp.eq.s32.totalorder %s44, 0
    %p487 = por %p485, %p486
    %s488 = ssub.s32 %s45, %s57
    %s489 = ssub.s32 %s46, %s53
    %s490 = sor.u32 %s488, %s489
    %p491 = scmp.eq.s32.totalorder %s490, 0
    %s493 = sadd.s32 %s492, 1
    %s494 = scalar_select %p491, %s492, %s493
    %p497 = pneg %p491
    %p498 = scmp.eq.s32.totalorder %s38, 1
    %p499 = por %p497, %p498
    %p500 = scmp.ne.s32.totalorder %s492, %s495
    %p501 = scmp.eq.s32.totalorder %s38, 0
    %p502 = por %p500, %p501
    %p503 = scmp.ne.s32.totalorder %s492, %s495
    %p504 = scmp.eq.s32.totalorder %s43, 1
    %p505 = por %p503, %p504
    %p506 = scmp.ne.s32.totalorder %s495, %s496
    %p507 = scmp.eq.s32.totalorder %s43, 0
    %p508 = por %p506, %p507
    %p509 = scmp.ne.s32.totalorder %s495, %s496
    %p510 = scmp.eq.s32.totalorder %s44, 1
    %p511 = por %p509, %p510
    %p513 = scmp.ne.s32.totalorder %s496, %s512
    %p514 = scmp.eq.s32.totalorder %s44, 0
    %p515 = por %p513, %p514
    %p516 = scmp.le.s32.totalorder 1, %s38
    %p517 = scmp.lt.s32.totalorder %s38, 3
    %p518 = pnand %p516, %p517
    %p519 = pneg %p518
    // Predicated region
    $region9: #{encoder_decoder_forward.11} parent=5 // pred_check
      _
    $region10: #{encoder_decoder_forward.11} parent=5 // pred_check_branch
      %521 = sbr.rel (%p518) target = $region12
    $region11: #{encoder_decoder_forward.11} parent=5 // pred_region
      %s522 = ssub.s32 %s38, 1
      // Predicated region
      $region13: #{encoder_decoder_forward.11} parent=11 // pred_check
        %p523 = pneg %p123
      $region14: #{encoder_decoder_forward.11} parent=11 // pred_check_branch
        %525 = sbr.rel (%p523) target = $region16
      $region15: #{encoder_decoder_forward.11} parent=11 // pred_region
        _
      $region16: #{encoder_decoder_forward.11} parent=11 // pred_fallthru
        _
      // Predicated region
      $region17: #{encoder_decoder_forward.11} parent=11 // pred_check
        %p526 = pneg %p144
      $region18: #{encoder_decoder_forward.11} parent=11 // pred_check_branch
        %528 = sbr.rel (%p526) target = $region20
      $region19: #{encoder_decoder_forward.11} parent=11 // pred_region
        _
      $region20: #{encoder_decoder_forward.11} parent=11 // pred_fallthru
        _
      // Predicated region
      $region21: #{encoder_decoder_forward.11} parent=11 // pred_check
        %p529 = pneg %p165
      $region22: #{encoder_decoder_forward.11} parent=11 // pred_check_branch
        %531 = sbr.rel (%p529) target = $region24
      $region23: #{encoder_decoder_forward.11} parent=11 // pred_region
        _
      $region24: #{encoder_decoder_forward.11} parent=11 // pred_fallthru
        _
      // Predicated region
      $region25: #{encoder_decoder_forward.11} parent=11 // pred_check
        %p532 = pneg %p186
      $region26: #{encoder_decoder_forward.11} parent=11 // pred_check_branch
        %534 = sbr.rel (%p532) target = $region28
      $region27: #{encoder_decoder_forward.11} parent=11 // pred_region
        _
      $region28: #{encoder_decoder_forward.11} parent=11 // pred_fallthru
        _
      // Predicated region
      $region29: #{encoder_decoder_forward.11} parent=11 // pred_check
        %p535 = pneg %p207
      $region30: #{encoder_decoder_forward.11} parent=11 // pred_check_branch
        %537 = sbr.rel (%p535) target = $region32
      $region31: #{encoder_decoder_forward.11} parent=11 // pred_region
        _
      $region32: #{encoder_decoder_forward.11} parent=11 // pred_fallthru
        _
      // Predicated region
      $region33: #{encoder_decoder_forward.11} parent=11 // pred_check
        %p538 = pneg %p228
      $region34: #{encoder_decoder_forward.11} parent=11 // pred_check_branch
        %540 = sbr.rel (%p538) target = $region36
      $region35: #{encoder_decoder_forward.11} parent=11 // pred_region
        _
      $region36: #{encoder_decoder_forward.11} parent=11 // pred_fallthru
        _
      // Predicated region
      $region37: #{encoder_decoder_forward.11} parent=11 // pred_check
        %p541 = pneg %p249
      $region38: #{encoder_decoder_forward.11} parent=11 // pred_check_branch
        %543 = sbr.rel (%p541) target = $region40
      $region39: #{encoder_decoder_forward.11} parent=11 // pred_region
        _
      $region40: #{encoder_decoder_forward.11} parent=11 // pred_fallthru
        _
      // Predicated region
      $region41: #{encoder_decoder_forward.11} parent=11 // pred_check
        %p544 = pneg %p270
      $region42: #{encoder_decoder_forward.11} parent=11 // pred_check_branch
        %546 = sbr.rel (%p544) target = $region44
      $region43: #{encoder_decoder_forward.11} parent=11 // pred_region
        _
      $region44: #{encoder_decoder_forward.11} parent=11 // pred_fallthru
        _
      // Predicated region
      $region45: #{encoder_decoder_forward.11} parent=11 // pred_check
        %p547 = pneg %p291
      $region46: #{encoder_decoder_forward.11} parent=11 // pred_check_branch
        %549 = sbr.rel (%p547) target = $region48
      $region47: #{encoder_decoder_forward.11} parent=11 // pred_region
        _
      $region48: #{encoder_decoder_forward.11} parent=11 // pred_fallthru
        _
      // Predicated region
      $region49: #{encoder_decoder_forward.11} parent=11 // pred_check
        %p550 = pneg %p312
      $region50: #{encoder_decoder_forward.11} parent=11 // pred_check_branch
        %552 = sbr.rel (%p550) target = $region52
      $region51: #{encoder_decoder_forward.11} parent=11 // pred_region
        _
      $region52: #{encoder_decoder_forward.11} parent=11 // pred_fallthru
        _
      // Predicated region
      $region53: #{encoder_decoder_forward.11} parent=11 // pred_check
        %p553 = pneg %p333
      $region54: #{encoder_decoder_forward.11} parent=11 // pred_check_branch
        %555 = sbr.rel (%p553) target = $region56
      $region55: #{encoder_decoder_forward.11} parent=11 // pred_region
        _
      $region56: #{encoder_decoder_forward.11} parent=11 // pred_fallthru
        _
      // Predicated region
      $region57: #{encoder_decoder_forward.11} parent=11 // pred_check
        %p556 = pneg %p354
      $region58: #{encoder_decoder_forward.11} parent=11 // pred_check_branch
        %558 = sbr.rel (%p556) target = $region60
      $region59: #{encoder_decoder_forward.11} parent=11 // pred_region
        _
      $region60: #{encoder_decoder_forward.11} parent=11 // pred_fallthru
        _
      // Predicated region
      $region61: #{encoder_decoder_forward.11} parent=11 // pred_check
        %p559 = pneg %p375
      $region62: #{encoder_decoder_forward.11} parent=11 // pred_check_branch
        %561 = sbr.rel (%p559) target = $region64
      $region63: #{encoder_decoder_forward.11} parent=11 // pred_region
        _
      $region64: #{encoder_decoder_forward.11} parent=11 // pred_fallthru
        _
      // Predicated region
      $region65: #{encoder_decoder_forward.11} parent=11 // pred_check
        %p562 = pneg %p396
      $region66: #{encoder_decoder_forward.11} parent=11 // pred_check_branch
        %564 = sbr.rel (%p562) target = $region68
      $region67: #{encoder_decoder_forward.11} parent=11 // pred_region
        _
      $region68: #{encoder_decoder_forward.11} parent=11 // pred_fallthru
        _
      // Predicated region
      $region69: #{encoder_decoder_forward.11} parent=11 // pred_check
        %p565 = pneg %p417
      $region70: #{encoder_decoder_forward.11} parent=11 // pred_check_branch
        %567 = sbr.rel (%p565) target = $region72
      $region71: #{encoder_decoder_forward.11} parent=11 // pred_region
        _
      $region72: #{encoder_decoder_forward.11} parent=11 // pred_fallthru
        _
      // Predicated region
      $region73: #{encoder_decoder_forward.11} parent=11 // pred_check
        %p568 = pneg %p438
      $region74: #{encoder_decoder_forward.11} parent=11 // pred_check_branch
        %570 = sbr.rel (%p568) target = $region76
      $region75: #{encoder_decoder_forward.11} parent=11 // pred_region
        _
      $region76: #{encoder_decoder_forward.11} parent=11 // pred_fallthru
        _
      // Predicated region
      $region77: #{encoder_decoder_forward.11} parent=11 // pred_check
        %p571 = pneg %p459
      $region78: #{encoder_decoder_forward.11} parent=11 // pred_check_branch
        %573 = sbr.rel (%p571) target = $region80
      $region79: #{encoder_decoder_forward.11} parent=11 // pred_region
        _
      $region80: #{encoder_decoder_forward.11} parent=11 // pred_fallthru
        _
      // Predicated region
      $region81: #{encoder_decoder_forward.11} parent=11 // pred_check
        %p574 = pneg %p480
      $region82: #{encoder_decoder_forward.11} parent=11 // pred_check_branch
        %576 = sbr.rel (%p574) target = $region84
      $region83: #{encoder_decoder_forward.11} parent=11 // pred_region
        _
      $region84: #{encoder_decoder_forward.11} parent=11 // pred_fallthru
        _
    $region12: #{encoder_decoder_forward.11} parent=5 // pred_fallthru
      _
    %p577 = scmp.lt.s32.totalorder %s38, 2
    // Predicated region
    $region85: #{encoder_decoder_forward.11} parent=5 // pred_check
      %p578 = pneg %p577
    $region86: #{encoder_decoder_forward.11} parent=5 // pred_check_branch
      %580 = sbr.rel (%p578) target = $region88
    $region87: #{encoder_decoder_forward.11} parent=5 // pred_region
      // Predicated region
      $region89: #{encoder_decoder_forward.11} parent=87 // pred_check
        %p581 = pneg %p70
      $region90: #{encoder_decoder_forward.11} parent=87 // pred_check_branch
        %583 = sbr.rel (%p581) target = $region92
      $region91: #{encoder_decoder_forward.11} parent=87 // pred_region
        %p584 = scmp.lt.s32.totalorder %s45, 1
        %s585 = scalar_select %p584, %s45, 1
        %s586 = smul.addr %s585, 8
        %s587 = scalar_lea.vmem %s2, %s586
      $region92: #{encoder_decoder_forward.11} parent=87 // pred_fallthru
        _
      // Predicated region
      $region93: #{encoder_decoder_forward.11} parent=87 // pred_check
        %p588 = pneg %p96
      $region94: #{encoder_decoder_forward.11} parent=87 // pred_check_branch
        %590 = sbr.rel (%p588) target = $region96
      $region95: #{encoder_decoder_forward.11} parent=87 // pred_region
        %p591 = scmp.lt.s32.totalorder %s45, 1
        %s592 = scalar_select %p591, %s45, 1
        %s593 = smul.addr %s592, 2
        %s594 = smul.addr %s593, 8
        %s595 = scalar_lea.vmem %s3, %s594
      $region96: #{encoder_decoder_forward.11} parent=87 // pred_fallthru
        _
    $region88: #{encoder_decoder_forward.11} parent=5 // pred_fallthru
      _
    %p596 = scmp.le.s32.totalorder 1, %s38
    %p597 = scmp.lt.s32.totalorder %s38, 3
    %p598 = pnand %p596, %p597
    %p599 = pneg %p598
    // Predicated region
    $region97: #{encoder_decoder_forward.11} parent=5 // pred_check
      _
    $region98: #{encoder_decoder_forward.11} parent=5 // pred_check_branch
      %601 = sbr.rel (%p598) target = $region100
    $region99: #{encoder_decoder_forward.11} parent=5 // pred_region
      %s602 = ssub.s32 %s38, 1
      %p603 = scmp.lt.s32.totalorder %s47, 1
      %s604 = scalar_select %p603, %s47, 1
      %s605 = smul.addr %s604, 8
      %s606 = scalar_lea.vmem %s2, %s605
      %p607 = pneg %p76
      %p608 = pneg %p73
      %p609 = scmp.lt.s32.totalorder %s47, 1
      %s610 = scalar_select %p609, %s47, 1
      %s611 = smul.addr %s610, 2
      %s612 = smul.addr %s611, 8
      %s613 = scalar_lea.vmem %s3, %s612
      %p614 = pneg %p102
      %p615 = pneg %p99
      %p616 = pneg %p123
      %p617 = pneg %p120
      %p618 = pneg %p144
      %p619 = pneg %p141
      %p620 = pneg %p165
      %p621 = pneg %p162
      %p622 = pneg %p186
      %p623 = pneg %p183
      %p624 = pneg %p207
      %p625 = pneg %p204
      %p626 = pneg %p228
      %p627 = pneg %p225
      %p628 = pneg %p249
      %p629 = pneg %p246
      %p630 = pneg %p270
      %p631 = pneg %p267
      %p632 = pneg %p291
      %p633 = pneg %p288
      %p634 = pneg %p312
      %p635 = pneg %p309
      %p636 = pneg %p333
      %p637 = pneg %p330
      %p638 = pneg %p354
      %p639 = pneg %p351
      %p640 = pneg %p375
      %p641 = pneg %p372
      %p642 = pneg %p396
      %p643 = pneg %p393
      %p644 = pneg %p417
      %p645 = pneg %p414
      %p646 = pneg %p438
      %p647 = pneg %p435
      %p648 = pneg %p459
      %p649 = pneg %p456
      %p650 = pneg %p480
      %p651 = pneg %p477
      %p652 = pneg %p508
      %p653 = pneg %p505
      %p654 = scmp.lt.s32.totalorder %s47, 1
      %s655 = scalar_select %p654, %s47, 1
      %p656 = scmp.lt.s32.totalorder %s48, 0
      %s657 = scalar_select %p656, %s48, 0
      %s658 = sadd.s32 %s657, %s655
      %s659 = smul.addr %s658, 8
      %s660 = scalar_lea.vmem %s22, %s659
      %p661 = scmp.lt.s32.totalorder %s47, 1
      %s662 = scalar_select %p661, %s47, 1
      %s663 = smul.addr %s662, 8
      %s664 = scalar_lea.vmem %s2, %s663
      %p665 = scmp.lt.s32.totalorder %s47, 1
      %s666 = scalar_select %p665, %s47, 1
      %s667 = smul.addr %s666, 2
      %s668 = smul.addr %s667, 8
      %s669 = scalar_lea.vmem %s3, %s668
      %p670 = scmp.lt.s32.totalorder %s47, 1
      %s671 = scalar_select %p670, %s47, 1
      %p672 = scmp.lt.s32.totalorder %s48, 0
      %s673 = scalar_select %p672, %s48, 0
      %s674 = sadd.s32 %s673, %s671
      %s675 = smul.addr %s674, 8
      %s676 = scalar_lea.vmem %s22, %s675
      %s678 = smul.u32 %s48, 8
      %v679 = vld [vmem:[%s664] sm:$0xff]
      %v680 = vld [vmem:[%s4] sm:$0x1]
      %v681 = vld [vmem:[%s5] sm:$0x1]
      %vm682 = vcmask 261120
      %v683 = vsel %vm682, %v679, 0.0
      %684 = vadd.xlane.f32.xlu0 %v683
      %v685 = vpop.xlane.xlu0 %684
      %v686 = vrcp.pop 32.0
      %v687 = vmul.f32 %v685, %v686
      %v688 = vsub.f32 %v679, %v687
      %v689 = vmul.f32 %v688, %v688
      %v690 = vsel %vm682, %v689, 0.0
      %691 = vadd.xlane.f32.xlu0 %v690
      %v692 = vpop.xlane.xlu0 %691
      %v693 = vmul.f32 %v692, %v686
      %v694 = vadd.f32 %v693, 1e-05
      %v695 = vrsqrt.pop %v694
      %v696 = vmul.f32 %v688, %v695
      %v698 = vlaneseq
      %v699 = vshrl.u32 %v698, 7
      %v700 = vsub.s32 0, %v699
      %v701 = vrot.slane %v680, %v700
      %v703 = vmul.f32 %v696, %v701
      %v705 = vlaneseq
      %v706 = vshrl.u32 %v705, 7
      %v707 = vsub.s32 0, %v706
      %v708 = vrot.slane %v681, %v707
      %v710 = vadd.f32 %v703, %v708
      %v711 = vpack.c.bf16 %v710, %v710
      %v712 = vld [vmem:[%s7] sm:$0xf]
      %v713 = vld [vmem:[%s7 + $0x4] sm:$0xf]
      %v714 = vld [vmem:[%s7 + $0x8] sm:$0xf]
      %v715 = vld [vmem:[%s7 + $0xc] sm:$0xf]
      %v720 = vunpack.c.l.b16 %v712
      %v721 = vunpack.c.l.b16 %v713
      %v722 = vunpack.c.l.b16 %v714
      %v723 = vunpack.c.l.b16 %v715
      %v724 = vpack.c.b16 %v721, %v720
      %v725 = vpack.c.b16 %v723, %v722
      %v729 = vsel %vm682, %v711, 0
      %731 = vmatprep.subr.bf16.mxu0 0
      %732 = vmatpush1.bf16.msra.mxu0 %v724
      %733 = vmatprep.subr.bf16.mxu0 0
      %734 = vmatpush1.bf16.msra.mxu0 %v725
      %735 = vmatprep.subr.bf16.mxu0 0
      %736 = vmatpush1.bf16.msra.mxu0 0
      %737 = vmatprep.subr.bf16.mxu0 0
      %738 = vmatpush1.bf16.msra.mxu0 0
      %739 = vmatprep.subr.bf16.mxu0 0
      %740 = vmatpush1.bf16.msra.mxu0 0
      %741 = vmatprep.subr.bf16.mxu0 0
      %742 = vmatpush1.bf16.msra.mxu0 0
      %743 = vmatprep.subr.bf16.mxu0 0
      %744 = vmatpush1.bf16.msra.mxu0 0
      %745 = vmatprep.subr.bf16.mxu0 0
      %746 = vmatpush1.bf16.msra.mxu0 0
      %747 = vmatprep.subr.bf16.mxu0 0
      %748 = vmatpush1.bf16.msra.mxu0 0
      %749 = vmatprep.subr.bf16.mxu0 0
      %750 = vmatpush1.bf16.msra.mxu0 0
      %751 = vmatprep.subr.bf16.mxu0 0
      %752 = vmatpush1.bf16.msra.mxu0 0
      %753 = vmatprep.subr.bf16.mxu0 0
      %754 = vmatpush1.bf16.msra.mxu0 0
      %755 = vmatprep.subr.bf16.mxu0 0
      %756 = vmatpush1.bf16.msra.mxu0 0
      %757 = vmatprep.subr.bf16.mxu0 0
      %758 = vmatpush1.bf16.msra.mxu0 0
      %759 = vmatprep.subr.bf16.mxu0 0
      %760 = vmatpush1.bf16.msra.mxu0 0
      %761 = vmatprep.subr.bf16.mxu0 0
      %762 = vmatpush1.bf16.msra.mxu0 0
      %763 = vmatprep.mubr.bf16.mxu0 0
      %764 = vmatmul.mubr.bf16.gmra.mrb[0].mxu0 %v729
      %v765 = vpop.f32.mrb[0].mxu0
      %v766 = vadd.f32 0.0, %v765
      %v767 = vpop.f32.mrb[0].mxu0
      %v768 = vpop.f32.mrb[0].mxu0
      %v769 = vpop.f32.mrb[0].mxu0
      %770 = vdwg.mxu0
      %s771 = scalar_lea.vmem %s664, %s678
      %v772 = vld [vmem:[%s771] sm:$0xff]
      %v773 = vsel %vm682, %v772, 0.0
      %774 = vadd.xlane.f32.xlu0 %v773
      %v775 = vpop.xlane.xlu0 %774
      %v776 = vmul.f32 %v775, %v686
      %v777 = vsub.f32 %v772, %v776
      %v778 = vmul.f32 %v777, %v777
      %v779 = vsel %vm682, %v778, 0.0
      %780 = vadd.xlane.f32.xlu0 %v779
      %v781 = vpop.xlane.xlu0 %780
      %v782 = vmul.f32 %v781, %v686
      %v783 = vadd.f32 %v782, 1e-05
      %v784 = vrsqrt.pop %v783
      %v785 = vmul.f32 %v777, %v784
      %v786 = vmul.f32 %v785, %v701
      %v787 = vadd.f32 %v786, %v708
      %v788 = vpack.c.bf16 %v787, %v787
      %v789 = vld [vmem:[%s6] sm:$0xf]
      %v790 = vld [vmem:[%s6 + $0x4] sm:$0xf]
      %v791 = vld [vmem:[%s6 + $0x8] sm:$0xf]
      %v792 = vld [vmem:[%s6 + $0xc] sm:$0xf]
      %v797 = vunpack.c.l.b16 %v789
      %v798 = vunpack.c.l.b16 %v790
      %v799 = vunpack.c.l.b16 %v791
      %v800 = vunpack.c.l.b16 %v792
      %v801 = vpack.c.b16 %v798, %v797
      %v802 = vpack.c.b16 %v800, %v799
      %v806 = vsel %vm682, %v788, 0
      %808 = vmatprep.subr.bf16.mxu0 0
      %809 = vmatpush1.bf16.msra.mxu0 %v801
      %810 = vmatprep.subr.bf16.mxu0 0
      %811 = vmatpush1.bf16.msra.mxu0 %v802
      %812 = vmatprep.subr.bf16.mxu0 0
      %813 = vmatpush1.bf16.msra.mxu0 0
      %814 = vmatprep.subr.bf16.mxu0 0
      %815 = vmatpush1.bf16.msra.mxu0 0
      %816 = vmatprep.subr.bf16.mxu0 0
      %817 = vmatpush1.bf16.msra.mxu0 0
      %818 = vmatprep.subr.bf16.mxu0 0
      %819 = vmatpush1.bf16.msra.mxu0 0
      %820 = vmatprep.subr.bf16.mxu0 0
      %821 = vmatpush1.bf16.msra.mxu0 0
      %822 = vmatprep.subr.bf16.mxu0 0
      %823 = vmatpush1.bf16.msra.mxu0 0
      %824 = vmatprep.subr.bf16.mxu0 0
      %825 = vmatpush1.bf16.msra.mxu0 0
      %826 = vmatprep.subr.bf16.mxu0 0
      %827 = vmatpush1.bf16.msra.mxu0 0
      %828 = vmatprep.subr.bf16.mxu0 0
      %829 = vmatpush1.bf16.msra.mxu0 0
      %830 = vmatprep.subr.bf16.mxu0 0
      %831 = vmatpush1.bf16.msra.mxu0 0
      %832 = vmatprep.subr.bf16.mxu0 0
      %833 = vmatpush1.bf16.msra.mxu0 0
      %834 = vmatprep.subr.bf16.mxu0 0
      %835 = vmatpush1.bf16.msra.mxu0 0
      %836 = vmatprep.subr.bf16.mxu0 0
      %837 = vmatpush1.bf16.msra.mxu0 0
      %838 = vmatprep.subr.bf16.mxu0 0
      %839 = vmatpush1.bf16.msra.mxu0 0
      %840 = vmatprep.mubr.bf16.mxu0 0
      %841 = vmatmul.mubr.bf16.gmra.mrb[0].mxu0 %v806
      %v842 = vpop.f32.mrb[0].mxu0
      %v843 = vadd.f32 0.0, %v842
      %v844 = vpop.f32.mrb[0].mxu0
      %v845 = vpop.f32.mrb[0].mxu0
      %v846 = vpop.f32.mrb[0].mxu0
      %847 = vdwg.mxu0
      %v848 = vlaneseq
      %v849 = vshrl.u32 %v848, 7
      %v850 = vstv %s678
      %v851 = vadd.s32 %v850, %v849
      %v852 = vlaneseq
      %v853 = vand.u32 %v852, 127
      %vm854 = vcmp.ge.s32.totalorder %v851, %v853
      %v855 = vsel %vm854, 0.0, -1e+09
      %v856 = vld [vmem:[%s9] sm:$0x1]
      %857 = vst.msk [vmem:[#allocation2] sm:$0xff] %vm682, 0.0
      %v858 = vpack.c.bf16 %v843, %v843
      %v859 = vpack.c.bf16 %v766, %v766
      %vm860 = vcmask 64512
      %v862 = vsel %vm860, %v858, 0
      %v865 = vsel %vm860, %v859, 0
      %867 = vmatprep.subr.bf16.mxu0 0
      %868 = vmatpush1.bf16.xpose.msra.mxu0 %v865
      %869 = vmatprep.subr.bf16.mxu0 0
      %870 = vmatpush1.bf16.xpose.msra.mxu0 0
      %871 = vmatprep.subr.bf16.mxu0 0
      %872 = vmatpush1.bf16.xpose.msra.mxu0 0
      %873 = vmatprep.subr.bf16.mxu0 0
      %874 = vmatpush1.bf16.xpose.msra.mxu0 0
      %875 = vmatprep.subr.bf16.mxu0 0
      %876 = vmatpush1.bf16.xpose.msra.mxu0 0
      %877 = vmatprep.subr.bf16.mxu0 0
      %878 = vmatpush1.bf16.xpose.msra.mxu0 0
      %879 = vmatprep.subr.bf16.mxu0 0
      %880 = vmatpush1.bf16.xpose.msra.mxu0 0
      %881 = vmatprep.subr.bf16.mxu0 0
      %882 = vmatpush1.bf16.xpose.msra.mxu0 0
      %883 = vmatprep.subr.bf16.mxu0 0
      %884 = vmatpush1.bf16.xpose.msra.mxu0 0
      %885 = vmatprep.subr.bf16.mxu0 0
      %886 = vmatpush1.bf16.xpose.msra.mxu0 0
      %887 = vmatprep.subr.bf16.mxu0 0
      %888 = vmatpush1.bf16.xpose.msra.mxu0 0
      %889 = vmatprep.subr.bf16.mxu0 0
      %890 = vmatpush1.bf16.xpose.msra.mxu0 0
      %891 = vmatprep.subr.bf16.mxu0 0
      %892 = vmatpush1.bf16.xpose.msra.mxu0 0
      %893 = vmatprep.subr.bf16.mxu0 0
      %894 = vmatpush1.bf16.xpose.msra.mxu0 0
      %895 = vmatprep.subr.bf16.mxu0 0
      %896 = vmatpush1.bf16.xpose.msra.mxu0 0
      %897 = vmatprep.subr.bf16.mxu0 0
      %898 = vmatpush1.bf16.xpose.msra.mxu0 0
      %899 = vmatprep.mubr.bf16.mxu0 0
      %900 = vmatmul.mubr.bf16.gmra.mrb[0].mxu0 %v862
      %v901 = vpop.f32.mrb[0].mxu0
      %v902 = vadd.f32 %v855, %v901
      %v903 = vpop.f32.mrb[0].mxu0
      %v904 = vpop.f32.mrb[0].mxu0
      %v905 = vpop.f32.mrb[0].mxu0
      %906 = vdwg.mxu0
      %v907 = vsel %vm860, %v902, -inf
      %908 = vmax.xlane.f32.xlu0 %v907
      %v909 = vpop.xlane.xlu0 %908
      %v910 = vsub.f32 %v902, %v909
      %v911 = vmul.f32 %v910, 1.442695
      %v912 = vpow.pop %v911
      %v913 = vsel %vm860, %v912, 0.0
      %914 = vadd.xlane.f32.xlu0 %v913
      %v915 = vpop.xlane.xlu0 %914
      %v916 = vrcp.pop %v915
      %v917 = vmul.f32 %v912, %v916
      %v918 = vpack.c.bf16 %v917, %v917
      %920 = vrot.lane.b32.xlu0 %v859, 96
      %v921 = vpop.permute.xlu0 %920
      %v923 = vsel %vm860, %v918, 0
      %vm925 = vcmask 1043456
      %v927 = vsel %vm925, %v921, 0
      %929 = vmatprep.subr.bf16.mxu0 0
      %930 = vmatpush1.bf16.msra.mxu0 %v927
      %931 = vmatprep.subr.bf16.mxu0 0
      %932 = vmatpush1.bf16.msra.mxu0 0
      %933 = vmatprep.subr.bf16.mxu0 0
      %934 = vmatpush1.bf16.msra.mxu0 0
      %935 = vmatprep.subr.bf16.mxu0 0
      %936 = vmatpush1.bf16.msra.mxu0 0
      %937 = vmatprep.subr.bf16.mxu0 0
      %938 = vmatpush1.bf16.msra.mxu0 0
      %939 = vmatprep.subr.bf16.mxu0 0
      %940 = vmatpush1.bf16.msra.mxu0 0
      %941 = vmatprep.subr.bf16.mxu0 0
      %942 = vmatpush1.bf16.msra.mxu0 0
      %943 = vmatprep.subr.bf16.mxu0 0
      %944 = vmatpush1.bf16.msra.mxu0 0
      %945 = vmatprep.subr.bf16.mxu0 0
      %946 = vmatpush1.bf16.msra.mxu0 0
      %947 = vmatprep.subr.bf16.mxu0 0
      %948 = vmatpush1.bf16.msra.mxu0 0
      %949 = vmatprep.subr.bf16.mxu0 0
      %950 = vmatpush1.bf16.msra.mxu0 0
      %951 = vmatprep.subr.bf16.mxu0 0
      %952 = vmatpush1.bf16.msra.mxu0 0
      %953 = vmatprep.subr.bf16.mxu0 0
      %954 = vmatpush1.bf16.msra.mxu0 0
      %955 = vmatprep.subr.bf16.mxu0 0
      %956 = vmatpush1.bf16.msra.mxu0 0
      %957 = vmatprep.subr.bf16.mxu0 0
      %958 = vmatpush1.bf16.msra.mxu0 0
      %959 = vmatprep.subr.bf16.mxu0 0
      %960 = vmatpush1.bf16.msra.mxu0 0
      %961 = vmatprep.mubr.bf16.mxu0 0
      %962 = vmatmul.mubr.bf16.gmra.mrb[0].mxu0 %v923
      %v963 = vpop.f32.mrb[0].mxu0
      %v964 = vadd.f32 0.0, %v963
      %v965 = vpop.f32.mrb[0].mxu0
      %v966 = vpop.f32.mrb[0].mxu0
      %v967 = vpop.f32.mrb[0].mxu0
      %968 = vdwg.mxu0
      %v969 = vld [vmem:[#allocation2] sm:$0xff]
      %v970 = vpack.c.bf16 %v964, %v964
      %v971 = vld [vmem:[%s8] sm:$0xf]
      %v973 = vsel %vm860, %v970, 0
      %v976 = vsel %vm925, %v971, 0
      %978 = vmatprep.subr.bf16.mxu0 0
      %979 = vmatpush1.bf16.msra.mxu0 %v976
      %980 = vmatprep.subr.bf16.mxu0 0
      %981 = vmatpush1.bf16.msra.mxu0 0
      %982 = vmatprep.subr.bf16.mxu0 0
      %983 = vmatpush1.bf16.msra.mxu0 0
      %984 = vmatprep.subr.bf16.mxu0 0
      %985 = vmatpush1.bf16.msra.mxu0 0
      %986 = vmatprep.subr.bf16.mxu0 0
      %987 = vmatpush1.bf16.msra.mxu0 0
      %988 = vmatprep.subr.bf16.mxu0 0
      %989 = vmatpush1.bf16.msra.mxu0 0
      %990 = vmatprep.subr.bf16.mxu0 0
      %991 = vmatpush1.bf16.msra.mxu0 0
      %992 = vmatprep.subr.bf16.mxu0 0
      %993 = vmatpush1.bf16.msra.mxu0 0
      %994 = vmatprep.subr.bf16.mxu0 0
      %995 = vmatpush1.bf16.msra.mxu0 0
      %996 = vmatprep.subr.bf16.mxu0 0
      %997 = vmatpush1.bf16.msra.mxu0 0
      %998 = vmatprep.subr.bf16.mxu0 0
      %999 = vmatpush1.bf16.msra.mxu0 0
      %1000 = vmatprep.subr.bf16.mxu0 0
      %1001 = vmatpush1.bf16.msra.mxu0 0
      %1002 = vmatprep.subr.bf16.mxu0 0
      %1003 = vmatpush1.bf16.msra.mxu0 0
      %1004 = vmatprep.subr.bf16.mxu0 0
      %1005 = vmatpush1.bf16.msra.mxu0 0
      %1006 = vmatprep.subr.bf16.mxu0 0
      %1007 = vmatpush1.bf16.msra.mxu0 0
      %1008 = vmatprep.subr.bf16.mxu0 0
      %1009 = vmatpush1.bf16.msra.mxu0 0
      %1010 = vmatprep.mubr.bf16.mxu0 0
      %1011 = vmatmul.mubr.bf16.gmra.mrb[0].mxu0 %v973
      %v1012 = vpop.f32.mrb[0].mxu0
      %v1013 = vadd.f32 0.0, %v1012
      %v1014 = vpop.f32.mrb[0].mxu0
      %v1015 = vpop.f32.mrb[0].mxu0
      %v1016 = vpop.f32.mrb[0].mxu0
      %1017 = vdwg.mxu0
      %v1018 = vadd.f32 %v969, %v1013
      %1019 = vst.msk [vmem:[#allocation2] sm:$0xff] %vm682, %v1018
      %1021 = vrot.lane.b32.xlu0 %v858, 120
      %v1022 = vpop.permute.xlu0 %1021
      %1023 = vrot.lane.b32.xlu0 %v859, 120
      %v1024 = vpop.permute.xlu0 %1023
      %v1026 = vsel %vm860, %v1022, 0
      %v1029 = vsel %vm860, %v1024, 0
      %1031 = vmatprep.subr.bf16.mxu0 0
      %1032 = vmatpush1.bf16.xpose.msra.mxu0 %v1029
      %1033 = vmatprep.subr.bf16.mxu0 0
      %1034 = vmatpush1.bf16.xpose.msra.mxu0 0
      %1035 = vmatprep.subr.bf16.mxu0 0
      %1036 = vmatpush1.bf16.xpose.msra.mxu0 0
      %1037 = vmatprep.subr.bf16.mxu0 0
      %1038 = vmatpush1.bf16.xpose.msra.mxu0 0
      %1039 = vmatprep.subr.bf16.mxu0 0
      %1040 = vmatpush1.bf16.xpose.msra.mxu0 0
      %1041 = vmatprep.subr.bf16.mxu0 0
      %1042 = vmatpush1.bf16.xpose.msra.mxu0 0
      %1043 = vmatprep.subr.bf16.mxu0 0
      %1044 = vmatpush1.bf16.xpose.msra.mxu0 0
      %1045 = vmatprep.subr.bf16.mxu0 0
      %1046 = vmatpush1.bf16.xpose.msra.mxu0 0
      %1047 = vmatprep.subr.bf16.mxu0 0
      %1048 = vmatpush1.bf16.xpose.msra.mxu0 0
      %1049 = vmatprep.subr.bf16.mxu0 0
      %1050 = vmatpush1.bf16.xpose.msra.mxu0 0
      %1051 = vmatprep.subr.bf16.mxu0 0
      %1052 = vmatpush1.bf16.xpose.msra.mxu0 0
      %1053 = vmatprep.subr.bf16.mxu0 0
      %1054 = vmatpush1.bf16.xpose.msra.mxu0 0
      %1055 = vmatprep.subr.bf16.mxu0 0
      %1056 = vmatpush1.bf16.xpose.msra.mxu0 0
      %1057 = vmatprep.subr.bf16.mxu0 0
      %1058 = vmatpush1.bf16.xpose.msra.mxu0 0
      %1059 = vmatprep.subr.bf16.mxu0 0
      %1060 = vmatpush1.bf16.xpose.msra.mxu0 0
      %1061 = vmatprep.subr.bf16.mxu0 0
      %1062 = vmatpush1.bf16.xpose.msra.mxu0 0
      %1063 = vmatprep.mubr.bf16.mxu0 0
      %1064 = vmatmul.mubr.bf16.gmra.mrb[0].mxu0 %v1026
      %v1065 = vpop.f32.mrb[0].mxu0
      %v1066 = vadd.f32 %v855, %v1065
      %v1067 = vpop.f32.mrb[0].mxu0
      %v1068 = vpop.f32.mrb[0].mxu0
      %v1069 = vpop.f32.mrb[0].mxu0
      %1070 = vdwg.mxu0
      %v1071 = vsel %vm860, %v1066, -inf
      %1072 = vmax.xlane.f32.xlu0 %v1071
      %v1073 = vpop.xlane.xlu0 %1072
      %v1074 = vsub.f32 %v1066, %v1073
      %v1075 = vmul.f32 %v1074, 1.442695
      %v1076 = vpow.pop %v1075
      %v1077 = vsel %vm860, %v1076, 0.0
      %1078 = vadd.xlane.f32.xlu0 %v1077
      %v1079 = vpop.xlane.xlu0 %1078
      %v1080 = vrcp.pop %v1079
      %v1081 = vmul.f32 %v1076, %v1080
      %v1082 = vpack.c.bf16 %v1081, %v1081
      %1083 = vrot.lane.b32.xlu0 %v859, 88
      %v1084 = vpop.permute.xlu0 %1083
      %v1086 = vsel %vm860, %v1082, 0
      %v1089 = vsel %vm925, %v1084, 0
      %1091 = vmatprep.subr.bf16.mxu0 0
      %1092 = vmatpush1.bf16.msra.mxu0 %v1089
      %1093 = vmatprep.subr.bf16.mxu0 0
      %1094 = vmatpush1.bf16.msra.mxu0 0
      %1095 = vmatprep.subr.bf16.mxu0 0
      %1096 = vmatpush1.bf16.msra.mxu0 0
      %1097 = vmatprep.subr.bf16.mxu0 0
      %1098 = vmatpush1.bf16.msra.mxu0 0
      %1099 = vmatprep.subr.bf16.mxu0 0
      %1100 = vmatpush1.bf16.msra.mxu0 0
      %1101 = vmatprep.subr.bf16.mxu0 0
      %1102 = vmatpush1.bf16.msra.mxu0 0
      %1103 = vmatprep.subr.bf16.mxu0 0
      %1104 = vmatpush1.bf16.msra.mxu0 0
      %1105 = vmatprep.subr.bf16.mxu0 0
      %1106 = vmatpush1.bf16.msra.mxu0 0
      %1107 = vmatprep.subr.bf16.mxu0 0
      %1108 = vmatpush1.bf16.msra.mxu0 0
      %1109 = vmatprep.subr.bf16.mxu0 0
      %1110 = vmatpush1.bf16.msra.mxu0 0
      %1111 = vmatprep.subr.bf16.mxu0 0
      %1112 = vmatpush1.bf16.msra.mxu0 0
      %1113 = vmatprep.subr.bf16.mxu0 0
      %1114 = vmatpush1.bf16.msra.mxu0 0
      %1115 = vmatprep.subr.bf16.mxu0 0
      %1116 = vmatpush1.bf16.msra.mxu0 0
      %1117 = vmatprep.subr.bf16.mxu0 0
      %1118 = vmatpush1.bf16.msra.mxu0 0
      %1119 = vmatprep.subr.bf16.mxu0 0
      %1120 = vmatpush1.bf16.msra.mxu0 0
      %1121 = vmatprep.subr.bf16.mxu0 0
      %1122 = vmatpush1.bf16.msra.mxu0 0
      %1123 = vmatprep.mubr.bf16.mxu0 0
      %1124 = vmatmul.mubr.bf16.gmra.mrb[0].mxu0 %v1086
      %v1125 = vpop.f32.mrb[0].mxu0
      %v1126 = vadd.f32 0.0, %v1125
      %v1127 = vpop.f32.mrb[0].mxu0
      %v1128 = vpop.f32.mrb[0].mxu0
      %v1129 = vpop.f32.mrb[0].mxu0
      %1130 = vdwg.mxu0
      %v1131 = vld [vmem:[#allocation2] sm:$0xff]
      %v1132 = vpack.c.bf16 %v1126, %v1126
      %v1133 = vld [vmem:[%s8 + $0x4] sm:$0xf]
      %v1135 = vsel %vm860, %v1132, 0
      %v1138 = vsel %vm925, %v1133, 0
      %1140 = vmatprep.subr.bf16.mxu0 0
      %1141 = vmatpush1.bf16.msra.mxu0 %v1138
      %1142 = vmatprep.subr.bf16.mxu0 0
      %1143 = vmatpush1.bf16.msra.mxu0 0
      %1144 = vmatprep.subr.bf16.mxu0 0
      %1145 = vmatpush1.bf16.msra.mxu0 0
      %1146 = vmatprep.subr.bf16.mxu0 0
      %1147 = vmatpush1.bf16.msra.mxu0 0
      %1148 = vmatprep.subr.bf16.mxu0 0
      %1149 = vmatpush1.bf16.msra.mxu0 0
      %1150 = vmatprep.subr.bf16.mxu0 0
      %1151 = vmatpush1.bf16.msra.mxu0 0
      %1152 = vmatprep.subr.bf16.mxu0 0
      %1153 = vmatpush1.bf16.msra.mxu0 0
      %1154 = vmatprep.subr.bf16.mxu0 0
      %1155 = vmatpush1.bf16.msra.mxu0 0
      %1156 = vmatprep.subr.bf16.mxu0 0
      %1157 = vmatpush1.bf16.msra.mxu0 0
      %1158 = vmatprep.subr.bf16.mxu0 0
      %1159 = vmatpush1.bf16.msra.mxu0 0
      %1160 = vmatprep.subr.bf16.mxu0 0
      %1161 = vmatpush1.bf16.msra.mxu0 0
      %1162 = vmatprep.subr.bf16.mxu0 0
      %1163 = vmatpush1.bf16.msra.mxu0 0
      %1164 = vmatprep.subr.bf16.mxu0 0
      %1165 = vmatpush1.bf16.msra.mxu0 0
      %1166 = vmatprep.subr.bf16.mxu0 0
      %1167 = vmatpush1.bf16.msra.mxu0 0
      %1168 = vmatprep.subr.bf16.mxu0 0
      %1169 = vmatpush1.bf16.msra.mxu0 0
      %1170 = vmatprep.subr.bf16.mxu0 0
      %1171 = vmatpush1.bf16.msra.mxu0 0
      %1172 = vmatprep.mubr.bf16.mxu0 0
      %1173 = vmatmul.mubr.bf16.gmra.mrb[0].mxu0 %v1135
      %v1174 = vpop.f32.mrb[0].mxu0
      %v1175 = vadd.f32 0.0, %v1174
      %v1176 = vpop.f32.mrb[0].mxu0
      %v1177 = vpop.f32.mrb[0].mxu0
      %v1178 = vpop.f32.mrb[0].mxu0
      %1179 = vdwg.mxu0
      %v1180 = vadd.f32 %v1131, %v1175
      %1181 = vst.msk [vmem:[#allocation2] sm:$0xff] %vm682, %v1180
      %1182 = vrot.lane.b32.xlu0 %v858, 112
      %v1183 = vpop.permute.xlu0 %1182
      %1184 = vrot.lane.b32.xlu0 %v859, 112
      %v1185 = vpop.permute.xlu0 %1184
      %v1187 = vsel %vm860, %v1183, 0
      %v1190 = vsel %vm860, %v1185, 0
      %1192 = vmatprep.subr.bf16.mxu0 0
      %1193 = vmatpush1.bf16.xpose.msra.mxu0 %v1190
      %1194 = vmatprep.subr.bf16.mxu0 0
      %1195 = vmatpush1.bf16.xpose.msra.mxu0 0
      %1196 = vmatprep.subr.bf16.mxu0 0
      %1197 = vmatpush1.bf16.xpose.msra.mxu0 0
      %1198 = vmatprep.subr.bf16.mxu0 0
      %1199 = vmatpush1.bf16.xpose.msra.mxu0 0
      %1200 = vmatprep.subr.bf16.mxu0 0
      %1201 = vmatpush1.bf16.xpose.msra.mxu0 0
      %1202 = vmatprep.subr.bf16.mxu0 0
      %1203 = vmatpush1.bf16.xpose.msra.mxu0 0
      %1204 = vmatprep.subr.bf16.mxu0 0
      %1205 = vmatpush1.bf16.xpose.msra.mxu0 0
      %1206 = vmatprep.subr.bf16.mxu0 0
      %1207 = vmatpush1.bf16.xpose.msra.mxu0 0
      %1208 = vmatprep.subr.bf16.mxu0 0
      %1209 = vmatpush1.bf16.xpose.msra.mxu0 0
      %1210 = vmatprep.subr.bf16.mxu0 0
      %1211 = vmatpush1.bf16.xpose.msra.mxu0 0
      %1212 = vmatprep.subr.bf16.mxu0 0
      %1213 = vmatpush1.bf16.xpose.msra.mxu0 0
      %1214 = vmatprep.subr.bf16.mxu0 0
      %1215 = vmatpush1.bf16.xpose.msra.mxu0 0
      %1216 = vmatprep.subr.bf16.mxu0 0
      %1217 = vmatpush1.bf16.xpose.msra.mxu0 0
      %1218 = vmatprep.subr.bf16.mxu0 0
      %1219 = vmatpush1.bf16.xpose.msra.mxu0 0
      %1220 = vmatprep.subr.bf16.mxu0 0
      %1221 = vmatpush1.bf16.xpose.msra.mxu0 0
      %1222 = vmatprep.subr.bf16.mxu0 0
      %1223 = vmatpush1.bf16.xpose.msra.mxu0 0
      %1224 = vmatprep.mubr.bf16.mxu0 0
      %1225 = vmatmul.mubr.bf16.gmra.mrb[0].mxu0 %v1187
      %v1226 = vpop.f32.mrb[0].mxu0
      %v1227 = vadd.f32 %v855, %v1226
      %v1228 = vpop.f32.mrb[0].mxu0
      %v1229 = vpop.f32.mrb[0].mxu0
      %v1230 = vpop.f32.mrb[0].mxu0
      %1231 = vdwg.mxu0
      %v1232 = vsel %vm860, %v1227, -inf
      %1233 = vmax.xlane.f32.xlu0 %v1232
      %v1234 = vpop.xlane.xlu0 %1233
      %v1235 = vsub.f32 %v1227, %v1234
      %v1236 = vmul.f32 %v1235, 1.442695
      %v1237 = vpow.pop %v1236
      %v1238 = vsel %vm860, %v1237, 0.0
      %1239 = vadd.xlane.f32.xlu0 %v1238
      %v1240 = vpop.xlane.xlu0 %1239
      %v1241 = vrcp.pop %v1240
      %v1242 = vmul.f32 %v1237, %v1241
      %v1243 = vpack.c.bf16 %v1242, %v1242
      %1244 = vrot.lane.b32.xlu0 %v859, 80
      %v1245 = vpop.permute.xlu0 %1244
      %v1247 = vsel %vm860, %v1243, 0
      %v1250 = vsel %vm925, %v1245, 0
      %1252 = vmatprep.subr.bf16.mxu0 0
      %1253 = vmatpush1.bf16.msra.mxu0 %v1250
      %1254 = vmatprep.subr.bf16.mxu0 0
      %1255 = vmatpush1.bf16.msra.mxu0 0
      %1256 = vmatprep.subr.bf16.mxu0 0
      %1257 = vmatpush1.bf16.msra.mxu0 0
      %1258 = vmatprep.subr.bf16.mxu0 0
      %1259 = vmatpush1.bf16.msra.mxu0 0
      %1260 = vmatprep.subr.bf16.mxu0 0
      %1261 = vmatpush1.bf16.msra.mxu0 0
      %1262 = vmatprep.subr.bf16.mxu0 0
      %1263 = vmatpush1.bf16.msra.mxu0 0
      %1264 = vmatprep.subr.bf16.mxu0 0
      %1265 = vmatpush1.bf16.msra.mxu0 0
      %1266 = vmatprep.subr.bf16.mxu0 0
      %1267 = vmatpush1.bf16.msra.mxu0 0
      %1268 = vmatprep.subr.bf16.mxu0 0
      %1269 = vmatpush1.bf16.msra.mxu0 0
      %1270 = vmatprep.subr.bf16.mxu0 0
      %1271 = vmatpush1.bf16.msra.mxu0 0
      %1272 = vmatprep.subr.bf16.mxu0 0
      %1273 = vmatpush1.bf16.msra.mxu0 0
      %1274 = vmatprep.subr.bf16.mxu0 0
      %1275 = vmatpush1.bf16.msra.mxu0 0
      %1276 = vmatprep.subr.bf16.mxu0 0
      %1277 = vmatpush1.bf16.msra.mxu0 0
      %1278 = vmatprep.subr.bf16.mxu0 0
      %1279 = vmatpush1.bf16.msra.mxu0 0
      %1280 = vmatprep.subr.bf16.mxu0 0
      %1281 = vmatpush1.bf16.msra.mxu0 0
      %1282 = vmatprep.subr.bf16.mxu0 0
      %1283 = vmatpush1.bf16.msra.mxu0 0
      %1284 = vmatprep.mubr.bf16.mxu0 0
      %1285 = vmatmul.mubr.bf16.gmra.mrb[0].mxu0 %v1247
      %v1286 = vpop.f32.mrb[0].mxu0
      %v1287 = vadd.f32 0.0, %v1286
      %v1288 = vpop.f32.mrb[0].mxu0
      %v1289 = vpop.f32.mrb[0].mxu0
      %v1290 = vpop.f32.mrb[0].mxu0
      %1291 = vdwg.mxu0
      %v1292 = vld [vmem:[#allocation2] sm:$0xff]
      %v1293 = vpack.c.bf16 %v1287, %v1287
      %v1294 = vld [vmem:[%s8 + $0x8] sm:$0xf]
      %v1296 = vsel %vm860, %v1293, 0
      %v1299 = vsel %vm925, %v1294, 0
      %1301 = vmatprep.subr.bf16.mxu0 0
      %1302 = vmatpush1.bf16.msra.mxu0 %v1299
      %1303 = vmatprep.subr.bf16.mxu0 0
      %1304 = vmatpush1.bf16.msra.mxu0 0
      %1305 = vmatprep.subr.bf16.mxu0 0
      %1306 = vmatpush1.bf16.msra.mxu0 0
      %1307 = vmatprep.subr.bf16.mxu0 0
      %1308 = vmatpush1.bf16.msra.mxu0 0
      %1309 = vmatprep.subr.bf16.mxu0 0
      %1310 = vmatpush1.bf16.msra.mxu0 0
      %1311 = vmatprep.subr.bf16.mxu0 0
      %1312 = vmatpush1.bf16.msra.mxu0 0
      %1313 = vmatprep.subr.bf16.mxu0 0
      %1314 = vmatpush1.bf16.msra.mxu0 0
      %1315 = vmatprep.subr.bf16.mxu0 0
      %1316 = vmatpush1.bf16.msra.mxu0 0
      %1317 = vmatprep.subr.bf16.mxu0 0
      %1318 = vmatpush1.bf16.msra.mxu0 0
      %1319 = vmatprep.subr.bf16.mxu0 0
      %1320 = vmatpush1.bf16.msra.mxu0 0
      %1321 = vmatprep.subr.bf16.mxu0 0
      %1322 = vmatpush1.bf16.msra.mxu0 0
      %1323 = vmatprep.subr.bf16.mxu0 0
      %1324 = vmatpush1.bf16.msra.mxu0 0
      %1325 = vmatprep.subr.bf16.mxu0 0
      %1326 = vmatpush1.bf16.msra.mxu0 0
      %1327 = vmatprep.subr.bf16.mxu0 0
      %1328 = vmatpush1.bf16.msra.mxu0 0
      %1329 = vmatprep.subr.bf16.mxu0 0
      %1330 = vmatpush1.bf16.msra.mxu0 0
      %1331 = vmatprep.subr.bf16.mxu0 0
      %1332 = vmatpush1.bf16.msra.mxu0 0
      %1333 = vmatprep.mubr.bf16.mxu0 0
      %1334 = vmatmul.mubr.bf16.gmra.mrb[0].mxu0 %v1296
      %v1335 = vpop.f32.mrb[0].mxu0
      %v1336 = vadd.f32 0.0, %v1335
      %v1337 = vpop.f32.mrb[0].mxu0
      %v1338 = vpop.f32.mrb[0].mxu0
      %v1339 = vpop.f32.mrb[0].mxu0
      %1340 = vdwg.mxu0
      %v1341 = vadd.f32 %v1292, %v1336
      %1342 = vst.msk [vmem:[#allocation2] sm:$0xff] %vm682, %v1341
      %1343 = vrot.lane.b32.xlu0 %v858, 104
      %v1344 = vpop.permute.xlu0 %1343
      %1345 = vrot.lane.b32.xlu0 %v859, 104
      %v1346 = vpop.permute.xlu0 %1345
      %v1348 = vsel %vm860, %v1344, 0
      %v1351 = vsel %vm860, %v1346, 0
      %1353 = vmatprep.subr.bf16.mxu0 0
      %1354 = vmatpush1.bf16.xpose.msra.mxu0 %v1351
      %1355 = vmatprep.subr.bf16.mxu0 0
      %1356 = vmatpush1.bf16.xpose.msra.mxu0 0
      %1357 = vmatprep.subr.bf16.mxu0 0
      %1358 = vmatpush1.bf16.xpose.msra.mxu0 0
      %1359 = vmatprep.subr.bf16.mxu0 0
      %1360 = vmatpush1.bf16.xpose.msra.mxu0 0
      %1361 = vmatprep.subr.bf16.mxu0 0
      %1362 = vmatpush1.bf16.xpose.msra.mxu0 0
      %1363 = vmatprep.subr.bf16.mxu0 0
      %1364 = vmatpush1.bf16.xpose.msra.mxu0 0
      %1365 = vmatprep.subr.bf16.mxu0 0
      %1366 = vmatpush1.bf16.xpose.msra.mxu0 0
      %1367 = vmatprep.subr.bf16.mxu0 0
      %1368 = vmatpush1.bf16.xpose.msra.mxu0 0
      %1369 = vmatprep.subr.bf16.mxu0 0
      %1370 = vmatpush1.bf16.xpose.msra.mxu0 0
      %1371 = vmatprep.subr.bf16.mxu0 0
      %1372 = vmatpush1.bf16.xpose.msra.mxu0 0
      %1373 = vmatprep.subr.bf16.mxu0 0
      %1374 = vmatpush1.bf16.xpose.msra.mxu0 0
      %1375 = vmatprep.subr.bf16.mxu0 0
      %1376 = vmatpush1.bf16.xpose.msra.mxu0 0
      %1377 = vmatprep.subr.bf16.mxu0 0
      %1378 = vmatpush1.bf16.xpose.msra.mxu0 0
      %1379 = vmatprep.subr.bf16.mxu0 0
      %1380 = vmatpush1.bf16.xpose.msra.mxu0 0
      %1381 = vmatprep.subr.bf16.mxu0 0
      %1382 = vmatpush1.bf16.xpose.msra.mxu0 0
      %1383 = vmatprep.subr.bf16.mxu0 0
      %1384 = vmatpush1.bf16.xpose.msra.mxu0 0
      %1385 = vmatprep.mubr.bf16.mxu0 0
      %1386 = vmatmul.mubr.bf16.gmra.mrb[0].mxu0 %v1348
      %v1387 = vpop.f32.mrb[0].mxu0
      %v1388 = vadd.f32 %v855, %v1387
      %v1389 = vpop.f32.mrb[0].mxu0
      %v1390 = vpop.f32.mrb[0].mxu0
      %v1391 = vpop.f32.mrb[0].mxu0
      %1392 = vdwg.mxu0
      %v1393 = vsel %vm860, %v1388, -inf
      %1394 = vmax.xlane.f32.xlu0 %v1393
      %v1395 = vpop.xlane.xlu0 %1394
      %v1396 = vsub.f32 %v1388, %v1395
      %v1397 = vmul.f32 %v1396, 1.442695
      %v1398 = vpow.pop %v1397
      %v1399 = vsel %vm860, %v1398, 0.0
      %1400 = vadd.xlane.f32.xlu0 %v1399
      %v1401 = vpop.xlane.xlu0 %1400
      %v1402 = vrcp.pop %v1401
      %v1403 = vmul.f32 %v1398, %v1402
      %v1404 = vpack.c.bf16 %v1403, %v1403
      %1405 = vrot.lane.b32.xlu0 %v859, 72
      %v1406 = vpop.permute.xlu0 %1405
      %v1408 = vsel %vm860, %v1404, 0
      %v1411 = vsel %vm925, %v1406, 0
      %1413 = vmatprep.subr.bf16.mxu0 0
      %1414 = vmatpush1.bf16.msra.mxu0 %v1411
      %1415 = vmatprep.subr.bf16.mxu0 0
      %1416 = vmatpush1.bf16.msra.mxu0 0
      %1417 = vmatprep.subr.bf16.mxu0 0
      %1418 = vmatpush1.bf16.msra.mxu0 0
      %1419 = vmatprep.subr.bf16.mxu0 0
      %1420 = vmatpush1.bf16.msra.mxu0 0
      %1421 = vmatprep.subr.bf16.mxu0 0
      %1422 = vmatpush1.bf16.msra.mxu0 0
      %1423 = vmatprep.subr.bf16.mxu0 0
      %1424 = vmatpush1.bf16.msra.mxu0 0
      %1425 = vmatprep.subr.bf16.mxu0 0
      %1426 = vmatpush1.bf16.msra.mxu0 0
      %1427 = vmatprep.subr.bf16.mxu0 0
      %1428 = vmatpush1.bf16.msra.mxu0 0
      %1429 = vmatprep.subr.bf16.mxu0 0
      %1430 = vmatpush1.bf16.msra.mxu0 0
      %1431 = vmatprep.subr.bf16.mxu0 0
      %1432 = vmatpush1.bf16.msra.mxu0 0
      %1433 = vmatprep.subr.bf16.mxu0 0
      %1434 = vmatpush1.bf16.msra.mxu0 0
      %1435 = vmatprep.subr.bf16.mxu0 0
      %1436 = vmatpush1.bf16.msra.mxu0 0
      %1437 = vmatprep.subr.bf16.mxu0 0
      %1438 = vmatpush1.bf16.msra.mxu0 0
      %1439 = vmatprep.subr.bf16.mxu0 0
      %1440 = vmatpush1.bf16.msra.mxu0 0
      %1441 = vmatprep.subr.bf16.mxu0 0
      %1442 = vmatpush1.bf16.msra.mxu0 0
      %1443 = vmatprep.subr.bf16.mxu0 0
      %1444 = vmatpush1.bf16.msra.mxu0 0
      %1445 = vmatprep.mubr.bf16.mxu0 0
      %1446 = vmatmul.mubr.bf16.gmra.mrb[0].mxu0 %v1408
      %v1447 = vpop.f32.mrb[0].mxu0
      %v1448 = vadd.f32 0.0, %v1447
      %v1449 = vpop.f32.mrb[0].mxu0
      %v1450 = vpop.f32.mrb[0].mxu0
      %v1451 = vpop.f32.mrb[0].mxu0
      %1452 = vdwg.mxu0
      %v1453 = vld [vmem:[#allocation2] sm:$0xff]
      %v1454 = vpack.c.bf16 %v1448, %v1448
      %v1455 = vld [vmem:[%s8 + $0xc] sm:$0xf]
      %v1457 = vsel %vm860, %v1454, 0
      %v1460 = vsel %vm925, %v1455, 0
      %1462 = vmatprep.subr.bf16.mxu0 0
      %1463 = vmatpush1.bf16.msra.mxu0 %v1460
      %1464 = vmatprep.subr.bf16.mxu0 0
      %1465 = vmatpush1.bf16.msra.mxu0 0
      %1466 = vmatprep.subr.bf16.mxu0 0
      %1467 = vmatpush1.bf16.msra.mxu0 0
      %1468 = vmatprep.subr.bf16.mxu0 0
      %1469 = vmatpush1.bf16.msra.mxu0 0
      %1470 = vmatprep.subr.bf16.mxu0 0
      %1471 = vmatpush1.bf16.msra.mxu0 0
      %1472 = vmatprep.subr.bf16.mxu0 0
      %1473 = vmatpush1.bf16.msra.mxu0 0
      %1474 = vmatprep.subr.bf16.mxu0 0
      %1475 = vmatpush1.bf16.msra.mxu0 0
      %1476 = vmatprep.subr.bf16.mxu0 0
      %1477 = vmatpush1.bf16.msra.mxu0 0
      %1478 = vmatprep.subr.bf16.mxu0 0
      %1479 = vmatpush1.bf16.msra.mxu0 0
      %1480 = vmatprep.subr.bf16.mxu0 0
      %1481 = vmatpush1.bf16.msra.mxu0 0
      %1482 = vmatprep.subr.bf16.mxu0 0
      %1483 = vmatpush1.bf16.msra.mxu0 0
      %1484 = vmatprep.subr.bf16.mxu0 0
      %1485 = vmatpush1.bf16.msra.mxu0 0
      %1486 = vmatprep.subr.bf16.mxu0 0
      %1487 = vmatpush1.bf16.msra.mxu0 0
      %1488 = vmatprep.subr.bf16.mxu0 0
      %1489 = vmatpush1.bf16.msra.mxu0 0
      %1490 = vmatprep.subr.bf16.mxu0 0
      %1491 = vmatpush1.bf16.msra.mxu0 0
      %1492 = vmatprep.subr.bf16.mxu0 0
      %1493 = vmatpush1.bf16.msra.mxu0 0
      %1494 = vmatprep.mubr.bf16.mxu0 0
      %1495 = vmatmul.mubr.bf16.gmra.mrb[0].mxu0 %v1457
      %v1496 = vpop.f32.mrb[0].mxu0
      %v1497 = vadd.f32 0.0, %v1496
      %v1498 = vpop.f32.mrb[0].mxu0
      %v1499 = vpop.f32.mrb[0].mxu0
      %v1500 = vpop.f32.mrb[0].mxu0
      %1501 = vdwg.mxu0
      %v1502 = vadd.f32 %v1453, %v1497
      %1503 = vst.msk [vmem:[#allocation2] sm:$0xff] %vm682, %v1502
      %v1504 = vld [vmem:[#allocation2] sm:$0xff]
      %v1506 = vlaneseq
      %v1507 = vshrl.u32 %v1506, 7
      %v1508 = vsub.s32 0, %v1507
      %v1509 = vrot.slane %v856, %v1508
      %v1511 = vadd.f32 %v1504, %v1509
      %v1512 = vadd.f32 %v787, %v1511
      %v1513 = vld [vmem:[%s10] sm:$0x1]
      %v1514 = vld [vmem:[%s11] sm:$0x1]
      %v1515 = vsel %vm682, %v1512, 0.0
      %1516 = vadd.xlane.f32.xlu0 %v1515
      %v1517 = vpop.xlane.xlu0 %1516
      %v1518 = vmul.f32 %v1517, %v686
      %v1519 = vsub.f32 %v1512, %v1518
      %v1520 = vmul.f32 %v1519, %v1519
      %v1521 = vsel %vm682, %v1520, 0.0
      %1522 = vadd.xlane.f32.xlu0 %v1521
      %v1523 = vpop.xlane.xlu0 %1522
      %v1524 = vmul.f32 %v1523, %v686
      %v1525 = vadd.f32 %v1524, 1e-05
      %v1526 = vrsqrt.pop %v1525
      %v1527 = vmul.f32 %v1519, %v1526
      %v1529 = vlaneseq
      %v1530 = vshrl.u32 %v1529, 7
      %v1531 = vsub.s32 0, %v1530
      %v1532 = vrot.slane %v1513, %v1531
      %v1534 = vmul.f32 %v1527, %v1532
      %v1536 = vlaneseq
      %v1537 = vshrl.u32 %v1536, 7
      %v1538 = vsub.s32 0, %v1537
      %v1539 = vrot.slane %v1514, %v1538
      %v1541 = vadd.f32 %v1534, %v1539
      %v1542 = vpack.c.bf16 %v1541, %v1541
      %v1543 = vld [vmem:[%s12] sm:$0xf]
      %v1544 = vld [vmem:[%s12 + $0x4] sm:$0xf]
      %v1545 = vld [vmem:[%s12 + $0x8] sm:$0xf]
      %v1546 = vld [vmem:[%s12 + $0xc] sm:$0xf]
      %v1551 = vunpack.c.l.b16 %v1543
      %v1552 = vunpack.c.l.b16 %v1544
      %v1553 = vunpack.c.l.b16 %v1545
      %v1554 = vunpack.c.l.b16 %v1546
      %v1555 = vpack.c.b16 %v1552, %v1551
      %v1556 = vpack.c.b16 %v1554, %v1553
      %v1560 = vsel %vm682, %v1542, 0
      %1562 = vmatprep.subr.bf16.mxu0 0
      %1563 = vmatpush1.bf16.msra.mxu0 %v1555
      %1564 = vmatprep.subr.bf16.mxu0 0
      %1565 = vmatpush1.bf16.msra.mxu0 %v1556
      %1566 = vmatprep.subr.bf16.mxu0 0
      %1567 = vmatpush1.bf16.msra.mxu0 0
      %1568 = vmatprep.subr.bf16.mxu0 0
      %1569 = vmatpush1.bf16.msra.mxu0 0
      %1570 = vmatprep.subr.bf16.mxu0 0
      %1571 = vmatpush1.bf16.msra.mxu0 0
      %1572 = vmatprep.subr.bf16.mxu0 0
      %1573 = vmatpush1.bf16.msra.mxu0 0
      %1574 = vmatprep.subr.bf16.mxu0 0
      %1575 = vmatpush1.bf16.msra.mxu0 0
      %1576 = vmatprep.subr.bf16.mxu0 0
      %1577 = vmatpush1.bf16.msra.mxu0 0
      %1578 = vmatprep.subr.bf16.mxu0 0
      %1579 = vmatpush1.bf16.msra.mxu0 0
      %1580 = vmatprep.subr.bf16.mxu0 0
      %1581 = vmatpush1.bf16.msra.mxu0 0
      %1582 = vmatprep.subr.bf16.mxu0 0
      %1583 = vmatpush1.bf16.msra.mxu0 0
      %1584 = vmatprep.subr.bf16.mxu0 0
      %1585 = vmatpush1.bf16.msra.mxu0 0
      %1586 = vmatprep.subr.bf16.mxu0 0
      %1587 = vmatpush1.bf16.msra.mxu0 0
      %1588 = vmatprep.subr.bf16.mxu0 0
      %1589 = vmatpush1.bf16.msra.mxu0 0
      %1590 = vmatprep.subr.bf16.mxu0 0
      %1591 = vmatpush1.bf16.msra.mxu0 0
      %1592 = vmatprep.subr.bf16.mxu0 0
      %1593 = vmatpush1.bf16.msra.mxu0 0
      %1594 = vmatprep.mubr.bf16.mxu0 0
      %1595 = vmatmul.mubr.bf16.gmra.mrb[0].mxu0 %v1560
      %v1596 = vpop.f32.mrb[0].mxu0
      %v1597 = vadd.f32 0.0, %v1596
      %v1598 = vpop.f32.mrb[0].mxu0
      %v1599 = vpop.f32.mrb[0].mxu0
      %v1600 = vpop.f32.mrb[0].mxu0
      %1601 = vdwg.mxu0
      %v1602 = vld [vmem:[%s669] sm:$0xff]
      %v1603 = vld [vmem:[%s669 + $0x8] sm:$0xff]
      %v1604 = vpack.c.bf16 %v1603, %v1602
      %v1605 = vld [vmem:[%s13] sm:$0xf]
      %v1606 = vld [vmem:[%s13 + $0x4] sm:$0xf]
      %v1607 = vld [vmem:[%s13 + $0x8] sm:$0xf]
      %v1608 = vld [vmem:[%s13 + $0xc] sm:$0xf]
      %v1613 = vunpack.c.l.b16 %v1605
      %v1614 = vunpack.c.l.b16 %v1606
      %v1615 = vunpack.c.l.b16 %v1607
      %v1616 = vunpack.c.l.b16 %v1608
      %v1617 = vpack.c.b16 %v1614, %v1613
      %v1618 = vpack.c.b16 %v1616, %v1615
      %v1622 = vsel %vm682, %v1604, 0
      %1624 = vmatprep.subr.bf16.mxu0 0
      %1625 = vmatpush1.bf16.msra.mxu0 %v1617
      %1626 = vmatprep.subr.bf16.mxu0 0
      %1627 = vmatpush1.bf16.msra.mxu0 %v1618
      %1628 = vmatprep.subr.bf16.mxu0 0
      %1629 = vmatpush1.bf16.msra.mxu0 0
      %1630 = vmatprep.subr.bf16.mxu0 0
      %1631 = vmatpush1.bf16.msra.mxu0 0
      %1632 = vmatprep.subr.bf16.mxu0 0
      %1633 = vmatpush1.bf16.msra.mxu0 0
      %1634 = vmatprep.subr.bf16.mxu0 0
      %1635 = vmatpush1.bf16.msra.mxu0 0
      %1636 = vmatprep.subr.bf16.mxu0 0
      %1637 = vmatpush1.bf16.msra.mxu0 0
      %1638 = vmatprep.subr.bf16.mxu0 0
      %1639 = vmatpush1.bf16.msra.mxu0 0
      %1640 = vmatprep.subr.bf16.mxu0 0
      %1641 = vmatpush1.bf16.msra.mxu0 0
      %1642 = vmatprep.subr.bf16.mxu0 0
      %1643 = vmatpush1.bf16.msra.mxu0 0
      %1644 = vmatprep.subr.bf16.mxu0 0
      %1645 = vmatpush1.bf16.msra.mxu0 0
      %1646 = vmatprep.subr.bf16.mxu0 0
      %1647 = vmatpush1.bf16.msra.mxu0 0
      %1648 = vmatprep.subr.bf16.mxu0 0
      %1649 = vmatpush1.bf16.msra.mxu0 0
      %1650 = vmatprep.subr.bf16.mxu0 0
      %1651 = vmatpush1.bf16.msra.mxu0 0
      %1652 = vmatprep.subr.bf16.mxu0 0
      %1653 = vmatpush1.bf16.msra.mxu0 0
      %1654 = vmatprep.subr.bf16.mxu0 0
      %1655 = vmatpush1.bf16.msra.mxu0 0
      %1656 = vmatprep.mubr.bf16.mxu0 0
      %1657 = vmatmul.mubr.bf16.gmra.mrb[0].mxu0 %v1622
      %v1658 = vpop.f32.mrb[0].mxu0
      %v1659 = vadd.f32 0.0, %v1658
      %v1660 = vpop.f32.mrb[0].mxu0
      %v1661 = vpop.f32.mrb[0].mxu0
      %v1662 = vadd.f32 0.0, %v1661
      %v1663 = vpop.f32.mrb[0].mxu0
      %1664 = vdwg.mxu0
      %s1665 = sld [smem:[#allocation4 + %s47]]
      %v1666 = vstv %s1665
      %vm1667 = vcmp.lt.s32.totalorder %v853, %v1666
      %vm1668 = vcmp.ge.s32.totalorder %v853, 8
      %s1669 = sld [smem:[#allocation5 + %s47]]
      %s1670 = sadd.s32 %s1669, 8
      %v1671 = vstv %s1670
      %vm1672 = vcmp.lt.s32.totalorder %v853, %v1671
      %vm1673 = vmand %vm1668, %vm1672
      %vm1674 = vmor %vm1667, %vm1673
      %v1675 = vsel %vm1674, 0.0, -1e+09
      %v1676 = vld [vmem:[%s15] sm:$0x1]
      %1677 = vst.msk [vmem:[#allocation2] sm:$0xff] %vm682, 0.0
      %v1678 = vpack.c.bf16 %v1597, %v1597
      %v1679 = vpack.c.bf16 %v1662, %v1659
      %v1681 = vsel %vm860, %v1678, 0
      %v1684 = vsel %vm860, %v1679, 0
      %1686 = vmatprep.subr.bf16.mxu0 0
      %1687 = vmatpush1.bf16.xpose.msra.mxu0 %v1684
      %1688 = vmatprep.subr.bf16.mxu0 0
      %1689 = vmatpush1.bf16.xpose.msra.mxu0 0
      %1690 = vmatprep.subr.bf16.mxu0 0
      %1691 = vmatpush1.bf16.xpose.msra.mxu0 0
      %1692 = vmatprep.subr.bf16.mxu0 0
      %1693 = vmatpush1.bf16.xpose.msra.mxu0 0
      %1694 = vmatprep.subr.bf16.mxu0 0
      %1695 = vmatpush1.bf16.xpose.msra.mxu0 0
      %1696 = vmatprep.subr.bf16.mxu0 0
      %1697 = vmatpush1.bf16.xpose.msra.mxu0 0
      %1698 = vmatprep.subr.bf16.mxu0 0
      %1699 = vmatpush1.bf16.xpose.msra.mxu0 0
      %1700 = vmatprep.subr.bf16.mxu0 0
      %1701 = vmatpush1.bf16.xpose.msra.mxu0 0
      %1702 = vmatprep.subr.bf16.mxu0 0
      %1703 = vmatpush1.bf16.xpose.msra.mxu0 0
      %1704 = vmatprep.subr.bf16.mxu0 0
      %1705 = vmatpush1.bf16.xpose.msra.mxu0 0
      %1706 = vmatprep.subr.bf16.mxu0 0
      %1707 = vmatpush1.bf16.xpose.msra.mxu0 0
      %1708 = vmatprep.subr.bf16.mxu0 0
      %1709 = vmatpush1.bf16.xpose.msra.mxu0 0
      %1710 = vmatprep.subr.bf16.mxu0 0
      %1711 = vmatpush1.bf16.xpose.msra.mxu0 0
      %1712 = vmatprep.subr.bf16.mxu0 0
      %1713 = vmatpush1.bf16.xpose.msra.mxu0 0
      %1714 = vmatprep.subr.bf16.mxu0 0
      %1715 = vmatpush1.bf16.xpose.msra.mxu0 0
      %1716 = vmatprep.subr.bf16.mxu0 0
      %1717 = vmatpush1.bf16.xpose.msra.mxu0 0
      %1718 = vmatprep.mubr.bf16.mxu0 0
      %1719 = vmatmul.mubr.bf16.gmra.mrb[0].mxu0 %v1681
      %v1720 = vpop.f32.mrb[0].mxu0
      %v1721 = vadd.f32 %v1675, %v1720
      %v1722 = vpop.f32.mrb[0].mxu0
      %v1723 = vpop.f32.mrb[0].mxu0
      %v1724 = vpop.f32.mrb[0].mxu0
      %1725 = vdwg.mxu0
      %vm1726 = vcmask 130048
      %v1727 = vsel %vm1726, %v1721, -inf
      %1728 = vmax.xlane.f32.xlu0 %v1727
      %v1729 = vpop.xlane.xlu0 %1728
      %v1730 = vsub.f32 %v1721, %v1729
      %v1731 = vmul.f32 %v1730, 1.442695
      %v1732 = vpow.pop %v1731
      %v1733 = vsel %vm1726, %v1732, 0.0
      %1734 = vadd.xlane.f32.xlu0 %v1733
      %v1735 = vpop.xlane.xlu0 %1734
      %v1736 = vrcp.pop %v1735
      %v1737 = vmul.f32 %v1732, %v1736
      %v1738 = vpack.c.bf16 %v1737, %v1737
      %1740 = vrot.lane.b32.xlu0 %v1679, 96
      %v1741 = vpop.permute.xlu0 %1740
      %v1744 = vsel %vm1726, %v1738, 0
      %1746 = vmatprep.subr.bf16.mxu0 0
      %1747 = vmatpush1.bf16.msra.mxu0 %v1741
      %1748 = vmatprep.subr.bf16.mxu0 0
      %1749 = vmatpush1.bf16.msra.mxu0 0
      %1750 = vmatprep.subr.bf16.mxu0 0
      %1751 = vmatpush1.bf16.msra.mxu0 0
      %1752 = vmatprep.subr.bf16.mxu0 0
      %1753 = vmatpush1.bf16.msra.mxu0 0
      %1754 = vmatprep.subr.bf16.mxu0 0
      %1755 = vmatpush1.bf16.msra.mxu0 0
      %1756 = vmatprep.subr.bf16.mxu0 0
      %1757 = vmatpush1.bf16.msra.mxu0 0
      %1758 = vmatprep.subr.bf16.mxu0 0
      %1759 = vmatpush1.bf16.msra.mxu0 0
      %1760 = vmatprep.subr.bf16.mxu0 0
      %1761 = vmatpush1.bf16.msra.mxu0 0
      %1762 = vmatprep.subr.bf16.mxu0 0
      %1763 = vmatpush1.bf16.msra.mxu0 0
      %1764 = vmatprep.subr.bf16.mxu0 0
      %1765 = vmatpush1.bf16.msra.mxu0 0
      %1766 = vmatprep.subr.bf16.mxu0 0
      %1767 = vmatpush1.bf16.msra.mxu0 0
      %1768 = vmatprep.subr.bf16.mxu0 0
      %1769 = vmatpush1.bf16.msra.mxu0 0
      %1770 = vmatprep.subr.bf16.mxu0 0
      %1771 = vmatpush1.bf16.msra.mxu0 0
      %1772 = vmatprep.subr.bf16.mxu0 0
      %1773 = vmatpush1.bf16.msra.mxu0 0
      %1774 = vmatprep.subr.bf16.mxu0 0
      %1775 = vmatpush1.bf16.msra.mxu0 0
      %1776 = vmatprep.subr.bf16.mxu0 0
      %1777 = vmatpush1.bf16.msra.mxu0 0
      %1778 = vmatprep.mubr.bf16.mxu0 0
      %1779 = vmatmul.mubr.bf16.gmra.mrb[0].mxu0 %v1744
      %v1780 = vpop.f32.mrb[0].mxu0
      %v1781 = vadd.f32 0.0, %v1780
      %v1782 = vpop.f32.mrb[0].mxu0
      %v1783 = vpop.f32.mrb[0].mxu0
      %v1784 = vpop.f32.mrb[0].mxu0
      %1785 = vdwg.mxu0
      %v1786 = vld [vmem:[#allocation2] sm:$0xff]
      %v1787 = vpack.c.bf16 %v1781, %v1781
      %v1788 = vld [vmem:[%s14] sm:$0xf]
      %v1790 = vsel %vm860, %v1787, 0
      %v1793 = vsel %vm925, %v1788, 0
      %1795 = vmatprep.subr.bf16.mxu0 0
      %1796 = vmatpush1.bf16.msra.mxu0 %v1793
      %1797 = vmatprep.subr.bf16.mxu0 0
      %1798 = vmatpush1.bf16.msra.mxu0 0
      %1799 = vmatprep.subr.bf16.mxu0 0
      %1800 = vmatpush1.bf16.msra.mxu0 0
      %1801 = vmatprep.subr.bf16.mxu0 0
      %1802 = vmatpush1.bf16.msra.mxu0 0
      %1803 = vmatprep.subr.bf16.mxu0 0
      %1804 = vmatpush1.bf16.msra.mxu0 0
      %1805 = vmatprep.subr.bf16.mxu0 0
      %1806 = vmatpush1.bf16.msra.mxu0 0
      %1807 = vmatprep.subr.bf16.mxu0 0
      %1808 = vmatpush1.bf16.msra.mxu0 0
      %1809 = vmatprep.subr.bf16.mxu0 0
      %1810 = vmatpush1.bf16.msra.mxu0 0
      %1811 = vmatprep.subr.bf16.mxu0 0
      %1812 = vmatpush1.bf16.msra.mxu0 0
      %1813 = vmatprep.subr.bf16.mxu0 0
      %1814 = vmatpush1.bf16.msra.mxu0 0
      %1815 = vmatprep.subr.bf16.mxu0 0
      %1816 = vmatpush1.bf16.msra.mxu0 0
      %1817 = vmatprep.subr.bf16.mxu0 0
      %1818 = vmatpush1.bf16.msra.mxu0 0
      %1819 = vmatprep.subr.bf16.mxu0 0
      %1820 = vmatpush1.bf16.msra.mxu0 0
      %1821 = vmatprep.subr.bf16.mxu0 0
      %1822 = vmatpush1.bf16.msra.mxu0 0
      %1823 = vmatprep.subr.bf16.mxu0 0
      %1824 = vmatpush1.bf16.msra.mxu0 0
      %1825 = vmatprep.subr.bf16.mxu0 0
      %1826 = vmatpush1.bf16.msra.mxu0 0
      %1827 = vmatprep.mubr.bf16.mxu0 0
      %1828 = vmatmul.mubr.bf16.gmra.mrb[0].mxu0 %v1790
      %v1829 = vpop.f32.mrb[0].mxu0
      %v1830 = vadd.f32 0.0, %v1829
      %v1831 = vpop.f32.mrb[0].mxu0
      %v1832 = vpop.f32.mrb[0].mxu0
      %v1833 = vpop.f32.mrb[0].mxu0
      %1834 = vdwg.mxu0
      %v1835 = vadd.f32 %v1786, %v1830
      %1836 = vst.msk [vmem:[#allocation2] sm:$0xff] %vm682, %v1835
      %1838 = vrot.lane.b32.xlu0 %v1678, 120
      %v1839 = vpop.permute.xlu0 %1838
      %1840 = vrot.lane.b32.xlu0 %v1679, 120
      %v1841 = vpop.permute.xlu0 %1840
      %v1843 = vsel %vm860, %v1839, 0
      %v1846 = vsel %vm860, %v1841, 0
      %1848 = vmatprep.subr.bf16.mxu0 0
      %1849 = vmatpush1.bf16.xpose.msra.mxu0 %v1846
      %1850 = vmatprep.subr.bf16.mxu0 0
      %1851 = vmatpush1.bf16.xpose.msra.mxu0 0
      %1852 = vmatprep.subr.bf16.mxu0 0
      %1853 = vmatpush1.bf16.xpose.msra.mxu0 0
      %1854 = vmatprep.subr.bf16.mxu0 0
      %1855 = vmatpush1.bf16.xpose.msra.mxu0 0
      %1856 = vmatprep.subr.bf16.mxu0 0
      %1857 = vmatpush1.bf16.xpose.msra.mxu0 0
      %1858 = vmatprep.subr.bf16.mxu0 0
      %1859 = vmatpush1.bf16.xpose.msra.mxu0 0
      %1860 = vmatprep.subr.bf16.mxu0 0
      %1861 = vmatpush1.bf16.xpose.msra.mxu0 0
      %1862 = vmatprep.subr.bf16.mxu0 0
      %1863 = vmatpush1.bf16.xpose.msra.mxu0 0
      %1864 = vmatprep.subr.bf16.mxu0 0
      %1865 = vmatpush1.bf16.xpose.msra.mxu0 0
      %1866 = vmatprep.subr.bf16.mxu0 0
      %1867 = vmatpush1.bf16.xpose.msra.mxu0 0
      %1868 = vmatprep.subr.bf16.mxu0 0
      %1869 = vmatpush1.bf16.xpose.msra.mxu0 0
      %1870 = vmatprep.subr.bf16.mxu0 0
      %1871 = vmatpush1.bf16.xpose.msra.mxu0 0
      %1872 = vmatprep.subr.bf16.mxu0 0
      %1873 = vmatpush1.bf16.xpose.msra.mxu0 0
      %1874 = vmatprep.subr.bf16.mxu0 0
      %1875 = vmatpush1.bf16.xpose.msra.mxu0 0
      %1876 = vmatprep.subr.bf16.mxu0 0
      %1877 = vmatpush1.bf16.xpose.msra.mxu0 0
      %1878 = vmatprep.subr.bf16.mxu0 0
      %1879 = vmatpush1.bf16.xpose.msra.mxu0 0
      %1880 = vmatprep.mubr.bf16.mxu0 0
      %1881 = vmatmul.mubr.bf16.gmra.mrb[0].mxu0 %v1843
      %v1882 = vpop.f32.mrb[0].mxu0
      %v1883 = vadd.f32 %v1675, %v1882
      %v1884 = vpop.f32.mrb[0].mxu0
      %v1885 = vpop.f32.mrb[0].mxu0
      %v1886 = vpop.f32.mrb[0].mxu0
      %1887 = vdwg.mxu0
      %v1888 = vsel %vm1726, %v1883, -inf
      %1889 = vmax.xlane.f32.xlu0 %v1888
      %v1890 = vpop.xlane.xlu0 %1889
      %v1891 = vsub.f32 %v1883, %v1890
      %v1892 = vmul.f32 %v1891, 1.442695
      %v1893 = vpow.pop %v1892
      %v1894 = vsel %vm1726, %v1893, 0.0
      %1895 = vadd.xlane.f32.xlu0 %v1894
      %v1896 = vpop.xlane.xlu0 %1895
      %v1897 = vrcp.pop %v1896
      %v1898 = vmul.f32 %v1893, %v1897
      %v1899 = vpack.c.bf16 %v1898, %v1898
      %1900 = vrot.lane.b32.xlu0 %v1679, 88
      %v1901 = vpop.permute.xlu0 %1900
      %v1904 = vsel %vm1726, %v1899, 0
      %1906 = vmatprep.subr.bf16.mxu0 0
      %1907 = vmatpush1.bf16.msra.mxu0 %v1901
      %1908 = vmatprep.subr.bf16.mxu0 0
      %1909 = vmatpush1.bf16.msra.mxu0 0
      %1910 = vmatprep.subr.bf16.mxu0 0
      %1911 = vmatpush1.bf16.msra.mxu0 0
      %1912 = vmatprep.subr.bf16.mxu0 0
      %1913 = vmatpush1.bf16.msra.mxu0 0
      %1914 = vmatprep.subr.bf16.mxu0 0
      %1915 = vmatpush1.bf16.msra.mxu0 0
      %1916 = vmatprep.subr.bf16.mxu0 0
      %1917 = vmatpush1.bf16.msra.mxu0 0
      %1918 = vmatprep.subr.bf16.mxu0 0
      %1919 = vmatpush1.bf16.msra.mxu0 0
      %1920 = vmatprep.subr.bf16.mxu0 0
      %1921 = vmatpush1.bf16.msra.mxu0 0
      %1922 = vmatprep.subr.bf16.mxu0 0
      %1923 = vmatpush1.bf16.msra.mxu0 0
      %1924 = vmatprep.subr.bf16.mxu0 0
      %1925 = vmatpush1.bf16.msra.mxu0 0
      %1926 = vmatprep.subr.bf16.mxu0 0
      %1927 = vmatpush1.bf16.msra.mxu0 0
      %1928 = vmatprep.subr.bf16.mxu0 0
      %1929 = vmatpush1.bf16.msra.mxu0 0
      %1930 = vmatprep.subr.bf16.mxu0 0
      %1931 = vmatpush1.bf16.msra.mxu0 0
      %1932 = vmatprep.subr.bf16.mxu0 0
      %1933 = vmatpush1.bf16.msra.mxu0 0
      %1934 = vmatprep.subr.bf16.mxu0 0
      %1935 = vmatpush1.bf16.msra.mxu0 0
      %1936 = vmatprep.subr.bf16.mxu0 0
      %1937 = vmatpush1.bf16.msra.mxu0 0
      %1938 = vmatprep.mubr.bf16.mxu0 0
      %1939 = vmatmul.mubr.bf16.gmra.mrb[0].mxu0 %v1904
      %v1940 = vpop.f32.mrb[0].mxu0
      %v1941 = vadd.f32 0.0, %v1940
      %v1942 = vpop.f32.mrb[0].mxu0
      %v1943 = vpop.f32.mrb[0].mxu0
      %v1944 = vpop.f32.mrb[0].mxu0
      %1945 = vdwg.mxu0
      %v1946 = vld [vmem:[#allocation2] sm:$0xff]
      %v1947 = vpack.c.bf16 %v1941, %v1941
      %v1948 = vld [vmem:[%s14 + $0x4] sm:$0xf]
      %v1950 = vsel %vm860, %v1947, 0
      %v1953 = vsel %vm925, %v1948, 0
      %1955 = vmatprep.subr.bf16.mxu0 0
      %1956 = vmatpush1.bf16.msra.mxu0 %v1953
      %1957 = vmatprep.subr.bf16.mxu0 0
      %1958 = vmatpush1.bf16.msra.mxu0 0
      %1959 = vmatprep.subr.bf16.mxu0 0
      %1960 = vmatpush1.bf16.msra.mxu0 0
      %1961 = vmatprep.subr.bf16.mxu0 0
      %1962 = vmatpush1.bf16.msra.mxu0 0
      %1963 = vmatprep.subr.bf16.mxu0 0
      %1964 = vmatpush1.bf16.msra.mxu0 0
      %1965 = vmatprep.subr.bf16.mxu0 0
      %1966 = vmatpush1.bf16.msra.mxu0 0
      %1967 = vmatprep.subr.bf16.mxu0 0
      %1968 = vmatpush1.bf16.msra.mxu0 0
      %1969 = vmatprep.subr.bf16.mxu0 0
      %1970 = vmatpush1.bf16.msra.mxu0 0
      %1971 = vmatprep.subr.bf16.mxu0 0
      %1972 = vmatpush1.bf16.msra.mxu0 0
      %1973 = vmatprep.subr.bf16.mxu0 0
      %1974 = vmatpush1.bf16.msra.mxu0 0
      %1975 = vmatprep.subr.bf16.mxu0 0
      %1976 = vmatpush1.bf16.msra.mxu0 0
      %1977 = vmatprep.subr.bf16.mxu0 0
      %1978 = vmatpush1.bf16.msra.mxu0 0
      %1979 = vmatprep.subr.bf16.mxu0 0
      %1980 = vmatpush1.bf16.msra.mxu0 0
      %1981 = vmatprep.subr.bf16.mxu0 0
      %1982 = vmatpush1.bf16.msra.mxu0 0
      %1983 = vmatprep.subr.bf16.mxu0 0
      %1984 = vmatpush1.bf16.msra.mxu0 0
      %1985 = vmatprep.subr.bf16.mxu0 0
      %1986 = vmatpush1.bf16.msra.mxu0 0
      %1987 = vmatprep.mubr.bf16.mxu0 0
      %1988 = vmatmul.mubr.bf16.gmra.mrb[0].mxu0 %v1950
      %v1989 = vpop.f32.mrb[0].mxu0
      %v1990 = vadd.f32 0.0, %v1989
      %v1991 = vpop.f32.mrb[0].mxu0
      %v1992 = vpop.f32.mrb[0].mxu0
      %v1993 = vpop.f32.mrb[0].mxu0
      %1994 = vdwg.mxu0
      %v1995 = vadd.f32 %v1946, %v1990
      %1996 = vst.msk [vmem:[#allocation2] sm:$0xff] %vm682, %v1995
      %1997 = vrot.lane.b32.xlu0 %v1678, 112
      %v1998 = vpop.permute.xlu0 %1997
      %1999 = vrot.lane.b32.xlu0 %v1679, 112
      %v2000 = vpop.permute.xlu0 %1999
      %v2002 = vsel %vm860, %v1998, 0
      %v2005 = vsel %vm860, %v2000, 0
      %2007 = vmatprep.subr.bf16.mxu0 0
      %2008 = vmatpush1.bf16.xpose.msra.mxu0 %v2005
      %2009 = vmatprep.subr.bf16.mxu0 0
      %2010 = vmatpush1.bf16.xpose.msra.mxu0 0
      %2011 = vmatprep.subr.bf16.mxu0 0
      %2012 = vmatpush1.bf16.xpose.msra.mxu0 0
      %2013 = vmatprep.subr.bf16.mxu0 0
      %2014 = vmatpush1.bf16.xpose.msra.mxu0 0
      %2015 = vmatprep.subr.bf16.mxu0 0
      %2016 = vmatpush1.bf16.xpose.msra.mxu0 0
      %2017 = vmatprep.subr.bf16.mxu0 0
      %2018 = vmatpush1.bf16.xpose.msra.mxu0 0
      %2019 = vmatprep.subr.bf16.mxu0 0
      %2020 = vmatpush1.bf16.xpose.msra.mxu0 0
      %2021 = vmatprep.subr.bf16.mxu0 0
      %2022 = vmatpush1.bf16.xpose.msra.mxu0 0
      %2023 = vmatprep.subr.bf16.mxu0 0
      %2024 = vmatpush1.bf16.xpose.msra.mxu0 0
      %2025 = vmatprep.subr.bf16.mxu0 0
      %2026 = vmatpush1.bf16.xpose.msra.mxu0 0
      %2027 = vmatprep.subr.bf16.mxu0 0
      %2028 = vmatpush1.bf16.xpose.msra.mxu0 0
      %2029 = vmatprep.subr.bf16.mxu0 0
      %2030 = vmatpush1.bf16.xpose.msra.mxu0 0
      %2031 = vmatprep.subr.bf16.mxu0 0
      %2032 = vmatpush1.bf16.xpose.msra.mxu0 0
      %2033 = vmatprep.subr.bf16.mxu0 0
      %2034 = vmatpush1.bf16.xpose.msra.mxu0 0
      %2035 = vmatprep.subr.bf16.mxu0 0
      %2036 = vmatpush1.bf16.xpose.msra.mxu0 0
      %2037 = vmatprep.subr.bf16.mxu0 0
      %2038 = vmatpush1.bf16.xpose.msra.mxu0 0
      %2039 = vmatprep.mubr.bf16.mxu0 0
      %2040 = vmatmul.mubr.bf16.gmra.mrb[0].mxu0 %v2002
      %v2041 = vpop.f32.mrb[0].mxu0
      %v2042 = vadd.f32 %v1675, %v2041
      %v2043 = vpop.f32.mrb[0].mxu0
      %v2044 = vpop.f32.mrb[0].mxu0
      %v2045 = vpop.f32.mrb[0].mxu0
      %2046 = vdwg.mxu0
      %v2047 = vsel %vm1726, %v2042, -inf
      %2048 = vmax.xlane.f32.xlu0 %v2047
      %v2049 = vpop.xlane.xlu0 %2048
      %v2050 = vsub.f32 %v2042, %v2049
      %v2051 = vmul.f32 %v2050, 1.442695
      %v2052 = vpow.pop %v2051
      %v2053 = vsel %vm1726, %v2052, 0.0
      %2054 = vadd.xlane.f32.xlu0 %v2053
      %v2055 = vpop.xlane.xlu0 %2054
      %v2056 = vrcp.pop %v2055
      %v2057 = vmul.f32 %v2052, %v2056
      %v2058 = vpack.c.bf16 %v2057, %v2057
      %2059 = vrot.lane.b32.xlu0 %v1679, 80
      %v2060 = vpop.permute.xlu0 %2059
      %v2063 = vsel %vm1726, %v2058, 0
      %2065 = vmatprep.subr.bf16.mxu0 0
      %2066 = vmatpush1.bf16.msra.mxu0 %v2060
      %2067 = vmatprep.subr.bf16.mxu0 0
      %2068 = vmatpush1.bf16.msra.mxu0 0
      %2069 = vmatprep.subr.bf16.mxu0 0
      %2070 = vmatpush1.bf16.msra.mxu0 0
      %2071 = vmatprep.subr.bf16.mxu0 0
      %2072 = vmatpush1.bf16.msra.mxu0 0
      %2073 = vmatprep.subr.bf16.mxu0 0
      %2074 = vmatpush1.bf16.msra.mxu0 0
      %2075 = vmatprep.subr.bf16.mxu0 0
      %2076 = vmatpush1.bf16.msra.mxu0 0
      %2077 = vmatprep.subr.bf16.mxu0 0
      %2078 = vmatpush1.bf16.msra.mxu0 0
      %2079 = vmatprep.subr.bf16.mxu0 0
      %2080 = vmatpush1.bf16.msra.mxu0 0
      %2081 = vmatprep.subr.bf16.mxu0 0
      %2082 = vmatpush1.bf16.msra.mxu0 0
      %2083 = vmatprep.subr.bf16.mxu0 0
      %2084 = vmatpush1.bf16.msra.mxu0 0
      %2085 = vmatprep.subr.bf16.mxu0 0
      %2086 = vmatpush1.bf16.msra.mxu0 0
      %2087 = vmatprep.subr.bf16.mxu0 0
      %2088 = vmatpush1.bf16.msra.mxu0 0
      %2089 = vmatprep.subr.bf16.mxu0 0
      %2090 = vmatpush1.bf16.msra.mxu0 0
      %2091 = vmatprep.subr.bf16.mxu0 0
      %2092 = vmatpush1.bf16.msra.mxu0 0
      %2093 = vmatprep.subr.bf16.mxu0 0
      %2094 = vmatpush1.bf16.msra.mxu0 0
      %2095 = vmatprep.subr.bf16.mxu0 0
      %2096 = vmatpush1.bf16.msra.mxu0 0
      %2097 = vmatprep.mubr.bf16.mxu0 0
      %2098 = vmatmul.mubr.bf16.gmra.mrb[0].mxu0 %v2063
      %v2099 = vpop.f32.mrb[0].mxu0
      %v2100 = vadd.f32 0.0, %v2099
      %v2101 = vpop.f32.mrb[0].mxu0
      %v2102 = vpop.f32.mrb[0].mxu0
      %v2103 = vpop.f32.mrb[0].mxu0
      %2104 = vdwg.mxu0
      %v2105 = vld [vmem:[#allocation2] sm:$0xff]
      %v2106 = vpack.c.bf16 %v2100, %v2100
      %v2107 = vld [vmem:[%s14 + $0x8] sm:$0xf]
      %v2109 = vsel %vm860, %v2106, 0
      %v2112 = vsel %vm925, %v2107, 0
      %2114 = vmatprep.subr.bf16.mxu0 0
      %2115 = vmatpush1.bf16.msra.mxu0 %v2112
      %2116 = vmatprep.subr.bf16.mxu0 0
      %2117 = vmatpush1.bf16.msra.mxu0 0
      %2118 = vmatprep.subr.bf16.mxu0 0
      %2119 = vmatpush1.bf16.msra.mxu0 0
      %2120 = vmatprep.subr.bf16.mxu0 0
      %2121 = vmatpush1.bf16.msra.mxu0 0
      %2122 = vmatprep.subr.bf16.mxu0 0
      %2123 = vmatpush1.bf16.msra.mxu0 0
      %2124 = vmatprep.subr.bf16.mxu0 0
      %2125 = vmatpush1.bf16.msra.mxu0 0
      %2126 = vmatprep.subr.bf16.mxu0 0
      %2127 = vmatpush1.bf16.msra.mxu0 0
      %2128 = vmatprep.subr.bf16.mxu0 0
      %2129 = vmatpush1.bf16.msra.mxu0 0
      %2130 = vmatprep.subr.bf16.mxu0 0
      %2131 = vmatpush1.bf16.msra.mxu0 0
      %2132 = vmatprep.subr.bf16.mxu0 0
      %2133 = vmatpush1.bf16.msra.mxu0 0
      %2134 = vmatprep.subr.bf16.mxu0 0
      %2135 = vmatpush1.bf16.msra.mxu0 0
      %2136 = vmatprep.subr.bf16.mxu0 0
      %2137 = vmatpush1.bf16.msra.mxu0 0
      %2138 = vmatprep.subr.bf16.mxu0 0
      %2139 = vmatpush1.bf16.msra.mxu0 0
      %2140 = vmatprep.subr.bf16.mxu0 0
      %2141 = vmatpush1.bf16.msra.mxu0 0
      %2142 = vmatprep.subr.bf16.mxu0 0
      %2143 = vmatpush1.bf16.msra.mxu0 0
      %2144 = vmatprep.subr.bf16.mxu0 0
      %2145 = vmatpush1.bf16.msra.mxu0 0
      %2146 = vmatprep.mubr.bf16.mxu0 0
      %2147 = vmatmul.mubr.bf16.gmra.mrb[0].mxu0 %v2109
      %v2148 = vpop.f32.mrb[0].mxu0
      %v2149 = vadd.f32 0.0, %v2148
      %v2150 = vpop.f32.mrb[0].mxu0
      %v2151 = vpop.f32.mrb[0].mxu0
      %v2152 = vpop.f32.mrb[0].mxu0
      %2153 = vdwg.mxu0
      %v2154 = vadd.f32 %v2105, %v2149
      %2155 = vst.msk [vmem:[#allocation2] sm:$0xff] %vm682, %v2154
      %2156 = vrot.lane.b32.xlu0 %v1678, 104
      %v2157 = vpop.permute.xlu0 %2156
      %2158 = vrot.lane.b32.xlu0 %v1679, 104
      %v2159 = vpop.permute.xlu0 %2158
      %v2161 = vsel %vm860, %v2157, 0
      %v2164 = vsel %vm860, %v2159, 0
      %2166 = vmatprep.subr.bf16.mxu0 0
      %2167 = vmatpush1.bf16.xpose.msra.mxu0 %v2164
      %2168 = vmatprep.subr.bf16.mxu0 0
      %2169 = vmatpush1.bf16.xpose.msra.mxu0 0
      %2170 = vmatprep.subr.bf16.mxu0 0
      %2171 = vmatpush1.bf16.xpose.msra.mxu0 0
      %2172 = vmatprep.subr.bf16.mxu0 0
      %2173 = vmatpush1.bf16.xpose.msra.mxu0 0
      %2174 = vmatprep.subr.bf16.mxu0 0
      %2175 = vmatpush1.bf16.xpose.msra.mxu0 0
      %2176 = vmatprep.subr.bf16.mxu0 0
      %2177 = vmatpush1.bf16.xpose.msra.mxu0 0
      %2178 = vmatprep.subr.bf16.mxu0 0
      %2179 = vmatpush1.bf16.xpose.msra.mxu0 0
      %2180 = vmatprep.subr.bf16.mxu0 0
      %2181 = vmatpush1.bf16.xpose.msra.mxu0 0
      %2182 = vmatprep.subr.bf16.mxu0 0
      %2183 = vmatpush1.bf16.xpose.msra.mxu0 0
      %2184 = vmatprep.subr.bf16.mxu0 0
      %2185 = vmatpush1.bf16.xpose.msra.mxu0 0
      %2186 = vmatprep.subr.bf16.mxu0 0
      %2187 = vmatpush1.bf16.xpose.msra.mxu0 0
      %2188 = vmatprep.subr.bf16.mxu0 0
      %2189 = vmatpush1.bf16.xpose.msra.mxu0 0
      %2190 = vmatprep.subr.bf16.mxu0 0
      %2191 = vmatpush1.bf16.xpose.msra.mxu0 0
      %2192 = vmatprep.subr.bf16.mxu0 0
      %2193 = vmatpush1.bf16.xpose.msra.mxu0 0
      %2194 = vmatprep.subr.bf16.mxu0 0
      %2195 = vmatpush1.bf16.xpose.msra.mxu0 0
      %2196 = vmatprep.subr.bf16.mxu0 0
      %2197 = vmatpush1.bf16.xpose.msra.mxu0 0
      %2198 = vmatprep.mubr.bf16.mxu0 0
      %2199 = vmatmul.mubr.bf16.gmra.mrb[0].mxu0 %v2161
      %v2200 = vpop.f32.mrb[0].mxu0
      %v2201 = vadd.f32 %v1675, %v2200
      %v2202 = vpop.f32.mrb[0].mxu0
      %v2203 = vpop.f32.mrb[0].mxu0
      %v2204 = vpop.f32.mrb[0].mxu0
      %2205 = vdwg.mxu0
      %v2206 = vsel %vm1726, %v2201, -inf
      %2207 = vmax.xlane.f32.xlu0 %v2206
      %v2208 = vpop.xlane.xlu0 %2207
      %v2209 = vsub.f32 %v2201, %v2208
      %v2210 = vmul.f32 %v2209, 1.442695
      %v2211 = vpow.pop %v2210
      %v2212 = vsel %vm1726, %v2211, 0.0
      %2213 = vadd.xlane.f32.xlu0 %v2212
      %v2214 = vpop.xlane.xlu0 %2213
      %v2215 = vrcp.pop %v2214
      %v2216 = vmul.f32 %v2211, %v2215
      %v2217 = vpack.c.bf16 %v2216, %v2216
      %2218 = vrot.lane.b32.xlu0 %v1679, 72
      %v2219 = vpop.permute.xlu0 %2218
      %v2222 = vsel %vm1726, %v2217, 0
      %2224 = vmatprep.subr.bf16.mxu0 0
      %2225 = vmatpush1.bf16.msra.mxu0 %v2219
      %2226 = vmatprep.subr.bf16.mxu0 0
      %2227 = vmatpush1.bf16.msra.mxu0 0
      %2228 = vmatprep.subr.bf16.mxu0 0
      %2229 = vmatpush1.bf16.msra.mxu0 0
      %2230 = vmatprep.subr.bf16.mxu0 0
      %2231 = vmatpush1.bf16.msra.mxu0 0
      %2232 = vmatprep.subr.bf16.mxu0 0
      %2233 = vmatpush1.bf16.msra.mxu0 0
      %2234 = vmatprep.subr.bf16.mxu0 0
      %2235 = vmatpush1.bf16.msra.mxu0 0
      %2236 = vmatprep.subr.bf16.mxu0 0
      %2237 = vmatpush1.bf16.msra.mxu0 0
      %2238 = vmatprep.subr.bf16.mxu0 0
      %2239 = vmatpush1.bf16.msra.mxu0 0
      %2240 = vmatprep.subr.bf16.mxu0 0
      %2241 = vmatpush1.bf16.msra.mxu0 0
      %2242 = vmatprep.subr.bf16.mxu0 0
      %2243 = vmatpush1.bf16.msra.mxu0 0
      %2244 = vmatprep.subr.bf16.mxu0 0
      %2245 = vmatpush1.bf16.msra.mxu0 0
      %2246 = vmatprep.subr.bf16.mxu0 0
      %2247 = vmatpush1.bf16.msra.mxu0 0
      %2248 = vmatprep.subr.bf16.mxu0 0
      %2249 = vmatpush1.bf16.msra.mxu0 0
      %2250 = vmatprep.subr.bf16.mxu0 0
      %2251 = vmatpush1.bf16.msra.mxu0 0
      %2252 = vmatprep.subr.bf16.mxu0 0
      %2253 = vmatpush1.bf16.msra.mxu0 0
      %2254 = vmatprep.subr.bf16.mxu0 0
      %2255 = vmatpush1.bf16.msra.mxu0 0
      %2256 = vmatprep.mubr.bf16.mxu0 0
      %2257 = vmatmul.mubr.bf16.gmra.mrb[0].mxu0 %v2222
      %v2258 = vpop.f32.mrb[0].mxu0
      %v2259 = vadd.f32 0.0, %v2258
      %v2260 = vpop.f32.mrb[0].mxu0
      %v2261 = vpop.f32.mrb[0].mxu0
      %v2262 = vpop.f32.mrb[0].mxu0
      %2263 = vdwg.mxu0
      %v2264 = vld [vmem:[#allocation2] sm:$0xff]
      %v2265 = vpack.c.bf16 %v2259, %v2259
      %v2266 = vld [vmem:[%s14 + $0xc] sm:$0xf]
      %v2268 = vsel %vm860, %v2265, 0
      %v2271 = vsel %vm925, %v2266, 0
      %2273 = vmatprep.subr.bf16.mxu0 0
      %2274 = vmatpush1.bf16.msra.mxu0 %v2271
      %2275 = vmatprep.subr.bf16.mxu0 0
      %2276 = vmatpush1.bf16.msra.mxu0 0
      %2277 = vmatprep.subr.bf16.mxu0 0
      %2278 = vmatpush1.bf16.msra.mxu0 0
      %2279 = vmatprep.subr.bf16.mxu0 0
      %2280 = vmatpush1.bf16.msra.mxu0 0
      %2281 = vmatprep.subr.bf16.mxu0 0
      %2282 = vmatpush1.bf16.msra.mxu0 0
      %2283 = vmatprep.subr.bf16.mxu0 0
      %2284 = vmatpush1.bf16.msra.mxu0 0
      %2285 = vmatprep.subr.bf16.mxu0 0
      %2286 = vmatpush1.bf16.msra.mxu0 0
      %2287 = vmatprep.subr.bf16.mxu0 0
      %2288 = vmatpush1.bf16.msra.mxu0 0
      %2289 = vmatprep.subr.bf16.mxu0 0
      %2290 = vmatpush1.bf16.msra.mxu0 0
      %2291 = vmatprep.subr.bf16.mxu0 0
      %2292 = vmatpush1.bf16.msra.mxu0 0
      %2293 = vmatprep.subr.bf16.mxu0 0
      %2294 = vmatpush1.bf16.msra.mxu0 0
      %2295 = vmatprep.subr.bf16.mxu0 0
      %2296 = vmatpush1.bf16.msra.mxu0 0
      %2297 = vmatprep.subr.bf16.mxu0 0
      %2298 = vmatpush1.bf16.msra.mxu0 0
      %2299 = vmatprep.subr.bf16.mxu0 0
      %2300 = vmatpush1.bf16.msra.mxu0 0
      %2301 = vmatprep.subr.bf16.mxu0 0
      %2302 = vmatpush1.bf16.msra.mxu0 0
      %2303 = vmatprep.subr.bf16.mxu0 0
      %2304 = vmatpush1.bf16.msra.mxu0 0
      %2305 = vmatprep.mubr.bf16.mxu0 0
      %2306 = vmatmul.mubr.bf16.gmra.mrb[0].mxu0 %v2268
      %v2307 = vpop.f32.mrb[0].mxu0
      %v2308 = vadd.f32 0.0, %v2307
      %v2309 = vpop.f32.mrb[0].mxu0
      %v2310 = vpop.f32.mrb[0].mxu0
      %v2311 = vpop.f32.mrb[0].mxu0
      %2312 = vdwg.mxu0
      %v2313 = vadd.f32 %v2264, %v2308
      %2314 = vst.msk [vmem:[#allocation2] sm:$0xff] %vm682, %v2313
      %v2315 = vld [vmem:[#allocation2] sm:$0xff]
      %v2317 = vlaneseq
      %v2318 = vshrl.u32 %v2317, 7
      %v2319 = vsub.s32 0, %v2318
      %v2320 = vrot.slane %v1676, %v2319
      %v2322 = vadd.f32 %v2315, %v2320
      %v2323 = vadd.f32 %v1541, %v2322
      %v2324 = vld [vmem:[%s16] sm:$0x1]
      %v2325 = vld [vmem:[%s17] sm:$0x1]
      %v2326 = vsel %vm682, %v2323, 0.0
      %2327 = vadd.xlane.f32.xlu0 %v2326
      %v2328 = vpop.xlane.xlu0 %2327
      %v2329 = vmul.f32 %v2328, %v686
      %v2330 = vsub.f32 %v2323, %v2329
      %v2331 = vmul.f32 %v2330, %v2330
      %v2332 = vsel %vm682, %v2331, 0.0
      %2333 = vadd.xlane.f32.xlu0 %v2332
      %v2334 = vpop.xlane.xlu0 %2333
      %v2335 = vmul.f32 %v2334, %v686
      %v2336 = vadd.f32 %v2335, 1e-05
      %v2337 = vrsqrt.pop %v2336
      %v2338 = vmul.f32 %v2330, %v2337
      %v2340 = vlaneseq
      %v2341 = vshrl.u32 %v2340, 7
      %v2342 = vsub.s32 0, %v2341
      %v2343 = vrot.slane %v2324, %v2342
      %v2345 = vmul.f32 %v2338, %v2343
      %v2347 = vlaneseq
      %v2348 = vshrl.u32 %v2347, 7
      %v2349 = vsub.s32 0, %v2348
      %v2350 = vrot.slane %v2325, %v2349
      %v2352 = vadd.f32 %v2345, %v2350
      %v2353 = vpack.c.bf16 %v2352, %v2352
      %v2354 = vld [vmem:[%s18] sm:$0xf]
      %v2355 = vld [vmem:[%s18 + $0x4] sm:$0xf]
      %v2356 = vld [vmem:[%s18 + $0x8] sm:$0xf]
      %v2357 = vld [vmem:[%s18 + $0xc] sm:$0xf]
      %v2358 = vld [vmem:[%s19] sm:$0x1]
      %v2360 = vlaneseq
      %v2361 = vshrl.u32 %v2360, 7
      %v2362 = vsub.s32 0, %v2361
      %v2363 = vrot.slane %v2358, %v2362
      %v2369 = vunpack.c.l.b16 %v2354
      %v2370 = vunpack.c.l.b16 %v2355
      %v2371 = vunpack.c.l.b16 %v2356
      %v2372 = vunpack.c.l.b16 %v2357
      %v2373 = vpack.c.b16 %v2370, %v2369
      %v2374 = vpack.c.b16 %v2372, %v2371
      %v2378 = vsel %vm682, %v2353, 0
      %2380 = vmatprep.subr.bf16.mxu0 0
      %2381 = vmatpush1.bf16.msra.mxu0 %v2373
      %2382 = vmatprep.subr.bf16.mxu0 0
      %2383 = vmatpush1.bf16.msra.mxu0 %v2374
      %2384 = vmatprep.subr.bf16.mxu0 0
      %2385 = vmatpush1.bf16.msra.mxu0 0
      %2386 = vmatprep.subr.bf16.mxu0 0
      %2387 = vmatpush1.bf16.msra.mxu0 0
      %2388 = vmatprep.subr.bf16.mxu0 0
      %2389 = vmatpush1.bf16.msra.mxu0 0
      %2390 = vmatprep.subr.bf16.mxu0 0
      %2391 = vmatpush1.bf16.msra.mxu0 0
      %2392 = vmatprep.subr.bf16.mxu0 0
      %2393 = vmatpush1.bf16.msra.mxu0 0
      %2394 = vmatprep.subr.bf16.mxu0 0
      %2395 = vmatpush1.bf16.msra.mxu0 0
      %2396 = vmatprep.subr.bf16.mxu0 0
      %2397 = vmatpush1.bf16.msra.mxu0 0
      %2398 = vmatprep.subr.bf16.mxu0 0
      %2399 = vmatpush1.bf16.msra.mxu0 0
      %2400 = vmatprep.subr.bf16.mxu0 0
      %2401 = vmatpush1.bf16.msra.mxu0 0
      %2402 = vmatprep.subr.bf16.mxu0 0
      %2403 = vmatpush1.bf16.msra.mxu0 0
      %2404 = vmatprep.subr.bf16.mxu0 0
      %2405 = vmatpush1.bf16.msra.mxu0 0
      %2406 = vmatprep.subr.bf16.mxu0 0
      %2407 = vmatpush1.bf16.msra.mxu0 0
      %2408 = vmatprep.subr.bf16.mxu0 0
      %2409 = vmatpush1.bf16.msra.mxu0 0
      %2410 = vmatprep.subr.bf16.mxu0 0
      %2411 = vmatpush1.bf16.msra.mxu0 0
      %2412 = vmatprep.mubr.bf16.mxu0 0
      %2413 = vmatmul.mubr.bf16.gmra.mrb[0].mxu0 %v2378
      %v2414 = vpop.f32.mrb[0].mxu0
      %v2415 = vadd.f32 %v2363, %v2414
      %v2416 = vpop.f32.mrb[0].mxu0
      %v2417 = vpop.f32.mrb[0].mxu0
      %v2418 = vpop.f32.mrb[0].mxu0
      %2419 = vdwg.mxu0
      %v2420 = vmax.f32 %v2415, 0.0
      %v2421 = vpack.c.bf16 %v2420, %v2420
      %v2422 = vld [vmem:[%s20] sm:$0xf]
      %v2423 = vld [vmem:[%s20 + $0x4] sm:$0xf]
      %v2424 = vld [vmem:[%s20 + $0x8] sm:$0xf]
      %v2425 = vld [vmem:[%s20 + $0xc] sm:$0xf]
      %v2426 = vld [vmem:[%s20 + $0x10] sm:$0xf]
      %v2427 = vld [vmem:[%s20 + $0x14] sm:$0xf]
      %v2428 = vld [vmem:[%s20 + $0x18] sm:$0xf]
      %v2429 = vld [vmem:[%s20 + $0x1c] sm:$0xf]
      %v2430 = vld [vmem:[%s21] sm:$0x1]
      %v2432 = vlaneseq
      %v2433 = vshrl.u32 %v2432, 7
      %v2434 = vsub.s32 0, %v2433
      %v2435 = vrot.slane %v2430, %v2434
      %v2445 = vunpack.c.l.b16 %v2422
      %v2446 = vunpack.c.l.b16 %v2423
      %v2447 = vunpack.c.l.b16 %v2424
      %v2448 = vunpack.c.l.b16 %v2425
      %v2449 = vunpack.c.l.b16 %v2426
      %v2450 = vunpack.c.l.b16 %v2427
      %v2451 = vunpack.c.l.b16 %v2428
      %v2452 = vunpack.c.l.b16 %v2429
      %v2453 = vpack.c.b16 %v2446, %v2445
      %v2454 = vpack.c.b16 %v2448, %v2447
      %v2455 = vpack.c.b16 %v2450, %v2449
      %v2456 = vpack.c.b16 %v2452, %v2451
      %vm2461 = vcmask 523264
      %v2463 = vsel %vm2461, %v2421, 0
      %2465 = vmatprep.subr.bf16.mxu0 0
      %2466 = vmatpush1.bf16.msra.mxu0 %v2453
      %2467 = vmatprep.subr.bf16.mxu0 0
      %2468 = vmatpush1.bf16.msra.mxu0 %v2454
      %2469 = vmatprep.subr.bf16.mxu0 0
      %2470 = vmatpush1.bf16.msra.mxu0 %v2455
      %2471 = vmatprep.subr.bf16.mxu0 0
      %2472 = vmatpush1.bf16.msra.mxu0 %v2456
      %2473 = vmatprep.subr.bf16.mxu0 0
      %2474 = vmatpush1.bf16.msra.mxu0 0
      %2475 = vmatprep.subr.bf16.mxu0 0
      %2476 = vmatpush1.bf16.msra.mxu0 0
      %2477 = vmatprep.subr.bf16.mxu0 0
      %2478 = vmatpush1.bf16.msra.mxu0 0
      %2479 = vmatprep.subr.bf16.mxu0 0
      %2480 = vmatpush1.bf16.msra.mxu0 0
      %2481 = vmatprep.subr.bf16.mxu0 0
      %2482 = vmatpush1.bf16.msra.mxu0 0
      %2483 = vmatprep.subr.bf16.mxu0 0
      %2484 = vmatpush1.bf16.msra.mxu0 0
      %2485 = vmatprep.subr.bf16.mxu0 0
      %2486 = vmatpush1.bf16.msra.mxu0 0
      %2487 = vmatprep.subr.bf16.mxu0 0
      %2488 = vmatpush1.bf16.msra.mxu0 0
      %2489 = vmatprep.subr.bf16.mxu0 0
      %2490 = vmatpush1.bf16.msra.mxu0 0
      %2491 = vmatprep.subr.bf16.mxu0 0
      %2492 = vmatpush1.bf16.msra.mxu0 0
      %2493 = vmatprep.subr.bf16.mxu0 0
      %2494 = vmatpush1.bf16.msra.mxu0 0
      %2495 = vmatprep.subr.bf16.mxu0 0
      %2496 = vmatpush1.bf16.msra.mxu0 0
      %2497 = vmatprep.mubr.bf16.mxu0 0
      %2498 = vmatmul.mubr.bf16.gmra.mrb[0].mxu0 %v2463
      %v2499 = vpop.f32.mrb[0].mxu0
      %v2500 = vadd.f32 %v2435, %v2499
      %v2501 = vpop.f32.mrb[0].mxu0
      %v2502 = vpop.f32.mrb[0].mxu0
      %v2503 = vpop.f32.mrb[0].mxu0
      %2504 = vdwg.mxu0
      %v2505 = vadd.f32 %v2352, %v2500
      %2506 = vst.msk [vmem:[%s676] sm:$0xff] %vm682, %v2505
      %p2507 = scmp.lt.s32.totalorder %s47, 1
      %s2508 = scalar_select %p2507, %s47, 1
      %p2509 = scmp.lt.s32.totalorder %s48, 0
      %s2510 = scalar_select %p2509, %s48, 0
      %s2511 = sadd.s32 %s2510, %s2508
      %s2512 = smul.addr %s2511, 8
      %s2513 = scalar_lea.vmem %s22, %s2512
      // Predicated region
      $region101: #{encoder_decoder_forward.11} parent=99 // pred_check
        %p2514 = pneg %p505
      $region102: #{encoder_decoder_forward.11} parent=99 // pred_check_branch
        %2516 = sbr.rel (%p2514) target = $region104
      $region103: #{encoder_decoder_forward.11} parent=99 // pred_region
        _
      $region104: #{encoder_decoder_forward.11} parent=99 // pred_fallthru
        _
    $region100: #{encoder_decoder_forward.11} parent=5 // pred_fallthru
      _
    %p2517 = scmp.le.s32.totalorder 2, %s38
    // Predicated region
    $region105: #{encoder_decoder_forward.11} parent=5 // pred_check
      %p2518 = pneg %p2517
    $region106: #{encoder_decoder_forward.11} parent=5 // pred_check_branch
      %2520 = sbr.rel (%p2518) target = $region108
    $region107: #{encoder_decoder_forward.11} parent=5 // pred_region
      %s2521 = ssub.s32 %s38, 2
      // Predicated region
      $region109: #{encoder_decoder_forward.11} parent=107 // pred_check
        %p2522 = pneg %p511
      $region110: #{encoder_decoder_forward.11} parent=107 // pred_check_branch
        %2524 = sbr.rel (%p2522) target = $region112
      $region111: #{encoder_decoder_forward.11} parent=107 // pred_region
        %p2525 = scmp.lt.s32.totalorder %s49, 1
        %s2526 = scalar_select %p2525, %s49, 1
        %p2527 = scmp.lt.s32.totalorder %s50, 0
        %s2528 = scalar_select %p2527, %s50, 0
        %s2529 = sadd.s32 %s2528, %s2526
        %s2530 = smul.addr %s2529, 8
        %s2531 = scalar_lea.vmem %s22, %s2530
      $region112: #{encoder_decoder_forward.11} parent=107 // pred_fallthru
        _
    $region108: #{encoder_decoder_forward.11} parent=5 // pred_fallthru
      _
  $region6: #{encoder_decoder_forward.11} parent=0 // loop_footer
    %s42 = sadd.s32 1, %s38
  $region7: #{encoder_decoder_forward.11} parent=0 // loop_footer_branch
    %37 = sbr.rel target = $region3
  $region8: #{encoder_decoder_forward.11} parent=0 // loop_exit
    _

</llo_original>
